<compile_context>
chip_gen: v7x
topology: tpu7x:2x2x1
jax: 0.10.0
libtpu: 0.0.40
codegen_flags: <defaults>
</compile_context>

<pallas_src>
import functools

import jax
import jax.numpy as jnp
from jax import lax
from jax.experimental import pallas as pl
from jax.experimental.pallas import tpu as pltpu


# ----------------------------------------------------------------------------
# Pallas kernel
# ----------------------------------------------------------------------------
def _fcm_group_step(xaug, u, *, m, D):
    """One fuzzy-c-means iteration for one group; u: (B, K, N), xaug: (B, D+1, N)."""
    # ---- center update: one batched MXU matmul gives numerator AND denominator
    w = u * u if m == 2 else u ** m                                   # (B, K, N)
    moments = jnp.einsum("bkn,bdn->bkd", w, xaug,
                         preferred_element_type=jnp.float32)          # (B, K, D+1)
    denom = jnp.maximum(moments[..., D:D + 1], 1e-30)                 # starved-cluster guard
    centers = moments[..., :D] / denom                                # exact divide (tiny tile)

    # ---- membership update: 1 / dist^(2/(m-1)), normalized over K
    # TODO(synk): for large D (real PatchEmbed widths) switch dist2 to the MXU
    # form ||x||^2 - 2 c.x + ||c||^2 instead of the per-dim FMA loop.
    dist2 = jnp.full(u.shape, 1e-12, jnp.float32)                     # x == center guard
    for d in range(D):
        diff = xaug[:, d:d + 1, :] - centers[:, :, d:d + 1]           # fused broadcasts
        dist2 = dist2 + diff * diff
    if m == 2:
        inv = pl.reciprocal(dist2, approx=True)                       # EUP; == dist^(-2/(m-1))
    else:
        inv = dist2 ** (-1.0 / (m - 1.0))
    u_new = inv * pl.reciprocal(jnp.sum(inv, axis=1, keepdims=True), approx=False)
    return u_new, centers


def _fcm_kernel(xaug_ref, u_ref, memb_ref, cent_ref, *,
                m, max_iter, epsilon, check_every, group_sizes, D, K):
    eps2 = float(epsilon) * float(epsilon)
    n_groups = len(group_sizes)

    # Loop-invariant inputs, split per group (static slices on the leading axis).
    xaug_gs, u0_gs = [], []
    off = 0
    for gs in group_sizes:
        xaug_gs.append(xaug_ref[pl.ds(off, gs), :, :].astype(jnp.float32))
        u0_gs.append(u_ref[pl.ds(off, gs), :, :].astype(jnp.float32))
        off += gs

    def cond(carry):
        it, _, _, convs = carry
        all_conv = convs[0]
        for g in range(1, n_groups):
            all_conv = jnp.logical_and(all_conv, convs[g])
        return jnp.logical_and(it < max_iter, jnp.logical_not(all_conv))

    def body(carry):
        it, us, cents, convs = carry
        new_us, new_cents, new_convs = [], [], []
        for g in range(n_groups):
            u = us[g]
            cent = cents[g]
            u_dp = u_dc = None
            for step in range(check_every):
                u_prev = u
                u, cent = _fcm_group_step(xaug_gs[g], u, m=m, D=D)
                if step == max(check_every - 2, 0):
                    # Delta one step before the end of the block so the
                    # (B,K,N)->scalar reduce overlaps the final fcm step.
                    u_dp, u_dc = u_prev, u
            delta2 = jnp.sum((u_dp - u_dc) ** 2)
            conv_now = delta2 < eps2
            if check_every == 1:
                conv_now = jnp.logical_and(it >= 1, conv_now)  # ref skips iter-0 check
            # Freeze groups that had already converged at the start of this block.
            new_us.append(jnp.where(convs[g], us[g], u))
            new_cents.append(jnp.where(convs[g], cents[g], cent))
            new_convs.append(jnp.logical_or(convs[g], conv_now))
        return (it + check_every, tuple(new_us), tuple(new_cents), tuple(new_convs))

    init = (jnp.int32(0),
            tuple(u0_gs),
            tuple(jnp.zeros((gs, K, D), jnp.float32) for gs in group_sizes),
            tuple(jnp.array(False) for _ in group_sizes))
    _, us, cents, _ = lax.while_loop(cond, body, init)

    off = 0
    for g, gs in enumerate(group_sizes):
        memb_ref[pl.ds(off, gs), :, :] = us[g]
        cent_ref[pl.ds(off, gs), :, :] = cents[g]
        off += gs


# ----------------------------------------------------------------------------
# Host wrapper
# ----------------------------------------------------------------------------
def _default_num_programs(n_groups):
    # 1 lockstep program on single-TensorCore chips (v5e / v6e); one program per
    # TensorCore on dual-TC v7x so both cores stay busy.
    try:
        kind = jax.devices()[0].device_kind.lower()
    except Exception:
        kind = ""
    return n_groups if ("v7" in kind and n_groups > 1) else 1


def fuzzy_c_means_tpu(problems, *, m=2, max_iter=1000, epsilon=1e-6,
                      check_every=8, num_programs=None):
    """problems: list of (x, u0) pairs; x (B, D, N) f32, u0 (B, K, N) f32.
    Each entry corresponds to ONE reference fuzzy_c_means call: its B batch
    elements iterate in lockstep and share a single Frobenius-norm convergence
    test, like the PyTorch reference.  All entries share one pallas_call.
    Returns a list of (memberships (B, K, N), centers (B, D, K))."""
    assert len(problems) >= 1 and check_every >= 1
    xs = [jnp.asarray(x, jnp.float32) for x, _ in problems]
    us = [jnp.asarray(u, jnp.float32) for _, u in problems]
    B, D, N = xs[0].shape
    K = us[0].shape[1]
    for x_g, u_g in zip(xs, us):
        assert x_g.shape == (B, D, N) and u_g.shape == (B, K, N)

    group_sizes = tuple(x_g.shape[0] for x_g in xs)
    n_groups = len(group_sizes)
    p_total = sum(group_sizes)

    # Augmented points kept lane-dense as (D+1, N): ones row folded into the
    # center-update matmul, no (N, D+1) transpose (which pads 5 -> 128 lanes).
    xaug = jnp.concatenate(
        [jnp.concatenate([x_g, jnp.ones((B, 1, N), jnp.float32)], axis=1)
         for x_g in xs], axis=0)                                    # (P, D+1, N)
    u0 = jnp.concatenate(us, axis=0)                                # (P, K, N)

    n_prog = _default_num_programs(n_groups) if num_programs is None else num_programs
    n_prog = max(1, min(int(n_prog), n_groups))
    if n_groups % n_prog != 0 or len(set(group_sizes)) != 1:
        n_prog = 1
    p_per_prog = p_total // n_prog
    prog_group_sizes = group_sizes[: n_groups // n_prog]

    kernel = functools.partial(
        _fcm_kernel, m=m, max_iter=max_iter, epsilon=epsilon,
        check_every=check_every, group_sizes=prog_group_sizes, D=D, K=K)

    # TODO(synk): at real image sizes (N ~ 1e4-1e5) set vmem_limit_bytes and
    # pipeline_mode=pl.Buffered(1) on the big input specs (each block is read
    # exactly once per program, so double-buffering only doubles resident VMEM).
    memb, cent = pl.pallas_call(
        kernel,
        out_shape=(jax.ShapeDtypeStruct((p_total, K, N), jnp.float32),
                   jax.ShapeDtypeStruct((p_total, K, D), jnp.float32)),
        grid=(n_prog,),
        in_specs=[pl.BlockSpec((p_per_prog, D + 1, N), lambda i: (i, 0, 0)),
                  pl.BlockSpec((p_per_prog, K, N), lambda i: (i, 0, 0))],
        out_specs=(pl.BlockSpec((p_per_prog, K, N), lambda i: (i, 0, 0)),
                   pl.BlockSpec((p_per_prog, K, D), lambda i: (i, 0, 0))),
        compiler_params=pltpu.CompilerParams(
            dimension_semantics=("parallel",)),
    )(xaug, u0)

    out = []
    off = 0
    for gs in group_sizes:
        out.append((memb[off:off + gs],
                    jnp.transpose(cent[off:off + gs], (0, 2, 1))))   # (B, D, K)
        off += gs
    return out


# ----------------------------------------------------------------------------
# Plain-JAX glue (membership init + index compaction)
# ----------------------------------------------------------------------------
def initialize_memberships(key, batch, n_points, n_clusters):
    u = jax.random.uniform(key, (batch, n_points, n_clusters), dtype=jnp.float32)
    return u / jnp.sum(u, axis=2, keepdims=True)


def _compact_indices(mask_row):
    """Indices where mask is True, packed to the front, padded with -1."""
    n = mask_row.shape[0]
    idx = jnp.arange(n, dtype=jnp.int32)
    order = jnp.argsort(jnp.where(mask_row, idx, idx + n)).astype(jnp.int32)
    count = jnp.sum(mask_row.astype(jnp.int32))
    return jnp.where(idx < count, order, jnp.int32(-1))


def build_hyperedge_indices(memberships, threshold):
    # memberships: (B, N, K)
    mask = memberships > threshold
    hyperedge_matrix = jax.vmap(jax.vmap(_compact_indices))(
        jnp.transpose(mask, (0, 2, 1)))                              # (B, K, N)
    point_hyperedge_index = jax.vmap(jax.vmap(_compact_indices))(mask)  # (B, N, K)
    return hyperedge_matrix, point_hyperedge_index


# ----------------------------------------------------------------------------
# Forward pass of ImageToHypergraph
# ----------------------------------------------------------------------------
def image_to_hypergraph_forward(x, *, num_clusters=10, threshold=0.5, m=2,
                                init_keys=None):
    B, C, H, W = x.shape
    # TODO(synk): AddRandomWalkPE / PatchEmbed ("self.PE") are undefined in the
    # reference module; both are treated as identity so x_embed == x.
    x_embed = x

    ys = jnp.arange(H, dtype=jnp.int32)
    xs = jnp.arange(W, dtype=jnp.int32)
    yg, xg = jnp.meshgrid(ys, xs, indexing="ij")
    patch_positions = jnp.stack([yg.ravel(), xg.ravel()], axis=1)    # (H*W, 2)

    N = H * W
    k1, k2 = init_keys

    x1_bdn = x_embed.reshape(B, C, N)                    # x_embed.flatten(2)
    # TODO(synk): the reference calls fuzzy_c_means on raw NCHW x, which only
    # type-checks when W == 1; it is applied to the flattened (B, C, H*W) image
    # here, with an independent random membership init.
    x2_bdn = x.reshape(B, C, N)

    u1 = jnp.transpose(initialize_memberships(k1, B, N, num_clusters), (0, 2, 1))
    u2 = jnp.transpose(initialize_memberships(k2, B, N, 10), (0, 2, 1))

    if num_clusters == 10 and m == 2:
        # Both reference fuzzy_c_means calls share one pallas_call: problems
        # iterate in lockstep with per-call convergence masks (one program on
        # single-TC chips, one program per TensorCore on v7x).
        (memb1_kn, centers1), (_, centers2) = fuzzy_c_means_tpu(
            [(x1_bdn, u1), (x2_bdn, u2)], m=2, max_iter=1000, epsilon=1e-6)
    else:
        [(memb1_kn, centers1)] = fuzzy_c_means_tpu(
            [(x1_bdn, u1)], m=m, max_iter=1000, epsilon=1e-6)
        [(_, centers2)] = fuzzy_c_means_tpu(
            [(x2_bdn, u2)], m=2, max_iter=1000, epsilon=1e-6)

    memberships = jnp.transpose(memb1_kn, (0, 2, 1))                 # (B, N, K)
    hyperedge_matrix, point_full = build_hyperedge_indices(memberships, threshold)
    # TODO(synk): the reference trims point_hyperedge_index to a data-dependent
    # max membership count (a host sync right after the kernel); a static bound
    # of K columns is used instead -- extra columns are -1 padding.
    point_hyperedge_index = point_full                               # (B, N, K)
    hyperedge_features = centers1                                    # (B, C, K)

    return (hyperedge_matrix, point_hyperedge_index, hyperedge_features,
            patch_positions, (H, W), x_embed, centers2)


if __name__ == "__main__":
    key = jax.random.PRNGKey(0)
    kx, k1, k2 = jax.random.split(key, 3)

    B, C, H, W = 2, 4, 16, 16
    x = jax.random.normal(kx, (B, C, H, W), dtype=jnp.float32)

    (hyperedge_matrix, point_hyperedge_index, hyperedge_features,
     patch_positions, hw, x_embed, centers2) = image_to_hypergraph_forward(
        x, num_clusters=10, threshold=0.5, m=2, init_keys=(k1, k2))

    jax.block_until_ready((hyperedge_matrix, point_hyperedge_index,
                           hyperedge_features, patch_positions, x_embed,
                           centers2))
    print("KERNEL_OK")
</pallas_src>

<mosaic_0001>
module attributes {stable_mosaic.version = 11 : i64} {
  func.func @_fcm_kernel(%arg0: i32, %arg1: memref<4x5x256xf32, #tpu.memory_space<vmem>>, %arg2: memref<4x10x256xf32, #tpu.memory_space<vmem>>, %arg3: memref<4x10x256xf32, #tpu.memory_space<vmem>>, %arg4: memref<4x10x4xf32, #tpu.memory_space<vmem>>) attributes {dimension_semantics = [#tpu.dimension_semantics<parallel>], iteration_bounds = array<i64: 1>, scalar_prefetch = 0 : i64, scratch_operands = 0 : i64, tpu.core_type = #tpu.core_type<tc>, window_params = [{transform_indices = @transform_0, window_bounds = array<i64: 4, 5, 256>}, {transform_indices = @transform_1, window_bounds = array<i64: 4, 10, 256>}, {transform_indices = @transform_2, window_bounds = array<i64: 4, 10, 256>}, {transform_indices = @transform_3, window_bounds = array<i64: 4, 10, 4>}]} {
    %c0 = arith.constant 0 : index
    %c0_0 = arith.constant 0 : index
    %c0_1 = arith.constant 0 : index
    %0 = vector.load %arg1[%c0, %c0_0, %c0_1] : memref<4x5x256xf32, #tpu.memory_space<vmem>>, vector<2x5x256xf32>
    %c0_2 = arith.constant 0 : index
    %c0_3 = arith.constant 0 : index
    %c0_4 = arith.constant 0 : index
    %1 = vector.load %arg2[%c0_2, %c0_3, %c0_4] : memref<4x10x256xf32, #tpu.memory_space<vmem>>, vector<2x10x256xf32>
    %c2 = arith.constant 2 : index
    %c0_5 = arith.constant 0 : index
    %c0_6 = arith.constant 0 : index
    %2 = vector.load %arg1[%c2, %c0_5, %c0_6] : memref<4x5x256xf32, #tpu.memory_space<vmem>>, vector<2x5x256xf32>
    %c2_7 = arith.constant 2 : index
    %c0_8 = arith.constant 0 : index
    %c0_9 = arith.constant 0 : index
    %3 = vector.load %arg2[%c2_7, %c0_8, %c0_9] : memref<4x10x256xf32, #tpu.memory_space<vmem>>, vector<2x10x256xf32>
    %cst = arith.constant 0.000000e+00 : f32
    %4 = vector.broadcast %cst : f32 to vector<2x10x4xf32>
    %cst_10 = arith.constant 0.000000e+00 : f32
    %5 = vector.broadcast %cst_10 : f32 to vector<2x10x4xf32>
    %c0_i32 = arith.constant 0 : i32
    %false = arith.constant false
    %false_11 = arith.constant false
    %6:7 = scf.while (%arg5 = %c0_i32, %arg6 = %1, %arg7 = %3, %arg8 = %4, %arg9 = %5, %arg10 = %false, %arg11 = %false_11) : (i32, vector<2x10x256xf32>, vector<2x10x256xf32>, vector<2x10x4xf32>, vector<2x10x4xf32>, i1, i1) -> (i32, vector<2x10x256xf32>, vector<2x10x256xf32>, vector<2x10x4xf32>, vector<2x10x4xf32>, i1, i1) {
      %11 = arith.andi %arg10, %arg11 : i1
      %c1000_i32 = arith.constant 1000 : i32
      %12 = arith.cmpi slt, %arg5, %c1000_i32 : i32
      %true = arith.constant true
      %13 = arith.xori %11, %true : i1
      %14 = arith.andi %12, %13 : i1
      scf.condition(%14) %arg5, %arg6, %arg7, %arg8, %arg9, %arg10, %arg11 : i32, vector<2x10x256xf32>, vector<2x10x256xf32>, vector<2x10x4xf32>, vector<2x10x4xf32>, i1, i1
    } do {
    ^bb0(%arg5: i32, %arg6: vector<2x10x256xf32>, %arg7: vector<2x10x256xf32>, %arg8: vector<2x10x4xf32>, %arg9: vector<2x10x4xf32>, %arg10: i1, %arg11: i1):
      %11 = arith.mulf %arg6, %arg6 : vector<2x10x256xf32>
      "tpu.trace_start"() <{level = 10 : i32, message = "bkn,bdn->bkd"}> : () -> ()
      %cst_24 = arith.constant dense<0.000000e+00> : vector<2x10x5xf32>
      %12 = tpu.matmul %11, %0, %cst_24 {dimension_numbers = #tpu.dot_dimension_numbers<[2], [2], [1], [1], [0, 0, 0, 1, 1, 1], [0], [0]>} : vector<2x10x256xf32>, vector<2x5x256xf32>, vector<2x10x5xf32> -> vector<2x10x5xf32>
      "tpu.trace_stop"() : () -> ()
      %13 = vector.extract_strided_slice %12 {offsets = [0, 0, 4], sizes = [2, 10, 1], strides = [1, 1, 1]} : vector<2x10x5xf32> to vector<2x10x1xf32>
      %cst_25 = arith.constant 1.000000e-30 : f32
      %14 = vector.broadcast %cst_25 : f32 to vector<2x10x1xf32>
      %15 = arith.maximumf %13, %14 : vector<2x10x1xf32>
      %16 = vector.extract_strided_slice %12 {offsets = [0, 0, 0], sizes = [2, 10, 4], strides = [1, 1, 1]} : vector<2x10x5xf32> to vector<2x10x4xf32>
      %17 = vector.broadcast %15 : vector<2x10x1xf32> to vector<2x10x4xf32>
      %18 = arith.divf %16, %17 : vector<2x10x4xf32>
      %cst_26 = arith.constant 9.99999996E-13 : f32
      %19 = vector.broadcast %cst_26 : f32 to vector<2x10x256xf32>
      %20 = vector.extract_strided_slice %0 {offsets = [0, 0, 0], sizes = [2, 1, 256], strides = [1, 1, 1]} : vector<2x5x256xf32> to vector<2x1x256xf32>
      %21 = vector.extract_strided_slice %18 {offsets = [0, 0, 0], sizes = [2, 10, 1], strides = [1, 1, 1]} : vector<2x10x4xf32> to vector<2x10x1xf32>
      %22 = vector.broadcast %20 : vector<2x1x256xf32> to vector<2x10x256xf32>
      %23 = vector.broadcast %21 : vector<2x10x1xf32> to vector<2x10x256xf32>
      %24 = arith.subf %22, %23 : vector<2x10x256xf32>
      %25 = arith.mulf %24, %24 : vector<2x10x256xf32>
      %26 = arith.addf %19, %25 : vector<2x10x256xf32>
      %27 = vector.extract_strided_slice %0 {offsets = [0, 1, 0], sizes = [2, 1, 256], strides = [1, 1, 1]} : vector<2x5x256xf32> to vector<2x1x256xf32>
      %28 = vector.extract_strided_slice %18 {offsets = [0, 0, 1], sizes = [2, 10, 1], strides = [1, 1, 1]} : vector<2x10x4xf32> to vector<2x10x1xf32>
      %29 = vector.broadcast %27 : vector<2x1x256xf32> to vector<2x10x256xf32>
      %30 = vector.broadcast %28 : vector<2x10x1xf32> to vector<2x10x256xf32>
      %31 = arith.subf %29, %30 : vector<2x10x256xf32>
      %32 = arith.mulf %31, %31 : vector<2x10x256xf32>
      %33 = arith.addf %26, %32 : vector<2x10x256xf32>
      %34 = vector.extract_strided_slice %0 {offsets = [0, 2, 0], sizes = [2, 1, 256], strides = [1, 1, 1]} : vector<2x5x256xf32> to vector<2x1x256xf32>
      %35 = vector.extract_strided_slice %18 {offsets = [0, 0, 2], sizes = [2, 10, 1], strides = [1, 1, 1]} : vector<2x10x4xf32> to vector<2x10x1xf32>
      %36 = vector.broadcast %34 : vector<2x1x256xf32> to vector<2x10x256xf32>
      %37 = vector.broadcast %35 : vector<2x10x1xf32> to vector<2x10x256xf32>
      %38 = arith.subf %36, %37 : vector<2x10x256xf32>
      %39 = arith.mulf %38, %38 : vector<2x10x256xf32>
      %40 = arith.addf %33, %39 : vector<2x10x256xf32>
      %41 = vector.extract_strided_slice %0 {offsets = [0, 3, 0], sizes = [2, 1, 256], strides = [1, 1, 1]} : vector<2x5x256xf32> to vector<2x1x256xf32>
      %42 = vector.extract_strided_slice %18 {offsets = [0, 0, 3], sizes = [2, 10, 1], strides = [1, 1, 1]} : vector<2x10x4xf32> to vector<2x10x1xf32>
      %43 = vector.broadcast %41 : vector<2x1x256xf32> to vector<2x10x256xf32>
      %44 = vector.broadcast %42 : vector<2x10x1xf32> to vector<2x10x256xf32>
      %45 = arith.subf %43, %44 : vector<2x10x256xf32>
      %46 = arith.mulf %45, %45 : vector<2x10x256xf32>
      %47 = arith.addf %40, %46 : vector<2x10x256xf32>
      %48 = tpu.reciprocal %47 {approx = true} : vector<2x10x256xf32> -> vector<2x10x256xf32>
      %cst_27 = arith.constant dense<0.000000e+00> : vector<2x256xf32>
      %49 = vector.multi_reduction <add>, %48, %cst_27 [1] : vector<2x10x256xf32> to vector<2x256xf32>
      %50 = vector.shape_cast %49 : vector<2x256xf32> to vector<2x1x256xf32>
      %51 = tpu.reciprocal %50 : vector<2x1x256xf32> -> vector<2x1x256xf32>
      %52 = vector.broadcast %51 : vector<2x1x256xf32> to vector<2x10x256xf32>
      %53 = arith.mulf %48, %52 : vector<2x10x256xf32>
      %54 = arith.mulf %53, %53 : vector<2x10x256xf32>
      "tpu.trace_start"() <{level = 10 : i32, message = "bkn,bdn->bkd"}> : () -> ()
      %cst_28 = arith.constant dense<0.000000e+00> : vector<2x10x5xf32>
      %55 = tpu.matmul %54, %0, %cst_28 {dimension_numbers = #tpu.dot_dimension_numbers<[2], [2], [1], [1], [0, 0, 0, 1, 1, 1], [0], [0]>} : vector<2x10x256xf32>, vector<2x5x256xf32>, vector<2x10x5xf32> -> vector<2x10x5xf32>
      "tpu.trace_stop"() : () -> ()
      %56 = vector.extract_strided_slice %55 {offsets = [0, 0, 4], sizes = [2, 10, 1], strides = [1, 1, 1]} : vector<2x10x5xf32> to vector<2x10x1xf32>
      %cst_29 = arith.constant 1.000000e-30 : f32
      %57 = vector.broadcast %cst_29 : f32 to vector<2x10x1xf32>
      %58 = arith.maximumf %56, %57 : vector<2x10x1xf32>
      %59 = vector.extract_strided_slice %55 {offsets = [0, 0, 0], sizes = [2, 10, 4], strides = [1, 1, 1]} : vector<2x10x5xf32> to vector<2x10x4xf32>
      %60 = vector.broadcast %58 : vector<2x10x1xf32> to vector<2x10x4xf32>
      %61 = arith.divf %59, %60 : vector<2x10x4xf32>
      %cst_30 = arith.constant 9.99999996E-13 : f32
      %62 = vector.broadcast %cst_30 : f32 to vector<2x10x256xf32>
      %63 = vector.extract_strided_slice %0 {offsets = [0, 0, 0], sizes = [2, 1, 256], strides = [1, 1, 1]} : vector<2x5x256xf32> to vector<2x1x256xf32>
      %64 = vector.extract_strided_slice %61 {offsets = [0, 0, 0], sizes = [2, 10, 1], strides = [1, 1, 1]} : vector<2x10x4xf32> to vector<2x10x1xf32>
      %65 = vector.broadcast %63 : vector<2x1x256xf32> to vector<2x10x256xf32>
      %66 = vector.broadcast %64 : vector<2x10x1xf32> to vector<2x10x256xf32>
      %67 = arith.subf %65, %66 : vector<2x10x256xf32>
      %68 = arith.mulf %67, %67 : vector<2x10x256xf32>
      %69 = arith.addf %62, %68 : vector<2x10x256xf32>
      %70 = vector.extract_strided_slice %0 {offsets = [0, 1, 0], sizes = [2, 1, 256], strides = [1, 1, 1]} : vector<2x5x256xf32> to vector<2x1x256xf32>
      %71 = vector.extract_strided_slice %61 {offsets = [0, 0, 1], sizes = [2, 10, 1], strides = [1, 1, 1]} : vector<2x10x4xf32> to vector<2x10x1xf32>
      %72 = vector.broadcast %70 : vector<2x1x256xf32> to vector<2x10x256xf32>
      %73 = vector.broadcast %71 : vector<2x10x1xf32> to vector<2x10x256xf32>
      %74 = arith.subf %72, %73 : vector<2x10x256xf32>
      %75 = arith.mulf %74, %74 : vector<2x10x256xf32>
      %76 = arith.addf %69, %75 : vector<2x10x256xf32>
      %77 = vector.extract_strided_slice %0 {offsets = [0, 2, 0], sizes = [2, 1, 256], strides = [1, 1, 1]} : vector<2x5x256xf32> to vector<2x1x256xf32>
      %78 = vector.extract_strided_slice %61 {offsets = [0, 0, 2], sizes = [2, 10, 1], strides = [1, 1, 1]} : vector<2x10x4xf32> to vector<2x10x1xf32>
      %79 = vector.broadcast %77 : vector<2x1x256xf32> to vector<2x10x256xf32>
      %80 = vector.broadcast %78 : vector<2x10x1xf32> to vector<2x10x256xf32>
      %81 = arith.subf %79, %80 : vector<2x10x256xf32>
      %82 = arith.mulf %81, %81 : vector<2x10x256xf32>
      %83 = arith.addf %76, %82 : vector<2x10x256xf32>
      %84 = vector.extract_strided_slice %0 {offsets = [0, 3, 0], sizes = [2, 1, 256], strides = [1, 1, 1]} : vector<2x5x256xf32> to vector<2x1x256xf32>
      %85 = vector.extract_strided_slice %61 {offsets = [0, 0, 3], sizes = [2, 10, 1], strides = [1, 1, 1]} : vector<2x10x4xf32> to vector<2x10x1xf32>
      %86 = vector.broadcast %84 : vector<2x1x256xf32> to vector<2x10x256xf32>
      %87 = vector.broadcast %85 : vector<2x10x1xf32> to vector<2x10x256xf32>
      %88 = arith.subf %86, %87 : vector<2x10x256xf32>
      %89 = arith.mulf %88, %88 : vector<2x10x256xf32>
      %90 = arith.addf %83, %89 : vector<2x10x256xf32>
      %91 = tpu.reciprocal %90 {approx = true} : vector<2x10x256xf32> -> vector<2x10x256xf32>
      %cst_31 = arith.constant dense<0.000000e+00> : vector<2x256xf32>
      %92 = vector.multi_reduction <add>, %91, %cst_31 [1] : vector<2x10x256xf32> to vector<2x256xf32>
      %93 = vector.shape_cast %92 : vector<2x256xf32> to vector<2x1x256xf32>
      %94 = tpu.reciprocal %93 : vector<2x1x256xf32> -> vector<2x1x256xf32>
      %95 = vector.broadcast %94 : vector<2x1x256xf32> to vector<2x10x256xf32>
      %96 = arith.mulf %91, %95 : vector<2x10x256xf32>
      %97 = arith.mulf %96, %96 : vector<2x10x256xf32>
      "tpu.trace_start"() <{level = 10 : i32, message = "bkn,bdn->bkd"}> : () -> ()
      %cst_32 = arith.constant dense<0.000000e+00> : vector<2x10x5xf32>
      %98 = tpu.matmul %97, %0, %cst_32 {dimension_numbers = #tpu.dot_dimension_numbers<[2], [2], [1], [1], [0, 0, 0, 1, 1, 1], [0], [0]>} : vector<2x10x256xf32>, vector<2x5x256xf32>, vector<2x10x5xf32> -> vector<2x10x5xf32>
      "tpu.trace_stop"() : () -> ()
      %99 = vector.extract_strided_slice %98 {offsets = [0, 0, 4], sizes = [2, 10, 1], strides = [1, 1, 1]} : vector<2x10x5xf32> to vector<2x10x1xf32>
      %cst_33 = arith.constant 1.000000e-30 : f32
      %100 = vector.broadcast %cst_33 : f32 to vector<2x10x1xf32>
      %101 = arith.maximumf %99, %100 : vector<2x10x1xf32>
      %102 = vector.extract_strided_slice %98 {offsets = [0, 0, 0], sizes = [2, 10, 4], strides = [1, 1, 1]} : vector<2x10x5xf32> to vector<2x10x4xf32>
      %103 = vector.broadcast %101 : vector<2x10x1xf32> to vector<2x10x4xf32>
      %104 = arith.divf %102, %103 : vector<2x10x4xf32>
      %cst_34 = arith.constant 9.99999996E-13 : f32
      %105 = vector.broadcast %cst_34 : f32 to vector<2x10x256xf32>
      %106 = vector.extract_strided_slice %0 {offsets = [0, 0, 0], sizes = [2, 1, 256], strides = [1, 1, 1]} : vector<2x5x256xf32> to vector<2x1x256xf32>
      %107 = vector.extract_strided_slice %104 {offsets = [0, 0, 0], sizes = [2, 10, 1], strides = [1, 1, 1]} : vector<2x10x4xf32> to vector<2x10x1xf32>
      %108 = vector.broadcast %106 : vector<2x1x256xf32> to vector<2x10x256xf32>
      %109 = vector.broadcast %107 : vector<2x10x1xf32> to vector<2x10x256xf32>
      %110 = arith.subf %108, %109 : vector<2x10x256xf32>
      %111 = arith.mulf %110, %110 : vector<2x10x256xf32>
      %112 = arith.addf %105, %111 : vector<2x10x256xf32>
      %113 = vector.extract_strided_slice %0 {offsets = [0, 1, 0], sizes = [2, 1, 256], strides = [1, 1, 1]} : vector<2x5x256xf32> to vector<2x1x256xf32>
      %114 = vector.extract_strided_slice %104 {offsets = [0, 0, 1], sizes = [2, 10, 1], strides = [1, 1, 1]} : vector<2x10x4xf32> to vector<2x10x1xf32>
      %115 = vector.broadcast %113 : vector<2x1x256xf32> to vector<2x10x256xf32>
      %116 = vector.broadcast %114 : vector<2x10x1xf32> to vector<2x10x256xf32>
      %117 = arith.subf %115, %116 : vector<2x10x256xf32>
      %118 = arith.mulf %117, %117 : vector<2x10x256xf32>
      %119 = arith.addf %112, %118 : vector<2x10x256xf32>
      %120 = vector.extract_strided_slice %0 {offsets = [0, 2, 0], sizes = [2, 1, 256], strides = [1, 1, 1]} : vector<2x5x256xf32> to vector<2x1x256xf32>
      %121 = vector.extract_strided_slice %104 {offsets = [0, 0, 2], sizes = [2, 10, 1], strides = [1, 1, 1]} : vector<2x10x4xf32> to vector<2x10x1xf32>
      %122 = vector.broadcast %120 : vector<2x1x256xf32> to vector<2x10x256xf32>
      %123 = vector.broadcast %121 : vector<2x10x1xf32> to vector<2x10x256xf32>
      %124 = arith.subf %122, %123 : vector<2x10x256xf32>
      %125 = arith.mulf %124, %124 : vector<2x10x256xf32>
      %126 = arith.addf %119, %125 : vector<2x10x256xf32>
      %127 = vector.extract_strided_slice %0 {offsets = [0, 3, 0], sizes = [2, 1, 256], strides = [1, 1, 1]} : vector<2x5x256xf32> to vector<2x1x256xf32>
      %128 = vector.extract_strided_slice %104 {offsets = [0, 0, 3], sizes = [2, 10, 1], strides = [1, 1, 1]} : vector<2x10x4xf32> to vector<2x10x1xf32>
      %129 = vector.broadcast %127 : vector<2x1x256xf32> to vector<2x10x256xf32>
      %130 = vector.broadcast %128 : vector<2x10x1xf32> to vector<2x10x256xf32>
      %131 = arith.subf %129, %130 : vector<2x10x256xf32>
      %132 = arith.mulf %131, %131 : vector<2x10x256xf32>
      %133 = arith.addf %126, %132 : vector<2x10x256xf32>
      %134 = tpu.reciprocal %133 {approx = true} : vector<2x10x256xf32> -> vector<2x10x256xf32>
      %cst_35 = arith.constant dense<0.000000e+00> : vector<2x256xf32>
      %135 = vector.multi_reduction <add>, %134, %cst_35 [1] : vector<2x10x256xf32> to vector<2x256xf32>
      %136 = vector.shape_cast %135 : vector<2x256xf32> to vector<2x1x256xf32>
      %137 = tpu.reciprocal %136 : vector<2x1x256xf32> -> vector<2x1x256xf32>
      %138 = vector.broadcast %137 : vector<2x1x256xf32> to vector<2x10x256xf32>
      %139 = arith.mulf %134, %138 : vector<2x10x256xf32>
      %140 = arith.mulf %139, %139 : vector<2x10x256xf32>
      "tpu.trace_start"() <{level = 10 : i32, message = "bkn,bdn->bkd"}> : () -> ()
      %cst_36 = arith.constant dense<0.000000e+00> : vector<2x10x5xf32>
      %141 = tpu.matmul %140, %0, %cst_36 {dimension_numbers = #tpu.dot_dimension_numbers<[2], [2], [1], [1], [0, 0, 0, 1, 1, 1], [0], [0]>} : vector<2x10x256xf32>, vector<2x5x256xf32>, vector<2x10x5xf32> -> vector<2x10x5xf32>
      "tpu.trace_stop"() : () -> ()
      %142 = vector.extract_strided_slice %141 {offsets = [0, 0, 4], sizes = [2, 10, 1], strides = [1, 1, 1]} : vector<2x10x5xf32> to vector<2x10x1xf32>
      %cst_37 = arith.constant 1.000000e-30 : f32
      %143 = vector.broadcast %cst_37 : f32 to vector<2x10x1xf32>
      %144 = arith.maximumf %142, %143 : vector<2x10x1xf32>
      %145 = vector.extract_strided_slice %141 {offsets = [0, 0, 0], sizes = [2, 10, 4], strides = [1, 1, 1]} : vector<2x10x5xf32> to vector<2x10x4xf32>
      %146 = vector.broadcast %144 : vector<2x10x1xf32> to vector<2x10x4xf32>
      %147 = arith.divf %145, %146 : vector<2x10x4xf32>
      %cst_38 = arith.constant 9.99999996E-13 : f32
      %148 = vector.broadcast %cst_38 : f32 to vector<2x10x256xf32>
      %149 = vector.extract_strided_slice %0 {offsets = [0, 0, 0], sizes = [2, 1, 256], strides = [1, 1, 1]} : vector<2x5x256xf32> to vector<2x1x256xf32>
      %150 = vector.extract_strided_slice %147 {offsets = [0, 0, 0], sizes = [2, 10, 1], strides = [1, 1, 1]} : vector<2x10x4xf32> to vector<2x10x1xf32>
      %151 = vector.broadcast %149 : vector<2x1x256xf32> to vector<2x10x256xf32>
      %152 = vector.broadcast %150 : vector<2x10x1xf32> to vector<2x10x256xf32>
      %153 = arith.subf %151, %152 : vector<2x10x256xf32>
      %154 = arith.mulf %153, %153 : vector<2x10x256xf32>
      %155 = arith.addf %148, %154 : vector<2x10x256xf32>
      %156 = vector.extract_strided_slice %0 {offsets = [0, 1, 0], sizes = [2, 1, 256], strides = [1, 1, 1]} : vector<2x5x256xf32> to vector<2x1x256xf32>
      %157 = vector.extract_strided_slice %147 {offsets = [0, 0, 1], sizes = [2, 10, 1], strides = [1, 1, 1]} : vector<2x10x4xf32> to vector<2x10x1xf32>
      %158 = vector.broadcast %156 : vector<2x1x256xf32> to vector<2x10x256xf32>
      %159 = vector.broadcast %157 : vector<2x10x1xf32> to vector<2x10x256xf32>
      %160 = arith.subf %158, %159 : vector<2x10x256xf32>
      %161 = arith.mulf %160, %160 : vector<2x10x256xf32>
      %162 = arith.addf %155, %161 : vector<2x10x256xf32>
      %163 = vector.extract_strided_slice %0 {offsets = [0, 2, 0], sizes = [2, 1, 256], strides = [1, 1, 1]} : vector<2x5x256xf32> to vector<2x1x256xf32>
      %164 = vector.extract_strided_slice %147 {offsets = [0, 0, 2], sizes = [2, 10, 1], strides = [1, 1, 1]} : vector<2x10x4xf32> to vector<2x10x1xf32>
      %165 = vector.broadcast %163 : vector<2x1x256xf32> to vector<2x10x256xf32>
      %166 = vector.broadcast %164 : vector<2x10x1xf32> to vector<2x10x256xf32>
      %167 = arith.subf %165, %166 : vector<2x10x256xf32>
      %168 = arith.mulf %167, %167 : vector<2x10x256xf32>
      %169 = arith.addf %162, %168 : vector<2x10x256xf32>
      %170 = vector.extract_strided_slice %0 {offsets = [0, 3, 0], sizes = [2, 1, 256], strides = [1, 1, 1]} : vector<2x5x256xf32> to vector<2x1x256xf32>
      %171 = vector.extract_strided_slice %147 {offsets = [0, 0, 3], sizes = [2, 10, 1], strides = [1, 1, 1]} : vector<2x10x4xf32> to vector<2x10x1xf32>
      %172 = vector.broadcast %170 : vector<2x1x256xf32> to vector<2x10x256xf32>
      %173 = vector.broadcast %171 : vector<2x10x1xf32> to vector<2x10x256xf32>
      %174 = arith.subf %172, %173 : vector<2x10x256xf32>
      %175 = arith.mulf %174, %174 : vector<2x10x256xf32>
      %176 = arith.addf %169, %175 : vector<2x10x256xf32>
      %177 = tpu.reciprocal %176 {approx = true} : vector<2x10x256xf32> -> vector<2x10x256xf32>
      %cst_39 = arith.constant dense<0.000000e+00> : vector<2x256xf32>
      %178 = vector.multi_reduction <add>, %177, %cst_39 [1] : vector<2x10x256xf32> to vector<2x256xf32>
      %179 = vector.shape_cast %178 : vector<2x256xf32> to vector<2x1x256xf32>
      %180 = tpu.reciprocal %179 : vector<2x1x256xf32> -> vector<2x1x256xf32>
      %181 = vector.broadcast %180 : vector<2x1x256xf32> to vector<2x10x256xf32>
      %182 = arith.mulf %177, %181 : vector<2x10x256xf32>
      %183 = arith.mulf %182, %182 : vector<2x10x256xf32>
      "tpu.trace_start"() <{level = 10 : i32, message = "bkn,bdn->bkd"}> : () -> ()
      %cst_40 = arith.constant dense<0.000000e+00> : vector<2x10x5xf32>
      %184 = tpu.matmul %183, %0, %cst_40 {dimension_numbers = #tpu.dot_dimension_numbers<[2], [2], [1], [1], [0, 0, 0, 1, 1, 1], [0], [0]>} : vector<2x10x256xf32>, vector<2x5x256xf32>, vector<2x10x5xf32> -> vector<2x10x5xf32>
      "tpu.trace_stop"() : () -> ()
      %185 = vector.extract_strided_slice %184 {offsets = [0, 0, 4], sizes = [2, 10, 1], strides = [1, 1, 1]} : vector<2x10x5xf32> to vector<2x10x1xf32>
      %cst_41 = arith.constant 1.000000e-30 : f32
      %186 = vector.broadcast %cst_41 : f32 to vector<2x10x1xf32>
      %187 = arith.maximumf %185, %186 : vector<2x10x1xf32>
      %188 = vector.extract_strided_slice %184 {offsets = [0, 0, 0], sizes = [2, 10, 4], strides = [1, 1, 1]} : vector<2x10x5xf32> to vector<2x10x4xf32>
      %189 = vector.broadcast %187 : vector<2x10x1xf32> to vector<2x10x4xf32>
      %190 = arith.divf %188, %189 : vector<2x10x4xf32>
      %cst_42 = arith.constant 9.99999996E-13 : f32
      %191 = vector.broadcast %cst_42 : f32 to vector<2x10x256xf32>
      %192 = vector.extract_strided_slice %0 {offsets = [0, 0, 0], sizes = [2, 1, 256], strides = [1, 1, 1]} : vector<2x5x256xf32> to vector<2x1x256xf32>
      %193 = vector.extract_strided_slice %190 {offsets = [0, 0, 0], sizes = [2, 10, 1], strides = [1, 1, 1]} : vector<2x10x4xf32> to vector<2x10x1xf32>
      %194 = vector.broadcast %192 : vector<2x1x256xf32> to vector<2x10x256xf32>
      %195 = vector.broadcast %193 : vector<2x10x1xf32> to vector<2x10x256xf32>
      %196 = arith.subf %194, %195 : vector<2x10x256xf32>
      %197 = arith.mulf %196, %196 : vector<2x10x256xf32>
      %198 = arith.addf %191, %197 : vector<2x10x256xf32>
      %199 = vector.extract_strided_slice %0 {offsets = [0, 1, 0], sizes = [2, 1, 256], strides = [1, 1, 1]} : vector<2x5x256xf32> to vector<2x1x256xf32>
      %200 = vector.extract_strided_slice %190 {offsets = [0, 0, 1], sizes = [2, 10, 1], strides = [1, 1, 1]} : vector<2x10x4xf32> to vector<2x10x1xf32>
      %201 = vector.broadcast %199 : vector<2x1x256xf32> to vector<2x10x256xf32>
      %202 = vector.broadcast %200 : vector<2x10x1xf32> to vector<2x10x256xf32>
      %203 = arith.subf %201, %202 : vector<2x10x256xf32>
      %204 = arith.mulf %203, %203 : vector<2x10x256xf32>
      %205 = arith.addf %198, %204 : vector<2x10x256xf32>
      %206 = vector.extract_strided_slice %0 {offsets = [0, 2, 0], sizes = [2, 1, 256], strides = [1, 1, 1]} : vector<2x5x256xf32> to vector<2x1x256xf32>
      %207 = vector.extract_strided_slice %190 {offsets = [0, 0, 2], sizes = [2, 10, 1], strides = [1, 1, 1]} : vector<2x10x4xf32> to vector<2x10x1xf32>
      %208 = vector.broadcast %206 : vector<2x1x256xf32> to vector<2x10x256xf32>
      %209 = vector.broadcast %207 : vector<2x10x1xf32> to vector<2x10x256xf32>
      %210 = arith.subf %208, %209 : vector<2x10x256xf32>
      %211 = arith.mulf %210, %210 : vector<2x10x256xf32>
      %212 = arith.addf %205, %211 : vector<2x10x256xf32>
      %213 = vector.extract_strided_slice %0 {offsets = [0, 3, 0], sizes = [2, 1, 256], strides = [1, 1, 1]} : vector<2x5x256xf32> to vector<2x1x256xf32>
      %214 = vector.extract_strided_slice %190 {offsets = [0, 0, 3], sizes = [2, 10, 1], strides = [1, 1, 1]} : vector<2x10x4xf32> to vector<2x10x1xf32>
      %215 = vector.broadcast %213 : vector<2x1x256xf32> to vector<2x10x256xf32>
      %216 = vector.broadcast %214 : vector<2x10x1xf32> to vector<2x10x256xf32>
      %217 = arith.subf %215, %216 : vector<2x10x256xf32>
      %218 = arith.mulf %217, %217 : vector<2x10x256xf32>
      %219 = arith.addf %212, %218 : vector<2x10x256xf32>
      %220 = tpu.reciprocal %219 {approx = true} : vector<2x10x256xf32> -> vector<2x10x256xf32>
      %cst_43 = arith.constant dense<0.000000e+00> : vector<2x256xf32>
      %221 = vector.multi_reduction <add>, %220, %cst_43 [1] : vector<2x10x256xf32> to vector<2x256xf32>
      %222 = vector.shape_cast %221 : vector<2x256xf32> to vector<2x1x256xf32>
      %223 = tpu.reciprocal %222 : vector<2x1x256xf32> -> vector<2x1x256xf32>
      %224 = vector.broadcast %223 : vector<2x1x256xf32> to vector<2x10x256xf32>
      %225 = arith.mulf %220, %224 : vector<2x10x256xf32>
      %226 = arith.mulf %225, %225 : vector<2x10x256xf32>
      "tpu.trace_start"() <{level = 10 : i32, message = "bkn,bdn->bkd"}> : () -> ()
      %cst_44 = arith.constant dense<0.000000e+00> : vector<2x10x5xf32>
      %227 = tpu.matmul %226, %0, %cst_44 {dimension_numbers = #tpu.dot_dimension_numbers<[2], [2], [1], [1], [0, 0, 0, 1, 1, 1], [0], [0]>} : vector<2x10x256xf32>, vector<2x5x256xf32>, vector<2x10x5xf32> -> vector<2x10x5xf32>
      "tpu.trace_stop"() : () -> ()
      %228 = vector.extract_strided_slice %227 {offsets = [0, 0, 4], sizes = [2, 10, 1], strides = [1, 1, 1]} : vector<2x10x5xf32> to vector<2x10x1xf32>
      %cst_45 = arith.constant 1.000000e-30 : f32
      %229 = vector.broadcast %cst_45 : f32 to vector<2x10x1xf32>
      %230 = arith.maximumf %228, %229 : vector<2x10x1xf32>
      %231 = vector.extract_strided_slice %227 {offsets = [0, 0, 0], sizes = [2, 10, 4], strides = [1, 1, 1]} : vector<2x10x5xf32> to vector<2x10x4xf32>
      %232 = vector.broadcast %230 : vector<2x10x1xf32> to vector<2x10x4xf32>
      %233 = arith.divf %231, %232 : vector<2x10x4xf32>
      %cst_46 = arith.constant 9.99999996E-13 : f32
      %234 = vector.broadcast %cst_46 : f32 to vector<2x10x256xf32>
      %235 = vector.extract_strided_slice %0 {offsets = [0, 0, 0], sizes = [2, 1, 256], strides = [1, 1, 1]} : vector<2x5x256xf32> to vector<2x1x256xf32>
      %236 = vector.extract_strided_slice %233 {offsets = [0, 0, 0], sizes = [2, 10, 1], strides = [1, 1, 1]} : vector<2x10x4xf32> to vector<2x10x1xf32>
      %237 = vector.broadcast %235 : vector<2x1x256xf32> to vector<2x10x256xf32>
      %238 = vector.broadcast %236 : vector<2x10x1xf32> to vector<2x10x256xf32>
      %239 = arith.subf %237, %238 : vector<2x10x256xf32>
      %240 = arith.mulf %239, %239 : vector<2x10x256xf32>
      %241 = arith.addf %234, %240 : vector<2x10x256xf32>
      %242 = vector.extract_strided_slice %0 {offsets = [0, 1, 0], sizes = [2, 1, 256], strides = [1, 1, 1]} : vector<2x5x256xf32> to vector<2x1x256xf32>
      %243 = vector.extract_strided_slice %233 {offsets = [0, 0, 1], sizes = [2, 10, 1], strides = [1, 1, 1]} : vector<2x10x4xf32> to vector<2x10x1xf32>
      %244 = vector.broadcast %242 : vector<2x1x256xf32> to vector<2x10x256xf32>
      %245 = vector.broadcast %243 : vector<2x10x1xf32> to vector<2x10x256xf32>
      %246 = arith.subf %244, %245 : vector<2x10x256xf32>
      %247 = arith.mulf %246, %246 : vector<2x10x256xf32>
      %248 = arith.addf %241, %247 : vector<2x10x256xf32>
      %249 = vector.extract_strided_slice %0 {offsets = [0, 2, 0], sizes = [2, 1, 256], strides = [1, 1, 1]} : vector<2x5x256xf32> to vector<2x1x256xf32>
      %250 = vector.extract_strided_slice %233 {offsets = [0, 0, 2], sizes = [2, 10, 1], strides = [1, 1, 1]} : vector<2x10x4xf32> to vector<2x10x1xf32>
      %251 = vector.broadcast %249 : vector<2x1x256xf32> to vector<2x10x256xf32>
      %252 = vector.broadcast %250 : vector<2x10x1xf32> to vector<2x10x256xf32>
      %253 = arith.subf %251, %252 : vector<2x10x256xf32>
      %254 = arith.mulf %253, %253 : vector<2x10x256xf32>
      %255 = arith.addf %248, %254 : vector<2x10x256xf32>
      %256 = vector.extract_strided_slice %0 {offsets = [0, 3, 0], sizes = [2, 1, 256], strides = [1, 1, 1]} : vector<2x5x256xf32> to vector<2x1x256xf32>
      %257 = vector.extract_strided_slice %233 {offsets = [0, 0, 3], sizes = [2, 10, 1], strides = [1, 1, 1]} : vector<2x10x4xf32> to vector<2x10x1xf32>
      %258 = vector.broadcast %256 : vector<2x1x256xf32> to vector<2x10x256xf32>
      %259 = vector.broadcast %257 : vector<2x10x1xf32> to vector<2x10x256xf32>
      %260 = arith.subf %258, %259 : vector<2x10x256xf32>
      %261 = arith.mulf %260, %260 : vector<2x10x256xf32>
      %262 = arith.addf %255, %261 : vector<2x10x256xf32>
      %263 = tpu.reciprocal %262 {approx = true} : vector<2x10x256xf32> -> vector<2x10x256xf32>
      %cst_47 = arith.constant dense<0.000000e+00> : vector<2x256xf32>
      %264 = vector.multi_reduction <add>, %263, %cst_47 [1] : vector<2x10x256xf32> to vector<2x256xf32>
      %265 = vector.shape_cast %264 : vector<2x256xf32> to vector<2x1x256xf32>
      %266 = tpu.reciprocal %265 : vector<2x1x256xf32> -> vector<2x1x256xf32>
      %267 = vector.broadcast %266 : vector<2x1x256xf32> to vector<2x10x256xf32>
      %268 = arith.mulf %263, %267 : vector<2x10x256xf32>
      %269 = arith.mulf %268, %268 : vector<2x10x256xf32>
      "tpu.trace_start"() <{level = 10 : i32, message = "bkn,bdn->bkd"}> : () -> ()
      %cst_48 = arith.constant dense<0.000000e+00> : vector<2x10x5xf32>
      %270 = tpu.matmul %269, %0, %cst_48 {dimension_numbers = #tpu.dot_dimension_numbers<[2], [2], [1], [1], [0, 0, 0, 1, 1, 1], [0], [0]>} : vector<2x10x256xf32>, vector<2x5x256xf32>, vector<2x10x5xf32> -> vector<2x10x5xf32>
      "tpu.trace_stop"() : () -> ()
      %271 = vector.extract_strided_slice %270 {offsets = [0, 0, 4], sizes = [2, 10, 1], strides = [1, 1, 1]} : vector<2x10x5xf32> to vector<2x10x1xf32>
      %cst_49 = arith.constant 1.000000e-30 : f32
      %272 = vector.broadcast %cst_49 : f32 to vector<2x10x1xf32>
      %273 = arith.maximumf %271, %272 : vector<2x10x1xf32>
      %274 = vector.extract_strided_slice %270 {offsets = [0, 0, 0], sizes = [2, 10, 4], strides = [1, 1, 1]} : vector<2x10x5xf32> to vector<2x10x4xf32>
      %275 = vector.broadcast %273 : vector<2x10x1xf32> to vector<2x10x4xf32>
      %276 = arith.divf %274, %275 : vector<2x10x4xf32>
      %cst_50 = arith.constant 9.99999996E-13 : f32
      %277 = vector.broadcast %cst_50 : f32 to vector<2x10x256xf32>
      %278 = vector.extract_strided_slice %0 {offsets = [0, 0, 0], sizes = [2, 1, 256], strides = [1, 1, 1]} : vector<2x5x256xf32> to vector<2x1x256xf32>
      %279 = vector.extract_strided_slice %276 {offsets = [0, 0, 0], sizes = [2, 10, 1], strides = [1, 1, 1]} : vector<2x10x4xf32> to vector<2x10x1xf32>
      %280 = vector.broadcast %278 : vector<2x1x256xf32> to vector<2x10x256xf32>
      %281 = vector.broadcast %279 : vector<2x10x1xf32> to vector<2x10x256xf32>
      %282 = arith.subf %280, %281 : vector<2x10x256xf32>
      %283 = arith.mulf %282, %282 : vector<2x10x256xf32>
      %284 = arith.addf %277, %283 : vector<2x10x256xf32>
      %285 = vector.extract_strided_slice %0 {offsets = [0, 1, 0], sizes = [2, 1, 256], strides = [1, 1, 1]} : vector<2x5x256xf32> to vector<2x1x256xf32>
      %286 = vector.extract_strided_slice %276 {offsets = [0, 0, 1], sizes = [2, 10, 1], strides = [1, 1, 1]} : vector<2x10x4xf32> to vector<2x10x1xf32>
      %287 = vector.broadcast %285 : vector<2x1x256xf32> to vector<2x10x256xf32>
      %288 = vector.broadcast %286 : vector<2x10x1xf32> to vector<2x10x256xf32>
      %289 = arith.subf %287, %288 : vector<2x10x256xf32>
      %290 = arith.mulf %289, %289 : vector<2x10x256xf32>
      %291 = arith.addf %284, %290 : vector<2x10x256xf32>
      %292 = vector.extract_strided_slice %0 {offsets = [0, 2, 0], sizes = [2, 1, 256], strides = [1, 1, 1]} : vector<2x5x256xf32> to vector<2x1x256xf32>
      %293 = vector.extract_strided_slice %276 {offsets = [0, 0, 2], sizes = [2, 10, 1], strides = [1, 1, 1]} : vector<2x10x4xf32> to vector<2x10x1xf32>
      %294 = vector.broadcast %292 : vector<2x1x256xf32> to vector<2x10x256xf32>
      %295 = vector.broadcast %293 : vector<2x10x1xf32> to vector<2x10x256xf32>
      %296 = arith.subf %294, %295 : vector<2x10x256xf32>
      %297 = arith.mulf %296, %296 : vector<2x10x256xf32>
      %298 = arith.addf %291, %297 : vector<2x10x256xf32>
      %299 = vector.extract_strided_slice %0 {offsets = [0, 3, 0], sizes = [2, 1, 256], strides = [1, 1, 1]} : vector<2x5x256xf32> to vector<2x1x256xf32>
      %300 = vector.extract_strided_slice %276 {offsets = [0, 0, 3], sizes = [2, 10, 1], strides = [1, 1, 1]} : vector<2x10x4xf32> to vector<2x10x1xf32>
      %301 = vector.broadcast %299 : vector<2x1x256xf32> to vector<2x10x256xf32>
      %302 = vector.broadcast %300 : vector<2x10x1xf32> to vector<2x10x256xf32>
      %303 = arith.subf %301, %302 : vector<2x10x256xf32>
      %304 = arith.mulf %303, %303 : vector<2x10x256xf32>
      %305 = arith.addf %298, %304 : vector<2x10x256xf32>
      %306 = tpu.reciprocal %305 {approx = true} : vector<2x10x256xf32> -> vector<2x10x256xf32>
      %cst_51 = arith.constant dense<0.000000e+00> : vector<2x256xf32>
      %307 = vector.multi_reduction <add>, %306, %cst_51 [1] : vector<2x10x256xf32> to vector<2x256xf32>
      %308 = vector.shape_cast %307 : vector<2x256xf32> to vector<2x1x256xf32>
      %309 = tpu.reciprocal %308 : vector<2x1x256xf32> -> vector<2x1x256xf32>
      %310 = vector.broadcast %309 : vector<2x1x256xf32> to vector<2x10x256xf32>
      %311 = arith.mulf %306, %310 : vector<2x10x256xf32>
      %312 = arith.mulf %311, %311 : vector<2x10x256xf32>
      "tpu.trace_start"() <{level = 10 : i32, message = "bkn,bdn->bkd"}> : () -> ()
      %cst_52 = arith.constant dense<0.000000e+00> : vector<2x10x5xf32>
      %313 = tpu.matmul %312, %0, %cst_52 {dimension_numbers = #tpu.dot_dimension_numbers<[2], [2], [1], [1], [0, 0, 0, 1, 1, 1], [0], [0]>} : vector<2x10x256xf32>, vector<2x5x256xf32>, vector<2x10x5xf32> -> vector<2x10x5xf32>
      "tpu.trace_stop"() : () -> ()
      %314 = vector.extract_strided_slice %313 {offsets = [0, 0, 4], sizes = [2, 10, 1], strides = [1, 1, 1]} : vector<2x10x5xf32> to vector<2x10x1xf32>
      %cst_53 = arith.constant 1.000000e-30 : f32
      %315 = vector.broadcast %cst_53 : f32 to vector<2x10x1xf32>
      %316 = arith.maximumf %314, %315 : vector<2x10x1xf32>
      %317 = vector.extract_strided_slice %313 {offsets = [0, 0, 0], sizes = [2, 10, 4], strides = [1, 1, 1]} : vector<2x10x5xf32> to vector<2x10x4xf32>
      %318 = vector.broadcast %316 : vector<2x10x1xf32> to vector<2x10x4xf32>
      %319 = arith.divf %317, %318 : vector<2x10x4xf32>
      %cst_54 = arith.constant 9.99999996E-13 : f32
      %320 = vector.broadcast %cst_54 : f32 to vector<2x10x256xf32>
      %321 = vector.extract_strided_slice %0 {offsets = [0, 0, 0], sizes = [2, 1, 256], strides = [1, 1, 1]} : vector<2x5x256xf32> to vector<2x1x256xf32>
      %322 = vector.extract_strided_slice %319 {offsets = [0, 0, 0], sizes = [2, 10, 1], strides = [1, 1, 1]} : vector<2x10x4xf32> to vector<2x10x1xf32>
      %323 = vector.broadcast %321 : vector<2x1x256xf32> to vector<2x10x256xf32>
      %324 = vector.broadcast %322 : vector<2x10x1xf32> to vector<2x10x256xf32>
      %325 = arith.subf %323, %324 : vector<2x10x256xf32>
      %326 = arith.mulf %325, %325 : vector<2x10x256xf32>
      %327 = arith.addf %320, %326 : vector<2x10x256xf32>
      %328 = vector.extract_strided_slice %0 {offsets = [0, 1, 0], sizes = [2, 1, 256], strides = [1, 1, 1]} : vector<2x5x256xf32> to vector<2x1x256xf32>
      %329 = vector.extract_strided_slice %319 {offsets = [0, 0, 1], sizes = [2, 10, 1], strides = [1, 1, 1]} : vector<2x10x4xf32> to vector<2x10x1xf32>
      %330 = vector.broadcast %328 : vector<2x1x256xf32> to vector<2x10x256xf32>
      %331 = vector.broadcast %329 : vector<2x10x1xf32> to vector<2x10x256xf32>
      %332 = arith.subf %330, %331 : vector<2x10x256xf32>
      %333 = arith.mulf %332, %332 : vector<2x10x256xf32>
      %334 = arith.addf %327, %333 : vector<2x10x256xf32>
      %335 = vector.extract_strided_slice %0 {offsets = [0, 2, 0], sizes = [2, 1, 256], strides = [1, 1, 1]} : vector<2x5x256xf32> to vector<2x1x256xf32>
      %336 = vector.extract_strided_slice %319 {offsets = [0, 0, 2], sizes = [2, 10, 1], strides = [1, 1, 1]} : vector<2x10x4xf32> to vector<2x10x1xf32>
      %337 = vector.broadcast %335 : vector<2x1x256xf32> to vector<2x10x256xf32>
      %338 = vector.broadcast %336 : vector<2x10x1xf32> to vector<2x10x256xf32>
      %339 = arith.subf %337, %338 : vector<2x10x256xf32>
      %340 = arith.mulf %339, %339 : vector<2x10x256xf32>
      %341 = arith.addf %334, %340 : vector<2x10x256xf32>
      %342 = vector.extract_strided_slice %0 {offsets = [0, 3, 0], sizes = [2, 1, 256], strides = [1, 1, 1]} : vector<2x5x256xf32> to vector<2x1x256xf32>
      %343 = vector.extract_strided_slice %319 {offsets = [0, 0, 3], sizes = [2, 10, 1], strides = [1, 1, 1]} : vector<2x10x4xf32> to vector<2x10x1xf32>
      %344 = vector.broadcast %342 : vector<2x1x256xf32> to vector<2x10x256xf32>
      %345 = vector.broadcast %343 : vector<2x10x1xf32> to vector<2x10x256xf32>
      %346 = arith.subf %344, %345 : vector<2x10x256xf32>
      %347 = arith.mulf %346, %346 : vector<2x10x256xf32>
      %348 = arith.addf %341, %347 : vector<2x10x256xf32>
      %349 = tpu.reciprocal %348 {approx = true} : vector<2x10x256xf32> -> vector<2x10x256xf32>
      %cst_55 = arith.constant dense<0.000000e+00> : vector<2x256xf32>
      %350 = vector.multi_reduction <add>, %349, %cst_55 [1] : vector<2x10x256xf32> to vector<2x256xf32>
      %351 = vector.shape_cast %350 : vector<2x256xf32> to vector<2x1x256xf32>
      %352 = tpu.reciprocal %351 : vector<2x1x256xf32> -> vector<2x1x256xf32>
      %353 = vector.broadcast %352 : vector<2x1x256xf32> to vector<2x10x256xf32>
      %354 = arith.mulf %349, %353 : vector<2x10x256xf32>
      %355 = arith.subf %268, %311 : vector<2x10x256xf32>
      %356 = arith.mulf %355, %355 : vector<2x10x256xf32>
      %357 = vector.shape_cast %356 : vector<2x10x256xf32> to vector<1x2x10x256xf32>
      %cst_56 = arith.constant dense<0.000000e+00> : vector<1xf32>
      %358 = vector.multi_reduction <add>, %357, %cst_56 [1, 2, 3] : vector<1x2x10x256xf32> to vector<1xf32>
      %359 = vector.shape_cast %358 : vector<1xf32> to vector<1x1x1x1xf32>
      %360 = vector.extract %359[0, 0, 0, 0] : f32 from vector<1x1x1x1xf32>
      %cst_57 = arith.constant 9.99999996E-13 : f32
      %361 = arith.cmpf olt, %360, %cst_57 : f32
      %362 = arith.select %arg10, %arg6, %354 : vector<2x10x256xf32>
      %363 = arith.select %arg10, %arg8, %319 : vector<2x10x4xf32>
      %364 = arith.ori %arg10, %361 : i1
      %365 = arith.mulf %arg7, %arg7 : vector<2x10x256xf32>
      "tpu.trace_start"() <{level = 10 : i32, message = "bkn,bdn->bkd"}> : () -> ()
      %cst_58 = arith.constant dense<0.000000e+00> : vector<2x10x5xf32>
      %366 = tpu.matmul %365, %2, %cst_58 {dimension_numbers = #tpu.dot_dimension_numbers<[2], [2], [1], [1], [0, 0, 0, 1, 1, 1], [0], [0]>} : vector<2x10x256xf32>, vector<2x5x256xf32>, vector<2x10x5xf32> -> vector<2x10x5xf32>
      "tpu.trace_stop"() : () -> ()
      %367 = vector.extract_strided_slice %366 {offsets = [0, 0, 4], sizes = [2, 10, 1], strides = [1, 1, 1]} : vector<2x10x5xf32> to vector<2x10x1xf32>
      %cst_59 = arith.constant 1.000000e-30 : f32
      %368 = vector.broadcast %cst_59 : f32 to vector<2x10x1xf32>
      %369 = arith.maximumf %367, %368 : vector<2x10x1xf32>
      %370 = vector.extract_strided_slice %366 {offsets = [0, 0, 0], sizes = [2, 10, 4], strides = [1, 1, 1]} : vector<2x10x5xf32> to vector<2x10x4xf32>
      %371 = vector.broadcast %369 : vector<2x10x1xf32> to vector<2x10x4xf32>
      %372 = arith.divf %370, %371 : vector<2x10x4xf32>
      %cst_60 = arith.constant 9.99999996E-13 : f32
      %373 = vector.broadcast %cst_60 : f32 to vector<2x10x256xf32>
      %374 = vector.extract_strided_slice %2 {offsets = [0, 0, 0], sizes = [2, 1, 256], strides = [1, 1, 1]} : vector<2x5x256xf32> to vector<2x1x256xf32>
      %375 = vector.extract_strided_slice %372 {offsets = [0, 0, 0], sizes = [2, 10, 1], strides = [1, 1, 1]} : vector<2x10x4xf32> to vector<2x10x1xf32>
      %376 = vector.broadcast %374 : vector<2x1x256xf32> to vector<2x10x256xf32>
      %377 = vector.broadcast %375 : vector<2x10x1xf32> to vector<2x10x256xf32>
      %378 = arith.subf %376, %377 : vector<2x10x256xf32>
      %379 = arith.mulf %378, %378 : vector<2x10x256xf32>
      %380 = arith.addf %373, %379 : vector<2x10x256xf32>
      %381 = vector.extract_strided_slice %2 {offsets = [0, 1, 0], sizes = [2, 1, 256], strides = [1, 1, 1]} : vector<2x5x256xf32> to vector<2x1x256xf32>
      %382 = vector.extract_strided_slice %372 {offsets = [0, 0, 1], sizes = [2, 10, 1], strides = [1, 1, 1]} : vector<2x10x4xf32> to vector<2x10x1xf32>
      %383 = vector.broadcast %381 : vector<2x1x256xf32> to vector<2x10x256xf32>
      %384 = vector.broadcast %382 : vector<2x10x1xf32> to vector<2x10x256xf32>
      %385 = arith.subf %383, %384 : vector<2x10x256xf32>
      %386 = arith.mulf %385, %385 : vector<2x10x256xf32>
      %387 = arith.addf %380, %386 : vector<2x10x256xf32>
      %388 = vector.extract_strided_slice %2 {offsets = [0, 2, 0], sizes = [2, 1, 256], strides = [1, 1, 1]} : vector<2x5x256xf32> to vector<2x1x256xf32>
      %389 = vector.extract_strided_slice %372 {offsets = [0, 0, 2], sizes = [2, 10, 1], strides = [1, 1, 1]} : vector<2x10x4xf32> to vector<2x10x1xf32>
      %390 = vector.broadcast %388 : vector<2x1x256xf32> to vector<2x10x256xf32>
      %391 = vector.broadcast %389 : vector<2x10x1xf32> to vector<2x10x256xf32>
      %392 = arith.subf %390, %391 : vector<2x10x256xf32>
      %393 = arith.mulf %392, %392 : vector<2x10x256xf32>
      %394 = arith.addf %387, %393 : vector<2x10x256xf32>
      %395 = vector.extract_strided_slice %2 {offsets = [0, 3, 0], sizes = [2, 1, 256], strides = [1, 1, 1]} : vector<2x5x256xf32> to vector<2x1x256xf32>
      %396 = vector.extract_strided_slice %372 {offsets = [0, 0, 3], sizes = [2, 10, 1], strides = [1, 1, 1]} : vector<2x10x4xf32> to vector<2x10x1xf32>
      %397 = vector.broadcast %395 : vector<2x1x256xf32> to vector<2x10x256xf32>
      %398 = vector.broadcast %396 : vector<2x10x1xf32> to vector<2x10x256xf32>
      %399 = arith.subf %397, %398 : vector<2x10x256xf32>
      %400 = arith.mulf %399, %399 : vector<2x10x256xf32>
      %401 = arith.addf %394, %400 : vector<2x10x256xf32>
      %402 = tpu.reciprocal %401 {approx = true} : vector<2x10x256xf32> -> vector<2x10x256xf32>
      %cst_61 = arith.constant dense<0.000000e+00> : vector<2x256xf32>
      %403 = vector.multi_reduction <add>, %402, %cst_61 [1] : vector<2x10x256xf32> to vector<2x256xf32>
      %404 = vector.shape_cast %403 : vector<2x256xf32> to vector<2x1x256xf32>
      %405 = tpu.reciprocal %404 : vector<2x1x256xf32> -> vector<2x1x256xf32>
      %406 = vector.broadcast %405 : vector<2x1x256xf32> to vector<2x10x256xf32>
      %407 = arith.mulf %402, %406 : vector<2x10x256xf32>
      %408 = arith.mulf %407, %407 : vector<2x10x256xf32>
      "tpu.trace_start"() <{level = 10 : i32, message = "bkn,bdn->bkd"}> : () -> ()
      %cst_62 = arith.constant dense<0.000000e+00> : vector<2x10x5xf32>
      %409 = tpu.matmul %408, %2, %cst_62 {dimension_numbers = #tpu.dot_dimension_numbers<[2], [2], [1], [1], [0, 0, 0, 1, 1, 1], [0], [0]>} : vector<2x10x256xf32>, vector<2x5x256xf32>, vector<2x10x5xf32> -> vector<2x10x5xf32>
      "tpu.trace_stop"() : () -> ()
      %410 = vector.extract_strided_slice %409 {offsets = [0, 0, 4], sizes = [2, 10, 1], strides = [1, 1, 1]} : vector<2x10x5xf32> to vector<2x10x1xf32>
      %cst_63 = arith.constant 1.000000e-30 : f32
      %411 = vector.broadcast %cst_63 : f32 to vector<2x10x1xf32>
      %412 = arith.maximumf %410, %411 : vector<2x10x1xf32>
      %413 = vector.extract_strided_slice %409 {offsets = [0, 0, 0], sizes = [2, 10, 4], strides = [1, 1, 1]} : vector<2x10x5xf32> to vector<2x10x4xf32>
      %414 = vector.broadcast %412 : vector<2x10x1xf32> to vector<2x10x4xf32>
      %415 = arith.divf %413, %414 : vector<2x10x4xf32>
      %cst_64 = arith.constant 9.99999996E-13 : f32
      %416 = vector.broadcast %cst_64 : f32 to vector<2x10x256xf32>
      %417 = vector.extract_strided_slice %2 {offsets = [0, 0, 0], sizes = [2, 1, 256], strides = [1, 1, 1]} : vector<2x5x256xf32> to vector<2x1x256xf32>
      %418 = vector.extract_strided_slice %415 {offsets = [0, 0, 0], sizes = [2, 10, 1], strides = [1, 1, 1]} : vector<2x10x4xf32> to vector<2x10x1xf32>
      %419 = vector.broadcast %417 : vector<2x1x256xf32> to vector<2x10x256xf32>
      %420 = vector.broadcast %418 : vector<2x10x1xf32> to vector<2x10x256xf32>
      %421 = arith.subf %419, %420 : vector<2x10x256xf32>
      %422 = arith.mulf %421, %421 : vector<2x10x256xf32>
      %423 = arith.addf %416, %422 : vector<2x10x256xf32>
      %424 = vector.extract_strided_slice %2 {offsets = [0, 1, 0], sizes = [2, 1, 256], strides = [1, 1, 1]} : vector<2x5x256xf32> to vector<2x1x256xf32>
      %425 = vector.extract_strided_slice %415 {offsets = [0, 0, 1], sizes = [2, 10, 1], strides = [1, 1, 1]} : vector<2x10x4xf32> to vector<2x10x1xf32>
      %426 = vector.broadcast %424 : vector<2x1x256xf32> to vector<2x10x256xf32>
      %427 = vector.broadcast %425 : vector<2x10x1xf32> to vector<2x10x256xf32>
      %428 = arith.subf %426, %427 : vector<2x10x256xf32>
      %429 = arith.mulf %428, %428 : vector<2x10x256xf32>
      %430 = arith.addf %423, %429 : vector<2x10x256xf32>
      %431 = vector.extract_strided_slice %2 {offsets = [0, 2, 0], sizes = [2, 1, 256], strides = [1, 1, 1]} : vector<2x5x256xf32> to vector<2x1x256xf32>
      %432 = vector.extract_strided_slice %415 {offsets = [0, 0, 2], sizes = [2, 10, 1], strides = [1, 1, 1]} : vector<2x10x4xf32> to vector<2x10x1xf32>
      %433 = vector.broadcast %431 : vector<2x1x256xf32> to vector<2x10x256xf32>
      %434 = vector.broadcast %432 : vector<2x10x1xf32> to vector<2x10x256xf32>
      %435 = arith.subf %433, %434 : vector<2x10x256xf32>
      %436 = arith.mulf %435, %435 : vector<2x10x256xf32>
      %437 = arith.addf %430, %436 : vector<2x10x256xf32>
      %438 = vector.extract_strided_slice %2 {offsets = [0, 3, 0], sizes = [2, 1, 256], strides = [1, 1, 1]} : vector<2x5x256xf32> to vector<2x1x256xf32>
      %439 = vector.extract_strided_slice %415 {offsets = [0, 0, 3], sizes = [2, 10, 1], strides = [1, 1, 1]} : vector<2x10x4xf32> to vector<2x10x1xf32>
      %440 = vector.broadcast %438 : vector<2x1x256xf32> to vector<2x10x256xf32>
      %441 = vector.broadcast %439 : vector<2x10x1xf32> to vector<2x10x256xf32>
      %442 = arith.subf %440, %441 : vector<2x10x256xf32>
      %443 = arith.mulf %442, %442 : vector<2x10x256xf32>
      %444 = arith.addf %437, %443 : vector<2x10x256xf32>
      %445 = tpu.reciprocal %444 {approx = true} : vector<2x10x256xf32> -> vector<2x10x256xf32>
      %cst_65 = arith.constant dense<0.000000e+00> : vector<2x256xf32>
      %446 = vector.multi_reduction <add>, %445, %cst_65 [1] : vector<2x10x256xf32> to vector<2x256xf32>
      %447 = vector.shape_cast %446 : vector<2x256xf32> to vector<2x1x256xf32>
      %448 = tpu.reciprocal %447 : vector<2x1x256xf32> -> vector<2x1x256xf32>
      %449 = vector.broadcast %448 : vector<2x1x256xf32> to vector<2x10x256xf32>
      %450 = arith.mulf %445, %449 : vector<2x10x256xf32>
      %451 = arith.mulf %450, %450 : vector<2x10x256xf32>
      "tpu.trace_start"() <{level = 10 : i32, message = "bkn,bdn->bkd"}> : () -> ()
      %cst_66 = arith.constant dense<0.000000e+00> : vector<2x10x5xf32>
      %452 = tpu.matmul %451, %2, %cst_66 {dimension_numbers = #tpu.dot_dimension_numbers<[2], [2], [1], [1], [0, 0, 0, 1, 1, 1], [0], [0]>} : vector<2x10x256xf32>, vector<2x5x256xf32>, vector<2x10x5xf32> -> vector<2x10x5xf32>
      "tpu.trace_stop"() : () -> ()
      %453 = vector.extract_strided_slice %452 {offsets = [0, 0, 4], sizes = [2, 10, 1], strides = [1, 1, 1]} : vector<2x10x5xf32> to vector<2x10x1xf32>
      %cst_67 = arith.constant 1.000000e-30 : f32
      %454 = vector.broadcast %cst_67 : f32 to vector<2x10x1xf32>
      %455 = arith.maximumf %453, %454 : vector<2x10x1xf32>
      %456 = vector.extract_strided_slice %452 {offsets = [0, 0, 0], sizes = [2, 10, 4], strides = [1, 1, 1]} : vector<2x10x5xf32> to vector<2x10x4xf32>
      %457 = vector.broadcast %455 : vector<2x10x1xf32> to vector<2x10x4xf32>
      %458 = arith.divf %456, %457 : vector<2x10x4xf32>
      %cst_68 = arith.constant 9.99999996E-13 : f32
      %459 = vector.broadcast %cst_68 : f32 to vector<2x10x256xf32>
      %460 = vector.extract_strided_slice %2 {offsets = [0, 0, 0], sizes = [2, 1, 256], strides = [1, 1, 1]} : vector<2x5x256xf32> to vector<2x1x256xf32>
      %461 = vector.extract_strided_slice %458 {offsets = [0, 0, 0], sizes = [2, 10, 1], strides = [1, 1, 1]} : vector<2x10x4xf32> to vector<2x10x1xf32>
      %462 = vector.broadcast %460 : vector<2x1x256xf32> to vector<2x10x256xf32>
      %463 = vector.broadcast %461 : vector<2x10x1xf32> to vector<2x10x256xf32>
      %464 = arith.subf %462, %463 : vector<2x10x256xf32>
      %465 = arith.mulf %464, %464 : vector<2x10x256xf32>
      %466 = arith.addf %459, %465 : vector<2x10x256xf32>
      %467 = vector.extract_strided_slice %2 {offsets = [0, 1, 0], sizes = [2, 1, 256], strides = [1, 1, 1]} : vector<2x5x256xf32> to vector<2x1x256xf32>
      %468 = vector.extract_strided_slice %458 {offsets = [0, 0, 1], sizes = [2, 10, 1], strides = [1, 1, 1]} : vector<2x10x4xf32> to vector<2x10x1xf32>
      %469 = vector.broadcast %467 : vector<2x1x256xf32> to vector<2x10x256xf32>
      %470 = vector.broadcast %468 : vector<2x10x1xf32> to vector<2x10x256xf32>
      %471 = arith.subf %469, %470 : vector<2x10x256xf32>
      %472 = arith.mulf %471, %471 : vector<2x10x256xf32>
      %473 = arith.addf %466, %472 : vector<2x10x256xf32>
      %474 = vector.extract_strided_slice %2 {offsets = [0, 2, 0], sizes = [2, 1, 256], strides = [1, 1, 1]} : vector<2x5x256xf32> to vector<2x1x256xf32>
      %475 = vector.extract_strided_slice %458 {offsets = [0, 0, 2], sizes = [2, 10, 1], strides = [1, 1, 1]} : vector<2x10x4xf32> to vector<2x10x1xf32>
      %476 = vector.broadcast %474 : vector<2x1x256xf32> to vector<2x10x256xf32>
      %477 = vector.broadcast %475 : vector<2x10x1xf32> to vector<2x10x256xf32>
      %478 = arith.subf %476, %477 : vector<2x10x256xf32>
      %479 = arith.mulf %478, %478 : vector<2x10x256xf32>
      %480 = arith.addf %473, %479 : vector<2x10x256xf32>
      %481 = vector.extract_strided_slice %2 {offsets = [0, 3, 0], sizes = [2, 1, 256], strides = [1, 1, 1]} : vector<2x5x256xf32> to vector<2x1x256xf32>
      %482 = vector.extract_strided_slice %458 {offsets = [0, 0, 3], sizes = [2, 10, 1], strides = [1, 1, 1]} : vector<2x10x4xf32> to vector<2x10x1xf32>
      %483 = vector.broadcast %481 : vector<2x1x256xf32> to vector<2x10x256xf32>
      %484 = vector.broadcast %482 : vector<2x10x1xf32> to vector<2x10x256xf32>
      %485 = arith.subf %483, %484 : vector<2x10x256xf32>
      %486 = arith.mulf %485, %485 : vector<2x10x256xf32>
      %487 = arith.addf %480, %486 : vector<2x10x256xf32>
      %488 = tpu.reciprocal %487 {approx = true} : vector<2x10x256xf32> -> vector<2x10x256xf32>
      %cst_69 = arith.constant dense<0.000000e+00> : vector<2x256xf32>
      %489 = vector.multi_reduction <add>, %488, %cst_69 [1] : vector<2x10x256xf32> to vector<2x256xf32>
      %490 = vector.shape_cast %489 : vector<2x256xf32> to vector<2x1x256xf32>
      %491 = tpu.reciprocal %490 : vector<2x1x256xf32> -> vector<2x1x256xf32>
      %492 = vector.broadcast %491 : vector<2x1x256xf32> to vector<2x10x256xf32>
      %493 = arith.mulf %488, %492 : vector<2x10x256xf32>
      %494 = arith.mulf %493, %493 : vector<2x10x256xf32>
      "tpu.trace_start"() <{level = 10 : i32, message = "bkn,bdn->bkd"}> : () -> ()
      %cst_70 = arith.constant dense<0.000000e+00> : vector<2x10x5xf32>
      %495 = tpu.matmul %494, %2, %cst_70 {dimension_numbers = #tpu.dot_dimension_numbers<[2], [2], [1], [1], [0, 0, 0, 1, 1, 1], [0], [0]>} : vector<2x10x256xf32>, vector<2x5x256xf32>, vector<2x10x5xf32> -> vector<2x10x5xf32>
      "tpu.trace_stop"() : () -> ()
      %496 = vector.extract_strided_slice %495 {offsets = [0, 0, 4], sizes = [2, 10, 1], strides = [1, 1, 1]} : vector<2x10x5xf32> to vector<2x10x1xf32>
      %cst_71 = arith.constant 1.000000e-30 : f32
      %497 = vector.broadcast %cst_71 : f32 to vector<2x10x1xf32>
      %498 = arith.maximumf %496, %497 : vector<2x10x1xf32>
      %499 = vector.extract_strided_slice %495 {offsets = [0, 0, 0], sizes = [2, 10, 4], strides = [1, 1, 1]} : vector<2x10x5xf32> to vector<2x10x4xf32>
      %500 = vector.broadcast %498 : vector<2x10x1xf32> to vector<2x10x4xf32>
      %501 = arith.divf %499, %500 : vector<2x10x4xf32>
      %cst_72 = arith.constant 9.99999996E-13 : f32
      %502 = vector.broadcast %cst_72 : f32 to vector<2x10x256xf32>
      %503 = vector.extract_strided_slice %2 {offsets = [0, 0, 0], sizes = [2, 1, 256], strides = [1, 1, 1]} : vector<2x5x256xf32> to vector<2x1x256xf32>
      %504 = vector.extract_strided_slice %501 {offsets = [0, 0, 0], sizes = [2, 10, 1], strides = [1, 1, 1]} : vector<2x10x4xf32> to vector<2x10x1xf32>
      %505 = vector.broadcast %503 : vector<2x1x256xf32> to vector<2x10x256xf32>
      %506 = vector.broadcast %504 : vector<2x10x1xf32> to vector<2x10x256xf32>
      %507 = arith.subf %505, %506 : vector<2x10x256xf32>
      %508 = arith.mulf %507, %507 : vector<2x10x256xf32>
      %509 = arith.addf %502, %508 : vector<2x10x256xf32>
      %510 = vector.extract_strided_slice %2 {offsets = [0, 1, 0], sizes = [2, 1, 256], strides = [1, 1, 1]} : vector<2x5x256xf32> to vector<2x1x256xf32>
      %511 = vector.extract_strided_slice %501 {offsets = [0, 0, 1], sizes = [2, 10, 1], strides = [1, 1, 1]} : vector<2x10x4xf32> to vector<2x10x1xf32>
      %512 = vector.broadcast %510 : vector<2x1x256xf32> to vector<2x10x256xf32>
      %513 = vector.broadcast %511 : vector<2x10x1xf32> to vector<2x10x256xf32>
      %514 = arith.subf %512, %513 : vector<2x10x256xf32>
      %515 = arith.mulf %514, %514 : vector<2x10x256xf32>
      %516 = arith.addf %509, %515 : vector<2x10x256xf32>
      %517 = vector.extract_strided_slice %2 {offsets = [0, 2, 0], sizes = [2, 1, 256], strides = [1, 1, 1]} : vector<2x5x256xf32> to vector<2x1x256xf32>
      %518 = vector.extract_strided_slice %501 {offsets = [0, 0, 2], sizes = [2, 10, 1], strides = [1, 1, 1]} : vector<2x10x4xf32> to vector<2x10x1xf32>
      %519 = vector.broadcast %517 : vector<2x1x256xf32> to vector<2x10x256xf32>
      %520 = vector.broadcast %518 : vector<2x10x1xf32> to vector<2x10x256xf32>
      %521 = arith.subf %519, %520 : vector<2x10x256xf32>
      %522 = arith.mulf %521, %521 : vector<2x10x256xf32>
      %523 = arith.addf %516, %522 : vector<2x10x256xf32>
      %524 = vector.extract_strided_slice %2 {offsets = [0, 3, 0], sizes = [2, 1, 256], strides = [1, 1, 1]} : vector<2x5x256xf32> to vector<2x1x256xf32>
      %525 = vector.extract_strided_slice %501 {offsets = [0, 0, 3], sizes = [2, 10, 1], strides = [1, 1, 1]} : vector<2x10x4xf32> to vector<2x10x1xf32>
      %526 = vector.broadcast %524 : vector<2x1x256xf32> to vector<2x10x256xf32>
      %527 = vector.broadcast %525 : vector<2x10x1xf32> to vector<2x10x256xf32>
      %528 = arith.subf %526, %527 : vector<2x10x256xf32>
      %529 = arith.mulf %528, %528 : vector<2x10x256xf32>
      %530 = arith.addf %523, %529 : vector<2x10x256xf32>
      %531 = tpu.reciprocal %530 {approx = true} : vector<2x10x256xf32> -> vector<2x10x256xf32>
      %cst_73 = arith.constant dense<0.000000e+00> : vector<2x256xf32>
      %532 = vector.multi_reduction <add>, %531, %cst_73 [1] : vector<2x10x256xf32> to vector<2x256xf32>
      %533 = vector.shape_cast %532 : vector<2x256xf32> to vector<2x1x256xf32>
      %534 = tpu.reciprocal %533 : vector<2x1x256xf32> -> vector<2x1x256xf32>
      %535 = vector.broadcast %534 : vector<2x1x256xf32> to vector<2x10x256xf32>
      %536 = arith.mulf %531, %535 : vector<2x10x256xf32>
      %537 = arith.mulf %536, %536 : vector<2x10x256xf32>
      "tpu.trace_start"() <{level = 10 : i32, message = "bkn,bdn->bkd"}> : () -> ()
      %cst_74 = arith.constant dense<0.000000e+00> : vector<2x10x5xf32>
      %538 = tpu.matmul %537, %2, %cst_74 {dimension_numbers = #tpu.dot_dimension_numbers<[2], [2], [1], [1], [0, 0, 0, 1, 1, 1], [0], [0]>} : vector<2x10x256xf32>, vector<2x5x256xf32>, vector<2x10x5xf32> -> vector<2x10x5xf32>
      "tpu.trace_stop"() : () -> ()
      %539 = vector.extract_strided_slice %538 {offsets = [0, 0, 4], sizes = [2, 10, 1], strides = [1, 1, 1]} : vector<2x10x5xf32> to vector<2x10x1xf32>
      %cst_75 = arith.constant 1.000000e-30 : f32
      %540 = vector.broadcast %cst_75 : f32 to vector<2x10x1xf32>
      %541 = arith.maximumf %539, %540 : vector<2x10x1xf32>
      %542 = vector.extract_strided_slice %538 {offsets = [0, 0, 0], sizes = [2, 10, 4], strides = [1, 1, 1]} : vector<2x10x5xf32> to vector<2x10x4xf32>
      %543 = vector.broadcast %541 : vector<2x10x1xf32> to vector<2x10x4xf32>
      %544 = arith.divf %542, %543 : vector<2x10x4xf32>
      %cst_76 = arith.constant 9.99999996E-13 : f32
      %545 = vector.broadcast %cst_76 : f32 to vector<2x10x256xf32>
      %546 = vector.extract_strided_slice %2 {offsets = [0, 0, 0], sizes = [2, 1, 256], strides = [1, 1, 1]} : vector<2x5x256xf32> to vector<2x1x256xf32>
      %547 = vector.extract_strided_slice %544 {offsets = [0, 0, 0], sizes = [2, 10, 1], strides = [1, 1, 1]} : vector<2x10x4xf32> to vector<2x10x1xf32>
      %548 = vector.broadcast %546 : vector<2x1x256xf32> to vector<2x10x256xf32>
      %549 = vector.broadcast %547 : vector<2x10x1xf32> to vector<2x10x256xf32>
      %550 = arith.subf %548, %549 : vector<2x10x256xf32>
      %551 = arith.mulf %550, %550 : vector<2x10x256xf32>
      %552 = arith.addf %545, %551 : vector<2x10x256xf32>
      %553 = vector.extract_strided_slice %2 {offsets = [0, 1, 0], sizes = [2, 1, 256], strides = [1, 1, 1]} : vector<2x5x256xf32> to vector<2x1x256xf32>
      %554 = vector.extract_strided_slice %544 {offsets = [0, 0, 1], sizes = [2, 10, 1], strides = [1, 1, 1]} : vector<2x10x4xf32> to vector<2x10x1xf32>
      %555 = vector.broadcast %553 : vector<2x1x256xf32> to vector<2x10x256xf32>
      %556 = vector.broadcast %554 : vector<2x10x1xf32> to vector<2x10x256xf32>
      %557 = arith.subf %555, %556 : vector<2x10x256xf32>
      %558 = arith.mulf %557, %557 : vector<2x10x256xf32>
      %559 = arith.addf %552, %558 : vector<2x10x256xf32>
      %560 = vector.extract_strided_slice %2 {offsets = [0, 2, 0], sizes = [2, 1, 256], strides = [1, 1, 1]} : vector<2x5x256xf32> to vector<2x1x256xf32>
      %561 = vector.extract_strided_slice %544 {offsets = [0, 0, 2], sizes = [2, 10, 1], strides = [1, 1, 1]} : vector<2x10x4xf32> to vector<2x10x1xf32>
      %562 = vector.broadcast %560 : vector<2x1x256xf32> to vector<2x10x256xf32>
      %563 = vector.broadcast %561 : vector<2x10x1xf32> to vector<2x10x256xf32>
      %564 = arith.subf %562, %563 : vector<2x10x256xf32>
      %565 = arith.mulf %564, %564 : vector<2x10x256xf32>
      %566 = arith.addf %559, %565 : vector<2x10x256xf32>
      %567 = vector.extract_strided_slice %2 {offsets = [0, 3, 0], sizes = [2, 1, 256], strides = [1, 1, 1]} : vector<2x5x256xf32> to vector<2x1x256xf32>
      %568 = vector.extract_strided_slice %544 {offsets = [0, 0, 3], sizes = [2, 10, 1], strides = [1, 1, 1]} : vector<2x10x4xf32> to vector<2x10x1xf32>
      %569 = vector.broadcast %567 : vector<2x1x256xf32> to vector<2x10x256xf32>
      %570 = vector.broadcast %568 : vector<2x10x1xf32> to vector<2x10x256xf32>
      %571 = arith.subf %569, %570 : vector<2x10x256xf32>
      %572 = arith.mulf %571, %571 : vector<2x10x256xf32>
      %573 = arith.addf %566, %572 : vector<2x10x256xf32>
      %574 = tpu.reciprocal %573 {approx = true} : vector<2x10x256xf32> -> vector<2x10x256xf32>
      %cst_77 = arith.constant dense<0.000000e+00> : vector<2x256xf32>
      %575 = vector.multi_reduction <add>, %574, %cst_77 [1] : vector<2x10x256xf32> to vector<2x256xf32>
      %576 = vector.shape_cast %575 : vector<2x256xf32> to vector<2x1x256xf32>
      %577 = tpu.reciprocal %576 : vector<2x1x256xf32> -> vector<2x1x256xf32>
      %578 = vector.broadcast %577 : vector<2x1x256xf32> to vector<2x10x256xf32>
      %579 = arith.mulf %574, %578 : vector<2x10x256xf32>
      %580 = arith.mulf %579, %579 : vector<2x10x256xf32>
      "tpu.trace_start"() <{level = 10 : i32, message = "bkn,bdn->bkd"}> : () -> ()
      %cst_78 = arith.constant dense<0.000000e+00> : vector<2x10x5xf32>
      %581 = tpu.matmul %580, %2, %cst_78 {dimension_numbers = #tpu.dot_dimension_numbers<[2], [2], [1], [1], [0, 0, 0, 1, 1, 1], [0], [0]>} : vector<2x10x256xf32>, vector<2x5x256xf32>, vector<2x10x5xf32> -> vector<2x10x5xf32>
      "tpu.trace_stop"() : () -> ()
      %582 = vector.extract_strided_slice %581 {offsets = [0, 0, 4], sizes = [2, 10, 1], strides = [1, 1, 1]} : vector<2x10x5xf32> to vector<2x10x1xf32>
      %cst_79 = arith.constant 1.000000e-30 : f32
      %583 = vector.broadcast %cst_79 : f32 to vector<2x10x1xf32>
      %584 = arith.maximumf %582, %583 : vector<2x10x1xf32>
      %585 = vector.extract_strided_slice %581 {offsets = [0, 0, 0], sizes = [2, 10, 4], strides = [1, 1, 1]} : vector<2x10x5xf32> to vector<2x10x4xf32>
      %586 = vector.broadcast %584 : vector<2x10x1xf32> to vector<2x10x4xf32>
      %587 = arith.divf %585, %586 : vector<2x10x4xf32>
      %cst_80 = arith.constant 9.99999996E-13 : f32
      %588 = vector.broadcast %cst_80 : f32 to vector<2x10x256xf32>
      %589 = vector.extract_strided_slice %2 {offsets = [0, 0, 0], sizes = [2, 1, 256], strides = [1, 1, 1]} : vector<2x5x256xf32> to vector<2x1x256xf32>
      %590 = vector.extract_strided_slice %587 {offsets = [0, 0, 0], sizes = [2, 10, 1], strides = [1, 1, 1]} : vector<2x10x4xf32> to vector<2x10x1xf32>
      %591 = vector.broadcast %589 : vector<2x1x256xf32> to vector<2x10x256xf32>
      %592 = vector.broadcast %590 : vector<2x10x1xf32> to vector<2x10x256xf32>
      %593 = arith.subf %591, %592 : vector<2x10x256xf32>
      %594 = arith.mulf %593, %593 : vector<2x10x256xf32>
      %595 = arith.addf %588, %594 : vector<2x10x256xf32>
      %596 = vector.extract_strided_slice %2 {offsets = [0, 1, 0], sizes = [2, 1, 256], strides = [1, 1, 1]} : vector<2x5x256xf32> to vector<2x1x256xf32>
      %597 = vector.extract_strided_slice %587 {offsets = [0, 0, 1], sizes = [2, 10, 1], strides = [1, 1, 1]} : vector<2x10x4xf32> to vector<2x10x1xf32>
      %598 = vector.broadcast %596 : vector<2x1x256xf32> to vector<2x10x256xf32>
      %599 = vector.broadcast %597 : vector<2x10x1xf32> to vector<2x10x256xf32>
      %600 = arith.subf %598, %599 : vector<2x10x256xf32>
      %601 = arith.mulf %600, %600 : vector<2x10x256xf32>
      %602 = arith.addf %595, %601 : vector<2x10x256xf32>
      %603 = vector.extract_strided_slice %2 {offsets = [0, 2, 0], sizes = [2, 1, 256], strides = [1, 1, 1]} : vector<2x5x256xf32> to vector<2x1x256xf32>
      %604 = vector.extract_strided_slice %587 {offsets = [0, 0, 2], sizes = [2, 10, 1], strides = [1, 1, 1]} : vector<2x10x4xf32> to vector<2x10x1xf32>
      %605 = vector.broadcast %603 : vector<2x1x256xf32> to vector<2x10x256xf32>
      %606 = vector.broadcast %604 : vector<2x10x1xf32> to vector<2x10x256xf32>
      %607 = arith.subf %605, %606 : vector<2x10x256xf32>
      %608 = arith.mulf %607, %607 : vector<2x10x256xf32>
      %609 = arith.addf %602, %608 : vector<2x10x256xf32>
      %610 = vector.extract_strided_slice %2 {offsets = [0, 3, 0], sizes = [2, 1, 256], strides = [1, 1, 1]} : vector<2x5x256xf32> to vector<2x1x256xf32>
      %611 = vector.extract_strided_slice %587 {offsets = [0, 0, 3], sizes = [2, 10, 1], strides = [1, 1, 1]} : vector<2x10x4xf32> to vector<2x10x1xf32>
      %612 = vector.broadcast %610 : vector<2x1x256xf32> to vector<2x10x256xf32>
      %613 = vector.broadcast %611 : vector<2x10x1xf32> to vector<2x10x256xf32>
      %614 = arith.subf %612, %613 : vector<2x10x256xf32>
      %615 = arith.mulf %614, %614 : vector<2x10x256xf32>
      %616 = arith.addf %609, %615 : vector<2x10x256xf32>
      %617 = tpu.reciprocal %616 {approx = true} : vector<2x10x256xf32> -> vector<2x10x256xf32>
      %cst_81 = arith.constant dense<0.000000e+00> : vector<2x256xf32>
      %618 = vector.multi_reduction <add>, %617, %cst_81 [1] : vector<2x10x256xf32> to vector<2x256xf32>
      %619 = vector.shape_cast %618 : vector<2x256xf32> to vector<2x1x256xf32>
      %620 = tpu.reciprocal %619 : vector<2x1x256xf32> -> vector<2x1x256xf32>
      %621 = vector.broadcast %620 : vector<2x1x256xf32> to vector<2x10x256xf32>
      %622 = arith.mulf %617, %621 : vector<2x10x256xf32>
      %623 = arith.mulf %622, %622 : vector<2x10x256xf32>
      "tpu.trace_start"() <{level = 10 : i32, message = "bkn,bdn->bkd"}> : () -> ()
      %cst_82 = arith.constant dense<0.000000e+00> : vector<2x10x5xf32>
      %624 = tpu.matmul %623, %2, %cst_82 {dimension_numbers = #tpu.dot_dimension_numbers<[2], [2], [1], [1], [0, 0, 0, 1, 1, 1], [0], [0]>} : vector<2x10x256xf32>, vector<2x5x256xf32>, vector<2x10x5xf32> -> vector<2x10x5xf32>
      "tpu.trace_stop"() : () -> ()
      %625 = vector.extract_strided_slice %624 {offsets = [0, 0, 4], sizes = [2, 10, 1], strides = [1, 1, 1]} : vector<2x10x5xf32> to vector<2x10x1xf32>
      %cst_83 = arith.constant 1.000000e-30 : f32
      %626 = vector.broadcast %cst_83 : f32 to vector<2x10x1xf32>
      %627 = arith.maximumf %625, %626 : vector<2x10x1xf32>
      %628 = vector.extract_strided_slice %624 {offsets = [0, 0, 0], sizes = [2, 10, 4], strides = [1, 1, 1]} : vector<2x10x5xf32> to vector<2x10x4xf32>
      %629 = vector.broadcast %627 : vector<2x10x1xf32> to vector<2x10x4xf32>
      %630 = arith.divf %628, %629 : vector<2x10x4xf32>
      %cst_84 = arith.constant 9.99999996E-13 : f32
      %631 = vector.broadcast %cst_84 : f32 to vector<2x10x256xf32>
      %632 = vector.extract_strided_slice %2 {offsets = [0, 0, 0], sizes = [2, 1, 256], strides = [1, 1, 1]} : vector<2x5x256xf32> to vector<2x1x256xf32>
      %633 = vector.extract_strided_slice %630 {offsets = [0, 0, 0], sizes = [2, 10, 1], strides = [1, 1, 1]} : vector<2x10x4xf32> to vector<2x10x1xf32>
      %634 = vector.broadcast %632 : vector<2x1x256xf32> to vector<2x10x256xf32>
      %635 = vector.broadcast %633 : vector<2x10x1xf32> to vector<2x10x256xf32>
      %636 = arith.subf %634, %635 : vector<2x10x256xf32>
      %637 = arith.mulf %636, %636 : vector<2x10x256xf32>
      %638 = arith.addf %631, %637 : vector<2x10x256xf32>
      %639 = vector.extract_strided_slice %2 {offsets = [0, 1, 0], sizes = [2, 1, 256], strides = [1, 1, 1]} : vector<2x5x256xf32> to vector<2x1x256xf32>
      %640 = vector.extract_strided_slice %630 {offsets = [0, 0, 1], sizes = [2, 10, 1], strides = [1, 1, 1]} : vector<2x10x4xf32> to vector<2x10x1xf32>
      %641 = vector.broadcast %639 : vector<2x1x256xf32> to vector<2x10x256xf32>
      %642 = vector.broadcast %640 : vector<2x10x1xf32> to vector<2x10x256xf32>
      %643 = arith.subf %641, %642 : vector<2x10x256xf32>
      %644 = arith.mulf %643, %643 : vector<2x10x256xf32>
      %645 = arith.addf %638, %644 : vector<2x10x256xf32>
      %646 = vector.extract_strided_slice %2 {offsets = [0, 2, 0], sizes = [2, 1, 256], strides = [1, 1, 1]} : vector<2x5x256xf32> to vector<2x1x256xf32>
      %647 = vector.extract_strided_slice %630 {offsets = [0, 0, 2], sizes = [2, 10, 1], strides = [1, 1, 1]} : vector<2x10x4xf32> to vector<2x10x1xf32>
      %648 = vector.broadcast %646 : vector<2x1x256xf32> to vector<2x10x256xf32>
      %649 = vector.broadcast %647 : vector<2x10x1xf32> to vector<2x10x256xf32>
      %650 = arith.subf %648, %649 : vector<2x10x256xf32>
      %651 = arith.mulf %650, %650 : vector<2x10x256xf32>
      %652 = arith.addf %645, %651 : vector<2x10x256xf32>
      %653 = vector.extract_strided_slice %2 {offsets = [0, 3, 0], sizes = [2, 1, 256], strides = [1, 1, 1]} : vector<2x5x256xf32> to vector<2x1x256xf32>
      %654 = vector.extract_strided_slice %630 {offsets = [0, 0, 3], sizes = [2, 10, 1], strides = [1, 1, 1]} : vector<2x10x4xf32> to vector<2x10x1xf32>
      %655 = vector.broadcast %653 : vector<2x1x256xf32> to vector<2x10x256xf32>
      %656 = vector.broadcast %654 : vector<2x10x1xf32> to vector<2x10x256xf32>
      %657 = arith.subf %655, %656 : vector<2x10x256xf32>
      %658 = arith.mulf %657, %657 : vector<2x10x256xf32>
      %659 = arith.addf %652, %658 : vector<2x10x256xf32>
      %660 = tpu.reciprocal %659 {approx = true} : vector<2x10x256xf32> -> vector<2x10x256xf32>
      %cst_85 = arith.constant dense<0.000000e+00> : vector<2x256xf32>
      %661 = vector.multi_reduction <add>, %660, %cst_85 [1] : vector<2x10x256xf32> to vector<2x256xf32>
      %662 = vector.shape_cast %661 : vector<2x256xf32> to vector<2x1x256xf32>
      %663 = tpu.reciprocal %662 : vector<2x1x256xf32> -> vector<2x1x256xf32>
      %664 = vector.broadcast %663 : vector<2x1x256xf32> to vector<2x10x256xf32>
      %665 = arith.mulf %660, %664 : vector<2x10x256xf32>
      %666 = arith.mulf %665, %665 : vector<2x10x256xf32>
      "tpu.trace_start"() <{level = 10 : i32, message = "bkn,bdn->bkd"}> : () -> ()
      %cst_86 = arith.constant dense<0.000000e+00> : vector<2x10x5xf32>
      %667 = tpu.matmul %666, %2, %cst_86 {dimension_numbers = #tpu.dot_dimension_numbers<[2], [2], [1], [1], [0, 0, 0, 1, 1, 1], [0], [0]>} : vector<2x10x256xf32>, vector<2x5x256xf32>, vector<2x10x5xf32> -> vector<2x10x5xf32>
      "tpu.trace_stop"() : () -> ()
      %668 = vector.extract_strided_slice %667 {offsets = [0, 0, 4], sizes = [2, 10, 1], strides = [1, 1, 1]} : vector<2x10x5xf32> to vector<2x10x1xf32>
      %cst_87 = arith.constant 1.000000e-30 : f32
      %669 = vector.broadcast %cst_87 : f32 to vector<2x10x1xf32>
      %670 = arith.maximumf %668, %669 : vector<2x10x1xf32>
      %671 = vector.extract_strided_slice %667 {offsets = [0, 0, 0], sizes = [2, 10, 4], strides = [1, 1, 1]} : vector<2x10x5xf32> to vector<2x10x4xf32>
      %672 = vector.broadcast %670 : vector<2x10x1xf32> to vector<2x10x4xf32>
      %673 = arith.divf %671, %672 : vector<2x10x4xf32>
      %cst_88 = arith.constant 9.99999996E-13 : f32
      %674 = vector.broadcast %cst_88 : f32 to vector<2x10x256xf32>
      %675 = vector.extract_strided_slice %2 {offsets = [0, 0, 0], sizes = [2, 1, 256], strides = [1, 1, 1]} : vector<2x5x256xf32> to vector<2x1x256xf32>
      %676 = vector.extract_strided_slice %673 {offsets = [0, 0, 0], sizes = [2, 10, 1], strides = [1, 1, 1]} : vector<2x10x4xf32> to vector<2x10x1xf32>
      %677 = vector.broadcast %675 : vector<2x1x256xf32> to vector<2x10x256xf32>
      %678 = vector.broadcast %676 : vector<2x10x1xf32> to vector<2x10x256xf32>
      %679 = arith.subf %677, %678 : vector<2x10x256xf32>
      %680 = arith.mulf %679, %679 : vector<2x10x256xf32>
      %681 = arith.addf %674, %680 : vector<2x10x256xf32>
      %682 = vector.extract_strided_slice %2 {offsets = [0, 1, 0], sizes = [2, 1, 256], strides = [1, 1, 1]} : vector<2x5x256xf32> to vector<2x1x256xf32>
      %683 = vector.extract_strided_slice %673 {offsets = [0, 0, 1], sizes = [2, 10, 1], strides = [1, 1, 1]} : vector<2x10x4xf32> to vector<2x10x1xf32>
      %684 = vector.broadcast %682 : vector<2x1x256xf32> to vector<2x10x256xf32>
      %685 = vector.broadcast %683 : vector<2x10x1xf32> to vector<2x10x256xf32>
      %686 = arith.subf %684, %685 : vector<2x10x256xf32>
      %687 = arith.mulf %686, %686 : vector<2x10x256xf32>
      %688 = arith.addf %681, %687 : vector<2x10x256xf32>
      %689 = vector.extract_strided_slice %2 {offsets = [0, 2, 0], sizes = [2, 1, 256], strides = [1, 1, 1]} : vector<2x5x256xf32> to vector<2x1x256xf32>
      %690 = vector.extract_strided_slice %673 {offsets = [0, 0, 2], sizes = [2, 10, 1], strides = [1, 1, 1]} : vector<2x10x4xf32> to vector<2x10x1xf32>
      %691 = vector.broadcast %689 : vector<2x1x256xf32> to vector<2x10x256xf32>
      %692 = vector.broadcast %690 : vector<2x10x1xf32> to vector<2x10x256xf32>
      %693 = arith.subf %691, %692 : vector<2x10x256xf32>
      %694 = arith.mulf %693, %693 : vector<2x10x256xf32>
      %695 = arith.addf %688, %694 : vector<2x10x256xf32>
      %696 = vector.extract_strided_slice %2 {offsets = [0, 3, 0], sizes = [2, 1, 256], strides = [1, 1, 1]} : vector<2x5x256xf32> to vector<2x1x256xf32>
      %697 = vector.extract_strided_slice %673 {offsets = [0, 0, 3], sizes = [2, 10, 1], strides = [1, 1, 1]} : vector<2x10x4xf32> to vector<2x10x1xf32>
      %698 = vector.broadcast %696 : vector<2x1x256xf32> to vector<2x10x256xf32>
      %699 = vector.broadcast %697 : vector<2x10x1xf32> to vector<2x10x256xf32>
      %700 = arith.subf %698, %699 : vector<2x10x256xf32>
      %701 = arith.mulf %700, %700 : vector<2x10x256xf32>
      %702 = arith.addf %695, %701 : vector<2x10x256xf32>
      %703 = tpu.reciprocal %702 {approx = true} : vector<2x10x256xf32> -> vector<2x10x256xf32>
      %cst_89 = arith.constant dense<0.000000e+00> : vector<2x256xf32>
      %704 = vector.multi_reduction <add>, %703, %cst_89 [1] : vector<2x10x256xf32> to vector<2x256xf32>
      %705 = vector.shape_cast %704 : vector<2x256xf32> to vector<2x1x256xf32>
      %706 = tpu.reciprocal %705 : vector<2x1x256xf32> -> vector<2x1x256xf32>
      %707 = vector.broadcast %706 : vector<2x1x256xf32> to vector<2x10x256xf32>
      %708 = arith.mulf %703, %707 : vector<2x10x256xf32>
      %709 = arith.subf %622, %665 : vector<2x10x256xf32>
      %710 = arith.mulf %709, %709 : vector<2x10x256xf32>
      %711 = vector.shape_cast %710 : vector<2x10x256xf32> to vector<1x2x10x256xf32>
      %cst_90 = arith.constant dense<0.000000e+00> : vector<1xf32>
      %712 = vector.multi_reduction <add>, %711, %cst_90 [1, 2, 3] : vector<1x2x10x256xf32> to vector<1xf32>
      %713 = vector.shape_cast %712 : vector<1xf32> to vector<1x1x1x1xf32>
      %714 = vector.extract %713[0, 0, 0, 0] : f32 from vector<1x1x1x1xf32>
      %cst_91 = arith.constant 9.99999996E-13 : f32
      %715 = arith.cmpf olt, %714, %cst_91 : f32
      %716 = arith.select %arg11, %arg7, %708 : vector<2x10x256xf32>
      %717 = arith.select %arg11, %arg9, %673 : vector<2x10x4xf32>
      %718 = arith.ori %arg11, %715 : i1
      %c8_i32 = arith.constant 8 : i32
      %719 = arith.addi %arg5, %c8_i32 : i32
      scf.yield %719, %362, %716, %363, %717, %364, %718 : i32, vector<2x10x256xf32>, vector<2x10x256xf32>, vector<2x10x4xf32>, vector<2x10x4xf32>, i1, i1
    }
    %c0_12 = arith.constant 0 : index
    %c0_13 = arith.constant 0 : index
    %c0_14 = arith.constant 0 : index
    %7 = vector.load %arg3[%c0_12, %c0_13, %c0_14] : memref<4x10x256xf32, #tpu.memory_space<vmem>>, vector<2x10x256xf32>
    tpu.vector_store %arg3[%c0_12, %c0_13, %c0_14], %6#1 {strides = array<i32>} : memref<4x10x256xf32, #tpu.memory_space<vmem>>, vector<2x10x256xf32>,
    %c0_15 = arith.constant 0 : index
    %c0_16 = arith.constant 0 : index
    %c0_17 = arith.constant 0 : index
    %8 = vector.load %arg4[%c0_15, %c0_16, %c0_17] : memref<4x10x4xf32, #tpu.memory_space<vmem>>, vector<2x10x4xf32>
    tpu.vector_store %arg4[%c0_15, %c0_16, %c0_17], %6#3 {strides = array<i32>} : memref<4x10x4xf32, #tpu.memory_space<vmem>>, vector<2x10x4xf32>,
    %c2_18 = arith.constant 2 : index
    %c0_19 = arith.constant 0 : index
    %c0_20 = arith.constant 0 : index
    %9 = vector.load %arg3[%c2_18, %c0_19, %c0_20] : memref<4x10x256xf32, #tpu.memory_space<vmem>>, vector<2x10x256xf32>
    tpu.vector_store %arg3[%c2_18, %c0_19, %c0_20], %6#2 {strides = array<i32>} : memref<4x10x256xf32, #tpu.memory_space<vmem>>, vector<2x10x256xf32>,
    %c2_21 = arith.constant 2 : index
    %c0_22 = arith.constant 0 : index
    %c0_23 = arith.constant 0 : index
    %10 = vector.load %arg4[%c2_21, %c0_22, %c0_23] : memref<4x10x4xf32, #tpu.memory_space<vmem>>, vector<2x10x4xf32>
    tpu.vector_store %arg4[%c2_21, %c0_22, %c0_23], %6#4 {strides = array<i32>} : memref<4x10x4xf32, #tpu.memory_space<vmem>>, vector<2x10x4xf32>,
    return
  }
  func.func @transform_0(%arg0: i32) -> (i32, i32, i32) {
    %c0_i32 = arith.constant 0 : i32
    %c0_i32_0 = arith.constant 0 : i32
    %c0_i32_1 = arith.constant 0 : i32
    return %arg0, %c0_i32, %c0_i32_0 : i32, i32, i32
  }
  func.func @transform_1(%arg0: i32) -> (i32, i32, i32) {
    %c0_i32 = arith.constant 0 : i32
    %c0_i32_0 = arith.constant 0 : i32
    %c0_i32_1 = arith.constant 0 : i32
    return %arg0, %c0_i32, %c0_i32_0 : i32, i32, i32
  }
  func.func @transform_2(%arg0: i32) -> (i32, i32, i32) {
    %c0_i32 = arith.constant 0 : i32
    %c0_i32_0 = arith.constant 0 : i32
    %c0_i32_1 = arith.constant 0 : i32
    return %arg0, %c0_i32, %c0_i32_0 : i32, i32, i32
  }
  func.func @transform_3(%arg0: i32) -> (i32, i32, i32) {
    %c0_i32 = arith.constant 0 : i32
    %c0_i32_0 = arith.constant 0 : i32
    %c0_i32_1 = arith.constant 0 : i32
    return %arg0, %c0_i32, %c0_i32_0 : i32, i32, i32
  }
}

</mosaic_0001>

<llo_original>
// kernel: tpu_custom_call.1
$region0: #{tpu_custom_call.1}
  #allocation0 [shape = 'u32[]', space=smem, size = 0x4, offset = 0x4, fixed_abs, tag = 'smem constant byte address 0x4 - core index']
  #allocation1 [shape = 'u32[144,128]{1,0:T(1,128)}', space=vmem, size = 0x12000, scoped, tag = 'internal scratch']
  %s0 = inlined_call_operand.vmem [shape: f32[4,5,256], index: 0, kind: input, shape index: {}]
  %s1 = inlined_call_operand.vmem [shape: f32[4,10,256], index: 1, kind: input, shape index: {}]
  %s2 = inlined_call_operand.vmem [shape: f32[4,10,256], index: 2, kind: output, shape index: {0}]
  %s3 = inlined_call_operand.vmem [shape: f32[4,10,4], index: 3, kind: output, shape index: {1}]
  %4 = xla_tuple %s2, %s3
  %s5 = sld [smem:[#allocation0]]
  $region33: #{tpu_custom_call.1} parent=0
    _
  %s7 = ssub.s32 1, %s5
  %s8 = scalar_select 0, %s7, %s5
  // Predicated region
  $region2: #{tpu_custom_call.1} parent=0 // pred_check
    _
  $region3: #{tpu_custom_call.1} parent=0 // pred_check_branch
    %10 = sbr.rel (0) target = $region5
  $region4: #{tpu_custom_call.1} parent=0 // pred_region
    _
  $region5: #{tpu_custom_call.1} parent=0 // pred_fallthru
    _
  // Predicated region
  $region6: #{tpu_custom_call.1} parent=0 // pred_check
    _
  $region7: #{tpu_custom_call.1} parent=0 // pred_check_branch
    %12 = sbr.rel (0) target = $region9
  $region8: #{tpu_custom_call.1} parent=0 // pred_region
    _
  $region9: #{tpu_custom_call.1} parent=0 // pred_fallthru
    _
  %v13 = vld [vmem:[%s0] sm:$0x1f]
  %v14 = vld [vmem:[%s0 + $0x8] sm:$0x1f]
  %v15 = vld [vmem:[%s0 + $0x10] sm:$0x1f]
  %v16 = vld [vmem:[%s0 + $0x18] sm:$0x1f]
  %v17 = vld [vmem:[%s1] sm:$0xff]
  %v18 = vld [vmem:[%s1 + $0x8] sm:$0xff]
  %v19 = vld [vmem:[%s1 + $0x10] sm:$0x3]
  %v20 = vld [vmem:[%s1 + $0x18] sm:$0x3]
  %v21 = vld [vmem:[%s1 + $0x20] sm:$0xff]
  %v22 = vld [vmem:[%s1 + $0x28] sm:$0xff]
  %v23 = vld [vmem:[%s1 + $0x30] sm:$0x3]
  %v24 = vld [vmem:[%s1 + $0x38] sm:$0x3]
  %s25 = scalar_lea.vmem %s0, 32
  %v26 = vld [vmem:[%s25] sm:$0x1f]
  %v27 = vld [vmem:[%s25 + $0x8] sm:$0x1f]
  %v28 = vld [vmem:[%s25 + $0x10] sm:$0x1f]
  %v29 = vld [vmem:[%s25 + $0x18] sm:$0x1f]
  %s30 = scalar_lea.vmem %s1, 64
  %v31 = vld [vmem:[%s30] sm:$0xff]
  %v32 = vld [vmem:[%s30 + $0x8] sm:$0xff]
  %v33 = vld [vmem:[%s30 + $0x10] sm:$0x3]
  %v34 = vld [vmem:[%s30 + $0x18] sm:$0x3]
  %v35 = vld [vmem:[%s30 + $0x20] sm:$0xff]
  %v36 = vld [vmem:[%s30 + $0x28] sm:$0xff]
  %v37 = vld [vmem:[%s30 + $0x30] sm:$0x3]
  %v38 = vld [vmem:[%s30 + $0x38] sm:$0x3]
  // While loop
  $region10: #{tpu_custom_call.1} parent=0 // loop_pre_header
    _
  $region11: #{tpu_custom_call.1} parent=0 // loop_header
    %s40 = sphi 0, %s6806
    %v41 = vphi %v17, %v3428
    %v42 = vphi %v18, %v3429
    %v43 = vphi %v19, %v3430
    %v44 = vphi %v20, %v3431
    %v45 = vphi %v21, %v3432
    %v46 = vphi %v22, %v3433
    %v47 = vphi %v23, %v3434
    %v48 = vphi %v24, %v3435
    %v49 = vphi %v31, %v6793
    %v50 = vphi %v32, %v6794
    %v51 = vphi %v33, %v6795
    %v52 = vphi %v34, %v6796
    %v53 = vphi %v35, %v6797
    %v54 = vphi %v36, %v6798
    %v55 = vphi %v37, %v6799
    %v56 = vphi %v38, %v6800
    %v57 = vphi 0.0, %v3436
    %v58 = vphi 0.0, %v3437
    %v59 = vphi 0.0, %v3438
    %v60 = vphi 0.0, %v3439
    %v61 = vphi 0.0, %v6801
    %v62 = vphi 0.0, %v6802
    %v63 = vphi 0.0, %v6803
    %v64 = vphi 0.0, %v6804
    %p65 = pphi 0, %p3440
    %p66 = pphi 0, %p6805
    %p67 = pnand %p65, %p66
    %p68 = pneg %p67
    %p69 = scmp.lt.s32.totalorder %s40, 1000
    %p70 = pneg %p68
    %p71 = pnand %p69, %p70
    %p72 = pneg %p71
  $region12: #{tpu_custom_call.1} parent=0 // loop_header_branch
    %74 = sbr.rel (%p71) target = $region16
  $region13: #{tpu_custom_call.1} parent=0 // loop_body
    %v75 = vmul.f32 %v41, %v41
    %v76 = vmul.f32 %v42, %v42
    %v77 = vmul.f32 %v43, %v43
    %v78 = vmul.f32 %v44, %v44
    %v79 = vmul.f32 %v45, %v45
    %v80 = vmul.f32 %v46, %v46
    %v81 = vmul.f32 %v47, %v47
    %v82 = vmul.f32 %v48, %v48
    %83 = vmatprep.subr.mxu0 %v14
    %84 = vmatpush1.xpose.msra.mxu0 %v13
    %85 = vmatprep.subr.mxu0 0.0
    %86 = vmatpush1.xpose.msra.mxu0 0.0
    %87 = vmatprep.subr.mxu0 0.0
    %88 = vmatpush1.xpose.msra.mxu0 0.0
    %89 = vmatprep.subr.mxu0 0.0
    %90 = vmatpush1.xpose.msra.mxu0 0.0
    %91 = vmatprep.subr.mxu0 0.0
    %92 = vmatpush1.xpose.msra.mxu0 0.0
    %93 = vmatprep.subr.mxu0 0.0
    %94 = vmatpush1.xpose.msra.mxu0 0.0
    %95 = vmatprep.subr.mxu0 0.0
    %96 = vmatpush1.xpose.msra.mxu0 0.0
    %97 = vmatprep.subr.mxu0 0.0
    %98 = vmatpush1.xpose.msra.mxu0 0.0
    %99 = vmatprep.subr.mxu0 0.0
    %100 = vmatpush1.xpose.msra.mxu0 0.0
    %101 = vmatprep.subr.mxu0 0.0
    %102 = vmatpush1.xpose.msra.mxu0 0.0
    %103 = vmatprep.subr.mxu0 0.0
    %104 = vmatpush1.xpose.msra.mxu0 0.0
    %105 = vmatprep.subr.mxu0 0.0
    %106 = vmatpush1.xpose.msra.mxu0 0.0
    %107 = vmatprep.subr.mxu0 0.0
    %108 = vmatpush1.xpose.msra.mxu0 0.0
    %109 = vmatprep.subr.mxu0 0.0
    %110 = vmatpush1.xpose.msra.mxu0 0.0
    %111 = vmatprep.subr.mxu0 0.0
    %112 = vmatpush1.xpose.msra.mxu0 0.0
    %113 = vmatprep.subr.mxu0 0.0
    %114 = vmatpush1.xpose.msra.mxu0 0.0
    %115 = vmatprep.subr.mxu0 0.0
    %116 = vmatpush1.xpose.msra.mxu0 0.0
    %117 = vmatprep.subr.mxu0 0.0
    %118 = vmatpush1.xpose.msra.mxu0 0.0
    %119 = vmatprep.subr.mxu0 0.0
    %120 = vmatpush1.xpose.msra.mxu0 0.0
    %121 = vmatprep.subr.mxu0 0.0
    %122 = vmatpush1.xpose.msra.mxu0 0.0
    %123 = vmatprep.subr.mxu0 0.0
    %124 = vmatpush1.xpose.msra.mxu0 0.0
    %125 = vmatprep.subr.mxu0 0.0
    %126 = vmatpush1.xpose.msra.mxu0 0.0
    %127 = vmatprep.subr.mxu0 0.0
    %128 = vmatpush1.xpose.msra.mxu0 0.0
    %129 = vmatprep.subr.mxu0 0.0
    %130 = vmatpush1.xpose.msra.mxu0 0.0
    %131 = vmatprep.subr.mxu0 0.0
    %132 = vmatpush1.xpose.msra.mxu0 0.0
    %133 = vmatprep.subr.mxu0 0.0
    %134 = vmatpush1.xpose.msra.mxu0 0.0
    %135 = vmatprep.subr.mxu0 0.0
    %136 = vmatpush1.xpose.msra.mxu0 0.0
    %137 = vmatprep.subr.mxu0 0.0
    %138 = vmatpush1.xpose.msra.mxu0 0.0
    %139 = vmatprep.subr.mxu0 0.0
    %140 = vmatpush1.xpose.msra.mxu0 0.0
    %141 = vmatprep.subr.mxu0 0.0
    %142 = vmatpush1.xpose.msra.mxu0 0.0
    %143 = vmatprep.subr.mxu0 0.0
    %144 = vmatpush1.xpose.msra.mxu0 0.0
    %145 = vmatprep.subr.mxu0 0.0
    %146 = vmatpush1.xpose.msra.mxu0 0.0
    %147 = vmatprep.mubr.f32.mxu0 %v76
    %148 = vmatmul.mubr.f32.gmra.mrb[0].mxu0 %v75
    %v149 = vpop.f32.mrb[0].mxu0
    %v150 = vadd.f32 0.0, %v149
    %v151 = vpop.f32.mrb[0].mxu0
    %152 = vmatprep.mubr.f32.mxu0 %v78
    %153 = vmatmul.mubr.f32.gmra.mrb[0].mxu0 %v77
    %v154 = vpop.f32.mrb[0].mxu0
    %v155 = vadd.f32 0.0, %v154
    %v156 = vpop.f32.mrb[0].mxu0
    %157 = vdwg.mxu0
    %158 = vmatprep.subr.mxu0 %v16
    %159 = vmatpush1.xpose.msra.mxu0 %v15
    %160 = vmatprep.subr.mxu0 0.0
    %161 = vmatpush1.xpose.msra.mxu0 0.0
    %162 = vmatprep.subr.mxu0 0.0
    %163 = vmatpush1.xpose.msra.mxu0 0.0
    %164 = vmatprep.subr.mxu0 0.0
    %165 = vmatpush1.xpose.msra.mxu0 0.0
    %166 = vmatprep.subr.mxu0 0.0
    %167 = vmatpush1.xpose.msra.mxu0 0.0
    %168 = vmatprep.subr.mxu0 0.0
    %169 = vmatpush1.xpose.msra.mxu0 0.0
    %170 = vmatprep.subr.mxu0 0.0
    %171 = vmatpush1.xpose.msra.mxu0 0.0
    %172 = vmatprep.subr.mxu0 0.0
    %173 = vmatpush1.xpose.msra.mxu0 0.0
    %174 = vmatprep.subr.mxu0 0.0
    %175 = vmatpush1.xpose.msra.mxu0 0.0
    %176 = vmatprep.subr.mxu0 0.0
    %177 = vmatpush1.xpose.msra.mxu0 0.0
    %178 = vmatprep.subr.mxu0 0.0
    %179 = vmatpush1.xpose.msra.mxu0 0.0
    %180 = vmatprep.subr.mxu0 0.0
    %181 = vmatpush1.xpose.msra.mxu0 0.0
    %182 = vmatprep.subr.mxu0 0.0
    %183 = vmatpush1.xpose.msra.mxu0 0.0
    %184 = vmatprep.subr.mxu0 0.0
    %185 = vmatpush1.xpose.msra.mxu0 0.0
    %186 = vmatprep.subr.mxu0 0.0
    %187 = vmatpush1.xpose.msra.mxu0 0.0
    %188 = vmatprep.subr.mxu0 0.0
    %189 = vmatpush1.xpose.msra.mxu0 0.0
    %190 = vmatprep.subr.mxu0 0.0
    %191 = vmatpush1.xpose.msra.mxu0 0.0
    %192 = vmatprep.subr.mxu0 0.0
    %193 = vmatpush1.xpose.msra.mxu0 0.0
    %194 = vmatprep.subr.mxu0 0.0
    %195 = vmatpush1.xpose.msra.mxu0 0.0
    %196 = vmatprep.subr.mxu0 0.0
    %197 = vmatpush1.xpose.msra.mxu0 0.0
    %198 = vmatprep.subr.mxu0 0.0
    %199 = vmatpush1.xpose.msra.mxu0 0.0
    %200 = vmatprep.subr.mxu0 0.0
    %201 = vmatpush1.xpose.msra.mxu0 0.0
    %202 = vmatprep.subr.mxu0 0.0
    %203 = vmatpush1.xpose.msra.mxu0 0.0
    %204 = vmatprep.subr.mxu0 0.0
    %205 = vmatpush1.xpose.msra.mxu0 0.0
    %206 = vmatprep.subr.mxu0 0.0
    %207 = vmatpush1.xpose.msra.mxu0 0.0
    %208 = vmatprep.subr.mxu0 0.0
    %209 = vmatpush1.xpose.msra.mxu0 0.0
    %210 = vmatprep.subr.mxu0 0.0
    %211 = vmatpush1.xpose.msra.mxu0 0.0
    %212 = vmatprep.subr.mxu0 0.0
    %213 = vmatpush1.xpose.msra.mxu0 0.0
    %214 = vmatprep.subr.mxu0 0.0
    %215 = vmatpush1.xpose.msra.mxu0 0.0
    %216 = vmatprep.subr.mxu0 0.0
    %217 = vmatpush1.xpose.msra.mxu0 0.0
    %218 = vmatprep.subr.mxu0 0.0
    %219 = vmatpush1.xpose.msra.mxu0 0.0
    %220 = vmatprep.subr.mxu0 0.0
    %221 = vmatpush1.xpose.msra.mxu0 0.0
    %222 = vmatprep.mubr.f32.mxu0 %v80
    %223 = vmatmul.mubr.f32.gmra.mrb[0].mxu0 %v79
    %v224 = vpop.f32.mrb[0].mxu0
    %v225 = vadd.f32 0.0, %v224
    %v226 = vpop.f32.mrb[0].mxu0
    %227 = vmatprep.mubr.f32.mxu0 %v82
    %228 = vmatmul.mubr.f32.gmra.mrb[0].mxu0 %v81
    %v229 = vpop.f32.mrb[0].mxu0
    %v230 = vadd.f32 0.0, %v229
    %v231 = vpop.f32.mrb[0].mxu0
    %232 = vdwg.mxu0
    %v233 = vmax.f32 %v150, 1e-30
    %v234 = vmax.f32 %v155, 1e-30
    %v235 = vmax.f32 %v225, 1e-30
    %v236 = vmax.f32 %v230, 1e-30
    %238 = vset.pattern.permute.xlu0 4
    %239 = vperm.xlu0 %238, %v233
    %v240 = vpop.permute.xlu0 %239
    %243 = vset.pattern.permute.xlu0 4
    %244 = vperm.xlu0 %243, %v234
    %v245 = vpop.permute.xlu0 %244
    %248 = vset.pattern.permute.xlu0 4
    %249 = vperm.xlu0 %248, %v235
    %v250 = vpop.permute.xlu0 %249
    %253 = vset.pattern.permute.xlu0 4
    %254 = vperm.xlu0 %253, %v236
    %v255 = vpop.permute.xlu0 %254
    %v257 = vrcp.pop %v240
    %v258 = vmul.f32 %v150, %v257
    %v259 = vrcp.pop %v245
    %v260 = vmul.f32 %v155, %v259
    %v261 = vrcp.pop %v250
    %v262 = vmul.f32 %v225, %v261
    %v263 = vrcp.pop %v255
    %v264 = vmul.f32 %v230, %v263
    %v265 = vlaneseq
    %v266 = vshrl.u32 %v265, 7
    %v267 = vsub.s32 0, %v266
    %v268 = vrot.slane %v13, %v267
    %v269 = vlaneseq
    %v270 = vshrl.u32 %v269, 7
    %v271 = vsub.s32 0, %v270
    %v272 = vrot.slane %v14, %v271
    %v273 = vlaneseq
    %v274 = vshrl.u32 %v273, 7
    %v275 = vsub.s32 0, %v274
    %v276 = vrot.slane %v15, %v275
    %v277 = vlaneseq
    %v278 = vshrl.u32 %v277, 7
    %v279 = vsub.s32 0, %v278
    %v280 = vrot.slane %v16, %v279
    %282 = vset.pattern.permute.xlu0 0
    %283 = vperm.xlu0 %282, %v258
    %v284 = vpop.permute.xlu0 %283
    %287 = vset.pattern.permute.xlu0 0
    %288 = vperm.xlu0 %287, %v260
    %v289 = vpop.permute.xlu0 %288
    %292 = vset.pattern.permute.xlu0 0
    %293 = vperm.xlu0 %292, %v262
    %v294 = vpop.permute.xlu0 %293
    %297 = vset.pattern.permute.xlu0 0
    %298 = vperm.xlu0 %297, %v264
    %v299 = vpop.permute.xlu0 %298
    %v301 = vsub.f32 %v268, %v284
    %v302 = vsub.f32 %v272, %v284
    %v303 = vsub.f32 %v268, %v289
    %v304 = vsub.f32 %v272, %v289
    %v305 = vsub.f32 %v276, %v294
    %v306 = vsub.f32 %v280, %v294
    %v307 = vsub.f32 %v276, %v299
    %v308 = vsub.f32 %v280, %v299
    %v309 = vmul.f32 %v301, %v301
    %v310 = vmul.f32 %v302, %v302
    %v311 = vmul.f32 %v303, %v303
    %v312 = vmul.f32 %v304, %v304
    %v313 = vmul.f32 %v305, %v305
    %v314 = vmul.f32 %v306, %v306
    %v315 = vmul.f32 %v307, %v307
    %v316 = vmul.f32 %v308, %v308
    %v317 = vadd.f32 %v309, 1e-12
    %v318 = vadd.f32 %v310, 1e-12
    %v319 = vadd.f32 %v311, 1e-12
    %v320 = vadd.f32 %v312, 1e-12
    %v321 = vadd.f32 %v313, 1e-12
    %v322 = vadd.f32 %v314, 1e-12
    %v323 = vadd.f32 %v315, 1e-12
    %v324 = vadd.f32 %v316, 1e-12
    %v325 = vlaneseq
    %v326 = vshrl.u32 %v325, 7
    %v327 = vsub.s32 1, %v326
    %v328 = vrot.slane %v13, %v327
    %v329 = vlaneseq
    %v330 = vshrl.u32 %v329, 7
    %v331 = vsub.s32 1, %v330
    %v332 = vrot.slane %v14, %v331
    %v333 = vlaneseq
    %v334 = vshrl.u32 %v333, 7
    %v335 = vsub.s32 1, %v334
    %v336 = vrot.slane %v15, %v335
    %v337 = vlaneseq
    %v338 = vshrl.u32 %v337, 7
    %v339 = vsub.s32 1, %v338
    %v340 = vrot.slane %v16, %v339
    %341 = vset.pattern.permute.xlu0 1
    %342 = vperm.xlu0 %341, %v258
    %v343 = vpop.permute.xlu0 %342
    %345 = vset.pattern.permute.xlu0 1
    %346 = vperm.xlu0 %345, %v260
    %v347 = vpop.permute.xlu0 %346
    %349 = vset.pattern.permute.xlu0 1
    %350 = vperm.xlu0 %349, %v262
    %v351 = vpop.permute.xlu0 %350
    %353 = vset.pattern.permute.xlu0 1
    %354 = vperm.xlu0 %353, %v264
    %v355 = vpop.permute.xlu0 %354
    %v357 = vsub.f32 %v328, %v343
    %v358 = vsub.f32 %v332, %v343
    %v359 = vsub.f32 %v328, %v347
    %v360 = vsub.f32 %v332, %v347
    %v361 = vsub.f32 %v336, %v351
    %v362 = vsub.f32 %v340, %v351
    %v363 = vsub.f32 %v336, %v355
    %v364 = vsub.f32 %v340, %v355
    %v365 = vmul.f32 %v357, %v357
    %v366 = vmul.f32 %v358, %v358
    %v367 = vmul.f32 %v359, %v359
    %v368 = vmul.f32 %v360, %v360
    %v369 = vmul.f32 %v361, %v361
    %v370 = vmul.f32 %v362, %v362
    %v371 = vmul.f32 %v363, %v363
    %v372 = vmul.f32 %v364, %v364
    %v373 = vadd.f32 %v317, %v365
    %v374 = vadd.f32 %v318, %v366
    %v375 = vadd.f32 %v319, %v367
    %v376 = vadd.f32 %v320, %v368
    %v377 = vadd.f32 %v321, %v369
    %v378 = vadd.f32 %v322, %v370
    %v379 = vadd.f32 %v323, %v371
    %v380 = vadd.f32 %v324, %v372
    %v381 = vlaneseq
    %v382 = vshrl.u32 %v381, 7
    %v383 = vsub.s32 2, %v382
    %v384 = vrot.slane %v13, %v383
    %v385 = vlaneseq
    %v386 = vshrl.u32 %v385, 7
    %v387 = vsub.s32 2, %v386
    %v388 = vrot.slane %v14, %v387
    %v389 = vlaneseq
    %v390 = vshrl.u32 %v389, 7
    %v391 = vsub.s32 2, %v390
    %v392 = vrot.slane %v15, %v391
    %v393 = vlaneseq
    %v394 = vshrl.u32 %v393, 7
    %v395 = vsub.s32 2, %v394
    %v396 = vrot.slane %v16, %v395
    %397 = vset.pattern.permute.xlu0 2
    %398 = vperm.xlu0 %397, %v258
    %v399 = vpop.permute.xlu0 %398
    %401 = vset.pattern.permute.xlu0 2
    %402 = vperm.xlu0 %401, %v260
    %v403 = vpop.permute.xlu0 %402
    %405 = vset.pattern.permute.xlu0 2
    %406 = vperm.xlu0 %405, %v262
    %v407 = vpop.permute.xlu0 %406
    %409 = vset.pattern.permute.xlu0 2
    %410 = vperm.xlu0 %409, %v264
    %v411 = vpop.permute.xlu0 %410
    %v413 = vsub.f32 %v384, %v399
    %v414 = vsub.f32 %v388, %v399
    %v415 = vsub.f32 %v384, %v403
    %v416 = vsub.f32 %v388, %v403
    %v417 = vsub.f32 %v392, %v407
    %v418 = vsub.f32 %v396, %v407
    %v419 = vsub.f32 %v392, %v411
    %v420 = vsub.f32 %v396, %v411
    %v421 = vmul.f32 %v413, %v413
    %v422 = vmul.f32 %v414, %v414
    %v423 = vmul.f32 %v415, %v415
    %v424 = vmul.f32 %v416, %v416
    %v425 = vmul.f32 %v417, %v417
    %v426 = vmul.f32 %v418, %v418
    %v427 = vmul.f32 %v419, %v419
    %v428 = vmul.f32 %v420, %v420
    %v429 = vadd.f32 %v373, %v421
    %v430 = vadd.f32 %v374, %v422
    %v431 = vadd.f32 %v375, %v423
    %v432 = vadd.f32 %v376, %v424
    %v433 = vadd.f32 %v377, %v425
    %v434 = vadd.f32 %v378, %v426
    %v435 = vadd.f32 %v379, %v427
    %v436 = vadd.f32 %v380, %v428
    %v437 = vlaneseq
    %v438 = vshrl.u32 %v437, 7
    %v439 = vsub.s32 3, %v438
    %v440 = vrot.slane %v13, %v439
    %v441 = vlaneseq
    %v442 = vshrl.u32 %v441, 7
    %v443 = vsub.s32 3, %v442
    %v444 = vrot.slane %v14, %v443
    %v445 = vlaneseq
    %v446 = vshrl.u32 %v445, 7
    %v447 = vsub.s32 3, %v446
    %v448 = vrot.slane %v15, %v447
    %v449 = vlaneseq
    %v450 = vshrl.u32 %v449, 7
    %v451 = vsub.s32 3, %v450
    %v452 = vrot.slane %v16, %v451
    %453 = vset.pattern.permute.xlu0 3
    %454 = vperm.xlu0 %453, %v258
    %v455 = vpop.permute.xlu0 %454
    %457 = vset.pattern.permute.xlu0 3
    %458 = vperm.xlu0 %457, %v260
    %v459 = vpop.permute.xlu0 %458
    %461 = vset.pattern.permute.xlu0 3
    %462 = vperm.xlu0 %461, %v262
    %v463 = vpop.permute.xlu0 %462
    %465 = vset.pattern.permute.xlu0 3
    %466 = vperm.xlu0 %465, %v264
    %v467 = vpop.permute.xlu0 %466
    %v469 = vsub.f32 %v440, %v455
    %v470 = vsub.f32 %v444, %v455
    %v471 = vsub.f32 %v440, %v459
    %v472 = vsub.f32 %v444, %v459
    %v473 = vsub.f32 %v448, %v463
    %v474 = vsub.f32 %v452, %v463
    %v475 = vsub.f32 %v448, %v467
    %v476 = vsub.f32 %v452, %v467
    %v477 = vmul.f32 %v469, %v469
    %v478 = vmul.f32 %v470, %v470
    %v479 = vmul.f32 %v471, %v471
    %v480 = vmul.f32 %v472, %v472
    %v481 = vmul.f32 %v473, %v473
    %v482 = vmul.f32 %v474, %v474
    %v483 = vmul.f32 %v475, %v475
    %v484 = vmul.f32 %v476, %v476
    %v485 = vadd.f32 %v429, %v477
    %v486 = vadd.f32 %v430, %v478
    %v487 = vadd.f32 %v431, %v479
    %v488 = vadd.f32 %v432, %v480
    %v489 = vadd.f32 %v433, %v481
    %v490 = vadd.f32 %v434, %v482
    %v491 = vadd.f32 %v435, %v483
    %v492 = vadd.f32 %v436, %v484
    %v493 = vrcp.pop %v485
    %v494 = vrcp.pop %v486
    %v495 = vrcp.pop %v487
    %v496 = vrcp.pop %v488
    %v497 = vrcp.pop %v489
    %v498 = vrcp.pop %v490
    %v499 = vrcp.pop %v491
    %v500 = vrcp.pop %v492
    %vm501 = vcmask 1041408
    %v502 = vsel %vm501, %v495, 0.0
    %v503 = vadd.f32 %v493, %v502
    %v504 = vrot.slane %v503, 4
    %v505 = vadd.f32 %v503, %v504
    %v506 = vrot.slane %v505, 2
    %v507 = vadd.f32 %v505, %v506
    %v508 = vrot.slane %v507, 1
    %v509 = vadd.f32 %v507, %v508
    %v510 = vsel %vm501, %v496, 0.0
    %v511 = vadd.f32 %v494, %v510
    %v512 = vrot.slane %v511, 4
    %v513 = vadd.f32 %v511, %v512
    %v514 = vrot.slane %v513, 2
    %v515 = vadd.f32 %v513, %v514
    %v516 = vrot.slane %v515, 1
    %v517 = vadd.f32 %v515, %v516
    %v518 = vsel %vm501, %v499, 0.0
    %v519 = vadd.f32 %v497, %v518
    %v520 = vrot.slane %v519, 4
    %v521 = vadd.f32 %v519, %v520
    %v522 = vrot.slane %v521, 2
    %v523 = vadd.f32 %v521, %v522
    %v524 = vrot.slane %v523, 1
    %v525 = vadd.f32 %v523, %v524
    %v526 = vsel %vm501, %v500, 0.0
    %v527 = vadd.f32 %v498, %v526
    %v528 = vrot.slane %v527, 4
    %v529 = vadd.f32 %v527, %v528
    %v530 = vrot.slane %v529, 2
    %v531 = vadd.f32 %v529, %v530
    %v532 = vrot.slane %v531, 1
    %v533 = vadd.f32 %v531, %v532
    %v534 = vrcp.pop %v509
    %v535 = vrcp.pop %v517
    %v536 = vrcp.pop %v525
    %v537 = vrcp.pop %v533
    %v538 = vmul.f32 %v493, %v534
    %v539 = vmul.f32 %v494, %v535
    %v540 = vmul.f32 %v495, %v534
    %v541 = vmul.f32 %v496, %v535
    %v542 = vmul.f32 %v497, %v536
    %v543 = vmul.f32 %v498, %v537
    %v544 = vmul.f32 %v499, %v536
    %v545 = vmul.f32 %v500, %v537
    %v546 = vmul.f32 %v538, %v538
    %v547 = vmul.f32 %v539, %v539
    %v548 = vmul.f32 %v540, %v540
    %v549 = vmul.f32 %v541, %v541
    %v550 = vmul.f32 %v542, %v542
    %v551 = vmul.f32 %v543, %v543
    %v552 = vmul.f32 %v544, %v544
    %v553 = vmul.f32 %v545, %v545
    %554 = vmatprep.subr.mxu0 %v14
    %555 = vmatpush1.xpose.msra.mxu0 %v13
    %556 = vmatprep.subr.mxu0 0.0
    %557 = vmatpush1.xpose.msra.mxu0 0.0
    %558 = vmatprep.subr.mxu0 0.0
    %559 = vmatpush1.xpose.msra.mxu0 0.0
    %560 = vmatprep.subr.mxu0 0.0
    %561 = vmatpush1.xpose.msra.mxu0 0.0
    %562 = vmatprep.subr.mxu0 0.0
    %563 = vmatpush1.xpose.msra.mxu0 0.0
    %564 = vmatprep.subr.mxu0 0.0
    %565 = vmatpush1.xpose.msra.mxu0 0.0
    %566 = vmatprep.subr.mxu0 0.0
    %567 = vmatpush1.xpose.msra.mxu0 0.0
    %568 = vmatprep.subr.mxu0 0.0
    %569 = vmatpush1.xpose.msra.mxu0 0.0
    %570 = vmatprep.subr.mxu0 0.0
    %571 = vmatpush1.xpose.msra.mxu0 0.0
    %572 = vmatprep.subr.mxu0 0.0
    %573 = vmatpush1.xpose.msra.mxu0 0.0
    %574 = vmatprep.subr.mxu0 0.0
    %575 = vmatpush1.xpose.msra.mxu0 0.0
    %576 = vmatprep.subr.mxu0 0.0
    %577 = vmatpush1.xpose.msra.mxu0 0.0
    %578 = vmatprep.subr.mxu0 0.0
    %579 = vmatpush1.xpose.msra.mxu0 0.0
    %580 = vmatprep.subr.mxu0 0.0
    %581 = vmatpush1.xpose.msra.mxu0 0.0
    %582 = vmatprep.subr.mxu0 0.0
    %583 = vmatpush1.xpose.msra.mxu0 0.0
    %584 = vmatprep.subr.mxu0 0.0
    %585 = vmatpush1.xpose.msra.mxu0 0.0
    %586 = vmatprep.subr.mxu0 0.0
    %587 = vmatpush1.xpose.msra.mxu0 0.0
    %588 = vmatprep.subr.mxu0 0.0
    %589 = vmatpush1.xpose.msra.mxu0 0.0
    %590 = vmatprep.subr.mxu0 0.0
    %591 = vmatpush1.xpose.msra.mxu0 0.0
    %592 = vmatprep.subr.mxu0 0.0
    %593 = vmatpush1.xpose.msra.mxu0 0.0
    %594 = vmatprep.subr.mxu0 0.0
    %595 = vmatpush1.xpose.msra.mxu0 0.0
    %596 = vmatprep.subr.mxu0 0.0
    %597 = vmatpush1.xpose.msra.mxu0 0.0
    %598 = vmatprep.subr.mxu0 0.0
    %599 = vmatpush1.xpose.msra.mxu0 0.0
    %600 = vmatprep.subr.mxu0 0.0
    %601 = vmatpush1.xpose.msra.mxu0 0.0
    %602 = vmatprep.subr.mxu0 0.0
    %603 = vmatpush1.xpose.msra.mxu0 0.0
    %604 = vmatprep.subr.mxu0 0.0
    %605 = vmatpush1.xpose.msra.mxu0 0.0
    %606 = vmatprep.subr.mxu0 0.0
    %607 = vmatpush1.xpose.msra.mxu0 0.0
    %608 = vmatprep.subr.mxu0 0.0
    %609 = vmatpush1.xpose.msra.mxu0 0.0
    %610 = vmatprep.subr.mxu0 0.0
    %611 = vmatpush1.xpose.msra.mxu0 0.0
    %612 = vmatprep.subr.mxu0 0.0
    %613 = vmatpush1.xpose.msra.mxu0 0.0
    %614 = vmatprep.subr.mxu0 0.0
    %615 = vmatpush1.xpose.msra.mxu0 0.0
    %616 = vmatprep.subr.mxu0 0.0
    %617 = vmatpush1.xpose.msra.mxu0 0.0
    %618 = vmatprep.mubr.f32.mxu0 %v547
    %619 = vmatmul.mubr.f32.gmra.mrb[0].mxu0 %v546
    %v620 = vpop.f32.mrb[0].mxu0
    %v621 = vadd.f32 0.0, %v620
    %v622 = vpop.f32.mrb[0].mxu0
    %623 = vmatprep.mubr.f32.mxu0 %v549
    %624 = vmatmul.mubr.f32.gmra.mrb[0].mxu0 %v548
    %v625 = vpop.f32.mrb[0].mxu0
    %v626 = vadd.f32 0.0, %v625
    %v627 = vpop.f32.mrb[0].mxu0
    %628 = vdwg.mxu0
    %629 = vmatprep.subr.mxu0 %v16
    %630 = vmatpush1.xpose.msra.mxu0 %v15
    %631 = vmatprep.subr.mxu0 0.0
    %632 = vmatpush1.xpose.msra.mxu0 0.0
    %633 = vmatprep.subr.mxu0 0.0
    %634 = vmatpush1.xpose.msra.mxu0 0.0
    %635 = vmatprep.subr.mxu0 0.0
    %636 = vmatpush1.xpose.msra.mxu0 0.0
    %637 = vmatprep.subr.mxu0 0.0
    %638 = vmatpush1.xpose.msra.mxu0 0.0
    %639 = vmatprep.subr.mxu0 0.0
    %640 = vmatpush1.xpose.msra.mxu0 0.0
    %641 = vmatprep.subr.mxu0 0.0
    %642 = vmatpush1.xpose.msra.mxu0 0.0
    %643 = vmatprep.subr.mxu0 0.0
    %644 = vmatpush1.xpose.msra.mxu0 0.0
    %645 = vmatprep.subr.mxu0 0.0
    %646 = vmatpush1.xpose.msra.mxu0 0.0
    %647 = vmatprep.subr.mxu0 0.0
    %648 = vmatpush1.xpose.msra.mxu0 0.0
    %649 = vmatprep.subr.mxu0 0.0
    %650 = vmatpush1.xpose.msra.mxu0 0.0
    %651 = vmatprep.subr.mxu0 0.0
    %652 = vmatpush1.xpose.msra.mxu0 0.0
    %653 = vmatprep.subr.mxu0 0.0
    %654 = vmatpush1.xpose.msra.mxu0 0.0
    %655 = vmatprep.subr.mxu0 0.0
    %656 = vmatpush1.xpose.msra.mxu0 0.0
    %657 = vmatprep.subr.mxu0 0.0
    %658 = vmatpush1.xpose.msra.mxu0 0.0
    %659 = vmatprep.subr.mxu0 0.0
    %660 = vmatpush1.xpose.msra.mxu0 0.0
    %661 = vmatprep.subr.mxu0 0.0
    %662 = vmatpush1.xpose.msra.mxu0 0.0
    %663 = vmatprep.subr.mxu0 0.0
    %664 = vmatpush1.xpose.msra.mxu0 0.0
    %665 = vmatprep.subr.mxu0 0.0
    %666 = vmatpush1.xpose.msra.mxu0 0.0
    %667 = vmatprep.subr.mxu0 0.0
    %668 = vmatpush1.xpose.msra.mxu0 0.0
    %669 = vmatprep.subr.mxu0 0.0
    %670 = vmatpush1.xpose.msra.mxu0 0.0
    %671 = vmatprep.subr.mxu0 0.0
    %672 = vmatpush1.xpose.msra.mxu0 0.0
    %673 = vmatprep.subr.mxu0 0.0
    %674 = vmatpush1.xpose.msra.mxu0 0.0
    %675 = vmatprep.subr.mxu0 0.0
    %676 = vmatpush1.xpose.msra.mxu0 0.0
    %677 = vmatprep.subr.mxu0 0.0
    %678 = vmatpush1.xpose.msra.mxu0 0.0
    %679 = vmatprep.subr.mxu0 0.0
    %680 = vmatpush1.xpose.msra.mxu0 0.0
    %681 = vmatprep.subr.mxu0 0.0
    %682 = vmatpush1.xpose.msra.mxu0 0.0
    %683 = vmatprep.subr.mxu0 0.0
    %684 = vmatpush1.xpose.msra.mxu0 0.0
    %685 = vmatprep.subr.mxu0 0.0
    %686 = vmatpush1.xpose.msra.mxu0 0.0
    %687 = vmatprep.subr.mxu0 0.0
    %688 = vmatpush1.xpose.msra.mxu0 0.0
    %689 = vmatprep.subr.mxu0 0.0
    %690 = vmatpush1.xpose.msra.mxu0 0.0
    %691 = vmatprep.subr.mxu0 0.0
    %692 = vmatpush1.xpose.msra.mxu0 0.0
    %693 = vmatprep.mubr.f32.mxu0 %v551
    %694 = vmatmul.mubr.f32.gmra.mrb[0].mxu0 %v550
    %v695 = vpop.f32.mrb[0].mxu0
    %v696 = vadd.f32 0.0, %v695
    %v697 = vpop.f32.mrb[0].mxu0
    %698 = vmatprep.mubr.f32.mxu0 %v553
    %699 = vmatmul.mubr.f32.gmra.mrb[0].mxu0 %v552
    %v700 = vpop.f32.mrb[0].mxu0
    %v701 = vadd.f32 0.0, %v700
    %v702 = vpop.f32.mrb[0].mxu0
    %703 = vdwg.mxu0
    %v704 = vmax.f32 %v621, 1e-30
    %v705 = vmax.f32 %v626, 1e-30
    %v706 = vmax.f32 %v696, 1e-30
    %v707 = vmax.f32 %v701, 1e-30
    %709 = vset.pattern.permute.xlu0 4
    %710 = vperm.xlu0 %709, %v704
    %v711 = vpop.permute.xlu0 %710
    %714 = vset.pattern.permute.xlu0 4
    %715 = vperm.xlu0 %714, %v705
    %v716 = vpop.permute.xlu0 %715
    %719 = vset.pattern.permute.xlu0 4
    %720 = vperm.xlu0 %719, %v706
    %v721 = vpop.permute.xlu0 %720
    %724 = vset.pattern.permute.xlu0 4
    %725 = vperm.xlu0 %724, %v707
    %v726 = vpop.permute.xlu0 %725
    %v728 = vrcp.pop %v711
    %v729 = vmul.f32 %v621, %v728
    %v730 = vrcp.pop %v716
    %v731 = vmul.f32 %v626, %v730
    %v732 = vrcp.pop %v721
    %v733 = vmul.f32 %v696, %v732
    %v734 = vrcp.pop %v726
    %v735 = vmul.f32 %v701, %v734
    %737 = vset.pattern.permute.xlu0 0
    %738 = vperm.xlu0 %737, %v729
    %v739 = vpop.permute.xlu0 %738
    %742 = vset.pattern.permute.xlu0 0
    %743 = vperm.xlu0 %742, %v731
    %v744 = vpop.permute.xlu0 %743
    %747 = vset.pattern.permute.xlu0 0
    %748 = vperm.xlu0 %747, %v733
    %v749 = vpop.permute.xlu0 %748
    %752 = vset.pattern.permute.xlu0 0
    %753 = vperm.xlu0 %752, %v735
    %v754 = vpop.permute.xlu0 %753
    %v756 = vsub.f32 %v268, %v739
    %v757 = vsub.f32 %v272, %v739
    %v758 = vsub.f32 %v268, %v744
    %v759 = vsub.f32 %v272, %v744
    %v760 = vsub.f32 %v276, %v749
    %v761 = vsub.f32 %v280, %v749
    %v762 = vsub.f32 %v276, %v754
    %v763 = vsub.f32 %v280, %v754
    %v764 = vmul.f32 %v756, %v756
    %v765 = vmul.f32 %v757, %v757
    %v766 = vmul.f32 %v758, %v758
    %v767 = vmul.f32 %v759, %v759
    %v768 = vmul.f32 %v760, %v760
    %v769 = vmul.f32 %v761, %v761
    %v770 = vmul.f32 %v762, %v762
    %v771 = vmul.f32 %v763, %v763
    %v772 = vadd.f32 %v764, 1e-12
    %v773 = vadd.f32 %v765, 1e-12
    %v774 = vadd.f32 %v766, 1e-12
    %v775 = vadd.f32 %v767, 1e-12
    %v776 = vadd.f32 %v768, 1e-12
    %v777 = vadd.f32 %v769, 1e-12
    %v778 = vadd.f32 %v770, 1e-12
    %v779 = vadd.f32 %v771, 1e-12
    %780 = vset.pattern.permute.xlu0 1
    %781 = vperm.xlu0 %780, %v729
    %v782 = vpop.permute.xlu0 %781
    %784 = vset.pattern.permute.xlu0 1
    %785 = vperm.xlu0 %784, %v731
    %v786 = vpop.permute.xlu0 %785
    %788 = vset.pattern.permute.xlu0 1
    %789 = vperm.xlu0 %788, %v733
    %v790 = vpop.permute.xlu0 %789
    %792 = vset.pattern.permute.xlu0 1
    %793 = vperm.xlu0 %792, %v735
    %v794 = vpop.permute.xlu0 %793
    %v796 = vsub.f32 %v328, %v782
    %v797 = vsub.f32 %v332, %v782
    %v798 = vsub.f32 %v328, %v786
    %v799 = vsub.f32 %v332, %v786
    %v800 = vsub.f32 %v336, %v790
    %v801 = vsub.f32 %v340, %v790
    %v802 = vsub.f32 %v336, %v794
    %v803 = vsub.f32 %v340, %v794
    %v804 = vmul.f32 %v796, %v796
    %v805 = vmul.f32 %v797, %v797
    %v806 = vmul.f32 %v798, %v798
    %v807 = vmul.f32 %v799, %v799
    %v808 = vmul.f32 %v800, %v800
    %v809 = vmul.f32 %v801, %v801
    %v810 = vmul.f32 %v802, %v802
    %v811 = vmul.f32 %v803, %v803
    %v812 = vadd.f32 %v772, %v804
    %v813 = vadd.f32 %v773, %v805
    %v814 = vadd.f32 %v774, %v806
    %v815 = vadd.f32 %v775, %v807
    %v816 = vadd.f32 %v776, %v808
    %v817 = vadd.f32 %v777, %v809
    %v818 = vadd.f32 %v778, %v810
    %v819 = vadd.f32 %v779, %v811
    %820 = vset.pattern.permute.xlu0 2
    %821 = vperm.xlu0 %820, %v729
    %v822 = vpop.permute.xlu0 %821
    %824 = vset.pattern.permute.xlu0 2
    %825 = vperm.xlu0 %824, %v731
    %v826 = vpop.permute.xlu0 %825
    %828 = vset.pattern.permute.xlu0 2
    %829 = vperm.xlu0 %828, %v733
    %v830 = vpop.permute.xlu0 %829
    %832 = vset.pattern.permute.xlu0 2
    %833 = vperm.xlu0 %832, %v735
    %v834 = vpop.permute.xlu0 %833
    %v836 = vsub.f32 %v384, %v822
    %v837 = vsub.f32 %v388, %v822
    %v838 = vsub.f32 %v384, %v826
    %v839 = vsub.f32 %v388, %v826
    %v840 = vsub.f32 %v392, %v830
    %v841 = vsub.f32 %v396, %v830
    %v842 = vsub.f32 %v392, %v834
    %v843 = vsub.f32 %v396, %v834
    %v844 = vmul.f32 %v836, %v836
    %v845 = vmul.f32 %v837, %v837
    %v846 = vmul.f32 %v838, %v838
    %v847 = vmul.f32 %v839, %v839
    %v848 = vmul.f32 %v840, %v840
    %v849 = vmul.f32 %v841, %v841
    %v850 = vmul.f32 %v842, %v842
    %v851 = vmul.f32 %v843, %v843
    %v852 = vadd.f32 %v812, %v844
    %v853 = vadd.f32 %v813, %v845
    %v854 = vadd.f32 %v814, %v846
    %v855 = vadd.f32 %v815, %v847
    %v856 = vadd.f32 %v816, %v848
    %v857 = vadd.f32 %v817, %v849
    %v858 = vadd.f32 %v818, %v850
    %v859 = vadd.f32 %v819, %v851
    %860 = vset.pattern.permute.xlu0 3
    %861 = vperm.xlu0 %860, %v729
    %v862 = vpop.permute.xlu0 %861
    %864 = vset.pattern.permute.xlu0 3
    %865 = vperm.xlu0 %864, %v731
    %v866 = vpop.permute.xlu0 %865
    %868 = vset.pattern.permute.xlu0 3
    %869 = vperm.xlu0 %868, %v733
    %v870 = vpop.permute.xlu0 %869
    %872 = vset.pattern.permute.xlu0 3
    %873 = vperm.xlu0 %872, %v735
    %v874 = vpop.permute.xlu0 %873
    %v876 = vsub.f32 %v440, %v862
    %v877 = vsub.f32 %v444, %v862
    %v878 = vsub.f32 %v440, %v866
    %v879 = vsub.f32 %v444, %v866
    %v880 = vsub.f32 %v448, %v870
    %v881 = vsub.f32 %v452, %v870
    %v882 = vsub.f32 %v448, %v874
    %v883 = vsub.f32 %v452, %v874
    %v884 = vmul.f32 %v876, %v876
    %v885 = vmul.f32 %v877, %v877
    %v886 = vmul.f32 %v878, %v878
    %v887 = vmul.f32 %v879, %v879
    %v888 = vmul.f32 %v880, %v880
    %v889 = vmul.f32 %v881, %v881
    %v890 = vmul.f32 %v882, %v882
    %v891 = vmul.f32 %v883, %v883
    %v892 = vadd.f32 %v852, %v884
    %v893 = vadd.f32 %v853, %v885
    %v894 = vadd.f32 %v854, %v886
    %v895 = vadd.f32 %v855, %v887
    %v896 = vadd.f32 %v856, %v888
    %v897 = vadd.f32 %v857, %v889
    %v898 = vadd.f32 %v858, %v890
    %v899 = vadd.f32 %v859, %v891
    %v900 = vrcp.pop %v892
    %v901 = vrcp.pop %v893
    %v902 = vrcp.pop %v894
    %v903 = vrcp.pop %v895
    %v904 = vrcp.pop %v896
    %v905 = vrcp.pop %v897
    %v906 = vrcp.pop %v898
    %v907 = vrcp.pop %v899
    %v908 = vsel %vm501, %v902, 0.0
    %v909 = vadd.f32 %v900, %v908
    %v910 = vrot.slane %v909, 4
    %v911 = vadd.f32 %v909, %v910
    %v912 = vrot.slane %v911, 2
    %v913 = vadd.f32 %v911, %v912
    %v914 = vrot.slane %v913, 1
    %v915 = vadd.f32 %v913, %v914
    %v916 = vsel %vm501, %v903, 0.0
    %v917 = vadd.f32 %v901, %v916
    %v918 = vrot.slane %v917, 4
    %v919 = vadd.f32 %v917, %v918
    %v920 = vrot.slane %v919, 2
    %v921 = vadd.f32 %v919, %v920
    %v922 = vrot.slane %v921, 1
    %v923 = vadd.f32 %v921, %v922
    %v924 = vsel %vm501, %v906, 0.0
    %v925 = vadd.f32 %v904, %v924
    %v926 = vrot.slane %v925, 4
    %v927 = vadd.f32 %v925, %v926
    %v928 = vrot.slane %v927, 2
    %v929 = vadd.f32 %v927, %v928
    %v930 = vrot.slane %v929, 1
    %v931 = vadd.f32 %v929, %v930
    %v932 = vsel %vm501, %v907, 0.0
    %v933 = vadd.f32 %v905, %v932
    %v934 = vrot.slane %v933, 4
    %v935 = vadd.f32 %v933, %v934
    %v936 = vrot.slane %v935, 2
    %v937 = vadd.f32 %v935, %v936
    %v938 = vrot.slane %v937, 1
    %v939 = vadd.f32 %v937, %v938
    %v940 = vrcp.pop %v915
    %v941 = vrcp.pop %v923
    %v942 = vrcp.pop %v931
    %v943 = vrcp.pop %v939
    %v944 = vmul.f32 %v900, %v940
    %v945 = vmul.f32 %v901, %v941
    %v946 = vmul.f32 %v902, %v940
    %v947 = vmul.f32 %v903, %v941
    %v948 = vmul.f32 %v904, %v942
    %v949 = vmul.f32 %v905, %v943
    %v950 = vmul.f32 %v906, %v942
    %v951 = vmul.f32 %v907, %v943
    %v952 = vmul.f32 %v944, %v944
    %v953 = vmul.f32 %v945, %v945
    %v954 = vmul.f32 %v946, %v946
    %v955 = vmul.f32 %v947, %v947
    %v956 = vmul.f32 %v948, %v948
    %v957 = vmul.f32 %v949, %v949
    %v958 = vmul.f32 %v950, %v950
    %v959 = vmul.f32 %v951, %v951
    %960 = vmatprep.subr.mxu0 %v14
    %961 = vmatpush1.xpose.msra.mxu0 %v13
    %962 = vmatprep.subr.mxu0 0.0
    %963 = vmatpush1.xpose.msra.mxu0 0.0
    %964 = vmatprep.subr.mxu0 0.0
    %965 = vmatpush1.xpose.msra.mxu0 0.0
    %966 = vmatprep.subr.mxu0 0.0
    %967 = vmatpush1.xpose.msra.mxu0 0.0
    %968 = vmatprep.subr.mxu0 0.0
    %969 = vmatpush1.xpose.msra.mxu0 0.0
    %970 = vmatprep.subr.mxu0 0.0
    %971 = vmatpush1.xpose.msra.mxu0 0.0
    %972 = vmatprep.subr.mxu0 0.0
    %973 = vmatpush1.xpose.msra.mxu0 0.0
    %974 = vmatprep.subr.mxu0 0.0
    %975 = vmatpush1.xpose.msra.mxu0 0.0
    %976 = vmatprep.subr.mxu0 0.0
    %977 = vmatpush1.xpose.msra.mxu0 0.0
    %978 = vmatprep.subr.mxu0 0.0
    %979 = vmatpush1.xpose.msra.mxu0 0.0
    %980 = vmatprep.subr.mxu0 0.0
    %981 = vmatpush1.xpose.msra.mxu0 0.0
    %982 = vmatprep.subr.mxu0 0.0
    %983 = vmatpush1.xpose.msra.mxu0 0.0
    %984 = vmatprep.subr.mxu0 0.0
    %985 = vmatpush1.xpose.msra.mxu0 0.0
    %986 = vmatprep.subr.mxu0 0.0
    %987 = vmatpush1.xpose.msra.mxu0 0.0
    %988 = vmatprep.subr.mxu0 0.0
    %989 = vmatpush1.xpose.msra.mxu0 0.0
    %990 = vmatprep.subr.mxu0 0.0
    %991 = vmatpush1.xpose.msra.mxu0 0.0
    %992 = vmatprep.subr.mxu0 0.0
    %993 = vmatpush1.xpose.msra.mxu0 0.0
    %994 = vmatprep.subr.mxu0 0.0
    %995 = vmatpush1.xpose.msra.mxu0 0.0
    %996 = vmatprep.subr.mxu0 0.0
    %997 = vmatpush1.xpose.msra.mxu0 0.0
    %998 = vmatprep.subr.mxu0 0.0
    %999 = vmatpush1.xpose.msra.mxu0 0.0
    %1000 = vmatprep.subr.mxu0 0.0
    %1001 = vmatpush1.xpose.msra.mxu0 0.0
    %1002 = vmatprep.subr.mxu0 0.0
    %1003 = vmatpush1.xpose.msra.mxu0 0.0
    %1004 = vmatprep.subr.mxu0 0.0
    %1005 = vmatpush1.xpose.msra.mxu0 0.0
    %1006 = vmatprep.subr.mxu0 0.0
    %1007 = vmatpush1.xpose.msra.mxu0 0.0
    %1008 = vmatprep.subr.mxu0 0.0
    %1009 = vmatpush1.xpose.msra.mxu0 0.0
    %1010 = vmatprep.subr.mxu0 0.0
    %1011 = vmatpush1.xpose.msra.mxu0 0.0
    %1012 = vmatprep.subr.mxu0 0.0
    %1013 = vmatpush1.xpose.msra.mxu0 0.0
    %1014 = vmatprep.subr.mxu0 0.0
    %1015 = vmatpush1.xpose.msra.mxu0 0.0
    %1016 = vmatprep.subr.mxu0 0.0
    %1017 = vmatpush1.xpose.msra.mxu0 0.0
    %1018 = vmatprep.subr.mxu0 0.0
    %1019 = vmatpush1.xpose.msra.mxu0 0.0
    %1020 = vmatprep.subr.mxu0 0.0
    %1021 = vmatpush1.xpose.msra.mxu0 0.0
    %1022 = vmatprep.subr.mxu0 0.0
    %1023 = vmatpush1.xpose.msra.mxu0 0.0
    %1024 = vmatprep.mubr.f32.mxu0 %v953
    %1025 = vmatmul.mubr.f32.gmra.mrb[0].mxu0 %v952
    %v1026 = vpop.f32.mrb[0].mxu0
    %v1027 = vadd.f32 0.0, %v1026
    %v1028 = vpop.f32.mrb[0].mxu0
    %1029 = vmatprep.mubr.f32.mxu0 %v955
    %1030 = vmatmul.mubr.f32.gmra.mrb[0].mxu0 %v954
    %v1031 = vpop.f32.mrb[0].mxu0
    %v1032 = vadd.f32 0.0, %v1031
    %v1033 = vpop.f32.mrb[0].mxu0
    %1034 = vdwg.mxu0
    %1035 = vmatprep.subr.mxu0 %v16
    %1036 = vmatpush1.xpose.msra.mxu0 %v15
    %1037 = vmatprep.subr.mxu0 0.0
    %1038 = vmatpush1.xpose.msra.mxu0 0.0
    %1039 = vmatprep.subr.mxu0 0.0
    %1040 = vmatpush1.xpose.msra.mxu0 0.0
    %1041 = vmatprep.subr.mxu0 0.0
    %1042 = vmatpush1.xpose.msra.mxu0 0.0
    %1043 = vmatprep.subr.mxu0 0.0
    %1044 = vmatpush1.xpose.msra.mxu0 0.0
    %1045 = vmatprep.subr.mxu0 0.0
    %1046 = vmatpush1.xpose.msra.mxu0 0.0
    %1047 = vmatprep.subr.mxu0 0.0
    %1048 = vmatpush1.xpose.msra.mxu0 0.0
    %1049 = vmatprep.subr.mxu0 0.0
    %1050 = vmatpush1.xpose.msra.mxu0 0.0
    %1051 = vmatprep.subr.mxu0 0.0
    %1052 = vmatpush1.xpose.msra.mxu0 0.0
    %1053 = vmatprep.subr.mxu0 0.0
    %1054 = vmatpush1.xpose.msra.mxu0 0.0
    %1055 = vmatprep.subr.mxu0 0.0
    %1056 = vmatpush1.xpose.msra.mxu0 0.0
    %1057 = vmatprep.subr.mxu0 0.0
    %1058 = vmatpush1.xpose.msra.mxu0 0.0
    %1059 = vmatprep.subr.mxu0 0.0
    %1060 = vmatpush1.xpose.msra.mxu0 0.0
    %1061 = vmatprep.subr.mxu0 0.0
    %1062 = vmatpush1.xpose.msra.mxu0 0.0
    %1063 = vmatprep.subr.mxu0 0.0
    %1064 = vmatpush1.xpose.msra.mxu0 0.0
    %1065 = vmatprep.subr.mxu0 0.0
    %1066 = vmatpush1.xpose.msra.mxu0 0.0
    %1067 = vmatprep.subr.mxu0 0.0
    %1068 = vmatpush1.xpose.msra.mxu0 0.0
    %1069 = vmatprep.subr.mxu0 0.0
    %1070 = vmatpush1.xpose.msra.mxu0 0.0
    %1071 = vmatprep.subr.mxu0 0.0
    %1072 = vmatpush1.xpose.msra.mxu0 0.0
    %1073 = vmatprep.subr.mxu0 0.0
    %1074 = vmatpush1.xpose.msra.mxu0 0.0
    %1075 = vmatprep.subr.mxu0 0.0
    %1076 = vmatpush1.xpose.msra.mxu0 0.0
    %1077 = vmatprep.subr.mxu0 0.0
    %1078 = vmatpush1.xpose.msra.mxu0 0.0
    %1079 = vmatprep.subr.mxu0 0.0
    %1080 = vmatpush1.xpose.msra.mxu0 0.0
    %1081 = vmatprep.subr.mxu0 0.0
    %1082 = vmatpush1.xpose.msra.mxu0 0.0
    %1083 = vmatprep.subr.mxu0 0.0
    %1084 = vmatpush1.xpose.msra.mxu0 0.0
    %1085 = vmatprep.subr.mxu0 0.0
    %1086 = vmatpush1.xpose.msra.mxu0 0.0
    %1087 = vmatprep.subr.mxu0 0.0
    %1088 = vmatpush1.xpose.msra.mxu0 0.0
    %1089 = vmatprep.subr.mxu0 0.0
    %1090 = vmatpush1.xpose.msra.mxu0 0.0
    %1091 = vmatprep.subr.mxu0 0.0
    %1092 = vmatpush1.xpose.msra.mxu0 0.0
    %1093 = vmatprep.subr.mxu0 0.0
    %1094 = vmatpush1.xpose.msra.mxu0 0.0
    %1095 = vmatprep.subr.mxu0 0.0
    %1096 = vmatpush1.xpose.msra.mxu0 0.0
    %1097 = vmatprep.subr.mxu0 0.0
    %1098 = vmatpush1.xpose.msra.mxu0 0.0
    %1099 = vmatprep.mubr.f32.mxu0 %v957
    %1100 = vmatmul.mubr.f32.gmra.mrb[0].mxu0 %v956
    %v1101 = vpop.f32.mrb[0].mxu0
    %v1102 = vadd.f32 0.0, %v1101
    %v1103 = vpop.f32.mrb[0].mxu0
    %1104 = vmatprep.mubr.f32.mxu0 %v959
    %1105 = vmatmul.mubr.f32.gmra.mrb[0].mxu0 %v958
    %v1106 = vpop.f32.mrb[0].mxu0
    %v1107 = vadd.f32 0.0, %v1106
    %v1108 = vpop.f32.mrb[0].mxu0
    %1109 = vdwg.mxu0
    %v1110 = vmax.f32 %v1027, 1e-30
    %v1111 = vmax.f32 %v1032, 1e-30
    %v1112 = vmax.f32 %v1102, 1e-30
    %v1113 = vmax.f32 %v1107, 1e-30
    %1115 = vset.pattern.permute.xlu0 4
    %1116 = vperm.xlu0 %1115, %v1110
    %v1117 = vpop.permute.xlu0 %1116
    %1120 = vset.pattern.permute.xlu0 4
    %1121 = vperm.xlu0 %1120, %v1111
    %v1122 = vpop.permute.xlu0 %1121
    %1125 = vset.pattern.permute.xlu0 4
    %1126 = vperm.xlu0 %1125, %v1112
    %v1127 = vpop.permute.xlu0 %1126
    %1130 = vset.pattern.permute.xlu0 4
    %1131 = vperm.xlu0 %1130, %v1113
    %v1132 = vpop.permute.xlu0 %1131
    %v1134 = vrcp.pop %v1117
    %v1135 = vmul.f32 %v1027, %v1134
    %v1136 = vrcp.pop %v1122
    %v1137 = vmul.f32 %v1032, %v1136
    %v1138 = vrcp.pop %v1127
    %v1139 = vmul.f32 %v1102, %v1138
    %v1140 = vrcp.pop %v1132
    %v1141 = vmul.f32 %v1107, %v1140
    %1143 = vset.pattern.permute.xlu0 0
    %1144 = vperm.xlu0 %1143, %v1135
    %v1145 = vpop.permute.xlu0 %1144
    %1148 = vset.pattern.permute.xlu0 0
    %1149 = vperm.xlu0 %1148, %v1137
    %v1150 = vpop.permute.xlu0 %1149
    %1153 = vset.pattern.permute.xlu0 0
    %1154 = vperm.xlu0 %1153, %v1139
    %v1155 = vpop.permute.xlu0 %1154
    %1158 = vset.pattern.permute.xlu0 0
    %1159 = vperm.xlu0 %1158, %v1141
    %v1160 = vpop.permute.xlu0 %1159
    %v1162 = vsub.f32 %v268, %v1145
    %v1163 = vsub.f32 %v272, %v1145
    %v1164 = vsub.f32 %v268, %v1150
    %v1165 = vsub.f32 %v272, %v1150
    %v1166 = vsub.f32 %v276, %v1155
    %v1167 = vsub.f32 %v280, %v1155
    %v1168 = vsub.f32 %v276, %v1160
    %v1169 = vsub.f32 %v280, %v1160
    %v1170 = vmul.f32 %v1162, %v1162
    %v1171 = vmul.f32 %v1163, %v1163
    %v1172 = vmul.f32 %v1164, %v1164
    %v1173 = vmul.f32 %v1165, %v1165
    %v1174 = vmul.f32 %v1166, %v1166
    %v1175 = vmul.f32 %v1167, %v1167
    %v1176 = vmul.f32 %v1168, %v1168
    %v1177 = vmul.f32 %v1169, %v1169
    %v1178 = vadd.f32 %v1170, 1e-12
    %v1179 = vadd.f32 %v1171, 1e-12
    %v1180 = vadd.f32 %v1172, 1e-12
    %v1181 = vadd.f32 %v1173, 1e-12
    %v1182 = vadd.f32 %v1174, 1e-12
    %v1183 = vadd.f32 %v1175, 1e-12
    %v1184 = vadd.f32 %v1176, 1e-12
    %v1185 = vadd.f32 %v1177, 1e-12
    %1186 = vset.pattern.permute.xlu0 1
    %1187 = vperm.xlu0 %1186, %v1135
    %v1188 = vpop.permute.xlu0 %1187
    %1190 = vset.pattern.permute.xlu0 1
    %1191 = vperm.xlu0 %1190, %v1137
    %v1192 = vpop.permute.xlu0 %1191
    %1194 = vset.pattern.permute.xlu0 1
    %1195 = vperm.xlu0 %1194, %v1139
    %v1196 = vpop.permute.xlu0 %1195
    %1198 = vset.pattern.permute.xlu0 1
    %1199 = vperm.xlu0 %1198, %v1141
    %v1200 = vpop.permute.xlu0 %1199
    %v1202 = vsub.f32 %v328, %v1188
    %v1203 = vsub.f32 %v332, %v1188
    %v1204 = vsub.f32 %v328, %v1192
    %v1205 = vsub.f32 %v332, %v1192
    %v1206 = vsub.f32 %v336, %v1196
    %v1207 = vsub.f32 %v340, %v1196
    %v1208 = vsub.f32 %v336, %v1200
    %v1209 = vsub.f32 %v340, %v1200
    %v1210 = vmul.f32 %v1202, %v1202
    %v1211 = vmul.f32 %v1203, %v1203
    %v1212 = vmul.f32 %v1204, %v1204
    %v1213 = vmul.f32 %v1205, %v1205
    %v1214 = vmul.f32 %v1206, %v1206
    %v1215 = vmul.f32 %v1207, %v1207
    %v1216 = vmul.f32 %v1208, %v1208
    %v1217 = vmul.f32 %v1209, %v1209
    %v1218 = vadd.f32 %v1178, %v1210
    %v1219 = vadd.f32 %v1179, %v1211
    %v1220 = vadd.f32 %v1180, %v1212
    %v1221 = vadd.f32 %v1181, %v1213
    %v1222 = vadd.f32 %v1182, %v1214
    %v1223 = vadd.f32 %v1183, %v1215
    %v1224 = vadd.f32 %v1184, %v1216
    %v1225 = vadd.f32 %v1185, %v1217
    %1226 = vset.pattern.permute.xlu0 2
    %1227 = vperm.xlu0 %1226, %v1135
    %v1228 = vpop.permute.xlu0 %1227
    %1230 = vset.pattern.permute.xlu0 2
    %1231 = vperm.xlu0 %1230, %v1137
    %v1232 = vpop.permute.xlu0 %1231
    %1234 = vset.pattern.permute.xlu0 2
    %1235 = vperm.xlu0 %1234, %v1139
    %v1236 = vpop.permute.xlu0 %1235
    %1238 = vset.pattern.permute.xlu0 2
    %1239 = vperm.xlu0 %1238, %v1141
    %v1240 = vpop.permute.xlu0 %1239
    %v1242 = vsub.f32 %v384, %v1228
    %v1243 = vsub.f32 %v388, %v1228
    %v1244 = vsub.f32 %v384, %v1232
    %v1245 = vsub.f32 %v388, %v1232
    %v1246 = vsub.f32 %v392, %v1236
    %v1247 = vsub.f32 %v396, %v1236
    %v1248 = vsub.f32 %v392, %v1240
    %v1249 = vsub.f32 %v396, %v1240
    %v1250 = vmul.f32 %v1242, %v1242
    %v1251 = vmul.f32 %v1243, %v1243
    %v1252 = vmul.f32 %v1244, %v1244
    %v1253 = vmul.f32 %v1245, %v1245
    %v1254 = vmul.f32 %v1246, %v1246
    %v1255 = vmul.f32 %v1247, %v1247
    %v1256 = vmul.f32 %v1248, %v1248
    %v1257 = vmul.f32 %v1249, %v1249
    %v1258 = vadd.f32 %v1218, %v1250
    %v1259 = vadd.f32 %v1219, %v1251
    %v1260 = vadd.f32 %v1220, %v1252
    %v1261 = vadd.f32 %v1221, %v1253
    %v1262 = vadd.f32 %v1222, %v1254
    %v1263 = vadd.f32 %v1223, %v1255
    %v1264 = vadd.f32 %v1224, %v1256
    %v1265 = vadd.f32 %v1225, %v1257
    %1266 = vset.pattern.permute.xlu0 3
    %1267 = vperm.xlu0 %1266, %v1135
    %v1268 = vpop.permute.xlu0 %1267
    %1270 = vset.pattern.permute.xlu0 3
    %1271 = vperm.xlu0 %1270, %v1137
    %v1272 = vpop.permute.xlu0 %1271
    %1274 = vset.pattern.permute.xlu0 3
    %1275 = vperm.xlu0 %1274, %v1139
    %v1276 = vpop.permute.xlu0 %1275
    %1278 = vset.pattern.permute.xlu0 3
    %1279 = vperm.xlu0 %1278, %v1141
    %v1280 = vpop.permute.xlu0 %1279
    %v1282 = vsub.f32 %v440, %v1268
    %v1283 = vsub.f32 %v444, %v1268
    %v1284 = vsub.f32 %v440, %v1272
    %v1285 = vsub.f32 %v444, %v1272
    %v1286 = vsub.f32 %v448, %v1276
    %v1287 = vsub.f32 %v452, %v1276
    %v1288 = vsub.f32 %v448, %v1280
    %v1289 = vsub.f32 %v452, %v1280
    %v1290 = vmul.f32 %v1282, %v1282
    %v1291 = vmul.f32 %v1283, %v1283
    %v1292 = vmul.f32 %v1284, %v1284
    %v1293 = vmul.f32 %v1285, %v1285
    %v1294 = vmul.f32 %v1286, %v1286
    %v1295 = vmul.f32 %v1287, %v1287
    %v1296 = vmul.f32 %v1288, %v1288
    %v1297 = vmul.f32 %v1289, %v1289
    %v1298 = vadd.f32 %v1258, %v1290
    %v1299 = vadd.f32 %v1259, %v1291
    %v1300 = vadd.f32 %v1260, %v1292
    %v1301 = vadd.f32 %v1261, %v1293
    %v1302 = vadd.f32 %v1262, %v1294
    %v1303 = vadd.f32 %v1263, %v1295
    %v1304 = vadd.f32 %v1264, %v1296
    %v1305 = vadd.f32 %v1265, %v1297
    %v1306 = vrcp.pop %v1298
    %v1307 = vrcp.pop %v1299
    %v1308 = vrcp.pop %v1300
    %v1309 = vrcp.pop %v1301
    %v1310 = vrcp.pop %v1302
    %v1311 = vrcp.pop %v1303
    %v1312 = vrcp.pop %v1304
    %v1313 = vrcp.pop %v1305
    %v1314 = vsel %vm501, %v1308, 0.0
    %v1315 = vadd.f32 %v1306, %v1314
    %v1316 = vrot.slane %v1315, 4
    %v1317 = vadd.f32 %v1315, %v1316
    %v1318 = vrot.slane %v1317, 2
    %v1319 = vadd.f32 %v1317, %v1318
    %v1320 = vrot.slane %v1319, 1
    %v1321 = vadd.f32 %v1319, %v1320
    %v1322 = vsel %vm501, %v1309, 0.0
    %v1323 = vadd.f32 %v1307, %v1322
    %v1324 = vrot.slane %v1323, 4
    %v1325 = vadd.f32 %v1323, %v1324
    %v1326 = vrot.slane %v1325, 2
    %v1327 = vadd.f32 %v1325, %v1326
    %v1328 = vrot.slane %v1327, 1
    %v1329 = vadd.f32 %v1327, %v1328
    %v1330 = vsel %vm501, %v1312, 0.0
    %v1331 = vadd.f32 %v1310, %v1330
    %v1332 = vrot.slane %v1331, 4
    %v1333 = vadd.f32 %v1331, %v1332
    %v1334 = vrot.slane %v1333, 2
    %v1335 = vadd.f32 %v1333, %v1334
    %v1336 = vrot.slane %v1335, 1
    %v1337 = vadd.f32 %v1335, %v1336
    %v1338 = vsel %vm501, %v1313, 0.0
    %v1339 = vadd.f32 %v1311, %v1338
    %v1340 = vrot.slane %v1339, 4
    %v1341 = vadd.f32 %v1339, %v1340
    %v1342 = vrot.slane %v1341, 2
    %v1343 = vadd.f32 %v1341, %v1342
    %v1344 = vrot.slane %v1343, 1
    %v1345 = vadd.f32 %v1343, %v1344
    %v1346 = vrcp.pop %v1321
    %v1347 = vrcp.pop %v1329
    %v1348 = vrcp.pop %v1337
    %v1349 = vrcp.pop %v1345
    %v1350 = vmul.f32 %v1306, %v1346
    %v1351 = vmul.f32 %v1307, %v1347
    %v1352 = vmul.f32 %v1308, %v1346
    %v1353 = vmul.f32 %v1309, %v1347
    %v1354 = vmul.f32 %v1310, %v1348
    %v1355 = vmul.f32 %v1311, %v1349
    %v1356 = vmul.f32 %v1312, %v1348
    %v1357 = vmul.f32 %v1313, %v1349
    %v1358 = vmul.f32 %v1350, %v1350
    %v1359 = vmul.f32 %v1351, %v1351
    %v1360 = vmul.f32 %v1352, %v1352
    %v1361 = vmul.f32 %v1353, %v1353
    %v1362 = vmul.f32 %v1354, %v1354
    %v1363 = vmul.f32 %v1355, %v1355
    %v1364 = vmul.f32 %v1356, %v1356
    %v1365 = vmul.f32 %v1357, %v1357
    %1366 = vmatprep.subr.mxu0 %v14
    %1367 = vmatpush1.xpose.msra.mxu0 %v13
    %1368 = vmatprep.subr.mxu0 0.0
    %1369 = vmatpush1.xpose.msra.mxu0 0.0
    %1370 = vmatprep.subr.mxu0 0.0
    %1371 = vmatpush1.xpose.msra.mxu0 0.0
    %1372 = vmatprep.subr.mxu0 0.0
    %1373 = vmatpush1.xpose.msra.mxu0 0.0
    %1374 = vmatprep.subr.mxu0 0.0
    %1375 = vmatpush1.xpose.msra.mxu0 0.0
    %1376 = vmatprep.subr.mxu0 0.0
    %1377 = vmatpush1.xpose.msra.mxu0 0.0
    %1378 = vmatprep.subr.mxu0 0.0
    %1379 = vmatpush1.xpose.msra.mxu0 0.0
    %1380 = vmatprep.subr.mxu0 0.0
    %1381 = vmatpush1.xpose.msra.mxu0 0.0
    %1382 = vmatprep.subr.mxu0 0.0
    %1383 = vmatpush1.xpose.msra.mxu0 0.0
    %1384 = vmatprep.subr.mxu0 0.0
    %1385 = vmatpush1.xpose.msra.mxu0 0.0
    %1386 = vmatprep.subr.mxu0 0.0
    %1387 = vmatpush1.xpose.msra.mxu0 0.0
    %1388 = vmatprep.subr.mxu0 0.0
    %1389 = vmatpush1.xpose.msra.mxu0 0.0
    %1390 = vmatprep.subr.mxu0 0.0
    %1391 = vmatpush1.xpose.msra.mxu0 0.0
    %1392 = vmatprep.subr.mxu0 0.0
    %1393 = vmatpush1.xpose.msra.mxu0 0.0
    %1394 = vmatprep.subr.mxu0 0.0
    %1395 = vmatpush1.xpose.msra.mxu0 0.0
    %1396 = vmatprep.subr.mxu0 0.0
    %1397 = vmatpush1.xpose.msra.mxu0 0.0
    %1398 = vmatprep.subr.mxu0 0.0
    %1399 = vmatpush1.xpose.msra.mxu0 0.0
    %1400 = vmatprep.subr.mxu0 0.0
    %1401 = vmatpush1.xpose.msra.mxu0 0.0
    %1402 = vmatprep.subr.mxu0 0.0
    %1403 = vmatpush1.xpose.msra.mxu0 0.0
    %1404 = vmatprep.subr.mxu0 0.0
    %1405 = vmatpush1.xpose.msra.mxu0 0.0
    %1406 = vmatprep.subr.mxu0 0.0
    %1407 = vmatpush1.xpose.msra.mxu0 0.0
    %1408 = vmatprep.subr.mxu0 0.0
    %1409 = vmatpush1.xpose.msra.mxu0 0.0
    %1410 = vmatprep.subr.mxu0 0.0
    %1411 = vmatpush1.xpose.msra.mxu0 0.0
    %1412 = vmatprep.subr.mxu0 0.0
    %1413 = vmatpush1.xpose.msra.mxu0 0.0
    %1414 = vmatprep.subr.mxu0 0.0
    %1415 = vmatpush1.xpose.msra.mxu0 0.0
    %1416 = vmatprep.subr.mxu0 0.0
    %1417 = vmatpush1.xpose.msra.mxu0 0.0
    %1418 = vmatprep.subr.mxu0 0.0
    %1419 = vmatpush1.xpose.msra.mxu0 0.0
    %1420 = vmatprep.subr.mxu0 0.0
    %1421 = vmatpush1.xpose.msra.mxu0 0.0
    %1422 = vmatprep.subr.mxu0 0.0
    %1423 = vmatpush1.xpose.msra.mxu0 0.0
    %1424 = vmatprep.subr.mxu0 0.0
    %1425 = vmatpush1.xpose.msra.mxu0 0.0
    %1426 = vmatprep.subr.mxu0 0.0
    %1427 = vmatpush1.xpose.msra.mxu0 0.0
    %1428 = vmatprep.subr.mxu0 0.0
    %1429 = vmatpush1.xpose.msra.mxu0 0.0
    %1430 = vmatprep.mubr.f32.mxu0 %v1359
    %1431 = vmatmul.mubr.f32.gmra.mrb[0].mxu0 %v1358
    %v1432 = vpop.f32.mrb[0].mxu0
    %v1433 = vadd.f32 0.0, %v1432
    %v1434 = vpop.f32.mrb[0].mxu0
    %1435 = vmatprep.mubr.f32.mxu0 %v1361
    %1436 = vmatmul.mubr.f32.gmra.mrb[0].mxu0 %v1360
    %v1437 = vpop.f32.mrb[0].mxu0
    %v1438 = vadd.f32 0.0, %v1437
    %v1439 = vpop.f32.mrb[0].mxu0
    %1440 = vdwg.mxu0
    %1441 = vmatprep.subr.mxu0 %v16
    %1442 = vmatpush1.xpose.msra.mxu0 %v15
    %1443 = vmatprep.subr.mxu0 0.0
    %1444 = vmatpush1.xpose.msra.mxu0 0.0
    %1445 = vmatprep.subr.mxu0 0.0
    %1446 = vmatpush1.xpose.msra.mxu0 0.0
    %1447 = vmatprep.subr.mxu0 0.0
    %1448 = vmatpush1.xpose.msra.mxu0 0.0
    %1449 = vmatprep.subr.mxu0 0.0
    %1450 = vmatpush1.xpose.msra.mxu0 0.0
    %1451 = vmatprep.subr.mxu0 0.0
    %1452 = vmatpush1.xpose.msra.mxu0 0.0
    %1453 = vmatprep.subr.mxu0 0.0
    %1454 = vmatpush1.xpose.msra.mxu0 0.0
    %1455 = vmatprep.subr.mxu0 0.0
    %1456 = vmatpush1.xpose.msra.mxu0 0.0
    %1457 = vmatprep.subr.mxu0 0.0
    %1458 = vmatpush1.xpose.msra.mxu0 0.0
    %1459 = vmatprep.subr.mxu0 0.0
    %1460 = vmatpush1.xpose.msra.mxu0 0.0
    %1461 = vmatprep.subr.mxu0 0.0
    %1462 = vmatpush1.xpose.msra.mxu0 0.0
    %1463 = vmatprep.subr.mxu0 0.0
    %1464 = vmatpush1.xpose.msra.mxu0 0.0
    %1465 = vmatprep.subr.mxu0 0.0
    %1466 = vmatpush1.xpose.msra.mxu0 0.0
    %1467 = vmatprep.subr.mxu0 0.0
    %1468 = vmatpush1.xpose.msra.mxu0 0.0
    %1469 = vmatprep.subr.mxu0 0.0
    %1470 = vmatpush1.xpose.msra.mxu0 0.0
    %1471 = vmatprep.subr.mxu0 0.0
    %1472 = vmatpush1.xpose.msra.mxu0 0.0
    %1473 = vmatprep.subr.mxu0 0.0
    %1474 = vmatpush1.xpose.msra.mxu0 0.0
    %1475 = vmatprep.subr.mxu0 0.0
    %1476 = vmatpush1.xpose.msra.mxu0 0.0
    %1477 = vmatprep.subr.mxu0 0.0
    %1478 = vmatpush1.xpose.msra.mxu0 0.0
    %1479 = vmatprep.subr.mxu0 0.0
    %1480 = vmatpush1.xpose.msra.mxu0 0.0
    %1481 = vmatprep.subr.mxu0 0.0
    %1482 = vmatpush1.xpose.msra.mxu0 0.0
    %1483 = vmatprep.subr.mxu0 0.0
    %1484 = vmatpush1.xpose.msra.mxu0 0.0
    %1485 = vmatprep.subr.mxu0 0.0
    %1486 = vmatpush1.xpose.msra.mxu0 0.0
    %1487 = vmatprep.subr.mxu0 0.0
    %1488 = vmatpush1.xpose.msra.mxu0 0.0
    %1489 = vmatprep.subr.mxu0 0.0
    %1490 = vmatpush1.xpose.msra.mxu0 0.0
    %1491 = vmatprep.subr.mxu0 0.0
    %1492 = vmatpush1.xpose.msra.mxu0 0.0
    %1493 = vmatprep.subr.mxu0 0.0
    %1494 = vmatpush1.xpose.msra.mxu0 0.0
    %1495 = vmatprep.subr.mxu0 0.0
    %1496 = vmatpush1.xpose.msra.mxu0 0.0
    %1497 = vmatprep.subr.mxu0 0.0
    %1498 = vmatpush1.xpose.msra.mxu0 0.0
    %1499 = vmatprep.subr.mxu0 0.0
    %1500 = vmatpush1.xpose.msra.mxu0 0.0
    %1501 = vmatprep.subr.mxu0 0.0
    %1502 = vmatpush1.xpose.msra.mxu0 0.0
    %1503 = vmatprep.subr.mxu0 0.0
    %1504 = vmatpush1.xpose.msra.mxu0 0.0
    %1505 = vmatprep.mubr.f32.mxu0 %v1363
    %1506 = vmatmul.mubr.f32.gmra.mrb[0].mxu0 %v1362
    %v1507 = vpop.f32.mrb[0].mxu0
    %v1508 = vadd.f32 0.0, %v1507
    %v1509 = vpop.f32.mrb[0].mxu0
    %1510 = vmatprep.mubr.f32.mxu0 %v1365
    %1511 = vmatmul.mubr.f32.gmra.mrb[0].mxu0 %v1364
    %v1512 = vpop.f32.mrb[0].mxu0
    %v1513 = vadd.f32 0.0, %v1512
    %v1514 = vpop.f32.mrb[0].mxu0
    %1515 = vdwg.mxu0
    %v1516 = vmax.f32 %v1433, 1e-30
    %v1517 = vmax.f32 %v1438, 1e-30
    %v1518 = vmax.f32 %v1508, 1e-30
    %v1519 = vmax.f32 %v1513, 1e-30
    %1521 = vset.pattern.permute.xlu0 4
    %1522 = vperm.xlu0 %1521, %v1516
    %v1523 = vpop.permute.xlu0 %1522
    %1526 = vset.pattern.permute.xlu0 4
    %1527 = vperm.xlu0 %1526, %v1517
    %v1528 = vpop.permute.xlu0 %1527
    %1531 = vset.pattern.permute.xlu0 4
    %1532 = vperm.xlu0 %1531, %v1518
    %v1533 = vpop.permute.xlu0 %1532
    %1536 = vset.pattern.permute.xlu0 4
    %1537 = vperm.xlu0 %1536, %v1519
    %v1538 = vpop.permute.xlu0 %1537
    %v1540 = vrcp.pop %v1523
    %v1541 = vmul.f32 %v1433, %v1540
    %v1542 = vrcp.pop %v1528
    %v1543 = vmul.f32 %v1438, %v1542
    %v1544 = vrcp.pop %v1533
    %v1545 = vmul.f32 %v1508, %v1544
    %v1546 = vrcp.pop %v1538
    %v1547 = vmul.f32 %v1513, %v1546
    %1549 = vset.pattern.permute.xlu0 0
    %1550 = vperm.xlu0 %1549, %v1541
    %v1551 = vpop.permute.xlu0 %1550
    %1554 = vset.pattern.permute.xlu0 0
    %1555 = vperm.xlu0 %1554, %v1543
    %v1556 = vpop.permute.xlu0 %1555
    %1559 = vset.pattern.permute.xlu0 0
    %1560 = vperm.xlu0 %1559, %v1545
    %v1561 = vpop.permute.xlu0 %1560
    %1564 = vset.pattern.permute.xlu0 0
    %1565 = vperm.xlu0 %1564, %v1547
    %v1566 = vpop.permute.xlu0 %1565
    %v1568 = vsub.f32 %v268, %v1551
    %v1569 = vsub.f32 %v272, %v1551
    %v1570 = vsub.f32 %v268, %v1556
    %v1571 = vsub.f32 %v272, %v1556
    %v1572 = vsub.f32 %v276, %v1561
    %v1573 = vsub.f32 %v280, %v1561
    %v1574 = vsub.f32 %v276, %v1566
    %v1575 = vsub.f32 %v280, %v1566
    %v1576 = vmul.f32 %v1568, %v1568
    %v1577 = vmul.f32 %v1569, %v1569
    %v1578 = vmul.f32 %v1570, %v1570
    %v1579 = vmul.f32 %v1571, %v1571
    %v1580 = vmul.f32 %v1572, %v1572
    %v1581 = vmul.f32 %v1573, %v1573
    %v1582 = vmul.f32 %v1574, %v1574
    %v1583 = vmul.f32 %v1575, %v1575
    %v1584 = vadd.f32 %v1576, 1e-12
    %v1585 = vadd.f32 %v1577, 1e-12
    %v1586 = vadd.f32 %v1578, 1e-12
    %v1587 = vadd.f32 %v1579, 1e-12
    %v1588 = vadd.f32 %v1580, 1e-12
    %v1589 = vadd.f32 %v1581, 1e-12
    %v1590 = vadd.f32 %v1582, 1e-12
    %v1591 = vadd.f32 %v1583, 1e-12
    %1592 = vset.pattern.permute.xlu0 1
    %1593 = vperm.xlu0 %1592, %v1541
    %v1594 = vpop.permute.xlu0 %1593
    %1596 = vset.pattern.permute.xlu0 1
    %1597 = vperm.xlu0 %1596, %v1543
    %v1598 = vpop.permute.xlu0 %1597
    %1600 = vset.pattern.permute.xlu0 1
    %1601 = vperm.xlu0 %1600, %v1545
    %v1602 = vpop.permute.xlu0 %1601
    %1604 = vset.pattern.permute.xlu0 1
    %1605 = vperm.xlu0 %1604, %v1547
    %v1606 = vpop.permute.xlu0 %1605
    %v1608 = vsub.f32 %v328, %v1594
    %v1609 = vsub.f32 %v332, %v1594
    %v1610 = vsub.f32 %v328, %v1598
    %v1611 = vsub.f32 %v332, %v1598
    %v1612 = vsub.f32 %v336, %v1602
    %v1613 = vsub.f32 %v340, %v1602
    %v1614 = vsub.f32 %v336, %v1606
    %v1615 = vsub.f32 %v340, %v1606
    %v1616 = vmul.f32 %v1608, %v1608
    %v1617 = vmul.f32 %v1609, %v1609
    %v1618 = vmul.f32 %v1610, %v1610
    %v1619 = vmul.f32 %v1611, %v1611
    %v1620 = vmul.f32 %v1612, %v1612
    %v1621 = vmul.f32 %v1613, %v1613
    %v1622 = vmul.f32 %v1614, %v1614
    %v1623 = vmul.f32 %v1615, %v1615
    %v1624 = vadd.f32 %v1584, %v1616
    %v1625 = vadd.f32 %v1585, %v1617
    %v1626 = vadd.f32 %v1586, %v1618
    %v1627 = vadd.f32 %v1587, %v1619
    %v1628 = vadd.f32 %v1588, %v1620
    %v1629 = vadd.f32 %v1589, %v1621
    %v1630 = vadd.f32 %v1590, %v1622
    %v1631 = vadd.f32 %v1591, %v1623
    %1632 = vset.pattern.permute.xlu0 2
    %1633 = vperm.xlu0 %1632, %v1541
    %v1634 = vpop.permute.xlu0 %1633
    %1636 = vset.pattern.permute.xlu0 2
    %1637 = vperm.xlu0 %1636, %v1543
    %v1638 = vpop.permute.xlu0 %1637
    %1640 = vset.pattern.permute.xlu0 2
    %1641 = vperm.xlu0 %1640, %v1545
    %v1642 = vpop.permute.xlu0 %1641
    %1644 = vset.pattern.permute.xlu0 2
    %1645 = vperm.xlu0 %1644, %v1547
    %v1646 = vpop.permute.xlu0 %1645
    %v1648 = vsub.f32 %v384, %v1634
    %v1649 = vsub.f32 %v388, %v1634
    %v1650 = vsub.f32 %v384, %v1638
    %v1651 = vsub.f32 %v388, %v1638
    %v1652 = vsub.f32 %v392, %v1642
    %v1653 = vsub.f32 %v396, %v1642
    %v1654 = vsub.f32 %v392, %v1646
    %v1655 = vsub.f32 %v396, %v1646
    %v1656 = vmul.f32 %v1648, %v1648
    %v1657 = vmul.f32 %v1649, %v1649
    %v1658 = vmul.f32 %v1650, %v1650
    %v1659 = vmul.f32 %v1651, %v1651
    %v1660 = vmul.f32 %v1652, %v1652
    %v1661 = vmul.f32 %v1653, %v1653
    %v1662 = vmul.f32 %v1654, %v1654
    %v1663 = vmul.f32 %v1655, %v1655
    %v1664 = vadd.f32 %v1624, %v1656
    %v1665 = vadd.f32 %v1625, %v1657
    %v1666 = vadd.f32 %v1626, %v1658
    %v1667 = vadd.f32 %v1627, %v1659
    %v1668 = vadd.f32 %v1628, %v1660
    %v1669 = vadd.f32 %v1629, %v1661
    %v1670 = vadd.f32 %v1630, %v1662
    %v1671 = vadd.f32 %v1631, %v1663
    %1672 = vset.pattern.permute.xlu0 3
    %1673 = vperm.xlu0 %1672, %v1541
    %v1674 = vpop.permute.xlu0 %1673
    %1676 = vset.pattern.permute.xlu0 3
    %1677 = vperm.xlu0 %1676, %v1543
    %v1678 = vpop.permute.xlu0 %1677
    %1680 = vset.pattern.permute.xlu0 3
    %1681 = vperm.xlu0 %1680, %v1545
    %v1682 = vpop.permute.xlu0 %1681
    %1684 = vset.pattern.permute.xlu0 3
    %1685 = vperm.xlu0 %1684, %v1547
    %v1686 = vpop.permute.xlu0 %1685
    %v1688 = vsub.f32 %v440, %v1674
    %v1689 = vsub.f32 %v444, %v1674
    %v1690 = vsub.f32 %v440, %v1678
    %v1691 = vsub.f32 %v444, %v1678
    %v1692 = vsub.f32 %v448, %v1682
    %v1693 = vsub.f32 %v452, %v1682
    %v1694 = vsub.f32 %v448, %v1686
    %v1695 = vsub.f32 %v452, %v1686
    %v1696 = vmul.f32 %v1688, %v1688
    %v1697 = vmul.f32 %v1689, %v1689
    %v1698 = vmul.f32 %v1690, %v1690
    %v1699 = vmul.f32 %v1691, %v1691
    %v1700 = vmul.f32 %v1692, %v1692
    %v1701 = vmul.f32 %v1693, %v1693
    %v1702 = vmul.f32 %v1694, %v1694
    %v1703 = vmul.f32 %v1695, %v1695
    %v1704 = vadd.f32 %v1664, %v1696
    %v1705 = vadd.f32 %v1665, %v1697
    %v1706 = vadd.f32 %v1666, %v1698
    %v1707 = vadd.f32 %v1667, %v1699
    %v1708 = vadd.f32 %v1668, %v1700
    %v1709 = vadd.f32 %v1669, %v1701
    %v1710 = vadd.f32 %v1670, %v1702
    %v1711 = vadd.f32 %v1671, %v1703
    %v1712 = vrcp.pop %v1704
    %v1713 = vrcp.pop %v1705
    %v1714 = vrcp.pop %v1706
    %v1715 = vrcp.pop %v1707
    %v1716 = vrcp.pop %v1708
    %v1717 = vrcp.pop %v1709
    %v1718 = vrcp.pop %v1710
    %v1719 = vrcp.pop %v1711
    %v1720 = vsel %vm501, %v1714, 0.0
    %v1721 = vadd.f32 %v1712, %v1720
    %v1722 = vrot.slane %v1721, 4
    %v1723 = vadd.f32 %v1721, %v1722
    %v1724 = vrot.slane %v1723, 2
    %v1725 = vadd.f32 %v1723, %v1724
    %v1726 = vrot.slane %v1725, 1
    %v1727 = vadd.f32 %v1725, %v1726
    %v1728 = vsel %vm501, %v1715, 0.0
    %v1729 = vadd.f32 %v1713, %v1728
    %v1730 = vrot.slane %v1729, 4
    %v1731 = vadd.f32 %v1729, %v1730
    %v1732 = vrot.slane %v1731, 2
    %v1733 = vadd.f32 %v1731, %v1732
    %v1734 = vrot.slane %v1733, 1
    %v1735 = vadd.f32 %v1733, %v1734
    %v1736 = vsel %vm501, %v1718, 0.0
    %v1737 = vadd.f32 %v1716, %v1736
    %v1738 = vrot.slane %v1737, 4
    %v1739 = vadd.f32 %v1737, %v1738
    %v1740 = vrot.slane %v1739, 2
    %v1741 = vadd.f32 %v1739, %v1740
    %v1742 = vrot.slane %v1741, 1
    %v1743 = vadd.f32 %v1741, %v1742
    %v1744 = vsel %vm501, %v1719, 0.0
    %v1745 = vadd.f32 %v1717, %v1744
    %v1746 = vrot.slane %v1745, 4
    %v1747 = vadd.f32 %v1745, %v1746
    %v1748 = vrot.slane %v1747, 2
    %v1749 = vadd.f32 %v1747, %v1748
    %v1750 = vrot.slane %v1749, 1
    %v1751 = vadd.f32 %v1749, %v1750
    %v1752 = vrcp.pop %v1727
    %v1753 = vrcp.pop %v1735
    %v1754 = vrcp.pop %v1743
    %v1755 = vrcp.pop %v1751
    %v1756 = vmul.f32 %v1712, %v1752
    %v1757 = vmul.f32 %v1713, %v1753
    %v1758 = vmul.f32 %v1714, %v1752
    %v1759 = vmul.f32 %v1715, %v1753
    %v1760 = vmul.f32 %v1716, %v1754
    %v1761 = vmul.f32 %v1717, %v1755
    %v1762 = vmul.f32 %v1718, %v1754
    %v1763 = vmul.f32 %v1719, %v1755
    %v1764 = vmul.f32 %v1756, %v1756
    %v1765 = vmul.f32 %v1757, %v1757
    %v1766 = vmul.f32 %v1758, %v1758
    %v1767 = vmul.f32 %v1759, %v1759
    %v1768 = vmul.f32 %v1760, %v1760
    %v1769 = vmul.f32 %v1761, %v1761
    %v1770 = vmul.f32 %v1762, %v1762
    %v1771 = vmul.f32 %v1763, %v1763
    %1772 = vmatprep.subr.mxu0 %v14
    %1773 = vmatpush1.xpose.msra.mxu0 %v13
    %1774 = vmatprep.subr.mxu0 0.0
    %1775 = vmatpush1.xpose.msra.mxu0 0.0
    %1776 = vmatprep.subr.mxu0 0.0
    %1777 = vmatpush1.xpose.msra.mxu0 0.0
    %1778 = vmatprep.subr.mxu0 0.0
    %1779 = vmatpush1.xpose.msra.mxu0 0.0
    %1780 = vmatprep.subr.mxu0 0.0
    %1781 = vmatpush1.xpose.msra.mxu0 0.0
    %1782 = vmatprep.subr.mxu0 0.0
    %1783 = vmatpush1.xpose.msra.mxu0 0.0
    %1784 = vmatprep.subr.mxu0 0.0
    %1785 = vmatpush1.xpose.msra.mxu0 0.0
    %1786 = vmatprep.subr.mxu0 0.0
    %1787 = vmatpush1.xpose.msra.mxu0 0.0
    %1788 = vmatprep.subr.mxu0 0.0
    %1789 = vmatpush1.xpose.msra.mxu0 0.0
    %1790 = vmatprep.subr.mxu0 0.0
    %1791 = vmatpush1.xpose.msra.mxu0 0.0
    %1792 = vmatprep.subr.mxu0 0.0
    %1793 = vmatpush1.xpose.msra.mxu0 0.0
    %1794 = vmatprep.subr.mxu0 0.0
    %1795 = vmatpush1.xpose.msra.mxu0 0.0
    %1796 = vmatprep.subr.mxu0 0.0
    %1797 = vmatpush1.xpose.msra.mxu0 0.0
    %1798 = vmatprep.subr.mxu0 0.0
    %1799 = vmatpush1.xpose.msra.mxu0 0.0
    %1800 = vmatprep.subr.mxu0 0.0
    %1801 = vmatpush1.xpose.msra.mxu0 0.0
    %1802 = vmatprep.subr.mxu0 0.0
    %1803 = vmatpush1.xpose.msra.mxu0 0.0
    %1804 = vmatprep.subr.mxu0 0.0
    %1805 = vmatpush1.xpose.msra.mxu0 0.0
    %1806 = vmatprep.subr.mxu0 0.0
    %1807 = vmatpush1.xpose.msra.mxu0 0.0
    %1808 = vmatprep.subr.mxu0 0.0
    %1809 = vmatpush1.xpose.msra.mxu0 0.0
    %1810 = vmatprep.subr.mxu0 0.0
    %1811 = vmatpush1.xpose.msra.mxu0 0.0
    %1812 = vmatprep.subr.mxu0 0.0
    %1813 = vmatpush1.xpose.msra.mxu0 0.0
    %1814 = vmatprep.subr.mxu0 0.0
    %1815 = vmatpush1.xpose.msra.mxu0 0.0
    %1816 = vmatprep.subr.mxu0 0.0
    %1817 = vmatpush1.xpose.msra.mxu0 0.0
    %1818 = vmatprep.subr.mxu0 0.0
    %1819 = vmatpush1.xpose.msra.mxu0 0.0
    %1820 = vmatprep.subr.mxu0 0.0
    %1821 = vmatpush1.xpose.msra.mxu0 0.0
    %1822 = vmatprep.subr.mxu0 0.0
    %1823 = vmatpush1.xpose.msra.mxu0 0.0
    %1824 = vmatprep.subr.mxu0 0.0
    %1825 = vmatpush1.xpose.msra.mxu0 0.0
    %1826 = vmatprep.subr.mxu0 0.0
    %1827 = vmatpush1.xpose.msra.mxu0 0.0
    %1828 = vmatprep.subr.mxu0 0.0
    %1829 = vmatpush1.xpose.msra.mxu0 0.0
    %1830 = vmatprep.subr.mxu0 0.0
    %1831 = vmatpush1.xpose.msra.mxu0 0.0
    %1832 = vmatprep.subr.mxu0 0.0
    %1833 = vmatpush1.xpose.msra.mxu0 0.0
    %1834 = vmatprep.subr.mxu0 0.0
    %1835 = vmatpush1.xpose.msra.mxu0 0.0
    %1836 = vmatprep.mubr.f32.mxu0 %v1765
    %1837 = vmatmul.mubr.f32.gmra.mrb[0].mxu0 %v1764
    %v1838 = vpop.f32.mrb[0].mxu0
    %v1839 = vadd.f32 0.0, %v1838
    %v1840 = vpop.f32.mrb[0].mxu0
    %1841 = vmatprep.mubr.f32.mxu0 %v1767
    %1842 = vmatmul.mubr.f32.gmra.mrb[0].mxu0 %v1766
    %v1843 = vpop.f32.mrb[0].mxu0
    %v1844 = vadd.f32 0.0, %v1843
    %v1845 = vpop.f32.mrb[0].mxu0
    %1846 = vdwg.mxu0
    %1847 = vmatprep.subr.mxu0 %v16
    %1848 = vmatpush1.xpose.msra.mxu0 %v15
    %1849 = vmatprep.subr.mxu0 0.0
    %1850 = vmatpush1.xpose.msra.mxu0 0.0
    %1851 = vmatprep.subr.mxu0 0.0
    %1852 = vmatpush1.xpose.msra.mxu0 0.0
    %1853 = vmatprep.subr.mxu0 0.0
    %1854 = vmatpush1.xpose.msra.mxu0 0.0
    %1855 = vmatprep.subr.mxu0 0.0
    %1856 = vmatpush1.xpose.msra.mxu0 0.0
    %1857 = vmatprep.subr.mxu0 0.0
    %1858 = vmatpush1.xpose.msra.mxu0 0.0
    %1859 = vmatprep.subr.mxu0 0.0
    %1860 = vmatpush1.xpose.msra.mxu0 0.0
    %1861 = vmatprep.subr.mxu0 0.0
    %1862 = vmatpush1.xpose.msra.mxu0 0.0
    %1863 = vmatprep.subr.mxu0 0.0
    %1864 = vmatpush1.xpose.msra.mxu0 0.0
    %1865 = vmatprep.subr.mxu0 0.0
    %1866 = vmatpush1.xpose.msra.mxu0 0.0
    %1867 = vmatprep.subr.mxu0 0.0
    %1868 = vmatpush1.xpose.msra.mxu0 0.0
    %1869 = vmatprep.subr.mxu0 0.0
    %1870 = vmatpush1.xpose.msra.mxu0 0.0
    %1871 = vmatprep.subr.mxu0 0.0
    %1872 = vmatpush1.xpose.msra.mxu0 0.0
    %1873 = vmatprep.subr.mxu0 0.0
    %1874 = vmatpush1.xpose.msra.mxu0 0.0
    %1875 = vmatprep.subr.mxu0 0.0
    %1876 = vmatpush1.xpose.msra.mxu0 0.0
    %1877 = vmatprep.subr.mxu0 0.0
    %1878 = vmatpush1.xpose.msra.mxu0 0.0
    %1879 = vmatprep.subr.mxu0 0.0
    %1880 = vmatpush1.xpose.msra.mxu0 0.0
    %1881 = vmatprep.subr.mxu0 0.0
    %1882 = vmatpush1.xpose.msra.mxu0 0.0
    %1883 = vmatprep.subr.mxu0 0.0
    %1884 = vmatpush1.xpose.msra.mxu0 0.0
    %1885 = vmatprep.subr.mxu0 0.0
    %1886 = vmatpush1.xpose.msra.mxu0 0.0
    %1887 = vmatprep.subr.mxu0 0.0
    %1888 = vmatpush1.xpose.msra.mxu0 0.0
    %1889 = vmatprep.subr.mxu0 0.0
    %1890 = vmatpush1.xpose.msra.mxu0 0.0
    %1891 = vmatprep.subr.mxu0 0.0
    %1892 = vmatpush1.xpose.msra.mxu0 0.0
    %1893 = vmatprep.subr.mxu0 0.0
    %1894 = vmatpush1.xpose.msra.mxu0 0.0
    %1895 = vmatprep.subr.mxu0 0.0
    %1896 = vmatpush1.xpose.msra.mxu0 0.0
    %1897 = vmatprep.subr.mxu0 0.0
    %1898 = vmatpush1.xpose.msra.mxu0 0.0
    %1899 = vmatprep.subr.mxu0 0.0
    %1900 = vmatpush1.xpose.msra.mxu0 0.0
    %1901 = vmatprep.subr.mxu0 0.0
    %1902 = vmatpush1.xpose.msra.mxu0 0.0
    %1903 = vmatprep.subr.mxu0 0.0
    %1904 = vmatpush1.xpose.msra.mxu0 0.0
    %1905 = vmatprep.subr.mxu0 0.0
    %1906 = vmatpush1.xpose.msra.mxu0 0.0
    %1907 = vmatprep.subr.mxu0 0.0
    %1908 = vmatpush1.xpose.msra.mxu0 0.0
    %1909 = vmatprep.subr.mxu0 0.0
    %1910 = vmatpush1.xpose.msra.mxu0 0.0
    %1911 = vmatprep.mubr.f32.mxu0 %v1769
    %1912 = vmatmul.mubr.f32.gmra.mrb[0].mxu0 %v1768
    %v1913 = vpop.f32.mrb[0].mxu0
    %v1914 = vadd.f32 0.0, %v1913
    %v1915 = vpop.f32.mrb[0].mxu0
    %1916 = vmatprep.mubr.f32.mxu0 %v1771
    %1917 = vmatmul.mubr.f32.gmra.mrb[0].mxu0 %v1770
    %v1918 = vpop.f32.mrb[0].mxu0
    %v1919 = vadd.f32 0.0, %v1918
    %v1920 = vpop.f32.mrb[0].mxu0
    %1921 = vdwg.mxu0
    %v1922 = vmax.f32 %v1839, 1e-30
    %v1923 = vmax.f32 %v1844, 1e-30
    %v1924 = vmax.f32 %v1914, 1e-30
    %v1925 = vmax.f32 %v1919, 1e-30
    %1927 = vset.pattern.permute.xlu0 4
    %1928 = vperm.xlu0 %1927, %v1922
    %v1929 = vpop.permute.xlu0 %1928
    %1932 = vset.pattern.permute.xlu0 4
    %1933 = vperm.xlu0 %1932, %v1923
    %v1934 = vpop.permute.xlu0 %1933
    %1937 = vset.pattern.permute.xlu0 4
    %1938 = vperm.xlu0 %1937, %v1924
    %v1939 = vpop.permute.xlu0 %1938
    %1942 = vset.pattern.permute.xlu0 4
    %1943 = vperm.xlu0 %1942, %v1925
    %v1944 = vpop.permute.xlu0 %1943
    %v1946 = vrcp.pop %v1929
    %v1947 = vmul.f32 %v1839, %v1946
    %v1948 = vrcp.pop %v1934
    %v1949 = vmul.f32 %v1844, %v1948
    %v1950 = vrcp.pop %v1939
    %v1951 = vmul.f32 %v1914, %v1950
    %v1952 = vrcp.pop %v1944
    %v1953 = vmul.f32 %v1919, %v1952
    %1955 = vset.pattern.permute.xlu0 0
    %1956 = vperm.xlu0 %1955, %v1947
    %v1957 = vpop.permute.xlu0 %1956
    %1960 = vset.pattern.permute.xlu0 0
    %1961 = vperm.xlu0 %1960, %v1949
    %v1962 = vpop.permute.xlu0 %1961
    %1965 = vset.pattern.permute.xlu0 0
    %1966 = vperm.xlu0 %1965, %v1951
    %v1967 = vpop.permute.xlu0 %1966
    %1970 = vset.pattern.permute.xlu0 0
    %1971 = vperm.xlu0 %1970, %v1953
    %v1972 = vpop.permute.xlu0 %1971
    %v1974 = vsub.f32 %v268, %v1957
    %v1975 = vsub.f32 %v272, %v1957
    %v1976 = vsub.f32 %v268, %v1962
    %v1977 = vsub.f32 %v272, %v1962
    %v1978 = vsub.f32 %v276, %v1967
    %v1979 = vsub.f32 %v280, %v1967
    %v1980 = vsub.f32 %v276, %v1972
    %v1981 = vsub.f32 %v280, %v1972
    %v1982 = vmul.f32 %v1974, %v1974
    %v1983 = vmul.f32 %v1975, %v1975
    %v1984 = vmul.f32 %v1976, %v1976
    %v1985 = vmul.f32 %v1977, %v1977
    %v1986 = vmul.f32 %v1978, %v1978
    %v1987 = vmul.f32 %v1979, %v1979
    %v1988 = vmul.f32 %v1980, %v1980
    %v1989 = vmul.f32 %v1981, %v1981
    %v1990 = vadd.f32 %v1982, 1e-12
    %v1991 = vadd.f32 %v1983, 1e-12
    %v1992 = vadd.f32 %v1984, 1e-12
    %v1993 = vadd.f32 %v1985, 1e-12
    %v1994 = vadd.f32 %v1986, 1e-12
    %v1995 = vadd.f32 %v1987, 1e-12
    %v1996 = vadd.f32 %v1988, 1e-12
    %v1997 = vadd.f32 %v1989, 1e-12
    %1998 = vset.pattern.permute.xlu0 1
    %1999 = vperm.xlu0 %1998, %v1947
    %v2000 = vpop.permute.xlu0 %1999
    %2002 = vset.pattern.permute.xlu0 1
    %2003 = vperm.xlu0 %2002, %v1949
    %v2004 = vpop.permute.xlu0 %2003
    %2006 = vset.pattern.permute.xlu0 1
    %2007 = vperm.xlu0 %2006, %v1951
    %v2008 = vpop.permute.xlu0 %2007
    %2010 = vset.pattern.permute.xlu0 1
    %2011 = vperm.xlu0 %2010, %v1953
    %v2012 = vpop.permute.xlu0 %2011
    %v2014 = vsub.f32 %v328, %v2000
    %v2015 = vsub.f32 %v332, %v2000
    %v2016 = vsub.f32 %v328, %v2004
    %v2017 = vsub.f32 %v332, %v2004
    %v2018 = vsub.f32 %v336, %v2008
    %v2019 = vsub.f32 %v340, %v2008
    %v2020 = vsub.f32 %v336, %v2012
    %v2021 = vsub.f32 %v340, %v2012
    %v2022 = vmul.f32 %v2014, %v2014
    %v2023 = vmul.f32 %v2015, %v2015
    %v2024 = vmul.f32 %v2016, %v2016
    %v2025 = vmul.f32 %v2017, %v2017
    %v2026 = vmul.f32 %v2018, %v2018
    %v2027 = vmul.f32 %v2019, %v2019
    %v2028 = vmul.f32 %v2020, %v2020
    %v2029 = vmul.f32 %v2021, %v2021
    %v2030 = vadd.f32 %v1990, %v2022
    %v2031 = vadd.f32 %v1991, %v2023
    %v2032 = vadd.f32 %v1992, %v2024
    %v2033 = vadd.f32 %v1993, %v2025
    %v2034 = vadd.f32 %v1994, %v2026
    %v2035 = vadd.f32 %v1995, %v2027
    %v2036 = vadd.f32 %v1996, %v2028
    %v2037 = vadd.f32 %v1997, %v2029
    %2038 = vset.pattern.permute.xlu0 2
    %2039 = vperm.xlu0 %2038, %v1947
    %v2040 = vpop.permute.xlu0 %2039
    %2042 = vset.pattern.permute.xlu0 2
    %2043 = vperm.xlu0 %2042, %v1949
    %v2044 = vpop.permute.xlu0 %2043
    %2046 = vset.pattern.permute.xlu0 2
    %2047 = vperm.xlu0 %2046, %v1951
    %v2048 = vpop.permute.xlu0 %2047
    %2050 = vset.pattern.permute.xlu0 2
    %2051 = vperm.xlu0 %2050, %v1953
    %v2052 = vpop.permute.xlu0 %2051
    %v2054 = vsub.f32 %v384, %v2040
    %v2055 = vsub.f32 %v388, %v2040
    %v2056 = vsub.f32 %v384, %v2044
    %v2057 = vsub.f32 %v388, %v2044
    %v2058 = vsub.f32 %v392, %v2048
    %v2059 = vsub.f32 %v396, %v2048
    %v2060 = vsub.f32 %v392, %v2052
    %v2061 = vsub.f32 %v396, %v2052
    %v2062 = vmul.f32 %v2054, %v2054
    %v2063 = vmul.f32 %v2055, %v2055
    %v2064 = vmul.f32 %v2056, %v2056
    %v2065 = vmul.f32 %v2057, %v2057
    %v2066 = vmul.f32 %v2058, %v2058
    %v2067 = vmul.f32 %v2059, %v2059
    %v2068 = vmul.f32 %v2060, %v2060
    %v2069 = vmul.f32 %v2061, %v2061
    %v2070 = vadd.f32 %v2030, %v2062
    %v2071 = vadd.f32 %v2031, %v2063
    %v2072 = vadd.f32 %v2032, %v2064
    %v2073 = vadd.f32 %v2033, %v2065
    %v2074 = vadd.f32 %v2034, %v2066
    %v2075 = vadd.f32 %v2035, %v2067
    %v2076 = vadd.f32 %v2036, %v2068
    %v2077 = vadd.f32 %v2037, %v2069
    %2078 = vset.pattern.permute.xlu0 3
    %2079 = vperm.xlu0 %2078, %v1947
    %v2080 = vpop.permute.xlu0 %2079
    %2082 = vset.pattern.permute.xlu0 3
    %2083 = vperm.xlu0 %2082, %v1949
    %v2084 = vpop.permute.xlu0 %2083
    %2086 = vset.pattern.permute.xlu0 3
    %2087 = vperm.xlu0 %2086, %v1951
    %v2088 = vpop.permute.xlu0 %2087
    %2090 = vset.pattern.permute.xlu0 3
    %2091 = vperm.xlu0 %2090, %v1953
    %v2092 = vpop.permute.xlu0 %2091
    %v2094 = vsub.f32 %v440, %v2080
    %v2095 = vsub.f32 %v444, %v2080
    %v2096 = vsub.f32 %v440, %v2084
    %v2097 = vsub.f32 %v444, %v2084
    %v2098 = vsub.f32 %v448, %v2088
    %v2099 = vsub.f32 %v452, %v2088
    %v2100 = vsub.f32 %v448, %v2092
    %v2101 = vsub.f32 %v452, %v2092
    %v2102 = vmul.f32 %v2094, %v2094
    %v2103 = vmul.f32 %v2095, %v2095
    %v2104 = vmul.f32 %v2096, %v2096
    %v2105 = vmul.f32 %v2097, %v2097
    %v2106 = vmul.f32 %v2098, %v2098
    %v2107 = vmul.f32 %v2099, %v2099
    %v2108 = vmul.f32 %v2100, %v2100
    %v2109 = vmul.f32 %v2101, %v2101
    %v2110 = vadd.f32 %v2070, %v2102
    %v2111 = vadd.f32 %v2071, %v2103
    %v2112 = vadd.f32 %v2072, %v2104
    %v2113 = vadd.f32 %v2073, %v2105
    %v2114 = vadd.f32 %v2074, %v2106
    %v2115 = vadd.f32 %v2075, %v2107
    %v2116 = vadd.f32 %v2076, %v2108
    %v2117 = vadd.f32 %v2077, %v2109
    %v2118 = vrcp.pop %v2110
    %v2119 = vrcp.pop %v2111
    %v2120 = vrcp.pop %v2112
    %v2121 = vrcp.pop %v2113
    %v2122 = vrcp.pop %v2114
    %v2123 = vrcp.pop %v2115
    %v2124 = vrcp.pop %v2116
    %v2125 = vrcp.pop %v2117
    %v2126 = vsel %vm501, %v2120, 0.0
    %v2127 = vadd.f32 %v2118, %v2126
    %v2128 = vrot.slane %v2127, 4
    %v2129 = vadd.f32 %v2127, %v2128
    %v2130 = vrot.slane %v2129, 2
    %v2131 = vadd.f32 %v2129, %v2130
    %v2132 = vrot.slane %v2131, 1
    %v2133 = vadd.f32 %v2131, %v2132
    %v2134 = vsel %vm501, %v2121, 0.0
    %v2135 = vadd.f32 %v2119, %v2134
    %v2136 = vrot.slane %v2135, 4
    %v2137 = vadd.f32 %v2135, %v2136
    %v2138 = vrot.slane %v2137, 2
    %v2139 = vadd.f32 %v2137, %v2138
    %v2140 = vrot.slane %v2139, 1
    %v2141 = vadd.f32 %v2139, %v2140
    %v2142 = vsel %vm501, %v2124, 0.0
    %v2143 = vadd.f32 %v2122, %v2142
    %v2144 = vrot.slane %v2143, 4
    %v2145 = vadd.f32 %v2143, %v2144
    %v2146 = vrot.slane %v2145, 2
    %v2147 = vadd.f32 %v2145, %v2146
    %v2148 = vrot.slane %v2147, 1
    %v2149 = vadd.f32 %v2147, %v2148
    %v2150 = vsel %vm501, %v2125, 0.0
    %v2151 = vadd.f32 %v2123, %v2150
    %v2152 = vrot.slane %v2151, 4
    %v2153 = vadd.f32 %v2151, %v2152
    %v2154 = vrot.slane %v2153, 2
    %v2155 = vadd.f32 %v2153, %v2154
    %v2156 = vrot.slane %v2155, 1
    %v2157 = vadd.f32 %v2155, %v2156
    %v2158 = vrcp.pop %v2133
    %v2159 = vrcp.pop %v2141
    %v2160 = vrcp.pop %v2149
    %v2161 = vrcp.pop %v2157
    %v2162 = vmul.f32 %v2118, %v2158
    %v2163 = vmul.f32 %v2119, %v2159
    %v2164 = vmul.f32 %v2120, %v2158
    %v2165 = vmul.f32 %v2121, %v2159
    %v2166 = vmul.f32 %v2122, %v2160
    %v2167 = vmul.f32 %v2123, %v2161
    %v2168 = vmul.f32 %v2124, %v2160
    %v2169 = vmul.f32 %v2125, %v2161
    %v2170 = vmul.f32 %v2162, %v2162
    %v2171 = vmul.f32 %v2163, %v2163
    %v2172 = vmul.f32 %v2164, %v2164
    %v2173 = vmul.f32 %v2165, %v2165
    %v2174 = vmul.f32 %v2166, %v2166
    %v2175 = vmul.f32 %v2167, %v2167
    %v2176 = vmul.f32 %v2168, %v2168
    %v2177 = vmul.f32 %v2169, %v2169
    %2178 = vmatprep.subr.mxu0 %v14
    %2179 = vmatpush1.xpose.msra.mxu0 %v13
    %2180 = vmatprep.subr.mxu0 0.0
    %2181 = vmatpush1.xpose.msra.mxu0 0.0
    %2182 = vmatprep.subr.mxu0 0.0
    %2183 = vmatpush1.xpose.msra.mxu0 0.0
    %2184 = vmatprep.subr.mxu0 0.0
    %2185 = vmatpush1.xpose.msra.mxu0 0.0
    %2186 = vmatprep.subr.mxu0 0.0
    %2187 = vmatpush1.xpose.msra.mxu0 0.0
    %2188 = vmatprep.subr.mxu0 0.0
    %2189 = vmatpush1.xpose.msra.mxu0 0.0
    %2190 = vmatprep.subr.mxu0 0.0
    %2191 = vmatpush1.xpose.msra.mxu0 0.0
    %2192 = vmatprep.subr.mxu0 0.0
    %2193 = vmatpush1.xpose.msra.mxu0 0.0
    %2194 = vmatprep.subr.mxu0 0.0
    %2195 = vmatpush1.xpose.msra.mxu0 0.0
    %2196 = vmatprep.subr.mxu0 0.0
    %2197 = vmatpush1.xpose.msra.mxu0 0.0
    %2198 = vmatprep.subr.mxu0 0.0
    %2199 = vmatpush1.xpose.msra.mxu0 0.0
    %2200 = vmatprep.subr.mxu0 0.0
    %2201 = vmatpush1.xpose.msra.mxu0 0.0
    %2202 = vmatprep.subr.mxu0 0.0
    %2203 = vmatpush1.xpose.msra.mxu0 0.0
    %2204 = vmatprep.subr.mxu0 0.0
    %2205 = vmatpush1.xpose.msra.mxu0 0.0
    %2206 = vmatprep.subr.mxu0 0.0
    %2207 = vmatpush1.xpose.msra.mxu0 0.0
    %2208 = vmatprep.subr.mxu0 0.0
    %2209 = vmatpush1.xpose.msra.mxu0 0.0
    %2210 = vmatprep.subr.mxu0 0.0
    %2211 = vmatpush1.xpose.msra.mxu0 0.0
    %2212 = vmatprep.subr.mxu0 0.0
    %2213 = vmatpush1.xpose.msra.mxu0 0.0
    %2214 = vmatprep.subr.mxu0 0.0
    %2215 = vmatpush1.xpose.msra.mxu0 0.0
    %2216 = vmatprep.subr.mxu0 0.0
    %2217 = vmatpush1.xpose.msra.mxu0 0.0
    %2218 = vmatprep.subr.mxu0 0.0
    %2219 = vmatpush1.xpose.msra.mxu0 0.0
    %2220 = vmatprep.subr.mxu0 0.0
    %2221 = vmatpush1.xpose.msra.mxu0 0.0
    %2222 = vmatprep.subr.mxu0 0.0
    %2223 = vmatpush1.xpose.msra.mxu0 0.0
    %2224 = vmatprep.subr.mxu0 0.0
    %2225 = vmatpush1.xpose.msra.mxu0 0.0
    %2226 = vmatprep.subr.mxu0 0.0
    %2227 = vmatpush1.xpose.msra.mxu0 0.0
    %2228 = vmatprep.subr.mxu0 0.0
    %2229 = vmatpush1.xpose.msra.mxu0 0.0
    %2230 = vmatprep.subr.mxu0 0.0
    %2231 = vmatpush1.xpose.msra.mxu0 0.0
    %2232 = vmatprep.subr.mxu0 0.0
    %2233 = vmatpush1.xpose.msra.mxu0 0.0
    %2234 = vmatprep.subr.mxu0 0.0
    %2235 = vmatpush1.xpose.msra.mxu0 0.0
    %2236 = vmatprep.subr.mxu0 0.0
    %2237 = vmatpush1.xpose.msra.mxu0 0.0
    %2238 = vmatprep.subr.mxu0 0.0
    %2239 = vmatpush1.xpose.msra.mxu0 0.0
    %2240 = vmatprep.subr.mxu0 0.0
    %2241 = vmatpush1.xpose.msra.mxu0 0.0
    %2242 = vmatprep.mubr.f32.mxu0 %v2171
    %2243 = vmatmul.mubr.f32.gmra.mrb[0].mxu0 %v2170
    %v2244 = vpop.f32.mrb[0].mxu0
    %v2245 = vadd.f32 0.0, %v2244
    %v2246 = vpop.f32.mrb[0].mxu0
    %2247 = vmatprep.mubr.f32.mxu0 %v2173
    %2248 = vmatmul.mubr.f32.gmra.mrb[0].mxu0 %v2172
    %v2249 = vpop.f32.mrb[0].mxu0
    %v2250 = vadd.f32 0.0, %v2249
    %v2251 = vpop.f32.mrb[0].mxu0
    %2252 = vdwg.mxu0
    %2253 = vmatprep.subr.mxu0 %v16
    %2254 = vmatpush1.xpose.msra.mxu0 %v15
    %2255 = vmatprep.subr.mxu0 0.0
    %2256 = vmatpush1.xpose.msra.mxu0 0.0
    %2257 = vmatprep.subr.mxu0 0.0
    %2258 = vmatpush1.xpose.msra.mxu0 0.0
    %2259 = vmatprep.subr.mxu0 0.0
    %2260 = vmatpush1.xpose.msra.mxu0 0.0
    %2261 = vmatprep.subr.mxu0 0.0
    %2262 = vmatpush1.xpose.msra.mxu0 0.0
    %2263 = vmatprep.subr.mxu0 0.0
    %2264 = vmatpush1.xpose.msra.mxu0 0.0
    %2265 = vmatprep.subr.mxu0 0.0
    %2266 = vmatpush1.xpose.msra.mxu0 0.0
    %2267 = vmatprep.subr.mxu0 0.0
    %2268 = vmatpush1.xpose.msra.mxu0 0.0
    %2269 = vmatprep.subr.mxu0 0.0
    %2270 = vmatpush1.xpose.msra.mxu0 0.0
    %2271 = vmatprep.subr.mxu0 0.0
    %2272 = vmatpush1.xpose.msra.mxu0 0.0
    %2273 = vmatprep.subr.mxu0 0.0
    %2274 = vmatpush1.xpose.msra.mxu0 0.0
    %2275 = vmatprep.subr.mxu0 0.0
    %2276 = vmatpush1.xpose.msra.mxu0 0.0
    %2277 = vmatprep.subr.mxu0 0.0
    %2278 = vmatpush1.xpose.msra.mxu0 0.0
    %2279 = vmatprep.subr.mxu0 0.0
    %2280 = vmatpush1.xpose.msra.mxu0 0.0
    %2281 = vmatprep.subr.mxu0 0.0
    %2282 = vmatpush1.xpose.msra.mxu0 0.0
    %2283 = vmatprep.subr.mxu0 0.0
    %2284 = vmatpush1.xpose.msra.mxu0 0.0
    %2285 = vmatprep.subr.mxu0 0.0
    %2286 = vmatpush1.xpose.msra.mxu0 0.0
    %2287 = vmatprep.subr.mxu0 0.0
    %2288 = vmatpush1.xpose.msra.mxu0 0.0
    %2289 = vmatprep.subr.mxu0 0.0
    %2290 = vmatpush1.xpose.msra.mxu0 0.0
    %2291 = vmatprep.subr.mxu0 0.0
    %2292 = vmatpush1.xpose.msra.mxu0 0.0
    %2293 = vmatprep.subr.mxu0 0.0
    %2294 = vmatpush1.xpose.msra.mxu0 0.0
    %2295 = vmatprep.subr.mxu0 0.0
    %2296 = vmatpush1.xpose.msra.mxu0 0.0
    %2297 = vmatprep.subr.mxu0 0.0
    %2298 = vmatpush1.xpose.msra.mxu0 0.0
    %2299 = vmatprep.subr.mxu0 0.0
    %2300 = vmatpush1.xpose.msra.mxu0 0.0
    %2301 = vmatprep.subr.mxu0 0.0
    %2302 = vmatpush1.xpose.msra.mxu0 0.0
    %2303 = vmatprep.subr.mxu0 0.0
    %2304 = vmatpush1.xpose.msra.mxu0 0.0
    %2305 = vmatprep.subr.mxu0 0.0
    %2306 = vmatpush1.xpose.msra.mxu0 0.0
    %2307 = vmatprep.subr.mxu0 0.0
    %2308 = vmatpush1.xpose.msra.mxu0 0.0
    %2309 = vmatprep.subr.mxu0 0.0
    %2310 = vmatpush1.xpose.msra.mxu0 0.0
    %2311 = vmatprep.subr.mxu0 0.0
    %2312 = vmatpush1.xpose.msra.mxu0 0.0
    %2313 = vmatprep.subr.mxu0 0.0
    %2314 = vmatpush1.xpose.msra.mxu0 0.0
    %2315 = vmatprep.subr.mxu0 0.0
    %2316 = vmatpush1.xpose.msra.mxu0 0.0
    %2317 = vmatprep.mubr.f32.mxu0 %v2175
    %2318 = vmatmul.mubr.f32.gmra.mrb[0].mxu0 %v2174
    %v2319 = vpop.f32.mrb[0].mxu0
    %v2320 = vadd.f32 0.0, %v2319
    %v2321 = vpop.f32.mrb[0].mxu0
    %2322 = vmatprep.mubr.f32.mxu0 %v2177
    %2323 = vmatmul.mubr.f32.gmra.mrb[0].mxu0 %v2176
    %v2324 = vpop.f32.mrb[0].mxu0
    %v2325 = vadd.f32 0.0, %v2324
    %v2326 = vpop.f32.mrb[0].mxu0
    %2327 = vdwg.mxu0
    %v2328 = vmax.f32 %v2245, 1e-30
    %v2329 = vmax.f32 %v2250, 1e-30
    %v2330 = vmax.f32 %v2320, 1e-30
    %v2331 = vmax.f32 %v2325, 1e-30
    %2333 = vset.pattern.permute.xlu0 4
    %2334 = vperm.xlu0 %2333, %v2328
    %v2335 = vpop.permute.xlu0 %2334
    %2338 = vset.pattern.permute.xlu0 4
    %2339 = vperm.xlu0 %2338, %v2329
    %v2340 = vpop.permute.xlu0 %2339
    %2343 = vset.pattern.permute.xlu0 4
    %2344 = vperm.xlu0 %2343, %v2330
    %v2345 = vpop.permute.xlu0 %2344
    %2348 = vset.pattern.permute.xlu0 4
    %2349 = vperm.xlu0 %2348, %v2331
    %v2350 = vpop.permute.xlu0 %2349
    %v2352 = vrcp.pop %v2335
    %v2353 = vmul.f32 %v2245, %v2352
    %v2354 = vrcp.pop %v2340
    %v2355 = vmul.f32 %v2250, %v2354
    %v2356 = vrcp.pop %v2345
    %v2357 = vmul.f32 %v2320, %v2356
    %v2358 = vrcp.pop %v2350
    %v2359 = vmul.f32 %v2325, %v2358
    %2361 = vset.pattern.permute.xlu0 0
    %2362 = vperm.xlu0 %2361, %v2353
    %v2363 = vpop.permute.xlu0 %2362
    %2366 = vset.pattern.permute.xlu0 0
    %2367 = vperm.xlu0 %2366, %v2355
    %v2368 = vpop.permute.xlu0 %2367
    %2371 = vset.pattern.permute.xlu0 0
    %2372 = vperm.xlu0 %2371, %v2357
    %v2373 = vpop.permute.xlu0 %2372
    %2376 = vset.pattern.permute.xlu0 0
    %2377 = vperm.xlu0 %2376, %v2359
    %v2378 = vpop.permute.xlu0 %2377
    %v2380 = vsub.f32 %v268, %v2363
    %v2381 = vsub.f32 %v272, %v2363
    %v2382 = vsub.f32 %v268, %v2368
    %v2383 = vsub.f32 %v272, %v2368
    %v2384 = vsub.f32 %v276, %v2373
    %v2385 = vsub.f32 %v280, %v2373
    %v2386 = vsub.f32 %v276, %v2378
    %v2387 = vsub.f32 %v280, %v2378
    %v2388 = vmul.f32 %v2380, %v2380
    %v2389 = vmul.f32 %v2381, %v2381
    %v2390 = vmul.f32 %v2382, %v2382
    %v2391 = vmul.f32 %v2383, %v2383
    %v2392 = vmul.f32 %v2384, %v2384
    %v2393 = vmul.f32 %v2385, %v2385
    %v2394 = vmul.f32 %v2386, %v2386
    %v2395 = vmul.f32 %v2387, %v2387
    %v2396 = vadd.f32 %v2388, 1e-12
    %v2397 = vadd.f32 %v2389, 1e-12
    %v2398 = vadd.f32 %v2390, 1e-12
    %v2399 = vadd.f32 %v2391, 1e-12
    %v2400 = vadd.f32 %v2392, 1e-12
    %v2401 = vadd.f32 %v2393, 1e-12
    %v2402 = vadd.f32 %v2394, 1e-12
    %v2403 = vadd.f32 %v2395, 1e-12
    %2404 = vset.pattern.permute.xlu0 1
    %2405 = vperm.xlu0 %2404, %v2353
    %v2406 = vpop.permute.xlu0 %2405
    %2408 = vset.pattern.permute.xlu0 1
    %2409 = vperm.xlu0 %2408, %v2355
    %v2410 = vpop.permute.xlu0 %2409
    %2412 = vset.pattern.permute.xlu0 1
    %2413 = vperm.xlu0 %2412, %v2357
    %v2414 = vpop.permute.xlu0 %2413
    %2416 = vset.pattern.permute.xlu0 1
    %2417 = vperm.xlu0 %2416, %v2359
    %v2418 = vpop.permute.xlu0 %2417
    %v2420 = vsub.f32 %v328, %v2406
    %v2421 = vsub.f32 %v332, %v2406
    %v2422 = vsub.f32 %v328, %v2410
    %v2423 = vsub.f32 %v332, %v2410
    %v2424 = vsub.f32 %v336, %v2414
    %v2425 = vsub.f32 %v340, %v2414
    %v2426 = vsub.f32 %v336, %v2418
    %v2427 = vsub.f32 %v340, %v2418
    %v2428 = vmul.f32 %v2420, %v2420
    %v2429 = vmul.f32 %v2421, %v2421
    %v2430 = vmul.f32 %v2422, %v2422
    %v2431 = vmul.f32 %v2423, %v2423
    %v2432 = vmul.f32 %v2424, %v2424
    %v2433 = vmul.f32 %v2425, %v2425
    %v2434 = vmul.f32 %v2426, %v2426
    %v2435 = vmul.f32 %v2427, %v2427
    %v2436 = vadd.f32 %v2396, %v2428
    %v2437 = vadd.f32 %v2397, %v2429
    %v2438 = vadd.f32 %v2398, %v2430
    %v2439 = vadd.f32 %v2399, %v2431
    %v2440 = vadd.f32 %v2400, %v2432
    %v2441 = vadd.f32 %v2401, %v2433
    %v2442 = vadd.f32 %v2402, %v2434
    %v2443 = vadd.f32 %v2403, %v2435
    %2444 = vset.pattern.permute.xlu0 2
    %2445 = vperm.xlu0 %2444, %v2353
    %v2446 = vpop.permute.xlu0 %2445
    %2448 = vset.pattern.permute.xlu0 2
    %2449 = vperm.xlu0 %2448, %v2355
    %v2450 = vpop.permute.xlu0 %2449
    %2452 = vset.pattern.permute.xlu0 2
    %2453 = vperm.xlu0 %2452, %v2357
    %v2454 = vpop.permute.xlu0 %2453
    %2456 = vset.pattern.permute.xlu0 2
    %2457 = vperm.xlu0 %2456, %v2359
    %v2458 = vpop.permute.xlu0 %2457
    %v2460 = vsub.f32 %v384, %v2446
    %v2461 = vsub.f32 %v388, %v2446
    %v2462 = vsub.f32 %v384, %v2450
    %v2463 = vsub.f32 %v388, %v2450
    %v2464 = vsub.f32 %v392, %v2454
    %v2465 = vsub.f32 %v396, %v2454
    %v2466 = vsub.f32 %v392, %v2458
    %v2467 = vsub.f32 %v396, %v2458
    %v2468 = vmul.f32 %v2460, %v2460
    %v2469 = vmul.f32 %v2461, %v2461
    %v2470 = vmul.f32 %v2462, %v2462
    %v2471 = vmul.f32 %v2463, %v2463
    %v2472 = vmul.f32 %v2464, %v2464
    %v2473 = vmul.f32 %v2465, %v2465
    %v2474 = vmul.f32 %v2466, %v2466
    %v2475 = vmul.f32 %v2467, %v2467
    %v2476 = vadd.f32 %v2436, %v2468
    %v2477 = vadd.f32 %v2437, %v2469
    %v2478 = vadd.f32 %v2438, %v2470
    %v2479 = vadd.f32 %v2439, %v2471
    %v2480 = vadd.f32 %v2440, %v2472
    %v2481 = vadd.f32 %v2441, %v2473
    %v2482 = vadd.f32 %v2442, %v2474
    %v2483 = vadd.f32 %v2443, %v2475
    %2484 = vset.pattern.permute.xlu0 3
    %2485 = vperm.xlu0 %2484, %v2353
    %v2486 = vpop.permute.xlu0 %2485
    %2488 = vset.pattern.permute.xlu0 3
    %2489 = vperm.xlu0 %2488, %v2355
    %v2490 = vpop.permute.xlu0 %2489
    %2492 = vset.pattern.permute.xlu0 3
    %2493 = vperm.xlu0 %2492, %v2357
    %v2494 = vpop.permute.xlu0 %2493
    %2496 = vset.pattern.permute.xlu0 3
    %2497 = vperm.xlu0 %2496, %v2359
    %v2498 = vpop.permute.xlu0 %2497
    %v2500 = vsub.f32 %v440, %v2486
    %v2501 = vsub.f32 %v444, %v2486
    %v2502 = vsub.f32 %v440, %v2490
    %v2503 = vsub.f32 %v444, %v2490
    %v2504 = vsub.f32 %v448, %v2494
    %v2505 = vsub.f32 %v452, %v2494
    %v2506 = vsub.f32 %v448, %v2498
    %v2507 = vsub.f32 %v452, %v2498
    %v2508 = vmul.f32 %v2500, %v2500
    %v2509 = vmul.f32 %v2501, %v2501
    %v2510 = vmul.f32 %v2502, %v2502
    %v2511 = vmul.f32 %v2503, %v2503
    %v2512 = vmul.f32 %v2504, %v2504
    %v2513 = vmul.f32 %v2505, %v2505
    %v2514 = vmul.f32 %v2506, %v2506
    %v2515 = vmul.f32 %v2507, %v2507
    %v2516 = vadd.f32 %v2476, %v2508
    %v2517 = vadd.f32 %v2477, %v2509
    %v2518 = vadd.f32 %v2478, %v2510
    %v2519 = vadd.f32 %v2479, %v2511
    %v2520 = vadd.f32 %v2480, %v2512
    %v2521 = vadd.f32 %v2481, %v2513
    %v2522 = vadd.f32 %v2482, %v2514
    %v2523 = vadd.f32 %v2483, %v2515
    %v2524 = vrcp.pop %v2516
    %v2525 = vrcp.pop %v2517
    %v2526 = vrcp.pop %v2518
    %v2527 = vrcp.pop %v2519
    %v2528 = vrcp.pop %v2520
    %v2529 = vrcp.pop %v2521
    %v2530 = vrcp.pop %v2522
    %v2531 = vrcp.pop %v2523
    %v2532 = vsel %vm501, %v2526, 0.0
    %v2533 = vadd.f32 %v2524, %v2532
    %v2534 = vrot.slane %v2533, 4
    %v2535 = vadd.f32 %v2533, %v2534
    %v2536 = vrot.slane %v2535, 2
    %v2537 = vadd.f32 %v2535, %v2536
    %v2538 = vrot.slane %v2537, 1
    %v2539 = vadd.f32 %v2537, %v2538
    %v2540 = vsel %vm501, %v2527, 0.0
    %v2541 = vadd.f32 %v2525, %v2540
    %v2542 = vrot.slane %v2541, 4
    %v2543 = vadd.f32 %v2541, %v2542
    %v2544 = vrot.slane %v2543, 2
    %v2545 = vadd.f32 %v2543, %v2544
    %v2546 = vrot.slane %v2545, 1
    %v2547 = vadd.f32 %v2545, %v2546
    %v2548 = vsel %vm501, %v2530, 0.0
    %v2549 = vadd.f32 %v2528, %v2548
    %v2550 = vrot.slane %v2549, 4
    %v2551 = vadd.f32 %v2549, %v2550
    %v2552 = vrot.slane %v2551, 2
    %v2553 = vadd.f32 %v2551, %v2552
    %v2554 = vrot.slane %v2553, 1
    %v2555 = vadd.f32 %v2553, %v2554
    %v2556 = vsel %vm501, %v2531, 0.0
    %v2557 = vadd.f32 %v2529, %v2556
    %v2558 = vrot.slane %v2557, 4
    %v2559 = vadd.f32 %v2557, %v2558
    %v2560 = vrot.slane %v2559, 2
    %v2561 = vadd.f32 %v2559, %v2560
    %v2562 = vrot.slane %v2561, 1
    %v2563 = vadd.f32 %v2561, %v2562
    %v2564 = vrcp.pop %v2539
    %v2565 = vrcp.pop %v2547
    %v2566 = vrcp.pop %v2555
    %v2567 = vrcp.pop %v2563
    %v2568 = vmul.f32 %v2524, %v2564
    %v2569 = vmul.f32 %v2525, %v2565
    %v2570 = vmul.f32 %v2526, %v2564
    %v2571 = vmul.f32 %v2527, %v2565
    %v2572 = vmul.f32 %v2528, %v2566
    %v2573 = vmul.f32 %v2529, %v2567
    %v2574 = vmul.f32 %v2530, %v2566
    %v2575 = vmul.f32 %v2531, %v2567
    %v2576 = vmul.f32 %v2568, %v2568
    %v2577 = vmul.f32 %v2569, %v2569
    %v2578 = vmul.f32 %v2570, %v2570
    %v2579 = vmul.f32 %v2571, %v2571
    %v2580 = vmul.f32 %v2572, %v2572
    %v2581 = vmul.f32 %v2573, %v2573
    %v2582 = vmul.f32 %v2574, %v2574
    %v2583 = vmul.f32 %v2575, %v2575
    %2584 = vmatprep.subr.mxu0 %v14
    %2585 = vmatpush1.xpose.msra.mxu0 %v13
    %2586 = vmatprep.subr.mxu0 0.0
    %2587 = vmatpush1.xpose.msra.mxu0 0.0
    %2588 = vmatprep.subr.mxu0 0.0
    %2589 = vmatpush1.xpose.msra.mxu0 0.0
    %2590 = vmatprep.subr.mxu0 0.0
    %2591 = vmatpush1.xpose.msra.mxu0 0.0
    %2592 = vmatprep.subr.mxu0 0.0
    %2593 = vmatpush1.xpose.msra.mxu0 0.0
    %2594 = vmatprep.subr.mxu0 0.0
    %2595 = vmatpush1.xpose.msra.mxu0 0.0
    %2596 = vmatprep.subr.mxu0 0.0
    %2597 = vmatpush1.xpose.msra.mxu0 0.0
    %2598 = vmatprep.subr.mxu0 0.0
    %2599 = vmatpush1.xpose.msra.mxu0 0.0
    %2600 = vmatprep.subr.mxu0 0.0
    %2601 = vmatpush1.xpose.msra.mxu0 0.0
    %2602 = vmatprep.subr.mxu0 0.0
    %2603 = vmatpush1.xpose.msra.mxu0 0.0
    %2604 = vmatprep.subr.mxu0 0.0
    %2605 = vmatpush1.xpose.msra.mxu0 0.0
    %2606 = vmatprep.subr.mxu0 0.0
    %2607 = vmatpush1.xpose.msra.mxu0 0.0
    %2608 = vmatprep.subr.mxu0 0.0
    %2609 = vmatpush1.xpose.msra.mxu0 0.0
    %2610 = vmatprep.subr.mxu0 0.0
    %2611 = vmatpush1.xpose.msra.mxu0 0.0
    %2612 = vmatprep.subr.mxu0 0.0
    %2613 = vmatpush1.xpose.msra.mxu0 0.0
    %2614 = vmatprep.subr.mxu0 0.0
    %2615 = vmatpush1.xpose.msra.mxu0 0.0
    %2616 = vmatprep.subr.mxu0 0.0
    %2617 = vmatpush1.xpose.msra.mxu0 0.0
    %2618 = vmatprep.subr.mxu0 0.0
    %2619 = vmatpush1.xpose.msra.mxu0 0.0
    %2620 = vmatprep.subr.mxu0 0.0
    %2621 = vmatpush1.xpose.msra.mxu0 0.0
    %2622 = vmatprep.subr.mxu0 0.0
    %2623 = vmatpush1.xpose.msra.mxu0 0.0
    %2624 = vmatprep.subr.mxu0 0.0
    %2625 = vmatpush1.xpose.msra.mxu0 0.0
    %2626 = vmatprep.subr.mxu0 0.0
    %2627 = vmatpush1.xpose.msra.mxu0 0.0
    %2628 = vmatprep.subr.mxu0 0.0
    %2629 = vmatpush1.xpose.msra.mxu0 0.0
    %2630 = vmatprep.subr.mxu0 0.0
    %2631 = vmatpush1.xpose.msra.mxu0 0.0
    %2632 = vmatprep.subr.mxu0 0.0
    %2633 = vmatpush1.xpose.msra.mxu0 0.0
    %2634 = vmatprep.subr.mxu0 0.0
    %2635 = vmatpush1.xpose.msra.mxu0 0.0
    %2636 = vmatprep.subr.mxu0 0.0
    %2637 = vmatpush1.xpose.msra.mxu0 0.0
    %2638 = vmatprep.subr.mxu0 0.0
    %2639 = vmatpush1.xpose.msra.mxu0 0.0
    %2640 = vmatprep.subr.mxu0 0.0
    %2641 = vmatpush1.xpose.msra.mxu0 0.0
    %2642 = vmatprep.subr.mxu0 0.0
    %2643 = vmatpush1.xpose.msra.mxu0 0.0
    %2644 = vmatprep.subr.mxu0 0.0
    %2645 = vmatpush1.xpose.msra.mxu0 0.0
    %2646 = vmatprep.subr.mxu0 0.0
    %2647 = vmatpush1.xpose.msra.mxu0 0.0
    %2648 = vmatprep.mubr.f32.mxu0 %v2577
    %2649 = vmatmul.mubr.f32.gmra.mrb[0].mxu0 %v2576
    %v2650 = vpop.f32.mrb[0].mxu0
    %v2651 = vadd.f32 0.0, %v2650
    %v2652 = vpop.f32.mrb[0].mxu0
    %2653 = vmatprep.mubr.f32.mxu0 %v2579
    %2654 = vmatmul.mubr.f32.gmra.mrb[0].mxu0 %v2578
    %v2655 = vpop.f32.mrb[0].mxu0
    %v2656 = vadd.f32 0.0, %v2655
    %v2657 = vpop.f32.mrb[0].mxu0
    %2658 = vdwg.mxu0
    %2659 = vmatprep.subr.mxu0 %v16
    %2660 = vmatpush1.xpose.msra.mxu0 %v15
    %2661 = vmatprep.subr.mxu0 0.0
    %2662 = vmatpush1.xpose.msra.mxu0 0.0
    %2663 = vmatprep.subr.mxu0 0.0
    %2664 = vmatpush1.xpose.msra.mxu0 0.0
    %2665 = vmatprep.subr.mxu0 0.0
    %2666 = vmatpush1.xpose.msra.mxu0 0.0
    %2667 = vmatprep.subr.mxu0 0.0
    %2668 = vmatpush1.xpose.msra.mxu0 0.0
    %2669 = vmatprep.subr.mxu0 0.0
    %2670 = vmatpush1.xpose.msra.mxu0 0.0
    %2671 = vmatprep.subr.mxu0 0.0
    %2672 = vmatpush1.xpose.msra.mxu0 0.0
    %2673 = vmatprep.subr.mxu0 0.0
    %2674 = vmatpush1.xpose.msra.mxu0 0.0
    %2675 = vmatprep.subr.mxu0 0.0
    %2676 = vmatpush1.xpose.msra.mxu0 0.0
    %2677 = vmatprep.subr.mxu0 0.0
    %2678 = vmatpush1.xpose.msra.mxu0 0.0
    %2679 = vmatprep.subr.mxu0 0.0
    %2680 = vmatpush1.xpose.msra.mxu0 0.0
    %2681 = vmatprep.subr.mxu0 0.0
    %2682 = vmatpush1.xpose.msra.mxu0 0.0
    %2683 = vmatprep.subr.mxu0 0.0
    %2684 = vmatpush1.xpose.msra.mxu0 0.0
    %2685 = vmatprep.subr.mxu0 0.0
    %2686 = vmatpush1.xpose.msra.mxu0 0.0
    %2687 = vmatprep.subr.mxu0 0.0
    %2688 = vmatpush1.xpose.msra.mxu0 0.0
    %2689 = vmatprep.subr.mxu0 0.0
    %2690 = vmatpush1.xpose.msra.mxu0 0.0
    %2691 = vmatprep.subr.mxu0 0.0
    %2692 = vmatpush1.xpose.msra.mxu0 0.0
    %2693 = vmatprep.subr.mxu0 0.0
    %2694 = vmatpush1.xpose.msra.mxu0 0.0
    %2695 = vmatprep.subr.mxu0 0.0
    %2696 = vmatpush1.xpose.msra.mxu0 0.0
    %2697 = vmatprep.subr.mxu0 0.0
    %2698 = vmatpush1.xpose.msra.mxu0 0.0
    %2699 = vmatprep.subr.mxu0 0.0
    %2700 = vmatpush1.xpose.msra.mxu0 0.0
    %2701 = vmatprep.subr.mxu0 0.0
    %2702 = vmatpush1.xpose.msra.mxu0 0.0
    %2703 = vmatprep.subr.mxu0 0.0
    %2704 = vmatpush1.xpose.msra.mxu0 0.0
    %2705 = vmatprep.subr.mxu0 0.0
    %2706 = vmatpush1.xpose.msra.mxu0 0.0
    %2707 = vmatprep.subr.mxu0 0.0
    %2708 = vmatpush1.xpose.msra.mxu0 0.0
    %2709 = vmatprep.subr.mxu0 0.0
    %2710 = vmatpush1.xpose.msra.mxu0 0.0
    %2711 = vmatprep.subr.mxu0 0.0
    %2712 = vmatpush1.xpose.msra.mxu0 0.0
    %2713 = vmatprep.subr.mxu0 0.0
    %2714 = vmatpush1.xpose.msra.mxu0 0.0
    %2715 = vmatprep.subr.mxu0 0.0
    %2716 = vmatpush1.xpose.msra.mxu0 0.0
    %2717 = vmatprep.subr.mxu0 0.0
    %2718 = vmatpush1.xpose.msra.mxu0 0.0
    %2719 = vmatprep.subr.mxu0 0.0
    %2720 = vmatpush1.xpose.msra.mxu0 0.0
    %2721 = vmatprep.subr.mxu0 0.0
    %2722 = vmatpush1.xpose.msra.mxu0 0.0
    %2723 = vmatprep.mubr.f32.mxu0 %v2581
    %2724 = vmatmul.mubr.f32.gmra.mrb[0].mxu0 %v2580
    %v2725 = vpop.f32.mrb[0].mxu0
    %v2726 = vadd.f32 0.0, %v2725
    %v2727 = vpop.f32.mrb[0].mxu0
    %2728 = vmatprep.mubr.f32.mxu0 %v2583
    %2729 = vmatmul.mubr.f32.gmra.mrb[0].mxu0 %v2582
    %v2730 = vpop.f32.mrb[0].mxu0
    %v2731 = vadd.f32 0.0, %v2730
    %v2732 = vpop.f32.mrb[0].mxu0
    %2733 = vdwg.mxu0
    %v2734 = vmax.f32 %v2651, 1e-30
    %v2735 = vmax.f32 %v2656, 1e-30
    %v2736 = vmax.f32 %v2726, 1e-30
    %v2737 = vmax.f32 %v2731, 1e-30
    %2739 = vset.pattern.permute.xlu0 4
    %2740 = vperm.xlu0 %2739, %v2734
    %v2741 = vpop.permute.xlu0 %2740
    %2744 = vset.pattern.permute.xlu0 4
    %2745 = vperm.xlu0 %2744, %v2735
    %v2746 = vpop.permute.xlu0 %2745
    %2749 = vset.pattern.permute.xlu0 4
    %2750 = vperm.xlu0 %2749, %v2736
    %v2751 = vpop.permute.xlu0 %2750
    %2754 = vset.pattern.permute.xlu0 4
    %2755 = vperm.xlu0 %2754, %v2737
    %v2756 = vpop.permute.xlu0 %2755
    %v2758 = vrcp.pop %v2741
    %v2759 = vmul.f32 %v2651, %v2758
    %v2760 = vrcp.pop %v2746
    %v2761 = vmul.f32 %v2656, %v2760
    %v2762 = vrcp.pop %v2751
    %v2763 = vmul.f32 %v2726, %v2762
    %v2764 = vrcp.pop %v2756
    %v2765 = vmul.f32 %v2731, %v2764
    %2767 = vset.pattern.permute.xlu0 0
    %2768 = vperm.xlu0 %2767, %v2759
    %v2769 = vpop.permute.xlu0 %2768
    %2772 = vset.pattern.permute.xlu0 0
    %2773 = vperm.xlu0 %2772, %v2761
    %v2774 = vpop.permute.xlu0 %2773
    %2777 = vset.pattern.permute.xlu0 0
    %2778 = vperm.xlu0 %2777, %v2763
    %v2779 = vpop.permute.xlu0 %2778
    %2782 = vset.pattern.permute.xlu0 0
    %2783 = vperm.xlu0 %2782, %v2765
    %v2784 = vpop.permute.xlu0 %2783
    %v2786 = vsub.f32 %v268, %v2769
    %v2787 = vsub.f32 %v272, %v2769
    %v2788 = vsub.f32 %v268, %v2774
    %v2789 = vsub.f32 %v272, %v2774
    %v2790 = vsub.f32 %v276, %v2779
    %v2791 = vsub.f32 %v280, %v2779
    %v2792 = vsub.f32 %v276, %v2784
    %v2793 = vsub.f32 %v280, %v2784
    %v2794 = vmul.f32 %v2786, %v2786
    %v2795 = vmul.f32 %v2787, %v2787
    %v2796 = vmul.f32 %v2788, %v2788
    %v2797 = vmul.f32 %v2789, %v2789
    %v2798 = vmul.f32 %v2790, %v2790
    %v2799 = vmul.f32 %v2791, %v2791
    %v2800 = vmul.f32 %v2792, %v2792
    %v2801 = vmul.f32 %v2793, %v2793
    %v2802 = vadd.f32 %v2794, 1e-12
    %v2803 = vadd.f32 %v2795, 1e-12
    %v2804 = vadd.f32 %v2796, 1e-12
    %v2805 = vadd.f32 %v2797, 1e-12
    %v2806 = vadd.f32 %v2798, 1e-12
    %v2807 = vadd.f32 %v2799, 1e-12
    %v2808 = vadd.f32 %v2800, 1e-12
    %v2809 = vadd.f32 %v2801, 1e-12
    %2810 = vset.pattern.permute.xlu0 1
    %2811 = vperm.xlu0 %2810, %v2759
    %v2812 = vpop.permute.xlu0 %2811
    %2814 = vset.pattern.permute.xlu0 1
    %2815 = vperm.xlu0 %2814, %v2761
    %v2816 = vpop.permute.xlu0 %2815
    %2818 = vset.pattern.permute.xlu0 1
    %2819 = vperm.xlu0 %2818, %v2763
    %v2820 = vpop.permute.xlu0 %2819
    %2822 = vset.pattern.permute.xlu0 1
    %2823 = vperm.xlu0 %2822, %v2765
    %v2824 = vpop.permute.xlu0 %2823
    %v2826 = vsub.f32 %v328, %v2812
    %v2827 = vsub.f32 %v332, %v2812
    %v2828 = vsub.f32 %v328, %v2816
    %v2829 = vsub.f32 %v332, %v2816
    %v2830 = vsub.f32 %v336, %v2820
    %v2831 = vsub.f32 %v340, %v2820
    %v2832 = vsub.f32 %v336, %v2824
    %v2833 = vsub.f32 %v340, %v2824
    %v2834 = vmul.f32 %v2826, %v2826
    %v2835 = vmul.f32 %v2827, %v2827
    %v2836 = vmul.f32 %v2828, %v2828
    %v2837 = vmul.f32 %v2829, %v2829
    %v2838 = vmul.f32 %v2830, %v2830
    %v2839 = vmul.f32 %v2831, %v2831
    %v2840 = vmul.f32 %v2832, %v2832
    %v2841 = vmul.f32 %v2833, %v2833
    %v2842 = vadd.f32 %v2802, %v2834
    %v2843 = vadd.f32 %v2803, %v2835
    %v2844 = vadd.f32 %v2804, %v2836
    %v2845 = vadd.f32 %v2805, %v2837
    %v2846 = vadd.f32 %v2806, %v2838
    %v2847 = vadd.f32 %v2807, %v2839
    %v2848 = vadd.f32 %v2808, %v2840
    %v2849 = vadd.f32 %v2809, %v2841
    %2850 = vset.pattern.permute.xlu0 2
    %2851 = vperm.xlu0 %2850, %v2759
    %v2852 = vpop.permute.xlu0 %2851
    %2854 = vset.pattern.permute.xlu0 2
    %2855 = vperm.xlu0 %2854, %v2761
    %v2856 = vpop.permute.xlu0 %2855
    %2858 = vset.pattern.permute.xlu0 2
    %2859 = vperm.xlu0 %2858, %v2763
    %v2860 = vpop.permute.xlu0 %2859
    %2862 = vset.pattern.permute.xlu0 2
    %2863 = vperm.xlu0 %2862, %v2765
    %v2864 = vpop.permute.xlu0 %2863
    %v2866 = vsub.f32 %v384, %v2852
    %v2867 = vsub.f32 %v388, %v2852
    %v2868 = vsub.f32 %v384, %v2856
    %v2869 = vsub.f32 %v388, %v2856
    %v2870 = vsub.f32 %v392, %v2860
    %v2871 = vsub.f32 %v396, %v2860
    %v2872 = vsub.f32 %v392, %v2864
    %v2873 = vsub.f32 %v396, %v2864
    %v2874 = vmul.f32 %v2866, %v2866
    %v2875 = vmul.f32 %v2867, %v2867
    %v2876 = vmul.f32 %v2868, %v2868
    %v2877 = vmul.f32 %v2869, %v2869
    %v2878 = vmul.f32 %v2870, %v2870
    %v2879 = vmul.f32 %v2871, %v2871
    %v2880 = vmul.f32 %v2872, %v2872
    %v2881 = vmul.f32 %v2873, %v2873
    %v2882 = vadd.f32 %v2842, %v2874
    %v2883 = vadd.f32 %v2843, %v2875
    %v2884 = vadd.f32 %v2844, %v2876
    %v2885 = vadd.f32 %v2845, %v2877
    %v2886 = vadd.f32 %v2846, %v2878
    %v2887 = vadd.f32 %v2847, %v2879
    %v2888 = vadd.f32 %v2848, %v2880
    %v2889 = vadd.f32 %v2849, %v2881
    %2890 = vset.pattern.permute.xlu0 3
    %2891 = vperm.xlu0 %2890, %v2759
    %v2892 = vpop.permute.xlu0 %2891
    %2894 = vset.pattern.permute.xlu0 3
    %2895 = vperm.xlu0 %2894, %v2761
    %v2896 = vpop.permute.xlu0 %2895
    %2898 = vset.pattern.permute.xlu0 3
    %2899 = vperm.xlu0 %2898, %v2763
    %v2900 = vpop.permute.xlu0 %2899
    %2902 = vset.pattern.permute.xlu0 3
    %2903 = vperm.xlu0 %2902, %v2765
    %v2904 = vpop.permute.xlu0 %2903
    %v2906 = vsub.f32 %v440, %v2892
    %v2907 = vsub.f32 %v444, %v2892
    %v2908 = vsub.f32 %v440, %v2896
    %v2909 = vsub.f32 %v444, %v2896
    %v2910 = vsub.f32 %v448, %v2900
    %v2911 = vsub.f32 %v452, %v2900
    %v2912 = vsub.f32 %v448, %v2904
    %v2913 = vsub.f32 %v452, %v2904
    %v2914 = vmul.f32 %v2906, %v2906
    %v2915 = vmul.f32 %v2907, %v2907
    %v2916 = vmul.f32 %v2908, %v2908
    %v2917 = vmul.f32 %v2909, %v2909
    %v2918 = vmul.f32 %v2910, %v2910
    %v2919 = vmul.f32 %v2911, %v2911
    %v2920 = vmul.f32 %v2912, %v2912
    %v2921 = vmul.f32 %v2913, %v2913
    %v2922 = vadd.f32 %v2882, %v2914
    %v2923 = vadd.f32 %v2883, %v2915
    %v2924 = vadd.f32 %v2884, %v2916
    %v2925 = vadd.f32 %v2885, %v2917
    %v2926 = vadd.f32 %v2886, %v2918
    %v2927 = vadd.f32 %v2887, %v2919
    %v2928 = vadd.f32 %v2888, %v2920
    %v2929 = vadd.f32 %v2889, %v2921
    %v2930 = vrcp.pop %v2922
    %v2931 = vrcp.pop %v2923
    %v2932 = vrcp.pop %v2924
    %v2933 = vrcp.pop %v2925
    %v2934 = vrcp.pop %v2926
    %v2935 = vrcp.pop %v2927
    %v2936 = vrcp.pop %v2928
    %v2937 = vrcp.pop %v2929
    %v2938 = vsel %vm501, %v2932, 0.0
    %v2939 = vadd.f32 %v2930, %v2938
    %v2940 = vrot.slane %v2939, 4
    %v2941 = vadd.f32 %v2939, %v2940
    %v2942 = vrot.slane %v2941, 2
    %v2943 = vadd.f32 %v2941, %v2942
    %v2944 = vrot.slane %v2943, 1
    %v2945 = vadd.f32 %v2943, %v2944
    %v2946 = vsel %vm501, %v2933, 0.0
    %v2947 = vadd.f32 %v2931, %v2946
    %v2948 = vrot.slane %v2947, 4
    %v2949 = vadd.f32 %v2947, %v2948
    %v2950 = vrot.slane %v2949, 2
    %v2951 = vadd.f32 %v2949, %v2950
    %v2952 = vrot.slane %v2951, 1
    %v2953 = vadd.f32 %v2951, %v2952
    %v2954 = vsel %vm501, %v2936, 0.0
    %v2955 = vadd.f32 %v2934, %v2954
    %v2956 = vrot.slane %v2955, 4
    %v2957 = vadd.f32 %v2955, %v2956
    %v2958 = vrot.slane %v2957, 2
    %v2959 = vadd.f32 %v2957, %v2958
    %v2960 = vrot.slane %v2959, 1
    %v2961 = vadd.f32 %v2959, %v2960
    %v2962 = vsel %vm501, %v2937, 0.0
    %v2963 = vadd.f32 %v2935, %v2962
    %v2964 = vrot.slane %v2963, 4
    %v2965 = vadd.f32 %v2963, %v2964
    %v2966 = vrot.slane %v2965, 2
    %v2967 = vadd.f32 %v2965, %v2966
    %v2968 = vrot.slane %v2967, 1
    %v2969 = vadd.f32 %v2967, %v2968
    %v2970 = vrcp.pop %v2945
    %v2971 = vrcp.pop %v2953
    %v2972 = vrcp.pop %v2961
    %v2973 = vrcp.pop %v2969
    %v2974 = vmul.f32 %v2930, %v2970
    %v2975 = vmul.f32 %v2931, %v2971
    %v2976 = vmul.f32 %v2932, %v2970
    %v2977 = vmul.f32 %v2933, %v2971
    %v2978 = vmul.f32 %v2934, %v2972
    %v2979 = vmul.f32 %v2935, %v2973
    %v2980 = vmul.f32 %v2936, %v2972
    %v2981 = vmul.f32 %v2937, %v2973
    %v2982 = vmul.f32 %v2974, %v2974
    %v2983 = vmul.f32 %v2975, %v2975
    %v2984 = vmul.f32 %v2976, %v2976
    %v2985 = vmul.f32 %v2977, %v2977
    %v2986 = vmul.f32 %v2978, %v2978
    %v2987 = vmul.f32 %v2979, %v2979
    %v2988 = vmul.f32 %v2980, %v2980
    %v2989 = vmul.f32 %v2981, %v2981
    %2990 = vmatprep.subr.mxu0 %v14
    %2991 = vmatpush1.xpose.msra.mxu0 %v13
    %2992 = vmatprep.subr.mxu0 0.0
    %2993 = vmatpush1.xpose.msra.mxu0 0.0
    %2994 = vmatprep.subr.mxu0 0.0
    %2995 = vmatpush1.xpose.msra.mxu0 0.0
    %2996 = vmatprep.subr.mxu0 0.0
    %2997 = vmatpush1.xpose.msra.mxu0 0.0
    %2998 = vmatprep.subr.mxu0 0.0
    %2999 = vmatpush1.xpose.msra.mxu0 0.0
    %3000 = vmatprep.subr.mxu0 0.0
    %3001 = vmatpush1.xpose.msra.mxu0 0.0
    %3002 = vmatprep.subr.mxu0 0.0
    %3003 = vmatpush1.xpose.msra.mxu0 0.0
    %3004 = vmatprep.subr.mxu0 0.0
    %3005 = vmatpush1.xpose.msra.mxu0 0.0
    %3006 = vmatprep.subr.mxu0 0.0
    %3007 = vmatpush1.xpose.msra.mxu0 0.0
    %3008 = vmatprep.subr.mxu0 0.0
    %3009 = vmatpush1.xpose.msra.mxu0 0.0
    %3010 = vmatprep.subr.mxu0 0.0
    %3011 = vmatpush1.xpose.msra.mxu0 0.0
    %3012 = vmatprep.subr.mxu0 0.0
    %3013 = vmatpush1.xpose.msra.mxu0 0.0
    %3014 = vmatprep.subr.mxu0 0.0
    %3015 = vmatpush1.xpose.msra.mxu0 0.0
    %3016 = vmatprep.subr.mxu0 0.0
    %3017 = vmatpush1.xpose.msra.mxu0 0.0
    %3018 = vmatprep.subr.mxu0 0.0
    %3019 = vmatpush1.xpose.msra.mxu0 0.0
    %3020 = vmatprep.subr.mxu0 0.0
    %3021 = vmatpush1.xpose.msra.mxu0 0.0
    %3022 = vmatprep.subr.mxu0 0.0
    %3023 = vmatpush1.xpose.msra.mxu0 0.0
    %3024 = vmatprep.subr.mxu0 0.0
    %3025 = vmatpush1.xpose.msra.mxu0 0.0
    %3026 = vmatprep.subr.mxu0 0.0
    %3027 = vmatpush1.xpose.msra.mxu0 0.0
    %3028 = vmatprep.subr.mxu0 0.0
    %3029 = vmatpush1.xpose.msra.mxu0 0.0
    %3030 = vmatprep.subr.mxu0 0.0
    %3031 = vmatpush1.xpose.msra.mxu0 0.0
    %3032 = vmatprep.subr.mxu0 0.0
    %3033 = vmatpush1.xpose.msra.mxu0 0.0
    %3034 = vmatprep.subr.mxu0 0.0
    %3035 = vmatpush1.xpose.msra.mxu0 0.0
    %3036 = vmatprep.subr.mxu0 0.0
    %3037 = vmatpush1.xpose.msra.mxu0 0.0
    %3038 = vmatprep.subr.mxu0 0.0
    %3039 = vmatpush1.xpose.msra.mxu0 0.0
    %3040 = vmatprep.subr.mxu0 0.0
    %3041 = vmatpush1.xpose.msra.mxu0 0.0
    %3042 = vmatprep.subr.mxu0 0.0
    %3043 = vmatpush1.xpose.msra.mxu0 0.0
    %3044 = vmatprep.subr.mxu0 0.0
    %3045 = vmatpush1.xpose.msra.mxu0 0.0
    %3046 = vmatprep.subr.mxu0 0.0
    %3047 = vmatpush1.xpose.msra.mxu0 0.0
    %3048 = vmatprep.subr.mxu0 0.0
    %3049 = vmatpush1.xpose.msra.mxu0 0.0
    %3050 = vmatprep.subr.mxu0 0.0
    %3051 = vmatpush1.xpose.msra.mxu0 0.0
    %3052 = vmatprep.subr.mxu0 0.0
    %3053 = vmatpush1.xpose.msra.mxu0 0.0
    %3054 = vmatprep.mubr.f32.mxu0 %v2983
    %3055 = vmatmul.mubr.f32.gmra.mrb[0].mxu0 %v2982
    %v3056 = vpop.f32.mrb[0].mxu0
    %v3057 = vadd.f32 0.0, %v3056
    %v3058 = vpop.f32.mrb[0].mxu0
    %3059 = vmatprep.mubr.f32.mxu0 %v2985
    %3060 = vmatmul.mubr.f32.gmra.mrb[0].mxu0 %v2984
    %v3061 = vpop.f32.mrb[0].mxu0
    %v3062 = vadd.f32 0.0, %v3061
    %v3063 = vpop.f32.mrb[0].mxu0
    %3064 = vdwg.mxu0
    %3065 = vmatprep.subr.mxu0 %v16
    %3066 = vmatpush1.xpose.msra.mxu0 %v15
    %3067 = vmatprep.subr.mxu0 0.0
    %3068 = vmatpush1.xpose.msra.mxu0 0.0
    %3069 = vmatprep.subr.mxu0 0.0
    %3070 = vmatpush1.xpose.msra.mxu0 0.0
    %3071 = vmatprep.subr.mxu0 0.0
    %3072 = vmatpush1.xpose.msra.mxu0 0.0
    %3073 = vmatprep.subr.mxu0 0.0
    %3074 = vmatpush1.xpose.msra.mxu0 0.0
    %3075 = vmatprep.subr.mxu0 0.0
    %3076 = vmatpush1.xpose.msra.mxu0 0.0
    %3077 = vmatprep.subr.mxu0 0.0
    %3078 = vmatpush1.xpose.msra.mxu0 0.0
    %3079 = vmatprep.subr.mxu0 0.0
    %3080 = vmatpush1.xpose.msra.mxu0 0.0
    %3081 = vmatprep.subr.mxu0 0.0
    %3082 = vmatpush1.xpose.msra.mxu0 0.0
    %3083 = vmatprep.subr.mxu0 0.0
    %3084 = vmatpush1.xpose.msra.mxu0 0.0
    %3085 = vmatprep.subr.mxu0 0.0
    %3086 = vmatpush1.xpose.msra.mxu0 0.0
    %3087 = vmatprep.subr.mxu0 0.0
    %3088 = vmatpush1.xpose.msra.mxu0 0.0
    %3089 = vmatprep.subr.mxu0 0.0
    %3090 = vmatpush1.xpose.msra.mxu0 0.0
    %3091 = vmatprep.subr.mxu0 0.0
    %3092 = vmatpush1.xpose.msra.mxu0 0.0
    %3093 = vmatprep.subr.mxu0 0.0
    %3094 = vmatpush1.xpose.msra.mxu0 0.0
    %3095 = vmatprep.subr.mxu0 0.0
    %3096 = vmatpush1.xpose.msra.mxu0 0.0
    %3097 = vmatprep.subr.mxu0 0.0
    %3098 = vmatpush1.xpose.msra.mxu0 0.0
    %3099 = vmatprep.subr.mxu0 0.0
    %3100 = vmatpush1.xpose.msra.mxu0 0.0
    %3101 = vmatprep.subr.mxu0 0.0
    %3102 = vmatpush1.xpose.msra.mxu0 0.0
    %3103 = vmatprep.subr.mxu0 0.0
    %3104 = vmatpush1.xpose.msra.mxu0 0.0
    %3105 = vmatprep.subr.mxu0 0.0
    %3106 = vmatpush1.xpose.msra.mxu0 0.0
    %3107 = vmatprep.subr.mxu0 0.0
    %3108 = vmatpush1.xpose.msra.mxu0 0.0
    %3109 = vmatprep.subr.mxu0 0.0
    %3110 = vmatpush1.xpose.msra.mxu0 0.0
    %3111 = vmatprep.subr.mxu0 0.0
    %3112 = vmatpush1.xpose.msra.mxu0 0.0
    %3113 = vmatprep.subr.mxu0 0.0
    %3114 = vmatpush1.xpose.msra.mxu0 0.0
    %3115 = vmatprep.subr.mxu0 0.0
    %3116 = vmatpush1.xpose.msra.mxu0 0.0
    %3117 = vmatprep.subr.mxu0 0.0
    %3118 = vmatpush1.xpose.msra.mxu0 0.0
    %3119 = vmatprep.subr.mxu0 0.0
    %3120 = vmatpush1.xpose.msra.mxu0 0.0
    %3121 = vmatprep.subr.mxu0 0.0
    %3122 = vmatpush1.xpose.msra.mxu0 0.0
    %3123 = vmatprep.subr.mxu0 0.0
    %3124 = vmatpush1.xpose.msra.mxu0 0.0
    %3125 = vmatprep.subr.mxu0 0.0
    %3126 = vmatpush1.xpose.msra.mxu0 0.0
    %3127 = vmatprep.subr.mxu0 0.0
    %3128 = vmatpush1.xpose.msra.mxu0 0.0
    %3129 = vmatprep.mubr.f32.mxu0 %v2987
    %3130 = vmatmul.mubr.f32.gmra.mrb[0].mxu0 %v2986
    %v3131 = vpop.f32.mrb[0].mxu0
    %v3132 = vadd.f32 0.0, %v3131
    %v3133 = vpop.f32.mrb[0].mxu0
    %3134 = vmatprep.mubr.f32.mxu0 %v2989
    %3135 = vmatmul.mubr.f32.gmra.mrb[0].mxu0 %v2988
    %v3136 = vpop.f32.mrb[0].mxu0
    %v3137 = vadd.f32 0.0, %v3136
    %v3138 = vpop.f32.mrb[0].mxu0
    %3139 = vdwg.mxu0
    %v3140 = vmax.f32 %v3057, 1e-30
    %v3141 = vmax.f32 %v3062, 1e-30
    %v3142 = vmax.f32 %v3132, 1e-30
    %v3143 = vmax.f32 %v3137, 1e-30
    %3145 = vset.pattern.permute.xlu0 4
    %3146 = vperm.xlu0 %3145, %v3140
    %v3147 = vpop.permute.xlu0 %3146
    %3150 = vset.pattern.permute.xlu0 4
    %3151 = vperm.xlu0 %3150, %v3141
    %v3152 = vpop.permute.xlu0 %3151
    %3155 = vset.pattern.permute.xlu0 4
    %3156 = vperm.xlu0 %3155, %v3142
    %v3157 = vpop.permute.xlu0 %3156
    %3160 = vset.pattern.permute.xlu0 4
    %3161 = vperm.xlu0 %3160, %v3143
    %v3162 = vpop.permute.xlu0 %3161
    %v3164 = vrcp.pop %v3147
    %v3165 = vmul.f32 %v3057, %v3164
    %v3166 = vrcp.pop %v3152
    %v3167 = vmul.f32 %v3062, %v3166
    %v3168 = vrcp.pop %v3157
    %v3169 = vmul.f32 %v3132, %v3168
    %v3170 = vrcp.pop %v3162
    %v3171 = vmul.f32 %v3137, %v3170
    %3173 = vset.pattern.permute.xlu0 0
    %3174 = vperm.xlu0 %3173, %v3165
    %v3175 = vpop.permute.xlu0 %3174
    %3178 = vset.pattern.permute.xlu0 0
    %3179 = vperm.xlu0 %3178, %v3167
    %v3180 = vpop.permute.xlu0 %3179
    %3183 = vset.pattern.permute.xlu0 0
    %3184 = vperm.xlu0 %3183, %v3169
    %v3185 = vpop.permute.xlu0 %3184
    %3188 = vset.pattern.permute.xlu0 0
    %3189 = vperm.xlu0 %3188, %v3171
    %v3190 = vpop.permute.xlu0 %3189
    %v3192 = vsub.f32 %v268, %v3175
    %v3193 = vsub.f32 %v272, %v3175
    %v3194 = vsub.f32 %v268, %v3180
    %v3195 = vsub.f32 %v272, %v3180
    %v3196 = vsub.f32 %v276, %v3185
    %v3197 = vsub.f32 %v280, %v3185
    %v3198 = vsub.f32 %v276, %v3190
    %v3199 = vsub.f32 %v280, %v3190
    %v3200 = vmul.f32 %v3192, %v3192
    %v3201 = vmul.f32 %v3193, %v3193
    %v3202 = vmul.f32 %v3194, %v3194
    %v3203 = vmul.f32 %v3195, %v3195
    %v3204 = vmul.f32 %v3196, %v3196
    %v3205 = vmul.f32 %v3197, %v3197
    %v3206 = vmul.f32 %v3198, %v3198
    %v3207 = vmul.f32 %v3199, %v3199
    %v3208 = vadd.f32 %v3200, 1e-12
    %v3209 = vadd.f32 %v3201, 1e-12
    %v3210 = vadd.f32 %v3202, 1e-12
    %v3211 = vadd.f32 %v3203, 1e-12
    %v3212 = vadd.f32 %v3204, 1e-12
    %v3213 = vadd.f32 %v3205, 1e-12
    %v3214 = vadd.f32 %v3206, 1e-12
    %v3215 = vadd.f32 %v3207, 1e-12
    %3216 = vset.pattern.permute.xlu0 1
    %3217 = vperm.xlu0 %3216, %v3165
    %v3218 = vpop.permute.xlu0 %3217
    %3220 = vset.pattern.permute.xlu0 1
    %3221 = vperm.xlu0 %3220, %v3167
    %v3222 = vpop.permute.xlu0 %3221
    %3224 = vset.pattern.permute.xlu0 1
    %3225 = vperm.xlu0 %3224, %v3169
    %v3226 = vpop.permute.xlu0 %3225
    %3228 = vset.pattern.permute.xlu0 1
    %3229 = vperm.xlu0 %3228, %v3171
    %v3230 = vpop.permute.xlu0 %3229
    %v3232 = vsub.f32 %v328, %v3218
    %v3233 = vsub.f32 %v332, %v3218
    %v3234 = vsub.f32 %v328, %v3222
    %v3235 = vsub.f32 %v332, %v3222
    %v3236 = vsub.f32 %v336, %v3226
    %v3237 = vsub.f32 %v340, %v3226
    %v3238 = vsub.f32 %v336, %v3230
    %v3239 = vsub.f32 %v340, %v3230
    %v3240 = vmul.f32 %v3232, %v3232
    %v3241 = vmul.f32 %v3233, %v3233
    %v3242 = vmul.f32 %v3234, %v3234
    %v3243 = vmul.f32 %v3235, %v3235
    %v3244 = vmul.f32 %v3236, %v3236
    %v3245 = vmul.f32 %v3237, %v3237
    %v3246 = vmul.f32 %v3238, %v3238
    %v3247 = vmul.f32 %v3239, %v3239
    %v3248 = vadd.f32 %v3208, %v3240
    %v3249 = vadd.f32 %v3209, %v3241
    %v3250 = vadd.f32 %v3210, %v3242
    %v3251 = vadd.f32 %v3211, %v3243
    %v3252 = vadd.f32 %v3212, %v3244
    %v3253 = vadd.f32 %v3213, %v3245
    %v3254 = vadd.f32 %v3214, %v3246
    %v3255 = vadd.f32 %v3215, %v3247
    %3256 = vset.pattern.permute.xlu0 2
    %3257 = vperm.xlu0 %3256, %v3165
    %v3258 = vpop.permute.xlu0 %3257
    %3260 = vset.pattern.permute.xlu0 2
    %3261 = vperm.xlu0 %3260, %v3167
    %v3262 = vpop.permute.xlu0 %3261
    %3264 = vset.pattern.permute.xlu0 2
    %3265 = vperm.xlu0 %3264, %v3169
    %v3266 = vpop.permute.xlu0 %3265
    %3268 = vset.pattern.permute.xlu0 2
    %3269 = vperm.xlu0 %3268, %v3171
    %v3270 = vpop.permute.xlu0 %3269
    %v3272 = vsub.f32 %v384, %v3258
    %v3273 = vsub.f32 %v388, %v3258
    %v3274 = vsub.f32 %v384, %v3262
    %v3275 = vsub.f32 %v388, %v3262
    %v3276 = vsub.f32 %v392, %v3266
    %v3277 = vsub.f32 %v396, %v3266
    %v3278 = vsub.f32 %v392, %v3270
    %v3279 = vsub.f32 %v396, %v3270
    %v3280 = vmul.f32 %v3272, %v3272
    %v3281 = vmul.f32 %v3273, %v3273
    %v3282 = vmul.f32 %v3274, %v3274
    %v3283 = vmul.f32 %v3275, %v3275
    %v3284 = vmul.f32 %v3276, %v3276
    %v3285 = vmul.f32 %v3277, %v3277
    %v3286 = vmul.f32 %v3278, %v3278
    %v3287 = vmul.f32 %v3279, %v3279
    %v3288 = vadd.f32 %v3248, %v3280
    %v3289 = vadd.f32 %v3249, %v3281
    %v3290 = vadd.f32 %v3250, %v3282
    %v3291 = vadd.f32 %v3251, %v3283
    %v3292 = vadd.f32 %v3252, %v3284
    %v3293 = vadd.f32 %v3253, %v3285
    %v3294 = vadd.f32 %v3254, %v3286
    %v3295 = vadd.f32 %v3255, %v3287
    %3296 = vset.pattern.permute.xlu0 3
    %3297 = vperm.xlu0 %3296, %v3165
    %v3298 = vpop.permute.xlu0 %3297
    %3300 = vset.pattern.permute.xlu0 3
    %3301 = vperm.xlu0 %3300, %v3167
    %v3302 = vpop.permute.xlu0 %3301
    %3304 = vset.pattern.permute.xlu0 3
    %3305 = vperm.xlu0 %3304, %v3169
    %v3306 = vpop.permute.xlu0 %3305
    %3308 = vset.pattern.permute.xlu0 3
    %3309 = vperm.xlu0 %3308, %v3171
    %v3310 = vpop.permute.xlu0 %3309
    %v3312 = vsub.f32 %v440, %v3298
    %v3313 = vsub.f32 %v444, %v3298
    %v3314 = vsub.f32 %v440, %v3302
    %v3315 = vsub.f32 %v444, %v3302
    %v3316 = vsub.f32 %v448, %v3306
    %v3317 = vsub.f32 %v452, %v3306
    %v3318 = vsub.f32 %v448, %v3310
    %v3319 = vsub.f32 %v452, %v3310
    %v3320 = vmul.f32 %v3312, %v3312
    %v3321 = vmul.f32 %v3313, %v3313
    %v3322 = vmul.f32 %v3314, %v3314
    %v3323 = vmul.f32 %v3315, %v3315
    %v3324 = vmul.f32 %v3316, %v3316
    %v3325 = vmul.f32 %v3317, %v3317
    %v3326 = vmul.f32 %v3318, %v3318
    %v3327 = vmul.f32 %v3319, %v3319
    %v3328 = vadd.f32 %v3288, %v3320
    %v3329 = vadd.f32 %v3289, %v3321
    %v3330 = vadd.f32 %v3290, %v3322
    %v3331 = vadd.f32 %v3291, %v3323
    %v3332 = vadd.f32 %v3292, %v3324
    %v3333 = vadd.f32 %v3293, %v3325
    %v3334 = vadd.f32 %v3294, %v3326
    %v3335 = vadd.f32 %v3295, %v3327
    %v3336 = vrcp.pop %v3328
    %v3337 = vrcp.pop %v3329
    %v3338 = vrcp.pop %v3330
    %v3339 = vrcp.pop %v3331
    %v3340 = vrcp.pop %v3332
    %v3341 = vrcp.pop %v3333
    %v3342 = vrcp.pop %v3334
    %v3343 = vrcp.pop %v3335
    %v3344 = vsel %vm501, %v3338, 0.0
    %v3345 = vadd.f32 %v3336, %v3344
    %v3346 = vrot.slane %v3345, 4
    %v3347 = vadd.f32 %v3345, %v3346
    %v3348 = vrot.slane %v3347, 2
    %v3349 = vadd.f32 %v3347, %v3348
    %v3350 = vrot.slane %v3349, 1
    %v3351 = vadd.f32 %v3349, %v3350
    %v3352 = vsel %vm501, %v3339, 0.0
    %v3353 = vadd.f32 %v3337, %v3352
    %v3354 = vrot.slane %v3353, 4
    %v3355 = vadd.f32 %v3353, %v3354
    %v3356 = vrot.slane %v3355, 2
    %v3357 = vadd.f32 %v3355, %v3356
    %v3358 = vrot.slane %v3357, 1
    %v3359 = vadd.f32 %v3357, %v3358
    %v3360 = vsel %vm501, %v3342, 0.0
    %v3361 = vadd.f32 %v3340, %v3360
    %v3362 = vrot.slane %v3361, 4
    %v3363 = vadd.f32 %v3361, %v3362
    %v3364 = vrot.slane %v3363, 2
    %v3365 = vadd.f32 %v3363, %v3364
    %v3366 = vrot.slane %v3365, 1
    %v3367 = vadd.f32 %v3365, %v3366
    %v3368 = vsel %vm501, %v3343, 0.0
    %v3369 = vadd.f32 %v3341, %v3368
    %v3370 = vrot.slane %v3369, 4
    %v3371 = vadd.f32 %v3369, %v3370
    %v3372 = vrot.slane %v3371, 2
    %v3373 = vadd.f32 %v3371, %v3372
    %v3374 = vrot.slane %v3373, 1
    %v3375 = vadd.f32 %v3373, %v3374
    %v3376 = vrcp.pop %v3351
    %v3377 = vrcp.pop %v3359
    %v3378 = vrcp.pop %v3367
    %v3379 = vrcp.pop %v3375
    %v3380 = vmul.f32 %v3336, %v3376
    %v3381 = vmul.f32 %v3337, %v3377
    %v3382 = vmul.f32 %v3338, %v3376
    %v3383 = vmul.f32 %v3339, %v3377
    %v3384 = vmul.f32 %v3340, %v3378
    %v3385 = vmul.f32 %v3341, %v3379
    %v3386 = vmul.f32 %v3342, %v3378
    %v3387 = vmul.f32 %v3343, %v3379
    %v3388 = vsub.f32 %v2568, %v2974
    %v3389 = vsub.f32 %v2569, %v2975
    %v3390 = vsub.f32 %v2570, %v2976
    %v3391 = vsub.f32 %v2571, %v2977
    %v3392 = vsub.f32 %v2572, %v2978
    %v3393 = vsub.f32 %v2573, %v2979
    %v3394 = vsub.f32 %v2574, %v2980
    %v3395 = vsub.f32 %v2575, %v2981
    %v3396 = vmul.f32 %v3388, %v3388
    %v3397 = vmul.f32 %v3389, %v3389
    %v3398 = vmul.f32 %v3390, %v3390
    %v3399 = vmul.f32 %v3391, %v3391
    %v3400 = vmul.f32 %v3392, %v3392
    %v3401 = vmul.f32 %v3393, %v3393
    %v3402 = vmul.f32 %v3394, %v3394
    %v3403 = vmul.f32 %v3395, %v3395
    %v3404 = vadd.f32 %v3396, %v3397
    %v3405 = vsel %vm501, %v3398, 0.0
    %v3406 = vadd.f32 %v3404, %v3405
    %v3407 = vsel %vm501, %v3399, 0.0
    %v3408 = vadd.f32 %v3406, %v3407
    %v3409 = vadd.f32 %v3408, %v3400
    %v3410 = vadd.f32 %v3409, %v3401
    %v3411 = vsel %vm501, %v3402, 0.0
    %v3412 = vadd.f32 %v3410, %v3411
    %v3413 = vsel %vm501, %v3403, 0.0
    %v3414 = vadd.f32 %v3412, %v3413
    %3415 = vadd.xlane.f32.xlu0 %v3414
    %v3416 = vpop.xlane.xlu0 %3415
    %v3417 = vrot.slane %v3416, 4
    %v3418 = vadd.f32 %v3416, %v3417
    %v3419 = vrot.slane %v3418, 2
    %v3420 = vadd.f32 %v3418, %v3419
    %v3421 = vrot.slane %v3420, 1
    %v3422 = vadd.f32 %v3420, %v3421
    %s3423 = vtos %v3422
    %p3424 = scmp.lt.f32.partialorder %s3423, 1e-12
    %s3425 = scalar_select %p65, 1, 0
    %v3426 = vstv %s3425
    %vm3427 = vcmp.eq.s32.totalorder %v3426, 1
    %v3428 = vsel %vm3427, %v41, %v3380
    %v3429 = vsel %vm3427, %v42, %v3381
    %v3430 = vsel %vm3427, %v43, %v3382
    %v3431 = vsel %vm3427, %v44, %v3383
    %v3432 = vsel %vm3427, %v45, %v3384
    %v3433 = vsel %vm3427, %v46, %v3385
    %v3434 = vsel %vm3427, %v47, %v3386
    %v3435 = vsel %vm3427, %v48, %v3387
    %v3436 = vsel %vm3427, %v57, %v3165
    %v3437 = vsel %vm3427, %v58, %v3167
    %v3438 = vsel %vm3427, %v59, %v3169
    %v3439 = vsel %vm3427, %v60, %v3171
    %p3440 = por %p65, %p3424
    %v3441 = vmul.f32 %v49, %v49
    %v3442 = vmul.f32 %v50, %v50
    %v3443 = vmul.f32 %v51, %v51
    %v3444 = vmul.f32 %v52, %v52
    %v3445 = vmul.f32 %v53, %v53
    %v3446 = vmul.f32 %v54, %v54
    %v3447 = vmul.f32 %v55, %v55
    %v3448 = vmul.f32 %v56, %v56
    %3449 = vmatprep.subr.mxu0 %v27
    %3450 = vmatpush1.xpose.msra.mxu0 %v26
    %3451 = vmatprep.subr.mxu0 0.0
    %3452 = vmatpush1.xpose.msra.mxu0 0.0
    %3453 = vmatprep.subr.mxu0 0.0
    %3454 = vmatpush1.xpose.msra.mxu0 0.0
    %3455 = vmatprep.subr.mxu0 0.0
    %3456 = vmatpush1.xpose.msra.mxu0 0.0
    %3457 = vmatprep.subr.mxu0 0.0
    %3458 = vmatpush1.xpose.msra.mxu0 0.0
    %3459 = vmatprep.subr.mxu0 0.0
    %3460 = vmatpush1.xpose.msra.mxu0 0.0
    %3461 = vmatprep.subr.mxu0 0.0
    %3462 = vmatpush1.xpose.msra.mxu0 0.0
    %3463 = vmatprep.subr.mxu0 0.0
    %3464 = vmatpush1.xpose.msra.mxu0 0.0
    %3465 = vmatprep.subr.mxu0 0.0
    %3466 = vmatpush1.xpose.msra.mxu0 0.0
    %3467 = vmatprep.subr.mxu0 0.0
    %3468 = vmatpush1.xpose.msra.mxu0 0.0
    %3469 = vmatprep.subr.mxu0 0.0
    %3470 = vmatpush1.xpose.msra.mxu0 0.0
    %3471 = vmatprep.subr.mxu0 0.0
    %3472 = vmatpush1.xpose.msra.mxu0 0.0
    %3473 = vmatprep.subr.mxu0 0.0
    %3474 = vmatpush1.xpose.msra.mxu0 0.0
    %3475 = vmatprep.subr.mxu0 0.0
    %3476 = vmatpush1.xpose.msra.mxu0 0.0
    %3477 = vmatprep.subr.mxu0 0.0
    %3478 = vmatpush1.xpose.msra.mxu0 0.0
    %3479 = vmatprep.subr.mxu0 0.0
    %3480 = vmatpush1.xpose.msra.mxu0 0.0
    %3481 = vmatprep.subr.mxu0 0.0
    %3482 = vmatpush1.xpose.msra.mxu0 0.0
    %3483 = vmatprep.subr.mxu0 0.0
    %3484 = vmatpush1.xpose.msra.mxu0 0.0
    %3485 = vmatprep.subr.mxu0 0.0
    %3486 = vmatpush1.xpose.msra.mxu0 0.0
    %3487 = vmatprep.subr.mxu0 0.0
    %3488 = vmatpush1.xpose.msra.mxu0 0.0
    %3489 = vmatprep.subr.mxu0 0.0
    %3490 = vmatpush1.xpose.msra.mxu0 0.0
    %3491 = vmatprep.subr.mxu0 0.0
    %3492 = vmatpush1.xpose.msra.mxu0 0.0
    %3493 = vmatprep.subr.mxu0 0.0
    %3494 = vmatpush1.xpose.msra.mxu0 0.0
    %3495 = vmatprep.subr.mxu0 0.0
    %3496 = vmatpush1.xpose.msra.mxu0 0.0
    %3497 = vmatprep.subr.mxu0 0.0
    %3498 = vmatpush1.xpose.msra.mxu0 0.0
    %3499 = vmatprep.subr.mxu0 0.0
    %3500 = vmatpush1.xpose.msra.mxu0 0.0
    %3501 = vmatprep.subr.mxu0 0.0
    %3502 = vmatpush1.xpose.msra.mxu0 0.0
    %3503 = vmatprep.subr.mxu0 0.0
    %3504 = vmatpush1.xpose.msra.mxu0 0.0
    %3505 = vmatprep.subr.mxu0 0.0
    %3506 = vmatpush1.xpose.msra.mxu0 0.0
    %3507 = vmatprep.subr.mxu0 0.0
    %3508 = vmatpush1.xpose.msra.mxu0 0.0
    %3509 = vmatprep.subr.mxu0 0.0
    %3510 = vmatpush1.xpose.msra.mxu0 0.0
    %3511 = vmatprep.subr.mxu0 0.0
    %3512 = vmatpush1.xpose.msra.mxu0 0.0
    %3513 = vmatprep.mubr.f32.mxu0 %v3442
    %3514 = vmatmul.mubr.f32.gmra.mrb[0].mxu0 %v3441
    %v3515 = vpop.f32.mrb[0].mxu0
    %v3516 = vadd.f32 0.0, %v3515
    %v3517 = vpop.f32.mrb[0].mxu0
    %3518 = vmatprep.mubr.f32.mxu0 %v3444
    %3519 = vmatmul.mubr.f32.gmra.mrb[0].mxu0 %v3443
    %v3520 = vpop.f32.mrb[0].mxu0
    %v3521 = vadd.f32 0.0, %v3520
    %v3522 = vpop.f32.mrb[0].mxu0
    %3523 = vdwg.mxu0
    %3524 = vmatprep.subr.mxu0 %v29
    %3525 = vmatpush1.xpose.msra.mxu0 %v28
    %3526 = vmatprep.subr.mxu0 0.0
    %3527 = vmatpush1.xpose.msra.mxu0 0.0
    %3528 = vmatprep.subr.mxu0 0.0
    %3529 = vmatpush1.xpose.msra.mxu0 0.0
    %3530 = vmatprep.subr.mxu0 0.0
    %3531 = vmatpush1.xpose.msra.mxu0 0.0
    %3532 = vmatprep.subr.mxu0 0.0
    %3533 = vmatpush1.xpose.msra.mxu0 0.0
    %3534 = vmatprep.subr.mxu0 0.0
    %3535 = vmatpush1.xpose.msra.mxu0 0.0
    %3536 = vmatprep.subr.mxu0 0.0
    %3537 = vmatpush1.xpose.msra.mxu0 0.0
    %3538 = vmatprep.subr.mxu0 0.0
    %3539 = vmatpush1.xpose.msra.mxu0 0.0
    %3540 = vmatprep.subr.mxu0 0.0
    %3541 = vmatpush1.xpose.msra.mxu0 0.0
    %3542 = vmatprep.subr.mxu0 0.0
    %3543 = vmatpush1.xpose.msra.mxu0 0.0
    %3544 = vmatprep.subr.mxu0 0.0
    %3545 = vmatpush1.xpose.msra.mxu0 0.0
    %3546 = vmatprep.subr.mxu0 0.0
    %3547 = vmatpush1.xpose.msra.mxu0 0.0
    %3548 = vmatprep.subr.mxu0 0.0
    %3549 = vmatpush1.xpose.msra.mxu0 0.0
    %3550 = vmatprep.subr.mxu0 0.0
    %3551 = vmatpush1.xpose.msra.mxu0 0.0
    %3552 = vmatprep.subr.mxu0 0.0
    %3553 = vmatpush1.xpose.msra.mxu0 0.0
    %3554 = vmatprep.subr.mxu0 0.0
    %3555 = vmatpush1.xpose.msra.mxu0 0.0
    %3556 = vmatprep.subr.mxu0 0.0
    %3557 = vmatpush1.xpose.msra.mxu0 0.0
    %3558 = vmatprep.subr.mxu0 0.0
    %3559 = vmatpush1.xpose.msra.mxu0 0.0
    %3560 = vmatprep.subr.mxu0 0.0
    %3561 = vmatpush1.xpose.msra.mxu0 0.0
    %3562 = vmatprep.subr.mxu0 0.0
    %3563 = vmatpush1.xpose.msra.mxu0 0.0
    %3564 = vmatprep.subr.mxu0 0.0
    %3565 = vmatpush1.xpose.msra.mxu0 0.0
    %3566 = vmatprep.subr.mxu0 0.0
    %3567 = vmatpush1.xpose.msra.mxu0 0.0
    %3568 = vmatprep.subr.mxu0 0.0
    %3569 = vmatpush1.xpose.msra.mxu0 0.0
    %3570 = vmatprep.subr.mxu0 0.0
    %3571 = vmatpush1.xpose.msra.mxu0 0.0
    %3572 = vmatprep.subr.mxu0 0.0
    %3573 = vmatpush1.xpose.msra.mxu0 0.0
    %3574 = vmatprep.subr.mxu0 0.0
    %3575 = vmatpush1.xpose.msra.mxu0 0.0
    %3576 = vmatprep.subr.mxu0 0.0
    %3577 = vmatpush1.xpose.msra.mxu0 0.0
    %3578 = vmatprep.subr.mxu0 0.0
    %3579 = vmatpush1.xpose.msra.mxu0 0.0
    %3580 = vmatprep.subr.mxu0 0.0
    %3581 = vmatpush1.xpose.msra.mxu0 0.0
    %3582 = vmatprep.subr.mxu0 0.0
    %3583 = vmatpush1.xpose.msra.mxu0 0.0
    %3584 = vmatprep.subr.mxu0 0.0
    %3585 = vmatpush1.xpose.msra.mxu0 0.0
    %3586 = vmatprep.subr.mxu0 0.0
    %3587 = vmatpush1.xpose.msra.mxu0 0.0
    %3588 = vmatprep.mubr.f32.mxu0 %v3446
    %3589 = vmatmul.mubr.f32.gmra.mrb[0].mxu0 %v3445
    %v3590 = vpop.f32.mrb[0].mxu0
    %v3591 = vadd.f32 0.0, %v3590
    %v3592 = vpop.f32.mrb[0].mxu0
    %3593 = vmatprep.mubr.f32.mxu0 %v3448
    %3594 = vmatmul.mubr.f32.gmra.mrb[0].mxu0 %v3447
    %v3595 = vpop.f32.mrb[0].mxu0
    %v3596 = vadd.f32 0.0, %v3595
    %v3597 = vpop.f32.mrb[0].mxu0
    %3598 = vdwg.mxu0
    %v3599 = vmax.f32 %v3516, 1e-30
    %v3600 = vmax.f32 %v3521, 1e-30
    %v3601 = vmax.f32 %v3591, 1e-30
    %v3602 = vmax.f32 %v3596, 1e-30
    %3604 = vset.pattern.permute.xlu0 4
    %3605 = vperm.xlu0 %3604, %v3599
    %v3606 = vpop.permute.xlu0 %3605
    %3609 = vset.pattern.permute.xlu0 4
    %3610 = vperm.xlu0 %3609, %v3600
    %v3611 = vpop.permute.xlu0 %3610
    %3614 = vset.pattern.permute.xlu0 4
    %3615 = vperm.xlu0 %3614, %v3601
    %v3616 = vpop.permute.xlu0 %3615
    %3619 = vset.pattern.permute.xlu0 4
    %3620 = vperm.xlu0 %3619, %v3602
    %v3621 = vpop.permute.xlu0 %3620
    %v3623 = vrcp.pop %v3606
    %v3624 = vmul.f32 %v3516, %v3623
    %v3625 = vrcp.pop %v3611
    %v3626 = vmul.f32 %v3521, %v3625
    %v3627 = vrcp.pop %v3616
    %v3628 = vmul.f32 %v3591, %v3627
    %v3629 = vrcp.pop %v3621
    %v3630 = vmul.f32 %v3596, %v3629
    %v3631 = vlaneseq
    %v3632 = vshrl.u32 %v3631, 7
    %v3633 = vsub.s32 0, %v3632
    %v3634 = vrot.slane %v26, %v3633
    %v3635 = vlaneseq
    %v3636 = vshrl.u32 %v3635, 7
    %v3637 = vsub.s32 0, %v3636
    %v3638 = vrot.slane %v27, %v3637
    %v3639 = vlaneseq
    %v3640 = vshrl.u32 %v3639, 7
    %v3641 = vsub.s32 0, %v3640
    %v3642 = vrot.slane %v28, %v3641
    %v3643 = vlaneseq
    %v3644 = vshrl.u32 %v3643, 7
    %v3645 = vsub.s32 0, %v3644
    %v3646 = vrot.slane %v29, %v3645
    %3648 = vset.pattern.permute.xlu0 0
    %3649 = vperm.xlu0 %3648, %v3624
    %v3650 = vpop.permute.xlu0 %3649
    %3653 = vset.pattern.permute.xlu0 0
    %3654 = vperm.xlu0 %3653, %v3626
    %v3655 = vpop.permute.xlu0 %3654
    %3658 = vset.pattern.permute.xlu0 0
    %3659 = vperm.xlu0 %3658, %v3628
    %v3660 = vpop.permute.xlu0 %3659
    %3663 = vset.pattern.permute.xlu0 0
    %3664 = vperm.xlu0 %3663, %v3630
    %v3665 = vpop.permute.xlu0 %3664
    %v3667 = vsub.f32 %v3634, %v3650
    %v3668 = vsub.f32 %v3638, %v3650
    %v3669 = vsub.f32 %v3634, %v3655
    %v3670 = vsub.f32 %v3638, %v3655
    %v3671 = vsub.f32 %v3642, %v3660
    %v3672 = vsub.f32 %v3646, %v3660
    %v3673 = vsub.f32 %v3642, %v3665
    %v3674 = vsub.f32 %v3646, %v3665
    %v3675 = vmul.f32 %v3667, %v3667
    %v3676 = vmul.f32 %v3668, %v3668
    %v3677 = vmul.f32 %v3669, %v3669
    %v3678 = vmul.f32 %v3670, %v3670
    %v3679 = vmul.f32 %v3671, %v3671
    %v3680 = vmul.f32 %v3672, %v3672
    %v3681 = vmul.f32 %v3673, %v3673
    %v3682 = vmul.f32 %v3674, %v3674
    %v3683 = vadd.f32 %v3675, 1e-12
    %v3684 = vadd.f32 %v3676, 1e-12
    %v3685 = vadd.f32 %v3677, 1e-12
    %v3686 = vadd.f32 %v3678, 1e-12
    %v3687 = vadd.f32 %v3679, 1e-12
    %v3688 = vadd.f32 %v3680, 1e-12
    %v3689 = vadd.f32 %v3681, 1e-12
    %v3690 = vadd.f32 %v3682, 1e-12
    %v3691 = vlaneseq
    %v3692 = vshrl.u32 %v3691, 7
    %v3693 = vsub.s32 1, %v3692
    %v3694 = vrot.slane %v26, %v3693
    %v3695 = vlaneseq
    %v3696 = vshrl.u32 %v3695, 7
    %v3697 = vsub.s32 1, %v3696
    %v3698 = vrot.slane %v27, %v3697
    %v3699 = vlaneseq
    %v3700 = vshrl.u32 %v3699, 7
    %v3701 = vsub.s32 1, %v3700
    %v3702 = vrot.slane %v28, %v3701
    %v3703 = vlaneseq
    %v3704 = vshrl.u32 %v3703, 7
    %v3705 = vsub.s32 1, %v3704
    %v3706 = vrot.slane %v29, %v3705
    %3707 = vset.pattern.permute.xlu0 1
    %3708 = vperm.xlu0 %3707, %v3624
    %v3709 = vpop.permute.xlu0 %3708
    %3711 = vset.pattern.permute.xlu0 1
    %3712 = vperm.xlu0 %3711, %v3626
    %v3713 = vpop.permute.xlu0 %3712
    %3715 = vset.pattern.permute.xlu0 1
    %3716 = vperm.xlu0 %3715, %v3628
    %v3717 = vpop.permute.xlu0 %3716
    %3719 = vset.pattern.permute.xlu0 1
    %3720 = vperm.xlu0 %3719, %v3630
    %v3721 = vpop.permute.xlu0 %3720
    %v3723 = vsub.f32 %v3694, %v3709
    %v3724 = vsub.f32 %v3698, %v3709
    %v3725 = vsub.f32 %v3694, %v3713
    %v3726 = vsub.f32 %v3698, %v3713
    %v3727 = vsub.f32 %v3702, %v3717
    %v3728 = vsub.f32 %v3706, %v3717
    %v3729 = vsub.f32 %v3702, %v3721
    %v3730 = vsub.f32 %v3706, %v3721
    %v3731 = vmul.f32 %v3723, %v3723
    %v3732 = vmul.f32 %v3724, %v3724
    %v3733 = vmul.f32 %v3725, %v3725
    %v3734 = vmul.f32 %v3726, %v3726
    %v3735 = vmul.f32 %v3727, %v3727
    %v3736 = vmul.f32 %v3728, %v3728
    %v3737 = vmul.f32 %v3729, %v3729
    %v3738 = vmul.f32 %v3730, %v3730
    %v3739 = vadd.f32 %v3683, %v3731
    %v3740 = vadd.f32 %v3684, %v3732
    %v3741 = vadd.f32 %v3685, %v3733
    %v3742 = vadd.f32 %v3686, %v3734
    %v3743 = vadd.f32 %v3687, %v3735
    %v3744 = vadd.f32 %v3688, %v3736
    %v3745 = vadd.f32 %v3689, %v3737
    %v3746 = vadd.f32 %v3690, %v3738
    %v3747 = vlaneseq
    %v3748 = vshrl.u32 %v3747, 7
    %v3749 = vsub.s32 2, %v3748
    %v3750 = vrot.slane %v26, %v3749
    %v3751 = vlaneseq
    %v3752 = vshrl.u32 %v3751, 7
    %v3753 = vsub.s32 2, %v3752
    %v3754 = vrot.slane %v27, %v3753
    %v3755 = vlaneseq
    %v3756 = vshrl.u32 %v3755, 7
    %v3757 = vsub.s32 2, %v3756
    %v3758 = vrot.slane %v28, %v3757
    %v3759 = vlaneseq
    %v3760 = vshrl.u32 %v3759, 7
    %v3761 = vsub.s32 2, %v3760
    %v3762 = vrot.slane %v29, %v3761
    %3763 = vset.pattern.permute.xlu0 2
    %3764 = vperm.xlu0 %3763, %v3624
    %v3765 = vpop.permute.xlu0 %3764
    %3767 = vset.pattern.permute.xlu0 2
    %3768 = vperm.xlu0 %3767, %v3626
    %v3769 = vpop.permute.xlu0 %3768
    %3771 = vset.pattern.permute.xlu0 2
    %3772 = vperm.xlu0 %3771, %v3628
    %v3773 = vpop.permute.xlu0 %3772
    %3775 = vset.pattern.permute.xlu0 2
    %3776 = vperm.xlu0 %3775, %v3630
    %v3777 = vpop.permute.xlu0 %3776
    %v3779 = vsub.f32 %v3750, %v3765
    %v3780 = vsub.f32 %v3754, %v3765
    %v3781 = vsub.f32 %v3750, %v3769
    %v3782 = vsub.f32 %v3754, %v3769
    %v3783 = vsub.f32 %v3758, %v3773
    %v3784 = vsub.f32 %v3762, %v3773
    %v3785 = vsub.f32 %v3758, %v3777
    %v3786 = vsub.f32 %v3762, %v3777
    %v3787 = vmul.f32 %v3779, %v3779
    %v3788 = vmul.f32 %v3780, %v3780
    %v3789 = vmul.f32 %v3781, %v3781
    %v3790 = vmul.f32 %v3782, %v3782
    %v3791 = vmul.f32 %v3783, %v3783
    %v3792 = vmul.f32 %v3784, %v3784
    %v3793 = vmul.f32 %v3785, %v3785
    %v3794 = vmul.f32 %v3786, %v3786
    %v3795 = vadd.f32 %v3739, %v3787
    %v3796 = vadd.f32 %v3740, %v3788
    %v3797 = vadd.f32 %v3741, %v3789
    %v3798 = vadd.f32 %v3742, %v3790
    %v3799 = vadd.f32 %v3743, %v3791
    %v3800 = vadd.f32 %v3744, %v3792
    %v3801 = vadd.f32 %v3745, %v3793
    %v3802 = vadd.f32 %v3746, %v3794
    %v3803 = vlaneseq
    %v3804 = vshrl.u32 %v3803, 7
    %v3805 = vsub.s32 3, %v3804
    %v3806 = vrot.slane %v26, %v3805
    %v3807 = vlaneseq
    %v3808 = vshrl.u32 %v3807, 7
    %v3809 = vsub.s32 3, %v3808
    %v3810 = vrot.slane %v27, %v3809
    %v3811 = vlaneseq
    %v3812 = vshrl.u32 %v3811, 7
    %v3813 = vsub.s32 3, %v3812
    %v3814 = vrot.slane %v28, %v3813
    %v3815 = vlaneseq
    %v3816 = vshrl.u32 %v3815, 7
    %v3817 = vsub.s32 3, %v3816
    %v3818 = vrot.slane %v29, %v3817
    %3819 = vset.pattern.permute.xlu0 3
    %3820 = vperm.xlu0 %3819, %v3624
    %v3821 = vpop.permute.xlu0 %3820
    %3823 = vset.pattern.permute.xlu0 3
    %3824 = vperm.xlu0 %3823, %v3626
    %v3825 = vpop.permute.xlu0 %3824
    %3827 = vset.pattern.permute.xlu0 3
    %3828 = vperm.xlu0 %3827, %v3628
    %v3829 = vpop.permute.xlu0 %3828
    %3831 = vset.pattern.permute.xlu0 3
    %3832 = vperm.xlu0 %3831, %v3630
    %v3833 = vpop.permute.xlu0 %3832
    %v3835 = vsub.f32 %v3806, %v3821
    %v3836 = vsub.f32 %v3810, %v3821
    %v3837 = vsub.f32 %v3806, %v3825
    %v3838 = vsub.f32 %v3810, %v3825
    %v3839 = vsub.f32 %v3814, %v3829
    %v3840 = vsub.f32 %v3818, %v3829
    %v3841 = vsub.f32 %v3814, %v3833
    %v3842 = vsub.f32 %v3818, %v3833
    %v3843 = vmul.f32 %v3835, %v3835
    %v3844 = vmul.f32 %v3836, %v3836
    %v3845 = vmul.f32 %v3837, %v3837
    %v3846 = vmul.f32 %v3838, %v3838
    %v3847 = vmul.f32 %v3839, %v3839
    %v3848 = vmul.f32 %v3840, %v3840
    %v3849 = vmul.f32 %v3841, %v3841
    %v3850 = vmul.f32 %v3842, %v3842
    %v3851 = vadd.f32 %v3795, %v3843
    %v3852 = vadd.f32 %v3796, %v3844
    %v3853 = vadd.f32 %v3797, %v3845
    %v3854 = vadd.f32 %v3798, %v3846
    %v3855 = vadd.f32 %v3799, %v3847
    %v3856 = vadd.f32 %v3800, %v3848
    %v3857 = vadd.f32 %v3801, %v3849
    %v3858 = vadd.f32 %v3802, %v3850
    %v3859 = vrcp.pop %v3851
    %v3860 = vrcp.pop %v3852
    %v3861 = vrcp.pop %v3853
    %v3862 = vrcp.pop %v3854
    %v3863 = vrcp.pop %v3855
    %v3864 = vrcp.pop %v3856
    %v3865 = vrcp.pop %v3857
    %v3866 = vrcp.pop %v3858
    %v3867 = vsel %vm501, %v3861, 0.0
    %v3868 = vadd.f32 %v3859, %v3867
    %v3869 = vrot.slane %v3868, 4
    %v3870 = vadd.f32 %v3868, %v3869
    %v3871 = vrot.slane %v3870, 2
    %v3872 = vadd.f32 %v3870, %v3871
    %v3873 = vrot.slane %v3872, 1
    %v3874 = vadd.f32 %v3872, %v3873
    %v3875 = vsel %vm501, %v3862, 0.0
    %v3876 = vadd.f32 %v3860, %v3875
    %v3877 = vrot.slane %v3876, 4
    %v3878 = vadd.f32 %v3876, %v3877
    %v3879 = vrot.slane %v3878, 2
    %v3880 = vadd.f32 %v3878, %v3879
    %v3881 = vrot.slane %v3880, 1
    %v3882 = vadd.f32 %v3880, %v3881
    %v3883 = vsel %vm501, %v3865, 0.0
    %v3884 = vadd.f32 %v3863, %v3883
    %v3885 = vrot.slane %v3884, 4
    %v3886 = vadd.f32 %v3884, %v3885
    %v3887 = vrot.slane %v3886, 2
    %v3888 = vadd.f32 %v3886, %v3887
    %v3889 = vrot.slane %v3888, 1
    %v3890 = vadd.f32 %v3888, %v3889
    %v3891 = vsel %vm501, %v3866, 0.0
    %v3892 = vadd.f32 %v3864, %v3891
    %v3893 = vrot.slane %v3892, 4
    %v3894 = vadd.f32 %v3892, %v3893
    %v3895 = vrot.slane %v3894, 2
    %v3896 = vadd.f32 %v3894, %v3895
    %v3897 = vrot.slane %v3896, 1
    %v3898 = vadd.f32 %v3896, %v3897
    %v3899 = vrcp.pop %v3874
    %v3900 = vrcp.pop %v3882
    %v3901 = vrcp.pop %v3890
    %v3902 = vrcp.pop %v3898
    %v3903 = vmul.f32 %v3859, %v3899
    %v3904 = vmul.f32 %v3860, %v3900
    %v3905 = vmul.f32 %v3861, %v3899
    %v3906 = vmul.f32 %v3862, %v3900
    %v3907 = vmul.f32 %v3863, %v3901
    %v3908 = vmul.f32 %v3864, %v3902
    %v3909 = vmul.f32 %v3865, %v3901
    %v3910 = vmul.f32 %v3866, %v3902
    %v3911 = vmul.f32 %v3903, %v3903
    %v3912 = vmul.f32 %v3904, %v3904
    %v3913 = vmul.f32 %v3905, %v3905
    %v3914 = vmul.f32 %v3906, %v3906
    %v3915 = vmul.f32 %v3907, %v3907
    %v3916 = vmul.f32 %v3908, %v3908
    %v3917 = vmul.f32 %v3909, %v3909
    %v3918 = vmul.f32 %v3910, %v3910
    %3919 = vmatprep.subr.mxu0 %v27
    %3920 = vmatpush1.xpose.msra.mxu0 %v26
    %3921 = vmatprep.subr.mxu0 0.0
    %3922 = vmatpush1.xpose.msra.mxu0 0.0
    %3923 = vmatprep.subr.mxu0 0.0
    %3924 = vmatpush1.xpose.msra.mxu0 0.0
    %3925 = vmatprep.subr.mxu0 0.0
    %3926 = vmatpush1.xpose.msra.mxu0 0.0
    %3927 = vmatprep.subr.mxu0 0.0
    %3928 = vmatpush1.xpose.msra.mxu0 0.0
    %3929 = vmatprep.subr.mxu0 0.0
    %3930 = vmatpush1.xpose.msra.mxu0 0.0
    %3931 = vmatprep.subr.mxu0 0.0
    %3932 = vmatpush1.xpose.msra.mxu0 0.0
    %3933 = vmatprep.subr.mxu0 0.0
    %3934 = vmatpush1.xpose.msra.mxu0 0.0
    %3935 = vmatprep.subr.mxu0 0.0
    %3936 = vmatpush1.xpose.msra.mxu0 0.0
    %3937 = vmatprep.subr.mxu0 0.0
    %3938 = vmatpush1.xpose.msra.mxu0 0.0
    %3939 = vmatprep.subr.mxu0 0.0
    %3940 = vmatpush1.xpose.msra.mxu0 0.0
    %3941 = vmatprep.subr.mxu0 0.0
    %3942 = vmatpush1.xpose.msra.mxu0 0.0
    %3943 = vmatprep.subr.mxu0 0.0
    %3944 = vmatpush1.xpose.msra.mxu0 0.0
    %3945 = vmatprep.subr.mxu0 0.0
    %3946 = vmatpush1.xpose.msra.mxu0 0.0
    %3947 = vmatprep.subr.mxu0 0.0
    %3948 = vmatpush1.xpose.msra.mxu0 0.0
    %3949 = vmatprep.subr.mxu0 0.0
    %3950 = vmatpush1.xpose.msra.mxu0 0.0
    %3951 = vmatprep.subr.mxu0 0.0
    %3952 = vmatpush1.xpose.msra.mxu0 0.0
    %3953 = vmatprep.subr.mxu0 0.0
    %3954 = vmatpush1.xpose.msra.mxu0 0.0
    %3955 = vmatprep.subr.mxu0 0.0
    %3956 = vmatpush1.xpose.msra.mxu0 0.0
    %3957 = vmatprep.subr.mxu0 0.0
    %3958 = vmatpush1.xpose.msra.mxu0 0.0
    %3959 = vmatprep.subr.mxu0 0.0
    %3960 = vmatpush1.xpose.msra.mxu0 0.0
    %3961 = vmatprep.subr.mxu0 0.0
    %3962 = vmatpush1.xpose.msra.mxu0 0.0
    %3963 = vmatprep.subr.mxu0 0.0
    %3964 = vmatpush1.xpose.msra.mxu0 0.0
    %3965 = vmatprep.subr.mxu0 0.0
    %3966 = vmatpush1.xpose.msra.mxu0 0.0
    %3967 = vmatprep.subr.mxu0 0.0
    %3968 = vmatpush1.xpose.msra.mxu0 0.0
    %3969 = vmatprep.subr.mxu0 0.0
    %3970 = vmatpush1.xpose.msra.mxu0 0.0
    %3971 = vmatprep.subr.mxu0 0.0
    %3972 = vmatpush1.xpose.msra.mxu0 0.0
    %3973 = vmatprep.subr.mxu0 0.0
    %3974 = vmatpush1.xpose.msra.mxu0 0.0
    %3975 = vmatprep.subr.mxu0 0.0
    %3976 = vmatpush1.xpose.msra.mxu0 0.0
    %3977 = vmatprep.subr.mxu0 0.0
    %3978 = vmatpush1.xpose.msra.mxu0 0.0
    %3979 = vmatprep.subr.mxu0 0.0
    %3980 = vmatpush1.xpose.msra.mxu0 0.0
    %3981 = vmatprep.subr.mxu0 0.0
    %3982 = vmatpush1.xpose.msra.mxu0 0.0
    %3983 = vmatprep.mubr.f32.mxu0 %v3912
    %3984 = vmatmul.mubr.f32.gmra.mrb[0].mxu0 %v3911
    %v3985 = vpop.f32.mrb[0].mxu0
    %v3986 = vadd.f32 0.0, %v3985
    %v3987 = vpop.f32.mrb[0].mxu0
    %3988 = vmatprep.mubr.f32.mxu0 %v3914
    %3989 = vmatmul.mubr.f32.gmra.mrb[0].mxu0 %v3913
    %v3990 = vpop.f32.mrb[0].mxu0
    %v3991 = vadd.f32 0.0, %v3990
    %v3992 = vpop.f32.mrb[0].mxu0
    %3993 = vdwg.mxu0
    %3994 = vmatprep.subr.mxu0 %v29
    %3995 = vmatpush1.xpose.msra.mxu0 %v28
    %3996 = vmatprep.subr.mxu0 0.0
    %3997 = vmatpush1.xpose.msra.mxu0 0.0
    %3998 = vmatprep.subr.mxu0 0.0
    %3999 = vmatpush1.xpose.msra.mxu0 0.0
    %4000 = vmatprep.subr.mxu0 0.0
    %4001 = vmatpush1.xpose.msra.mxu0 0.0
    %4002 = vmatprep.subr.mxu0 0.0
    %4003 = vmatpush1.xpose.msra.mxu0 0.0
    %4004 = vmatprep.subr.mxu0 0.0
    %4005 = vmatpush1.xpose.msra.mxu0 0.0
    %4006 = vmatprep.subr.mxu0 0.0
    %4007 = vmatpush1.xpose.msra.mxu0 0.0
    %4008 = vmatprep.subr.mxu0 0.0
    %4009 = vmatpush1.xpose.msra.mxu0 0.0
    %4010 = vmatprep.subr.mxu0 0.0
    %4011 = vmatpush1.xpose.msra.mxu0 0.0
    %4012 = vmatprep.subr.mxu0 0.0
    %4013 = vmatpush1.xpose.msra.mxu0 0.0
    %4014 = vmatprep.subr.mxu0 0.0
    %4015 = vmatpush1.xpose.msra.mxu0 0.0
    %4016 = vmatprep.subr.mxu0 0.0
    %4017 = vmatpush1.xpose.msra.mxu0 0.0
    %4018 = vmatprep.subr.mxu0 0.0
    %4019 = vmatpush1.xpose.msra.mxu0 0.0
    %4020 = vmatprep.subr.mxu0 0.0
    %4021 = vmatpush1.xpose.msra.mxu0 0.0
    %4022 = vmatprep.subr.mxu0 0.0
    %4023 = vmatpush1.xpose.msra.mxu0 0.0
    %4024 = vmatprep.subr.mxu0 0.0
    %4025 = vmatpush1.xpose.msra.mxu0 0.0
    %4026 = vmatprep.subr.mxu0 0.0
    %4027 = vmatpush1.xpose.msra.mxu0 0.0
    %4028 = vmatprep.subr.mxu0 0.0
    %4029 = vmatpush1.xpose.msra.mxu0 0.0
    %4030 = vmatprep.subr.mxu0 0.0
    %4031 = vmatpush1.xpose.msra.mxu0 0.0
    %4032 = vmatprep.subr.mxu0 0.0
    %4033 = vmatpush1.xpose.msra.mxu0 0.0
    %4034 = vmatprep.subr.mxu0 0.0
    %4035 = vmatpush1.xpose.msra.mxu0 0.0
    %4036 = vmatprep.subr.mxu0 0.0
    %4037 = vmatpush1.xpose.msra.mxu0 0.0
    %4038 = vmatprep.subr.mxu0 0.0
    %4039 = vmatpush1.xpose.msra.mxu0 0.0
    %4040 = vmatprep.subr.mxu0 0.0
    %4041 = vmatpush1.xpose.msra.mxu0 0.0
    %4042 = vmatprep.subr.mxu0 0.0
    %4043 = vmatpush1.xpose.msra.mxu0 0.0
    %4044 = vmatprep.subr.mxu0 0.0
    %4045 = vmatpush1.xpose.msra.mxu0 0.0
    %4046 = vmatprep.subr.mxu0 0.0
    %4047 = vmatpush1.xpose.msra.mxu0 0.0
    %4048 = vmatprep.subr.mxu0 0.0
    %4049 = vmatpush1.xpose.msra.mxu0 0.0
    %4050 = vmatprep.subr.mxu0 0.0
    %4051 = vmatpush1.xpose.msra.mxu0 0.0
    %4052 = vmatprep.subr.mxu0 0.0
    %4053 = vmatpush1.xpose.msra.mxu0 0.0
    %4054 = vmatprep.subr.mxu0 0.0
    %4055 = vmatpush1.xpose.msra.mxu0 0.0
    %4056 = vmatprep.subr.mxu0 0.0
    %4057 = vmatpush1.xpose.msra.mxu0 0.0
    %4058 = vmatprep.mubr.f32.mxu0 %v3916
    %4059 = vmatmul.mubr.f32.gmra.mrb[0].mxu0 %v3915
    %v4060 = vpop.f32.mrb[0].mxu0
    %v4061 = vadd.f32 0.0, %v4060
    %v4062 = vpop.f32.mrb[0].mxu0
    %4063 = vmatprep.mubr.f32.mxu0 %v3918
    %4064 = vmatmul.mubr.f32.gmra.mrb[0].mxu0 %v3917
    %v4065 = vpop.f32.mrb[0].mxu0
    %v4066 = vadd.f32 0.0, %v4065
    %v4067 = vpop.f32.mrb[0].mxu0
    %4068 = vdwg.mxu0
    %v4069 = vmax.f32 %v3986, 1e-30
    %v4070 = vmax.f32 %v3991, 1e-30
    %v4071 = vmax.f32 %v4061, 1e-30
    %v4072 = vmax.f32 %v4066, 1e-30
    %4074 = vset.pattern.permute.xlu0 4
    %4075 = vperm.xlu0 %4074, %v4069
    %v4076 = vpop.permute.xlu0 %4075
    %4079 = vset.pattern.permute.xlu0 4
    %4080 = vperm.xlu0 %4079, %v4070
    %v4081 = vpop.permute.xlu0 %4080
    %4084 = vset.pattern.permute.xlu0 4
    %4085 = vperm.xlu0 %4084, %v4071
    %v4086 = vpop.permute.xlu0 %4085
    %4089 = vset.pattern.permute.xlu0 4
    %4090 = vperm.xlu0 %4089, %v4072
    %v4091 = vpop.permute.xlu0 %4090
    %v4093 = vrcp.pop %v4076
    %v4094 = vmul.f32 %v3986, %v4093
    %v4095 = vrcp.pop %v4081
    %v4096 = vmul.f32 %v3991, %v4095
    %v4097 = vrcp.pop %v4086
    %v4098 = vmul.f32 %v4061, %v4097
    %v4099 = vrcp.pop %v4091
    %v4100 = vmul.f32 %v4066, %v4099
    %4102 = vset.pattern.permute.xlu0 0
    %4103 = vperm.xlu0 %4102, %v4094
    %v4104 = vpop.permute.xlu0 %4103
    %4107 = vset.pattern.permute.xlu0 0
    %4108 = vperm.xlu0 %4107, %v4096
    %v4109 = vpop.permute.xlu0 %4108
    %4112 = vset.pattern.permute.xlu0 0
    %4113 = vperm.xlu0 %4112, %v4098
    %v4114 = vpop.permute.xlu0 %4113
    %4117 = vset.pattern.permute.xlu0 0
    %4118 = vperm.xlu0 %4117, %v4100
    %v4119 = vpop.permute.xlu0 %4118
    %v4121 = vsub.f32 %v3634, %v4104
    %v4122 = vsub.f32 %v3638, %v4104
    %v4123 = vsub.f32 %v3634, %v4109
    %v4124 = vsub.f32 %v3638, %v4109
    %v4125 = vsub.f32 %v3642, %v4114
    %v4126 = vsub.f32 %v3646, %v4114
    %v4127 = vsub.f32 %v3642, %v4119
    %v4128 = vsub.f32 %v3646, %v4119
    %v4129 = vmul.f32 %v4121, %v4121
    %v4130 = vmul.f32 %v4122, %v4122
    %v4131 = vmul.f32 %v4123, %v4123
    %v4132 = vmul.f32 %v4124, %v4124
    %v4133 = vmul.f32 %v4125, %v4125
    %v4134 = vmul.f32 %v4126, %v4126
    %v4135 = vmul.f32 %v4127, %v4127
    %v4136 = vmul.f32 %v4128, %v4128
    %v4137 = vadd.f32 %v4129, 1e-12
    %v4138 = vadd.f32 %v4130, 1e-12
    %v4139 = vadd.f32 %v4131, 1e-12
    %v4140 = vadd.f32 %v4132, 1e-12
    %v4141 = vadd.f32 %v4133, 1e-12
    %v4142 = vadd.f32 %v4134, 1e-12
    %v4143 = vadd.f32 %v4135, 1e-12
    %v4144 = vadd.f32 %v4136, 1e-12
    %4145 = vset.pattern.permute.xlu0 1
    %4146 = vperm.xlu0 %4145, %v4094
    %v4147 = vpop.permute.xlu0 %4146
    %4149 = vset.pattern.permute.xlu0 1
    %4150 = vperm.xlu0 %4149, %v4096
    %v4151 = vpop.permute.xlu0 %4150
    %4153 = vset.pattern.permute.xlu0 1
    %4154 = vperm.xlu0 %4153, %v4098
    %v4155 = vpop.permute.xlu0 %4154
    %4157 = vset.pattern.permute.xlu0 1
    %4158 = vperm.xlu0 %4157, %v4100
    %v4159 = vpop.permute.xlu0 %4158
    %v4161 = vsub.f32 %v3694, %v4147
    %v4162 = vsub.f32 %v3698, %v4147
    %v4163 = vsub.f32 %v3694, %v4151
    %v4164 = vsub.f32 %v3698, %v4151
    %v4165 = vsub.f32 %v3702, %v4155
    %v4166 = vsub.f32 %v3706, %v4155
    %v4167 = vsub.f32 %v3702, %v4159
    %v4168 = vsub.f32 %v3706, %v4159
    %v4169 = vmul.f32 %v4161, %v4161
    %v4170 = vmul.f32 %v4162, %v4162
    %v4171 = vmul.f32 %v4163, %v4163
    %v4172 = vmul.f32 %v4164, %v4164
    %v4173 = vmul.f32 %v4165, %v4165
    %v4174 = vmul.f32 %v4166, %v4166
    %v4175 = vmul.f32 %v4167, %v4167
    %v4176 = vmul.f32 %v4168, %v4168
    %v4177 = vadd.f32 %v4137, %v4169
    %v4178 = vadd.f32 %v4138, %v4170
    %v4179 = vadd.f32 %v4139, %v4171
    %v4180 = vadd.f32 %v4140, %v4172
    %v4181 = vadd.f32 %v4141, %v4173
    %v4182 = vadd.f32 %v4142, %v4174
    %v4183 = vadd.f32 %v4143, %v4175
    %v4184 = vadd.f32 %v4144, %v4176
    %4185 = vset.pattern.permute.xlu0 2
    %4186 = vperm.xlu0 %4185, %v4094
    %v4187 = vpop.permute.xlu0 %4186
    %4189 = vset.pattern.permute.xlu0 2
    %4190 = vperm.xlu0 %4189, %v4096
    %v4191 = vpop.permute.xlu0 %4190
    %4193 = vset.pattern.permute.xlu0 2
    %4194 = vperm.xlu0 %4193, %v4098
    %v4195 = vpop.permute.xlu0 %4194
    %4197 = vset.pattern.permute.xlu0 2
    %4198 = vperm.xlu0 %4197, %v4100
    %v4199 = vpop.permute.xlu0 %4198
    %v4201 = vsub.f32 %v3750, %v4187
    %v4202 = vsub.f32 %v3754, %v4187
    %v4203 = vsub.f32 %v3750, %v4191
    %v4204 = vsub.f32 %v3754, %v4191
    %v4205 = vsub.f32 %v3758, %v4195
    %v4206 = vsub.f32 %v3762, %v4195
    %v4207 = vsub.f32 %v3758, %v4199
    %v4208 = vsub.f32 %v3762, %v4199
    %v4209 = vmul.f32 %v4201, %v4201
    %v4210 = vmul.f32 %v4202, %v4202
    %v4211 = vmul.f32 %v4203, %v4203
    %v4212 = vmul.f32 %v4204, %v4204
    %v4213 = vmul.f32 %v4205, %v4205
    %v4214 = vmul.f32 %v4206, %v4206
    %v4215 = vmul.f32 %v4207, %v4207
    %v4216 = vmul.f32 %v4208, %v4208
    %v4217 = vadd.f32 %v4177, %v4209
    %v4218 = vadd.f32 %v4178, %v4210
    %v4219 = vadd.f32 %v4179, %v4211
    %v4220 = vadd.f32 %v4180, %v4212
    %v4221 = vadd.f32 %v4181, %v4213
    %v4222 = vadd.f32 %v4182, %v4214
    %v4223 = vadd.f32 %v4183, %v4215
    %v4224 = vadd.f32 %v4184, %v4216
    %4225 = vset.pattern.permute.xlu0 3
    %4226 = vperm.xlu0 %4225, %v4094
    %v4227 = vpop.permute.xlu0 %4226
    %4229 = vset.pattern.permute.xlu0 3
    %4230 = vperm.xlu0 %4229, %v4096
    %v4231 = vpop.permute.xlu0 %4230
    %4233 = vset.pattern.permute.xlu0 3
    %4234 = vperm.xlu0 %4233, %v4098
    %v4235 = vpop.permute.xlu0 %4234
    %4237 = vset.pattern.permute.xlu0 3
    %4238 = vperm.xlu0 %4237, %v4100
    %v4239 = vpop.permute.xlu0 %4238
    %v4241 = vsub.f32 %v3806, %v4227
    %v4242 = vsub.f32 %v3810, %v4227
    %v4243 = vsub.f32 %v3806, %v4231
    %v4244 = vsub.f32 %v3810, %v4231
    %v4245 = vsub.f32 %v3814, %v4235
    %v4246 = vsub.f32 %v3818, %v4235
    %v4247 = vsub.f32 %v3814, %v4239
    %v4248 = vsub.f32 %v3818, %v4239
    %v4249 = vmul.f32 %v4241, %v4241
    %v4250 = vmul.f32 %v4242, %v4242
    %v4251 = vmul.f32 %v4243, %v4243
    %v4252 = vmul.f32 %v4244, %v4244
    %v4253 = vmul.f32 %v4245, %v4245
    %v4254 = vmul.f32 %v4246, %v4246
    %v4255 = vmul.f32 %v4247, %v4247
    %v4256 = vmul.f32 %v4248, %v4248
    %v4257 = vadd.f32 %v4217, %v4249
    %v4258 = vadd.f32 %v4218, %v4250
    %v4259 = vadd.f32 %v4219, %v4251
    %v4260 = vadd.f32 %v4220, %v4252
    %v4261 = vadd.f32 %v4221, %v4253
    %v4262 = vadd.f32 %v4222, %v4254
    %v4263 = vadd.f32 %v4223, %v4255
    %v4264 = vadd.f32 %v4224, %v4256
    %v4265 = vrcp.pop %v4257
    %v4266 = vrcp.pop %v4258
    %v4267 = vrcp.pop %v4259
    %v4268 = vrcp.pop %v4260
    %v4269 = vrcp.pop %v4261
    %v4270 = vrcp.pop %v4262
    %v4271 = vrcp.pop %v4263
    %v4272 = vrcp.pop %v4264
    %v4273 = vsel %vm501, %v4267, 0.0
    %v4274 = vadd.f32 %v4265, %v4273
    %v4275 = vrot.slane %v4274, 4
    %v4276 = vadd.f32 %v4274, %v4275
    %v4277 = vrot.slane %v4276, 2
    %v4278 = vadd.f32 %v4276, %v4277
    %v4279 = vrot.slane %v4278, 1
    %v4280 = vadd.f32 %v4278, %v4279
    %v4281 = vsel %vm501, %v4268, 0.0
    %v4282 = vadd.f32 %v4266, %v4281
    %v4283 = vrot.slane %v4282, 4
    %v4284 = vadd.f32 %v4282, %v4283
    %v4285 = vrot.slane %v4284, 2
    %v4286 = vadd.f32 %v4284, %v4285
    %v4287 = vrot.slane %v4286, 1
    %v4288 = vadd.f32 %v4286, %v4287
    %v4289 = vsel %vm501, %v4271, 0.0
    %v4290 = vadd.f32 %v4269, %v4289
    %v4291 = vrot.slane %v4290, 4
    %v4292 = vadd.f32 %v4290, %v4291
    %v4293 = vrot.slane %v4292, 2
    %v4294 = vadd.f32 %v4292, %v4293
    %v4295 = vrot.slane %v4294, 1
    %v4296 = vadd.f32 %v4294, %v4295
    %v4297 = vsel %vm501, %v4272, 0.0
    %v4298 = vadd.f32 %v4270, %v4297
    %v4299 = vrot.slane %v4298, 4
    %v4300 = vadd.f32 %v4298, %v4299
    %v4301 = vrot.slane %v4300, 2
    %v4302 = vadd.f32 %v4300, %v4301
    %v4303 = vrot.slane %v4302, 1
    %v4304 = vadd.f32 %v4302, %v4303
    %v4305 = vrcp.pop %v4280
    %v4306 = vrcp.pop %v4288
    %v4307 = vrcp.pop %v4296
    %v4308 = vrcp.pop %v4304
    %v4309 = vmul.f32 %v4265, %v4305
    %v4310 = vmul.f32 %v4266, %v4306
    %v4311 = vmul.f32 %v4267, %v4305
    %v4312 = vmul.f32 %v4268, %v4306
    %v4313 = vmul.f32 %v4269, %v4307
    %v4314 = vmul.f32 %v4270, %v4308
    %v4315 = vmul.f32 %v4271, %v4307
    %v4316 = vmul.f32 %v4272, %v4308
    %v4317 = vmul.f32 %v4309, %v4309
    %v4318 = vmul.f32 %v4310, %v4310
    %v4319 = vmul.f32 %v4311, %v4311
    %v4320 = vmul.f32 %v4312, %v4312
    %v4321 = vmul.f32 %v4313, %v4313
    %v4322 = vmul.f32 %v4314, %v4314
    %v4323 = vmul.f32 %v4315, %v4315
    %v4324 = vmul.f32 %v4316, %v4316
    %4325 = vmatprep.subr.mxu0 %v27
    %4326 = vmatpush1.xpose.msra.mxu0 %v26
    %4327 = vmatprep.subr.mxu0 0.0
    %4328 = vmatpush1.xpose.msra.mxu0 0.0
    %4329 = vmatprep.subr.mxu0 0.0
    %4330 = vmatpush1.xpose.msra.mxu0 0.0
    %4331 = vmatprep.subr.mxu0 0.0
    %4332 = vmatpush1.xpose.msra.mxu0 0.0
    %4333 = vmatprep.subr.mxu0 0.0
    %4334 = vmatpush1.xpose.msra.mxu0 0.0
    %4335 = vmatprep.subr.mxu0 0.0
    %4336 = vmatpush1.xpose.msra.mxu0 0.0
    %4337 = vmatprep.subr.mxu0 0.0
    %4338 = vmatpush1.xpose.msra.mxu0 0.0
    %4339 = vmatprep.subr.mxu0 0.0
    %4340 = vmatpush1.xpose.msra.mxu0 0.0
    %4341 = vmatprep.subr.mxu0 0.0
    %4342 = vmatpush1.xpose.msra.mxu0 0.0
    %4343 = vmatprep.subr.mxu0 0.0
    %4344 = vmatpush1.xpose.msra.mxu0 0.0
    %4345 = vmatprep.subr.mxu0 0.0
    %4346 = vmatpush1.xpose.msra.mxu0 0.0
    %4347 = vmatprep.subr.mxu0 0.0
    %4348 = vmatpush1.xpose.msra.mxu0 0.0
    %4349 = vmatprep.subr.mxu0 0.0
    %4350 = vmatpush1.xpose.msra.mxu0 0.0
    %4351 = vmatprep.subr.mxu0 0.0
    %4352 = vmatpush1.xpose.msra.mxu0 0.0
    %4353 = vmatprep.subr.mxu0 0.0
    %4354 = vmatpush1.xpose.msra.mxu0 0.0
    %4355 = vmatprep.subr.mxu0 0.0
    %4356 = vmatpush1.xpose.msra.mxu0 0.0
    %4357 = vmatprep.subr.mxu0 0.0
    %4358 = vmatpush1.xpose.msra.mxu0 0.0
    %4359 = vmatprep.subr.mxu0 0.0
    %4360 = vmatpush1.xpose.msra.mxu0 0.0
    %4361 = vmatprep.subr.mxu0 0.0
    %4362 = vmatpush1.xpose.msra.mxu0 0.0
    %4363 = vmatprep.subr.mxu0 0.0
    %4364 = vmatpush1.xpose.msra.mxu0 0.0
    %4365 = vmatprep.subr.mxu0 0.0
    %4366 = vmatpush1.xpose.msra.mxu0 0.0
    %4367 = vmatprep.subr.mxu0 0.0
    %4368 = vmatpush1.xpose.msra.mxu0 0.0
    %4369 = vmatprep.subr.mxu0 0.0
    %4370 = vmatpush1.xpose.msra.mxu0 0.0
    %4371 = vmatprep.subr.mxu0 0.0
    %4372 = vmatpush1.xpose.msra.mxu0 0.0
    %4373 = vmatprep.subr.mxu0 0.0
    %4374 = vmatpush1.xpose.msra.mxu0 0.0
    %4375 = vmatprep.subr.mxu0 0.0
    %4376 = vmatpush1.xpose.msra.mxu0 0.0
    %4377 = vmatprep.subr.mxu0 0.0
    %4378 = vmatpush1.xpose.msra.mxu0 0.0
    %4379 = vmatprep.subr.mxu0 0.0
    %4380 = vmatpush1.xpose.msra.mxu0 0.0
    %4381 = vmatprep.subr.mxu0 0.0
    %4382 = vmatpush1.xpose.msra.mxu0 0.0
    %4383 = vmatprep.subr.mxu0 0.0
    %4384 = vmatpush1.xpose.msra.mxu0 0.0
    %4385 = vmatprep.subr.mxu0 0.0
    %4386 = vmatpush1.xpose.msra.mxu0 0.0
    %4387 = vmatprep.subr.mxu0 0.0
    %4388 = vmatpush1.xpose.msra.mxu0 0.0
    %4389 = vmatprep.mubr.f32.mxu0 %v4318
    %4390 = vmatmul.mubr.f32.gmra.mrb[0].mxu0 %v4317
    %v4391 = vpop.f32.mrb[0].mxu0
    %v4392 = vadd.f32 0.0, %v4391
    %v4393 = vpop.f32.mrb[0].mxu0
    %4394 = vmatprep.mubr.f32.mxu0 %v4320
    %4395 = vmatmul.mubr.f32.gmra.mrb[0].mxu0 %v4319
    %v4396 = vpop.f32.mrb[0].mxu0
    %v4397 = vadd.f32 0.0, %v4396
    %v4398 = vpop.f32.mrb[0].mxu0
    %4399 = vdwg.mxu0
    %4400 = vmatprep.subr.mxu0 %v29
    %4401 = vmatpush1.xpose.msra.mxu0 %v28
    %4402 = vmatprep.subr.mxu0 0.0
    %4403 = vmatpush1.xpose.msra.mxu0 0.0
    %4404 = vmatprep.subr.mxu0 0.0
    %4405 = vmatpush1.xpose.msra.mxu0 0.0
    %4406 = vmatprep.subr.mxu0 0.0
    %4407 = vmatpush1.xpose.msra.mxu0 0.0
    %4408 = vmatprep.subr.mxu0 0.0
    %4409 = vmatpush1.xpose.msra.mxu0 0.0
    %4410 = vmatprep.subr.mxu0 0.0
    %4411 = vmatpush1.xpose.msra.mxu0 0.0
    %4412 = vmatprep.subr.mxu0 0.0
    %4413 = vmatpush1.xpose.msra.mxu0 0.0
    %4414 = vmatprep.subr.mxu0 0.0
    %4415 = vmatpush1.xpose.msra.mxu0 0.0
    %4416 = vmatprep.subr.mxu0 0.0
    %4417 = vmatpush1.xpose.msra.mxu0 0.0
    %4418 = vmatprep.subr.mxu0 0.0
    %4419 = vmatpush1.xpose.msra.mxu0 0.0
    %4420 = vmatprep.subr.mxu0 0.0
    %4421 = vmatpush1.xpose.msra.mxu0 0.0
    %4422 = vmatprep.subr.mxu0 0.0
    %4423 = vmatpush1.xpose.msra.mxu0 0.0
    %4424 = vmatprep.subr.mxu0 0.0
    %4425 = vmatpush1.xpose.msra.mxu0 0.0
    %4426 = vmatprep.subr.mxu0 0.0
    %4427 = vmatpush1.xpose.msra.mxu0 0.0
    %4428 = vmatprep.subr.mxu0 0.0
    %4429 = vmatpush1.xpose.msra.mxu0 0.0
    %4430 = vmatprep.subr.mxu0 0.0
    %4431 = vmatpush1.xpose.msra.mxu0 0.0
    %4432 = vmatprep.subr.mxu0 0.0
    %4433 = vmatpush1.xpose.msra.mxu0 0.0
    %4434 = vmatprep.subr.mxu0 0.0
    %4435 = vmatpush1.xpose.msra.mxu0 0.0
    %4436 = vmatprep.subr.mxu0 0.0
    %4437 = vmatpush1.xpose.msra.mxu0 0.0
    %4438 = vmatprep.subr.mxu0 0.0
    %4439 = vmatpush1.xpose.msra.mxu0 0.0
    %4440 = vmatprep.subr.mxu0 0.0
    %4441 = vmatpush1.xpose.msra.mxu0 0.0
    %4442 = vmatprep.subr.mxu0 0.0
    %4443 = vmatpush1.xpose.msra.mxu0 0.0
    %4444 = vmatprep.subr.mxu0 0.0
    %4445 = vmatpush1.xpose.msra.mxu0 0.0
    %4446 = vmatprep.subr.mxu0 0.0
    %4447 = vmatpush1.xpose.msra.mxu0 0.0
    %4448 = vmatprep.subr.mxu0 0.0
    %4449 = vmatpush1.xpose.msra.mxu0 0.0
    %4450 = vmatprep.subr.mxu0 0.0
    %4451 = vmatpush1.xpose.msra.mxu0 0.0
    %4452 = vmatprep.subr.mxu0 0.0
    %4453 = vmatpush1.xpose.msra.mxu0 0.0
    %4454 = vmatprep.subr.mxu0 0.0
    %4455 = vmatpush1.xpose.msra.mxu0 0.0
    %4456 = vmatprep.subr.mxu0 0.0
    %4457 = vmatpush1.xpose.msra.mxu0 0.0
    %4458 = vmatprep.subr.mxu0 0.0
    %4459 = vmatpush1.xpose.msra.mxu0 0.0
    %4460 = vmatprep.subr.mxu0 0.0
    %4461 = vmatpush1.xpose.msra.mxu0 0.0
    %4462 = vmatprep.subr.mxu0 0.0
    %4463 = vmatpush1.xpose.msra.mxu0 0.0
    %4464 = vmatprep.mubr.f32.mxu0 %v4322
    %4465 = vmatmul.mubr.f32.gmra.mrb[0].mxu0 %v4321
    %v4466 = vpop.f32.mrb[0].mxu0
    %v4467 = vadd.f32 0.0, %v4466
    %v4468 = vpop.f32.mrb[0].mxu0
    %4469 = vmatprep.mubr.f32.mxu0 %v4324
    %4470 = vmatmul.mubr.f32.gmra.mrb[0].mxu0 %v4323
    %v4471 = vpop.f32.mrb[0].mxu0
    %v4472 = vadd.f32 0.0, %v4471
    %v4473 = vpop.f32.mrb[0].mxu0
    %4474 = vdwg.mxu0
    %v4475 = vmax.f32 %v4392, 1e-30
    %v4476 = vmax.f32 %v4397, 1e-30
    %v4477 = vmax.f32 %v4467, 1e-30
    %v4478 = vmax.f32 %v4472, 1e-30
    %4480 = vset.pattern.permute.xlu0 4
    %4481 = vperm.xlu0 %4480, %v4475
    %v4482 = vpop.permute.xlu0 %4481
    %4485 = vset.pattern.permute.xlu0 4
    %4486 = vperm.xlu0 %4485, %v4476
    %v4487 = vpop.permute.xlu0 %4486
    %4490 = vset.pattern.permute.xlu0 4
    %4491 = vperm.xlu0 %4490, %v4477
    %v4492 = vpop.permute.xlu0 %4491
    %4495 = vset.pattern.permute.xlu0 4
    %4496 = vperm.xlu0 %4495, %v4478
    %v4497 = vpop.permute.xlu0 %4496
    %v4499 = vrcp.pop %v4482
    %v4500 = vmul.f32 %v4392, %v4499
    %v4501 = vrcp.pop %v4487
    %v4502 = vmul.f32 %v4397, %v4501
    %v4503 = vrcp.pop %v4492
    %v4504 = vmul.f32 %v4467, %v4503
    %v4505 = vrcp.pop %v4497
    %v4506 = vmul.f32 %v4472, %v4505
    %4508 = vset.pattern.permute.xlu0 0
    %4509 = vperm.xlu0 %4508, %v4500
    %v4510 = vpop.permute.xlu0 %4509
    %4513 = vset.pattern.permute.xlu0 0
    %4514 = vperm.xlu0 %4513, %v4502
    %v4515 = vpop.permute.xlu0 %4514
    %4518 = vset.pattern.permute.xlu0 0
    %4519 = vperm.xlu0 %4518, %v4504
    %v4520 = vpop.permute.xlu0 %4519
    %4523 = vset.pattern.permute.xlu0 0
    %4524 = vperm.xlu0 %4523, %v4506
    %v4525 = vpop.permute.xlu0 %4524
    %v4527 = vsub.f32 %v3634, %v4510
    %v4528 = vsub.f32 %v3638, %v4510
    %v4529 = vsub.f32 %v3634, %v4515
    %v4530 = vsub.f32 %v3638, %v4515
    %v4531 = vsub.f32 %v3642, %v4520
    %v4532 = vsub.f32 %v3646, %v4520
    %v4533 = vsub.f32 %v3642, %v4525
    %v4534 = vsub.f32 %v3646, %v4525
    %v4535 = vmul.f32 %v4527, %v4527
    %v4536 = vmul.f32 %v4528, %v4528
    %v4537 = vmul.f32 %v4529, %v4529
    %v4538 = vmul.f32 %v4530, %v4530
    %v4539 = vmul.f32 %v4531, %v4531
    %v4540 = vmul.f32 %v4532, %v4532
    %v4541 = vmul.f32 %v4533, %v4533
    %v4542 = vmul.f32 %v4534, %v4534
    %v4543 = vadd.f32 %v4535, 1e-12
    %v4544 = vadd.f32 %v4536, 1e-12
    %v4545 = vadd.f32 %v4537, 1e-12
    %v4546 = vadd.f32 %v4538, 1e-12
    %v4547 = vadd.f32 %v4539, 1e-12
    %v4548 = vadd.f32 %v4540, 1e-12
    %v4549 = vadd.f32 %v4541, 1e-12
    %v4550 = vadd.f32 %v4542, 1e-12
    %4551 = vset.pattern.permute.xlu0 1
    %4552 = vperm.xlu0 %4551, %v4500
    %v4553 = vpop.permute.xlu0 %4552
    %4555 = vset.pattern.permute.xlu0 1
    %4556 = vperm.xlu0 %4555, %v4502
    %v4557 = vpop.permute.xlu0 %4556
    %4559 = vset.pattern.permute.xlu0 1
    %4560 = vperm.xlu0 %4559, %v4504
    %v4561 = vpop.permute.xlu0 %4560
    %4563 = vset.pattern.permute.xlu0 1
    %4564 = vperm.xlu0 %4563, %v4506
    %v4565 = vpop.permute.xlu0 %4564
    %v4567 = vsub.f32 %v3694, %v4553
    %v4568 = vsub.f32 %v3698, %v4553
    %v4569 = vsub.f32 %v3694, %v4557
    %v4570 = vsub.f32 %v3698, %v4557
    %v4571 = vsub.f32 %v3702, %v4561
    %v4572 = vsub.f32 %v3706, %v4561
    %v4573 = vsub.f32 %v3702, %v4565
    %v4574 = vsub.f32 %v3706, %v4565
    %v4575 = vmul.f32 %v4567, %v4567
    %v4576 = vmul.f32 %v4568, %v4568
    %v4577 = vmul.f32 %v4569, %v4569
    %v4578 = vmul.f32 %v4570, %v4570
    %v4579 = vmul.f32 %v4571, %v4571
    %v4580 = vmul.f32 %v4572, %v4572
    %v4581 = vmul.f32 %v4573, %v4573
    %v4582 = vmul.f32 %v4574, %v4574
    %v4583 = vadd.f32 %v4543, %v4575
    %v4584 = vadd.f32 %v4544, %v4576
    %v4585 = vadd.f32 %v4545, %v4577
    %v4586 = vadd.f32 %v4546, %v4578
    %v4587 = vadd.f32 %v4547, %v4579
    %v4588 = vadd.f32 %v4548, %v4580
    %v4589 = vadd.f32 %v4549, %v4581
    %v4590 = vadd.f32 %v4550, %v4582
    %4591 = vset.pattern.permute.xlu0 2
    %4592 = vperm.xlu0 %4591, %v4500
    %v4593 = vpop.permute.xlu0 %4592
    %4595 = vset.pattern.permute.xlu0 2
    %4596 = vperm.xlu0 %4595, %v4502
    %v4597 = vpop.permute.xlu0 %4596
    %4599 = vset.pattern.permute.xlu0 2
    %4600 = vperm.xlu0 %4599, %v4504
    %v4601 = vpop.permute.xlu0 %4600
    %4603 = vset.pattern.permute.xlu0 2
    %4604 = vperm.xlu0 %4603, %v4506
    %v4605 = vpop.permute.xlu0 %4604
    %v4607 = vsub.f32 %v3750, %v4593
    %v4608 = vsub.f32 %v3754, %v4593
    %v4609 = vsub.f32 %v3750, %v4597
    %v4610 = vsub.f32 %v3754, %v4597
    %v4611 = vsub.f32 %v3758, %v4601
    %v4612 = vsub.f32 %v3762, %v4601
    %v4613 = vsub.f32 %v3758, %v4605
    %v4614 = vsub.f32 %v3762, %v4605
    %v4615 = vmul.f32 %v4607, %v4607
    %v4616 = vmul.f32 %v4608, %v4608
    %v4617 = vmul.f32 %v4609, %v4609
    %v4618 = vmul.f32 %v4610, %v4610
    %v4619 = vmul.f32 %v4611, %v4611
    %v4620 = vmul.f32 %v4612, %v4612
    %v4621 = vmul.f32 %v4613, %v4613
    %v4622 = vmul.f32 %v4614, %v4614
    %v4623 = vadd.f32 %v4583, %v4615
    %v4624 = vadd.f32 %v4584, %v4616
    %v4625 = vadd.f32 %v4585, %v4617
    %v4626 = vadd.f32 %v4586, %v4618
    %v4627 = vadd.f32 %v4587, %v4619
    %v4628 = vadd.f32 %v4588, %v4620
    %v4629 = vadd.f32 %v4589, %v4621
    %v4630 = vadd.f32 %v4590, %v4622
    %4631 = vset.pattern.permute.xlu0 3
    %4632 = vperm.xlu0 %4631, %v4500
    %v4633 = vpop.permute.xlu0 %4632
    %4635 = vset.pattern.permute.xlu0 3
    %4636 = vperm.xlu0 %4635, %v4502
    %v4637 = vpop.permute.xlu0 %4636
    %4639 = vset.pattern.permute.xlu0 3
    %4640 = vperm.xlu0 %4639, %v4504
    %v4641 = vpop.permute.xlu0 %4640
    %4643 = vset.pattern.permute.xlu0 3
    %4644 = vperm.xlu0 %4643, %v4506
    %v4645 = vpop.permute.xlu0 %4644
    %v4647 = vsub.f32 %v3806, %v4633
    %v4648 = vsub.f32 %v3810, %v4633
    %v4649 = vsub.f32 %v3806, %v4637
    %v4650 = vsub.f32 %v3810, %v4637
    %v4651 = vsub.f32 %v3814, %v4641
    %v4652 = vsub.f32 %v3818, %v4641
    %v4653 = vsub.f32 %v3814, %v4645
    %v4654 = vsub.f32 %v3818, %v4645
    %v4655 = vmul.f32 %v4647, %v4647
    %v4656 = vmul.f32 %v4648, %v4648
    %v4657 = vmul.f32 %v4649, %v4649
    %v4658 = vmul.f32 %v4650, %v4650
    %v4659 = vmul.f32 %v4651, %v4651
    %v4660 = vmul.f32 %v4652, %v4652
    %v4661 = vmul.f32 %v4653, %v4653
    %v4662 = vmul.f32 %v4654, %v4654
    %v4663 = vadd.f32 %v4623, %v4655
    %v4664 = vadd.f32 %v4624, %v4656
    %v4665 = vadd.f32 %v4625, %v4657
    %v4666 = vadd.f32 %v4626, %v4658
    %v4667 = vadd.f32 %v4627, %v4659
    %v4668 = vadd.f32 %v4628, %v4660
    %v4669 = vadd.f32 %v4629, %v4661
    %v4670 = vadd.f32 %v4630, %v4662
    %v4671 = vrcp.pop %v4663
    %v4672 = vrcp.pop %v4664
    %v4673 = vrcp.pop %v4665
    %v4674 = vrcp.pop %v4666
    %v4675 = vrcp.pop %v4667
    %v4676 = vrcp.pop %v4668
    %v4677 = vrcp.pop %v4669
    %v4678 = vrcp.pop %v4670
    %v4679 = vsel %vm501, %v4673, 0.0
    %v4680 = vadd.f32 %v4671, %v4679
    %v4681 = vrot.slane %v4680, 4
    %v4682 = vadd.f32 %v4680, %v4681
    %v4683 = vrot.slane %v4682, 2
    %v4684 = vadd.f32 %v4682, %v4683
    %v4685 = vrot.slane %v4684, 1
    %v4686 = vadd.f32 %v4684, %v4685
    %v4687 = vsel %vm501, %v4674, 0.0
    %v4688 = vadd.f32 %v4672, %v4687
    %v4689 = vrot.slane %v4688, 4
    %v4690 = vadd.f32 %v4688, %v4689
    %v4691 = vrot.slane %v4690, 2
    %v4692 = vadd.f32 %v4690, %v4691
    %v4693 = vrot.slane %v4692, 1
    %v4694 = vadd.f32 %v4692, %v4693
    %v4695 = vsel %vm501, %v4677, 0.0
    %v4696 = vadd.f32 %v4675, %v4695
    %v4697 = vrot.slane %v4696, 4
    %v4698 = vadd.f32 %v4696, %v4697
    %v4699 = vrot.slane %v4698, 2
    %v4700 = vadd.f32 %v4698, %v4699
    %v4701 = vrot.slane %v4700, 1
    %v4702 = vadd.f32 %v4700, %v4701
    %v4703 = vsel %vm501, %v4678, 0.0
    %v4704 = vadd.f32 %v4676, %v4703
    %v4705 = vrot.slane %v4704, 4
    %v4706 = vadd.f32 %v4704, %v4705
    %v4707 = vrot.slane %v4706, 2
    %v4708 = vadd.f32 %v4706, %v4707
    %v4709 = vrot.slane %v4708, 1
    %v4710 = vadd.f32 %v4708, %v4709
    %v4711 = vrcp.pop %v4686
    %v4712 = vrcp.pop %v4694
    %v4713 = vrcp.pop %v4702
    %v4714 = vrcp.pop %v4710
    %v4715 = vmul.f32 %v4671, %v4711
    %v4716 = vmul.f32 %v4672, %v4712
    %v4717 = vmul.f32 %v4673, %v4711
    %v4718 = vmul.f32 %v4674, %v4712
    %v4719 = vmul.f32 %v4675, %v4713
    %v4720 = vmul.f32 %v4676, %v4714
    %v4721 = vmul.f32 %v4677, %v4713
    %v4722 = vmul.f32 %v4678, %v4714
    %v4723 = vmul.f32 %v4715, %v4715
    %v4724 = vmul.f32 %v4716, %v4716
    %v4725 = vmul.f32 %v4717, %v4717
    %v4726 = vmul.f32 %v4718, %v4718
    %v4727 = vmul.f32 %v4719, %v4719
    %v4728 = vmul.f32 %v4720, %v4720
    %v4729 = vmul.f32 %v4721, %v4721
    %v4730 = vmul.f32 %v4722, %v4722
    %4731 = vmatprep.subr.mxu0 %v27
    %4732 = vmatpush1.xpose.msra.mxu0 %v26
    %4733 = vmatprep.subr.mxu0 0.0
    %4734 = vmatpush1.xpose.msra.mxu0 0.0
    %4735 = vmatprep.subr.mxu0 0.0
    %4736 = vmatpush1.xpose.msra.mxu0 0.0
    %4737 = vmatprep.subr.mxu0 0.0
    %4738 = vmatpush1.xpose.msra.mxu0 0.0
    %4739 = vmatprep.subr.mxu0 0.0
    %4740 = vmatpush1.xpose.msra.mxu0 0.0
    %4741 = vmatprep.subr.mxu0 0.0
    %4742 = vmatpush1.xpose.msra.mxu0 0.0
    %4743 = vmatprep.subr.mxu0 0.0
    %4744 = vmatpush1.xpose.msra.mxu0 0.0
    %4745 = vmatprep.subr.mxu0 0.0
    %4746 = vmatpush1.xpose.msra.mxu0 0.0
    %4747 = vmatprep.subr.mxu0 0.0
    %4748 = vmatpush1.xpose.msra.mxu0 0.0
    %4749 = vmatprep.subr.mxu0 0.0
    %4750 = vmatpush1.xpose.msra.mxu0 0.0
    %4751 = vmatprep.subr.mxu0 0.0
    %4752 = vmatpush1.xpose.msra.mxu0 0.0
    %4753 = vmatprep.subr.mxu0 0.0
    %4754 = vmatpush1.xpose.msra.mxu0 0.0
    %4755 = vmatprep.subr.mxu0 0.0
    %4756 = vmatpush1.xpose.msra.mxu0 0.0
    %4757 = vmatprep.subr.mxu0 0.0
    %4758 = vmatpush1.xpose.msra.mxu0 0.0
    %4759 = vmatprep.subr.mxu0 0.0
    %4760 = vmatpush1.xpose.msra.mxu0 0.0
    %4761 = vmatprep.subr.mxu0 0.0
    %4762 = vmatpush1.xpose.msra.mxu0 0.0
    %4763 = vmatprep.subr.mxu0 0.0
    %4764 = vmatpush1.xpose.msra.mxu0 0.0
    %4765 = vmatprep.subr.mxu0 0.0
    %4766 = vmatpush1.xpose.msra.mxu0 0.0
    %4767 = vmatprep.subr.mxu0 0.0
    %4768 = vmatpush1.xpose.msra.mxu0 0.0
    %4769 = vmatprep.subr.mxu0 0.0
    %4770 = vmatpush1.xpose.msra.mxu0 0.0
    %4771 = vmatprep.subr.mxu0 0.0
    %4772 = vmatpush1.xpose.msra.mxu0 0.0
    %4773 = vmatprep.subr.mxu0 0.0
    %4774 = vmatpush1.xpose.msra.mxu0 0.0
    %4775 = vmatprep.subr.mxu0 0.0
    %4776 = vmatpush1.xpose.msra.mxu0 0.0
    %4777 = vmatprep.subr.mxu0 0.0
    %4778 = vmatpush1.xpose.msra.mxu0 0.0
    %4779 = vmatprep.subr.mxu0 0.0
    %4780 = vmatpush1.xpose.msra.mxu0 0.0
    %4781 = vmatprep.subr.mxu0 0.0
    %4782 = vmatpush1.xpose.msra.mxu0 0.0
    %4783 = vmatprep.subr.mxu0 0.0
    %4784 = vmatpush1.xpose.msra.mxu0 0.0
    %4785 = vmatprep.subr.mxu0 0.0
    %4786 = vmatpush1.xpose.msra.mxu0 0.0
    %4787 = vmatprep.subr.mxu0 0.0
    %4788 = vmatpush1.xpose.msra.mxu0 0.0
    %4789 = vmatprep.subr.mxu0 0.0
    %4790 = vmatpush1.xpose.msra.mxu0 0.0
    %4791 = vmatprep.subr.mxu0 0.0
    %4792 = vmatpush1.xpose.msra.mxu0 0.0
    %4793 = vmatprep.subr.mxu0 0.0
    %4794 = vmatpush1.xpose.msra.mxu0 0.0
    %4795 = vmatprep.mubr.f32.mxu0 %v4724
    %4796 = vmatmul.mubr.f32.gmra.mrb[0].mxu0 %v4723
    %v4797 = vpop.f32.mrb[0].mxu0
    %v4798 = vadd.f32 0.0, %v4797
    %v4799 = vpop.f32.mrb[0].mxu0
    %4800 = vmatprep.mubr.f32.mxu0 %v4726
    %4801 = vmatmul.mubr.f32.gmra.mrb[0].mxu0 %v4725
    %v4802 = vpop.f32.mrb[0].mxu0
    %v4803 = vadd.f32 0.0, %v4802
    %v4804 = vpop.f32.mrb[0].mxu0
    %4805 = vdwg.mxu0
    %4806 = vmatprep.subr.mxu0 %v29
    %4807 = vmatpush1.xpose.msra.mxu0 %v28
    %4808 = vmatprep.subr.mxu0 0.0
    %4809 = vmatpush1.xpose.msra.mxu0 0.0
    %4810 = vmatprep.subr.mxu0 0.0
    %4811 = vmatpush1.xpose.msra.mxu0 0.0
    %4812 = vmatprep.subr.mxu0 0.0
    %4813 = vmatpush1.xpose.msra.mxu0 0.0
    %4814 = vmatprep.subr.mxu0 0.0
    %4815 = vmatpush1.xpose.msra.mxu0 0.0
    %4816 = vmatprep.subr.mxu0 0.0
    %4817 = vmatpush1.xpose.msra.mxu0 0.0
    %4818 = vmatprep.subr.mxu0 0.0
    %4819 = vmatpush1.xpose.msra.mxu0 0.0
    %4820 = vmatprep.subr.mxu0 0.0
    %4821 = vmatpush1.xpose.msra.mxu0 0.0
    %4822 = vmatprep.subr.mxu0 0.0
    %4823 = vmatpush1.xpose.msra.mxu0 0.0
    %4824 = vmatprep.subr.mxu0 0.0
    %4825 = vmatpush1.xpose.msra.mxu0 0.0
    %4826 = vmatprep.subr.mxu0 0.0
    %4827 = vmatpush1.xpose.msra.mxu0 0.0
    %4828 = vmatprep.subr.mxu0 0.0
    %4829 = vmatpush1.xpose.msra.mxu0 0.0
    %4830 = vmatprep.subr.mxu0 0.0
    %4831 = vmatpush1.xpose.msra.mxu0 0.0
    %4832 = vmatprep.subr.mxu0 0.0
    %4833 = vmatpush1.xpose.msra.mxu0 0.0
    %4834 = vmatprep.subr.mxu0 0.0
    %4835 = vmatpush1.xpose.msra.mxu0 0.0
    %4836 = vmatprep.subr.mxu0 0.0
    %4837 = vmatpush1.xpose.msra.mxu0 0.0
    %4838 = vmatprep.subr.mxu0 0.0
    %4839 = vmatpush1.xpose.msra.mxu0 0.0
    %4840 = vmatprep.subr.mxu0 0.0
    %4841 = vmatpush1.xpose.msra.mxu0 0.0
    %4842 = vmatprep.subr.mxu0 0.0
    %4843 = vmatpush1.xpose.msra.mxu0 0.0
    %4844 = vmatprep.subr.mxu0 0.0
    %4845 = vmatpush1.xpose.msra.mxu0 0.0
    %4846 = vmatprep.subr.mxu0 0.0
    %4847 = vmatpush1.xpose.msra.mxu0 0.0
    %4848 = vmatprep.subr.mxu0 0.0
    %4849 = vmatpush1.xpose.msra.mxu0 0.0
    %4850 = vmatprep.subr.mxu0 0.0
    %4851 = vmatpush1.xpose.msra.mxu0 0.0
    %4852 = vmatprep.subr.mxu0 0.0
    %4853 = vmatpush1.xpose.msra.mxu0 0.0
    %4854 = vmatprep.subr.mxu0 0.0
    %4855 = vmatpush1.xpose.msra.mxu0 0.0
    %4856 = vmatprep.subr.mxu0 0.0
    %4857 = vmatpush1.xpose.msra.mxu0 0.0
    %4858 = vmatprep.subr.mxu0 0.0
    %4859 = vmatpush1.xpose.msra.mxu0 0.0
    %4860 = vmatprep.subr.mxu0 0.0
    %4861 = vmatpush1.xpose.msra.mxu0 0.0
    %4862 = vmatprep.subr.mxu0 0.0
    %4863 = vmatpush1.xpose.msra.mxu0 0.0
    %4864 = vmatprep.subr.mxu0 0.0
    %4865 = vmatpush1.xpose.msra.mxu0 0.0
    %4866 = vmatprep.subr.mxu0 0.0
    %4867 = vmatpush1.xpose.msra.mxu0 0.0
    %4868 = vmatprep.subr.mxu0 0.0
    %4869 = vmatpush1.xpose.msra.mxu0 0.0
    %4870 = vmatprep.mubr.f32.mxu0 %v4728
    %4871 = vmatmul.mubr.f32.gmra.mrb[0].mxu0 %v4727
    %v4872 = vpop.f32.mrb[0].mxu0
    %v4873 = vadd.f32 0.0, %v4872
    %v4874 = vpop.f32.mrb[0].mxu0
    %4875 = vmatprep.mubr.f32.mxu0 %v4730
    %4876 = vmatmul.mubr.f32.gmra.mrb[0].mxu0 %v4729
    %v4877 = vpop.f32.mrb[0].mxu0
    %v4878 = vadd.f32 0.0, %v4877
    %v4879 = vpop.f32.mrb[0].mxu0
    %4880 = vdwg.mxu0
    %v4881 = vmax.f32 %v4798, 1e-30
    %v4882 = vmax.f32 %v4803, 1e-30
    %v4883 = vmax.f32 %v4873, 1e-30
    %v4884 = vmax.f32 %v4878, 1e-30
    %4886 = vset.pattern.permute.xlu0 4
    %4887 = vperm.xlu0 %4886, %v4881
    %v4888 = vpop.permute.xlu0 %4887
    %4891 = vset.pattern.permute.xlu0 4
    %4892 = vperm.xlu0 %4891, %v4882
    %v4893 = vpop.permute.xlu0 %4892
    %4896 = vset.pattern.permute.xlu0 4
    %4897 = vperm.xlu0 %4896, %v4883
    %v4898 = vpop.permute.xlu0 %4897
    %4901 = vset.pattern.permute.xlu0 4
    %4902 = vperm.xlu0 %4901, %v4884
    %v4903 = vpop.permute.xlu0 %4902
    %v4905 = vrcp.pop %v4888
    %v4906 = vmul.f32 %v4798, %v4905
    %v4907 = vrcp.pop %v4893
    %v4908 = vmul.f32 %v4803, %v4907
    %v4909 = vrcp.pop %v4898
    %v4910 = vmul.f32 %v4873, %v4909
    %v4911 = vrcp.pop %v4903
    %v4912 = vmul.f32 %v4878, %v4911
    %4914 = vset.pattern.permute.xlu0 0
    %4915 = vperm.xlu0 %4914, %v4906
    %v4916 = vpop.permute.xlu0 %4915
    %4919 = vset.pattern.permute.xlu0 0
    %4920 = vperm.xlu0 %4919, %v4908
    %v4921 = vpop.permute.xlu0 %4920
    %4924 = vset.pattern.permute.xlu0 0
    %4925 = vperm.xlu0 %4924, %v4910
    %v4926 = vpop.permute.xlu0 %4925
    %4929 = vset.pattern.permute.xlu0 0
    %4930 = vperm.xlu0 %4929, %v4912
    %v4931 = vpop.permute.xlu0 %4930
    %v4933 = vsub.f32 %v3634, %v4916
    %v4934 = vsub.f32 %v3638, %v4916
    %v4935 = vsub.f32 %v3634, %v4921
    %v4936 = vsub.f32 %v3638, %v4921
    %v4937 = vsub.f32 %v3642, %v4926
    %v4938 = vsub.f32 %v3646, %v4926
    %v4939 = vsub.f32 %v3642, %v4931
    %v4940 = vsub.f32 %v3646, %v4931
    %v4941 = vmul.f32 %v4933, %v4933
    %v4942 = vmul.f32 %v4934, %v4934
    %v4943 = vmul.f32 %v4935, %v4935
    %v4944 = vmul.f32 %v4936, %v4936
    %v4945 = vmul.f32 %v4937, %v4937
    %v4946 = vmul.f32 %v4938, %v4938
    %v4947 = vmul.f32 %v4939, %v4939
    %v4948 = vmul.f32 %v4940, %v4940
    %v4949 = vadd.f32 %v4941, 1e-12
    %v4950 = vadd.f32 %v4942, 1e-12
    %v4951 = vadd.f32 %v4943, 1e-12
    %v4952 = vadd.f32 %v4944, 1e-12
    %v4953 = vadd.f32 %v4945, 1e-12
    %v4954 = vadd.f32 %v4946, 1e-12
    %v4955 = vadd.f32 %v4947, 1e-12
    %v4956 = vadd.f32 %v4948, 1e-12
    %4957 = vset.pattern.permute.xlu0 1
    %4958 = vperm.xlu0 %4957, %v4906
    %v4959 = vpop.permute.xlu0 %4958
    %4961 = vset.pattern.permute.xlu0 1
    %4962 = vperm.xlu0 %4961, %v4908
    %v4963 = vpop.permute.xlu0 %4962
    %4965 = vset.pattern.permute.xlu0 1
    %4966 = vperm.xlu0 %4965, %v4910
    %v4967 = vpop.permute.xlu0 %4966
    %4969 = vset.pattern.permute.xlu0 1
    %4970 = vperm.xlu0 %4969, %v4912
    %v4971 = vpop.permute.xlu0 %4970
    %v4973 = vsub.f32 %v3694, %v4959
    %v4974 = vsub.f32 %v3698, %v4959
    %v4975 = vsub.f32 %v3694, %v4963
    %v4976 = vsub.f32 %v3698, %v4963
    %v4977 = vsub.f32 %v3702, %v4967
    %v4978 = vsub.f32 %v3706, %v4967
    %v4979 = vsub.f32 %v3702, %v4971
    %v4980 = vsub.f32 %v3706, %v4971
    %v4981 = vmul.f32 %v4973, %v4973
    %v4982 = vmul.f32 %v4974, %v4974
    %v4983 = vmul.f32 %v4975, %v4975
    %v4984 = vmul.f32 %v4976, %v4976
    %v4985 = vmul.f32 %v4977, %v4977
    %v4986 = vmul.f32 %v4978, %v4978
    %v4987 = vmul.f32 %v4979, %v4979
    %v4988 = vmul.f32 %v4980, %v4980
    %v4989 = vadd.f32 %v4949, %v4981
    %v4990 = vadd.f32 %v4950, %v4982
    %v4991 = vadd.f32 %v4951, %v4983
    %v4992 = vadd.f32 %v4952, %v4984
    %v4993 = vadd.f32 %v4953, %v4985
    %v4994 = vadd.f32 %v4954, %v4986
    %v4995 = vadd.f32 %v4955, %v4987
    %v4996 = vadd.f32 %v4956, %v4988
    %4997 = vset.pattern.permute.xlu0 2
    %4998 = vperm.xlu0 %4997, %v4906
    %v4999 = vpop.permute.xlu0 %4998
    %5001 = vset.pattern.permute.xlu0 2
    %5002 = vperm.xlu0 %5001, %v4908
    %v5003 = vpop.permute.xlu0 %5002
    %5005 = vset.pattern.permute.xlu0 2
    %5006 = vperm.xlu0 %5005, %v4910
    %v5007 = vpop.permute.xlu0 %5006
    %5009 = vset.pattern.permute.xlu0 2
    %5010 = vperm.xlu0 %5009, %v4912
    %v5011 = vpop.permute.xlu0 %5010
    %v5013 = vsub.f32 %v3750, %v4999
    %v5014 = vsub.f32 %v3754, %v4999
    %v5015 = vsub.f32 %v3750, %v5003
    %v5016 = vsub.f32 %v3754, %v5003
    %v5017 = vsub.f32 %v3758, %v5007
    %v5018 = vsub.f32 %v3762, %v5007
    %v5019 = vsub.f32 %v3758, %v5011
    %v5020 = vsub.f32 %v3762, %v5011
    %v5021 = vmul.f32 %v5013, %v5013
    %v5022 = vmul.f32 %v5014, %v5014
    %v5023 = vmul.f32 %v5015, %v5015
    %v5024 = vmul.f32 %v5016, %v5016
    %v5025 = vmul.f32 %v5017, %v5017
    %v5026 = vmul.f32 %v5018, %v5018
    %v5027 = vmul.f32 %v5019, %v5019
    %v5028 = vmul.f32 %v5020, %v5020
    %v5029 = vadd.f32 %v4989, %v5021
    %v5030 = vadd.f32 %v4990, %v5022
    %v5031 = vadd.f32 %v4991, %v5023
    %v5032 = vadd.f32 %v4992, %v5024
    %v5033 = vadd.f32 %v4993, %v5025
    %v5034 = vadd.f32 %v4994, %v5026
    %v5035 = vadd.f32 %v4995, %v5027
    %v5036 = vadd.f32 %v4996, %v5028
    %5037 = vset.pattern.permute.xlu0 3
    %5038 = vperm.xlu0 %5037, %v4906
    %v5039 = vpop.permute.xlu0 %5038
    %5041 = vset.pattern.permute.xlu0 3
    %5042 = vperm.xlu0 %5041, %v4908
    %v5043 = vpop.permute.xlu0 %5042
    %5045 = vset.pattern.permute.xlu0 3
    %5046 = vperm.xlu0 %5045, %v4910
    %v5047 = vpop.permute.xlu0 %5046
    %5049 = vset.pattern.permute.xlu0 3
    %5050 = vperm.xlu0 %5049, %v4912
    %v5051 = vpop.permute.xlu0 %5050
    %v5053 = vsub.f32 %v3806, %v5039
    %v5054 = vsub.f32 %v3810, %v5039
    %v5055 = vsub.f32 %v3806, %v5043
    %v5056 = vsub.f32 %v3810, %v5043
    %v5057 = vsub.f32 %v3814, %v5047
    %v5058 = vsub.f32 %v3818, %v5047
    %v5059 = vsub.f32 %v3814, %v5051
    %v5060 = vsub.f32 %v3818, %v5051
    %v5061 = vmul.f32 %v5053, %v5053
    %v5062 = vmul.f32 %v5054, %v5054
    %v5063 = vmul.f32 %v5055, %v5055
    %v5064 = vmul.f32 %v5056, %v5056
    %v5065 = vmul.f32 %v5057, %v5057
    %v5066 = vmul.f32 %v5058, %v5058
    %v5067 = vmul.f32 %v5059, %v5059
    %v5068 = vmul.f32 %v5060, %v5060
    %v5069 = vadd.f32 %v5029, %v5061
    %v5070 = vadd.f32 %v5030, %v5062
    %v5071 = vadd.f32 %v5031, %v5063
    %v5072 = vadd.f32 %v5032, %v5064
    %v5073 = vadd.f32 %v5033, %v5065
    %v5074 = vadd.f32 %v5034, %v5066
    %v5075 = vadd.f32 %v5035, %v5067
    %v5076 = vadd.f32 %v5036, %v5068
    %v5077 = vrcp.pop %v5069
    %v5078 = vrcp.pop %v5070
    %v5079 = vrcp.pop %v5071
    %v5080 = vrcp.pop %v5072
    %v5081 = vrcp.pop %v5073
    %v5082 = vrcp.pop %v5074
    %v5083 = vrcp.pop %v5075
    %v5084 = vrcp.pop %v5076
    %v5085 = vsel %vm501, %v5079, 0.0
    %v5086 = vadd.f32 %v5077, %v5085
    %v5087 = vrot.slane %v5086, 4
    %v5088 = vadd.f32 %v5086, %v5087
    %v5089 = vrot.slane %v5088, 2
    %v5090 = vadd.f32 %v5088, %v5089
    %v5091 = vrot.slane %v5090, 1
    %v5092 = vadd.f32 %v5090, %v5091
    %v5093 = vsel %vm501, %v5080, 0.0
    %v5094 = vadd.f32 %v5078, %v5093
    %v5095 = vrot.slane %v5094, 4
    %v5096 = vadd.f32 %v5094, %v5095
    %v5097 = vrot.slane %v5096, 2
    %v5098 = vadd.f32 %v5096, %v5097
    %v5099 = vrot.slane %v5098, 1
    %v5100 = vadd.f32 %v5098, %v5099
    %v5101 = vsel %vm501, %v5083, 0.0
    %v5102 = vadd.f32 %v5081, %v5101
    %v5103 = vrot.slane %v5102, 4
    %v5104 = vadd.f32 %v5102, %v5103
    %v5105 = vrot.slane %v5104, 2
    %v5106 = vadd.f32 %v5104, %v5105
    %v5107 = vrot.slane %v5106, 1
    %v5108 = vadd.f32 %v5106, %v5107
    %v5109 = vsel %vm501, %v5084, 0.0
    %v5110 = vadd.f32 %v5082, %v5109
    %v5111 = vrot.slane %v5110, 4
    %v5112 = vadd.f32 %v5110, %v5111
    %v5113 = vrot.slane %v5112, 2
    %v5114 = vadd.f32 %v5112, %v5113
    %v5115 = vrot.slane %v5114, 1
    %v5116 = vadd.f32 %v5114, %v5115
    %v5117 = vrcp.pop %v5092
    %v5118 = vrcp.pop %v5100
    %v5119 = vrcp.pop %v5108
    %v5120 = vrcp.pop %v5116
    %v5121 = vmul.f32 %v5077, %v5117
    %v5122 = vmul.f32 %v5078, %v5118
    %v5123 = vmul.f32 %v5079, %v5117
    %v5124 = vmul.f32 %v5080, %v5118
    %v5125 = vmul.f32 %v5081, %v5119
    %v5126 = vmul.f32 %v5082, %v5120
    %v5127 = vmul.f32 %v5083, %v5119
    %v5128 = vmul.f32 %v5084, %v5120
    %v5129 = vmul.f32 %v5121, %v5121
    %v5130 = vmul.f32 %v5122, %v5122
    %v5131 = vmul.f32 %v5123, %v5123
    %v5132 = vmul.f32 %v5124, %v5124
    %v5133 = vmul.f32 %v5125, %v5125
    %v5134 = vmul.f32 %v5126, %v5126
    %v5135 = vmul.f32 %v5127, %v5127
    %v5136 = vmul.f32 %v5128, %v5128
    %5137 = vmatprep.subr.mxu0 %v27
    %5138 = vmatpush1.xpose.msra.mxu0 %v26
    %5139 = vmatprep.subr.mxu0 0.0
    %5140 = vmatpush1.xpose.msra.mxu0 0.0
    %5141 = vmatprep.subr.mxu0 0.0
    %5142 = vmatpush1.xpose.msra.mxu0 0.0
    %5143 = vmatprep.subr.mxu0 0.0
    %5144 = vmatpush1.xpose.msra.mxu0 0.0
    %5145 = vmatprep.subr.mxu0 0.0
    %5146 = vmatpush1.xpose.msra.mxu0 0.0
    %5147 = vmatprep.subr.mxu0 0.0
    %5148 = vmatpush1.xpose.msra.mxu0 0.0
    %5149 = vmatprep.subr.mxu0 0.0
    %5150 = vmatpush1.xpose.msra.mxu0 0.0
    %5151 = vmatprep.subr.mxu0 0.0
    %5152 = vmatpush1.xpose.msra.mxu0 0.0
    %5153 = vmatprep.subr.mxu0 0.0
    %5154 = vmatpush1.xpose.msra.mxu0 0.0
    %5155 = vmatprep.subr.mxu0 0.0
    %5156 = vmatpush1.xpose.msra.mxu0 0.0
    %5157 = vmatprep.subr.mxu0 0.0
    %5158 = vmatpush1.xpose.msra.mxu0 0.0
    %5159 = vmatprep.subr.mxu0 0.0
    %5160 = vmatpush1.xpose.msra.mxu0 0.0
    %5161 = vmatprep.subr.mxu0 0.0
    %5162 = vmatpush1.xpose.msra.mxu0 0.0
    %5163 = vmatprep.subr.mxu0 0.0
    %5164 = vmatpush1.xpose.msra.mxu0 0.0
    %5165 = vmatprep.subr.mxu0 0.0
    %5166 = vmatpush1.xpose.msra.mxu0 0.0
    %5167 = vmatprep.subr.mxu0 0.0
    %5168 = vmatpush1.xpose.msra.mxu0 0.0
    %5169 = vmatprep.subr.mxu0 0.0
    %5170 = vmatpush1.xpose.msra.mxu0 0.0
    %5171 = vmatprep.subr.mxu0 0.0
    %5172 = vmatpush1.xpose.msra.mxu0 0.0
    %5173 = vmatprep.subr.mxu0 0.0
    %5174 = vmatpush1.xpose.msra.mxu0 0.0
    %5175 = vmatprep.subr.mxu0 0.0
    %5176 = vmatpush1.xpose.msra.mxu0 0.0
    %5177 = vmatprep.subr.mxu0 0.0
    %5178 = vmatpush1.xpose.msra.mxu0 0.0
    %5179 = vmatprep.subr.mxu0 0.0
    %5180 = vmatpush1.xpose.msra.mxu0 0.0
    %5181 = vmatprep.subr.mxu0 0.0
    %5182 = vmatpush1.xpose.msra.mxu0 0.0
    %5183 = vmatprep.subr.mxu0 0.0
    %5184 = vmatpush1.xpose.msra.mxu0 0.0
    %5185 = vmatprep.subr.mxu0 0.0
    %5186 = vmatpush1.xpose.msra.mxu0 0.0
    %5187 = vmatprep.subr.mxu0 0.0
    %5188 = vmatpush1.xpose.msra.mxu0 0.0
    %5189 = vmatprep.subr.mxu0 0.0
    %5190 = vmatpush1.xpose.msra.mxu0 0.0
    %5191 = vmatprep.subr.mxu0 0.0
    %5192 = vmatpush1.xpose.msra.mxu0 0.0
    %5193 = vmatprep.subr.mxu0 0.0
    %5194 = vmatpush1.xpose.msra.mxu0 0.0
    %5195 = vmatprep.subr.mxu0 0.0
    %5196 = vmatpush1.xpose.msra.mxu0 0.0
    %5197 = vmatprep.subr.mxu0 0.0
    %5198 = vmatpush1.xpose.msra.mxu0 0.0
    %5199 = vmatprep.subr.mxu0 0.0
    %5200 = vmatpush1.xpose.msra.mxu0 0.0
    %5201 = vmatprep.mubr.f32.mxu0 %v5130
    %5202 = vmatmul.mubr.f32.gmra.mrb[0].mxu0 %v5129
    %v5203 = vpop.f32.mrb[0].mxu0
    %v5204 = vadd.f32 0.0, %v5203
    %v5205 = vpop.f32.mrb[0].mxu0
    %5206 = vmatprep.mubr.f32.mxu0 %v5132
    %5207 = vmatmul.mubr.f32.gmra.mrb[0].mxu0 %v5131
    %v5208 = vpop.f32.mrb[0].mxu0
    %v5209 = vadd.f32 0.0, %v5208
    %v5210 = vpop.f32.mrb[0].mxu0
    %5211 = vdwg.mxu0
    %5212 = vmatprep.subr.mxu0 %v29
    %5213 = vmatpush1.xpose.msra.mxu0 %v28
    %5214 = vmatprep.subr.mxu0 0.0
    %5215 = vmatpush1.xpose.msra.mxu0 0.0
    %5216 = vmatprep.subr.mxu0 0.0
    %5217 = vmatpush1.xpose.msra.mxu0 0.0
    %5218 = vmatprep.subr.mxu0 0.0
    %5219 = vmatpush1.xpose.msra.mxu0 0.0
    %5220 = vmatprep.subr.mxu0 0.0
    %5221 = vmatpush1.xpose.msra.mxu0 0.0
    %5222 = vmatprep.subr.mxu0 0.0
    %5223 = vmatpush1.xpose.msra.mxu0 0.0
    %5224 = vmatprep.subr.mxu0 0.0
    %5225 = vmatpush1.xpose.msra.mxu0 0.0
    %5226 = vmatprep.subr.mxu0 0.0
    %5227 = vmatpush1.xpose.msra.mxu0 0.0
    %5228 = vmatprep.subr.mxu0 0.0
    %5229 = vmatpush1.xpose.msra.mxu0 0.0
    %5230 = vmatprep.subr.mxu0 0.0
    %5231 = vmatpush1.xpose.msra.mxu0 0.0
    %5232 = vmatprep.subr.mxu0 0.0
    %5233 = vmatpush1.xpose.msra.mxu0 0.0
    %5234 = vmatprep.subr.mxu0 0.0
    %5235 = vmatpush1.xpose.msra.mxu0 0.0
    %5236 = vmatprep.subr.mxu0 0.0
    %5237 = vmatpush1.xpose.msra.mxu0 0.0
    %5238 = vmatprep.subr.mxu0 0.0
    %5239 = vmatpush1.xpose.msra.mxu0 0.0
    %5240 = vmatprep.subr.mxu0 0.0
    %5241 = vmatpush1.xpose.msra.mxu0 0.0
    %5242 = vmatprep.subr.mxu0 0.0
    %5243 = vmatpush1.xpose.msra.mxu0 0.0
    %5244 = vmatprep.subr.mxu0 0.0
    %5245 = vmatpush1.xpose.msra.mxu0 0.0
    %5246 = vmatprep.subr.mxu0 0.0
    %5247 = vmatpush1.xpose.msra.mxu0 0.0
    %5248 = vmatprep.subr.mxu0 0.0
    %5249 = vmatpush1.xpose.msra.mxu0 0.0
    %5250 = vmatprep.subr.mxu0 0.0
    %5251 = vmatpush1.xpose.msra.mxu0 0.0
    %5252 = vmatprep.subr.mxu0 0.0
    %5253 = vmatpush1.xpose.msra.mxu0 0.0
    %5254 = vmatprep.subr.mxu0 0.0
    %5255 = vmatpush1.xpose.msra.mxu0 0.0
    %5256 = vmatprep.subr.mxu0 0.0
    %5257 = vmatpush1.xpose.msra.mxu0 0.0
    %5258 = vmatprep.subr.mxu0 0.0
    %5259 = vmatpush1.xpose.msra.mxu0 0.0
    %5260 = vmatprep.subr.mxu0 0.0
    %5261 = vmatpush1.xpose.msra.mxu0 0.0
    %5262 = vmatprep.subr.mxu0 0.0
    %5263 = vmatpush1.xpose.msra.mxu0 0.0
    %5264 = vmatprep.subr.mxu0 0.0
    %5265 = vmatpush1.xpose.msra.mxu0 0.0
    %5266 = vmatprep.subr.mxu0 0.0
    %5267 = vmatpush1.xpose.msra.mxu0 0.0
    %5268 = vmatprep.subr.mxu0 0.0
    %5269 = vmatpush1.xpose.msra.mxu0 0.0
    %5270 = vmatprep.subr.mxu0 0.0
    %5271 = vmatpush1.xpose.msra.mxu0 0.0
    %5272 = vmatprep.subr.mxu0 0.0
    %5273 = vmatpush1.xpose.msra.mxu0 0.0
    %5274 = vmatprep.subr.mxu0 0.0
    %5275 = vmatpush1.xpose.msra.mxu0 0.0
    %5276 = vmatprep.mubr.f32.mxu0 %v5134
    %5277 = vmatmul.mubr.f32.gmra.mrb[0].mxu0 %v5133
    %v5278 = vpop.f32.mrb[0].mxu0
    %v5279 = vadd.f32 0.0, %v5278
    %v5280 = vpop.f32.mrb[0].mxu0
    %5281 = vmatprep.mubr.f32.mxu0 %v5136
    %5282 = vmatmul.mubr.f32.gmra.mrb[0].mxu0 %v5135
    %v5283 = vpop.f32.mrb[0].mxu0
    %v5284 = vadd.f32 0.0, %v5283
    %v5285 = vpop.f32.mrb[0].mxu0
    %5286 = vdwg.mxu0
    %v5287 = vmax.f32 %v5204, 1e-30
    %v5288 = vmax.f32 %v5209, 1e-30
    %v5289 = vmax.f32 %v5279, 1e-30
    %v5290 = vmax.f32 %v5284, 1e-30
    %5292 = vset.pattern.permute.xlu0 4
    %5293 = vperm.xlu0 %5292, %v5287
    %v5294 = vpop.permute.xlu0 %5293
    %5297 = vset.pattern.permute.xlu0 4
    %5298 = vperm.xlu0 %5297, %v5288
    %v5299 = vpop.permute.xlu0 %5298
    %5302 = vset.pattern.permute.xlu0 4
    %5303 = vperm.xlu0 %5302, %v5289
    %v5304 = vpop.permute.xlu0 %5303
    %5307 = vset.pattern.permute.xlu0 4
    %5308 = vperm.xlu0 %5307, %v5290
    %v5309 = vpop.permute.xlu0 %5308
    %v5311 = vrcp.pop %v5294
    %v5312 = vmul.f32 %v5204, %v5311
    %v5313 = vrcp.pop %v5299
    %v5314 = vmul.f32 %v5209, %v5313
    %v5315 = vrcp.pop %v5304
    %v5316 = vmul.f32 %v5279, %v5315
    %v5317 = vrcp.pop %v5309
    %v5318 = vmul.f32 %v5284, %v5317
    %5320 = vset.pattern.permute.xlu0 0
    %5321 = vperm.xlu0 %5320, %v5312
    %v5322 = vpop.permute.xlu0 %5321
    %5325 = vset.pattern.permute.xlu0 0
    %5326 = vperm.xlu0 %5325, %v5314
    %v5327 = vpop.permute.xlu0 %5326
    %5330 = vset.pattern.permute.xlu0 0
    %5331 = vperm.xlu0 %5330, %v5316
    %v5332 = vpop.permute.xlu0 %5331
    %5335 = vset.pattern.permute.xlu0 0
    %5336 = vperm.xlu0 %5335, %v5318
    %v5337 = vpop.permute.xlu0 %5336
    %v5339 = vsub.f32 %v3634, %v5322
    %v5340 = vsub.f32 %v3638, %v5322
    %v5341 = vsub.f32 %v3634, %v5327
    %v5342 = vsub.f32 %v3638, %v5327
    %v5343 = vsub.f32 %v3642, %v5332
    %v5344 = vsub.f32 %v3646, %v5332
    %v5345 = vsub.f32 %v3642, %v5337
    %v5346 = vsub.f32 %v3646, %v5337
    %v5347 = vmul.f32 %v5339, %v5339
    %v5348 = vmul.f32 %v5340, %v5340
    %v5349 = vmul.f32 %v5341, %v5341
    %v5350 = vmul.f32 %v5342, %v5342
    %v5351 = vmul.f32 %v5343, %v5343
    %v5352 = vmul.f32 %v5344, %v5344
    %v5353 = vmul.f32 %v5345, %v5345
    %v5354 = vmul.f32 %v5346, %v5346
    %v5355 = vadd.f32 %v5347, 1e-12
    %v5356 = vadd.f32 %v5348, 1e-12
    %v5357 = vadd.f32 %v5349, 1e-12
    %v5358 = vadd.f32 %v5350, 1e-12
    %v5359 = vadd.f32 %v5351, 1e-12
    %v5360 = vadd.f32 %v5352, 1e-12
    %v5361 = vadd.f32 %v5353, 1e-12
    %v5362 = vadd.f32 %v5354, 1e-12
    %5363 = vset.pattern.permute.xlu0 1
    %5364 = vperm.xlu0 %5363, %v5312
    %v5365 = vpop.permute.xlu0 %5364
    %5367 = vset.pattern.permute.xlu0 1
    %5368 = vperm.xlu0 %5367, %v5314
    %v5369 = vpop.permute.xlu0 %5368
    %5371 = vset.pattern.permute.xlu0 1
    %5372 = vperm.xlu0 %5371, %v5316
    %v5373 = vpop.permute.xlu0 %5372
    %5375 = vset.pattern.permute.xlu0 1
    %5376 = vperm.xlu0 %5375, %v5318
    %v5377 = vpop.permute.xlu0 %5376
    %v5379 = vsub.f32 %v3694, %v5365
    %v5380 = vsub.f32 %v3698, %v5365
    %v5381 = vsub.f32 %v3694, %v5369
    %v5382 = vsub.f32 %v3698, %v5369
    %v5383 = vsub.f32 %v3702, %v5373
    %v5384 = vsub.f32 %v3706, %v5373
    %v5385 = vsub.f32 %v3702, %v5377
    %v5386 = vsub.f32 %v3706, %v5377
    %v5387 = vmul.f32 %v5379, %v5379
    %v5388 = vmul.f32 %v5380, %v5380
    %v5389 = vmul.f32 %v5381, %v5381
    %v5390 = vmul.f32 %v5382, %v5382
    %v5391 = vmul.f32 %v5383, %v5383
    %v5392 = vmul.f32 %v5384, %v5384
    %v5393 = vmul.f32 %v5385, %v5385
    %v5394 = vmul.f32 %v5386, %v5386
    %v5395 = vadd.f32 %v5355, %v5387
    %v5396 = vadd.f32 %v5356, %v5388
    %v5397 = vadd.f32 %v5357, %v5389
    %v5398 = vadd.f32 %v5358, %v5390
    %v5399 = vadd.f32 %v5359, %v5391
    %v5400 = vadd.f32 %v5360, %v5392
    %v5401 = vadd.f32 %v5361, %v5393
    %v5402 = vadd.f32 %v5362, %v5394
    %5403 = vset.pattern.permute.xlu0 2
    %5404 = vperm.xlu0 %5403, %v5312
    %v5405 = vpop.permute.xlu0 %5404
    %5407 = vset.pattern.permute.xlu0 2
    %5408 = vperm.xlu0 %5407, %v5314
    %v5409 = vpop.permute.xlu0 %5408
    %5411 = vset.pattern.permute.xlu0 2
    %5412 = vperm.xlu0 %5411, %v5316
    %v5413 = vpop.permute.xlu0 %5412
    %5415 = vset.pattern.permute.xlu0 2
    %5416 = vperm.xlu0 %5415, %v5318
    %v5417 = vpop.permute.xlu0 %5416
    %v5419 = vsub.f32 %v3750, %v5405
    %v5420 = vsub.f32 %v3754, %v5405
    %v5421 = vsub.f32 %v3750, %v5409
    %v5422 = vsub.f32 %v3754, %v5409
    %v5423 = vsub.f32 %v3758, %v5413
    %v5424 = vsub.f32 %v3762, %v5413
    %v5425 = vsub.f32 %v3758, %v5417
    %v5426 = vsub.f32 %v3762, %v5417
    %v5427 = vmul.f32 %v5419, %v5419
    %v5428 = vmul.f32 %v5420, %v5420
    %v5429 = vmul.f32 %v5421, %v5421
    %v5430 = vmul.f32 %v5422, %v5422
    %v5431 = vmul.f32 %v5423, %v5423
    %v5432 = vmul.f32 %v5424, %v5424
    %v5433 = vmul.f32 %v5425, %v5425
    %v5434 = vmul.f32 %v5426, %v5426
    %v5435 = vadd.f32 %v5395, %v5427
    %v5436 = vadd.f32 %v5396, %v5428
    %v5437 = vadd.f32 %v5397, %v5429
    %v5438 = vadd.f32 %v5398, %v5430
    %v5439 = vadd.f32 %v5399, %v5431
    %v5440 = vadd.f32 %v5400, %v5432
    %v5441 = vadd.f32 %v5401, %v5433
    %v5442 = vadd.f32 %v5402, %v5434
    %5443 = vset.pattern.permute.xlu0 3
    %5444 = vperm.xlu0 %5443, %v5312
    %v5445 = vpop.permute.xlu0 %5444
    %5447 = vset.pattern.permute.xlu0 3
    %5448 = vperm.xlu0 %5447, %v5314
    %v5449 = vpop.permute.xlu0 %5448
    %5451 = vset.pattern.permute.xlu0 3
    %5452 = vperm.xlu0 %5451, %v5316
    %v5453 = vpop.permute.xlu0 %5452
    %5455 = vset.pattern.permute.xlu0 3
    %5456 = vperm.xlu0 %5455, %v5318
    %v5457 = vpop.permute.xlu0 %5456
    %v5459 = vsub.f32 %v3806, %v5445
    %v5460 = vsub.f32 %v3810, %v5445
    %v5461 = vsub.f32 %v3806, %v5449
    %v5462 = vsub.f32 %v3810, %v5449
    %v5463 = vsub.f32 %v3814, %v5453
    %v5464 = vsub.f32 %v3818, %v5453
    %v5465 = vsub.f32 %v3814, %v5457
    %v5466 = vsub.f32 %v3818, %v5457
    %v5467 = vmul.f32 %v5459, %v5459
    %v5468 = vmul.f32 %v5460, %v5460
    %v5469 = vmul.f32 %v5461, %v5461
    %v5470 = vmul.f32 %v5462, %v5462
    %v5471 = vmul.f32 %v5463, %v5463
    %v5472 = vmul.f32 %v5464, %v5464
    %v5473 = vmul.f32 %v5465, %v5465
    %v5474 = vmul.f32 %v5466, %v5466
    %v5475 = vadd.f32 %v5435, %v5467
    %v5476 = vadd.f32 %v5436, %v5468
    %v5477 = vadd.f32 %v5437, %v5469
    %v5478 = vadd.f32 %v5438, %v5470
    %v5479 = vadd.f32 %v5439, %v5471
    %v5480 = vadd.f32 %v5440, %v5472
    %v5481 = vadd.f32 %v5441, %v5473
    %v5482 = vadd.f32 %v5442, %v5474
    %v5483 = vrcp.pop %v5475
    %v5484 = vrcp.pop %v5476
    %v5485 = vrcp.pop %v5477
    %v5486 = vrcp.pop %v5478
    %v5487 = vrcp.pop %v5479
    %v5488 = vrcp.pop %v5480
    %v5489 = vrcp.pop %v5481
    %v5490 = vrcp.pop %v5482
    %v5491 = vsel %vm501, %v5485, 0.0
    %v5492 = vadd.f32 %v5483, %v5491
    %v5493 = vrot.slane %v5492, 4
    %v5494 = vadd.f32 %v5492, %v5493
    %v5495 = vrot.slane %v5494, 2
    %v5496 = vadd.f32 %v5494, %v5495
    %v5497 = vrot.slane %v5496, 1
    %v5498 = vadd.f32 %v5496, %v5497
    %v5499 = vsel %vm501, %v5486, 0.0
    %v5500 = vadd.f32 %v5484, %v5499
    %v5501 = vrot.slane %v5500, 4
    %v5502 = vadd.f32 %v5500, %v5501
    %v5503 = vrot.slane %v5502, 2
    %v5504 = vadd.f32 %v5502, %v5503
    %v5505 = vrot.slane %v5504, 1
    %v5506 = vadd.f32 %v5504, %v5505
    %v5507 = vsel %vm501, %v5489, 0.0
    %v5508 = vadd.f32 %v5487, %v5507
    %v5509 = vrot.slane %v5508, 4
    %v5510 = vadd.f32 %v5508, %v5509
    %v5511 = vrot.slane %v5510, 2
    %v5512 = vadd.f32 %v5510, %v5511
    %v5513 = vrot.slane %v5512, 1
    %v5514 = vadd.f32 %v5512, %v5513
    %v5515 = vsel %vm501, %v5490, 0.0
    %v5516 = vadd.f32 %v5488, %v5515
    %v5517 = vrot.slane %v5516, 4
    %v5518 = vadd.f32 %v5516, %v5517
    %v5519 = vrot.slane %v5518, 2
    %v5520 = vadd.f32 %v5518, %v5519
    %v5521 = vrot.slane %v5520, 1
    %v5522 = vadd.f32 %v5520, %v5521
    %v5523 = vrcp.pop %v5498
    %v5524 = vrcp.pop %v5506
    %v5525 = vrcp.pop %v5514
    %v5526 = vrcp.pop %v5522
    %v5527 = vmul.f32 %v5483, %v5523
    %v5528 = vmul.f32 %v5484, %v5524
    %v5529 = vmul.f32 %v5485, %v5523
    %v5530 = vmul.f32 %v5486, %v5524
    %v5531 = vmul.f32 %v5487, %v5525
    %v5532 = vmul.f32 %v5488, %v5526
    %v5533 = vmul.f32 %v5489, %v5525
    %v5534 = vmul.f32 %v5490, %v5526
    %v5535 = vmul.f32 %v5527, %v5527
    %v5536 = vmul.f32 %v5528, %v5528
    %v5537 = vmul.f32 %v5529, %v5529
    %v5538 = vmul.f32 %v5530, %v5530
    %v5539 = vmul.f32 %v5531, %v5531
    %v5540 = vmul.f32 %v5532, %v5532
    %v5541 = vmul.f32 %v5533, %v5533
    %v5542 = vmul.f32 %v5534, %v5534
    %5543 = vmatprep.subr.mxu0 %v27
    %5544 = vmatpush1.xpose.msra.mxu0 %v26
    %5545 = vmatprep.subr.mxu0 0.0
    %5546 = vmatpush1.xpose.msra.mxu0 0.0
    %5547 = vmatprep.subr.mxu0 0.0
    %5548 = vmatpush1.xpose.msra.mxu0 0.0
    %5549 = vmatprep.subr.mxu0 0.0
    %5550 = vmatpush1.xpose.msra.mxu0 0.0
    %5551 = vmatprep.subr.mxu0 0.0
    %5552 = vmatpush1.xpose.msra.mxu0 0.0
    %5553 = vmatprep.subr.mxu0 0.0
    %5554 = vmatpush1.xpose.msra.mxu0 0.0
    %5555 = vmatprep.subr.mxu0 0.0
    %5556 = vmatpush1.xpose.msra.mxu0 0.0
    %5557 = vmatprep.subr.mxu0 0.0
    %5558 = vmatpush1.xpose.msra.mxu0 0.0
    %5559 = vmatprep.subr.mxu0 0.0
    %5560 = vmatpush1.xpose.msra.mxu0 0.0
    %5561 = vmatprep.subr.mxu0 0.0
    %5562 = vmatpush1.xpose.msra.mxu0 0.0
    %5563 = vmatprep.subr.mxu0 0.0
    %5564 = vmatpush1.xpose.msra.mxu0 0.0
    %5565 = vmatprep.subr.mxu0 0.0
    %5566 = vmatpush1.xpose.msra.mxu0 0.0
    %5567 = vmatprep.subr.mxu0 0.0
    %5568 = vmatpush1.xpose.msra.mxu0 0.0
    %5569 = vmatprep.subr.mxu0 0.0
    %5570 = vmatpush1.xpose.msra.mxu0 0.0
    %5571 = vmatprep.subr.mxu0 0.0
    %5572 = vmatpush1.xpose.msra.mxu0 0.0
    %5573 = vmatprep.subr.mxu0 0.0
    %5574 = vmatpush1.xpose.msra.mxu0 0.0
    %5575 = vmatprep.subr.mxu0 0.0
    %5576 = vmatpush1.xpose.msra.mxu0 0.0
    %5577 = vmatprep.subr.mxu0 0.0
    %5578 = vmatpush1.xpose.msra.mxu0 0.0
    %5579 = vmatprep.subr.mxu0 0.0
    %5580 = vmatpush1.xpose.msra.mxu0 0.0
    %5581 = vmatprep.subr.mxu0 0.0
    %5582 = vmatpush1.xpose.msra.mxu0 0.0
    %5583 = vmatprep.subr.mxu0 0.0
    %5584 = vmatpush1.xpose.msra.mxu0 0.0
    %5585 = vmatprep.subr.mxu0 0.0
    %5586 = vmatpush1.xpose.msra.mxu0 0.0
    %5587 = vmatprep.subr.mxu0 0.0
    %5588 = vmatpush1.xpose.msra.mxu0 0.0
    %5589 = vmatprep.subr.mxu0 0.0
    %5590 = vmatpush1.xpose.msra.mxu0 0.0
    %5591 = vmatprep.subr.mxu0 0.0
    %5592 = vmatpush1.xpose.msra.mxu0 0.0
    %5593 = vmatprep.subr.mxu0 0.0
    %5594 = vmatpush1.xpose.msra.mxu0 0.0
    %5595 = vmatprep.subr.mxu0 0.0
    %5596 = vmatpush1.xpose.msra.mxu0 0.0
    %5597 = vmatprep.subr.mxu0 0.0
    %5598 = vmatpush1.xpose.msra.mxu0 0.0
    %5599 = vmatprep.subr.mxu0 0.0
    %5600 = vmatpush1.xpose.msra.mxu0 0.0
    %5601 = vmatprep.subr.mxu0 0.0
    %5602 = vmatpush1.xpose.msra.mxu0 0.0
    %5603 = vmatprep.subr.mxu0 0.0
    %5604 = vmatpush1.xpose.msra.mxu0 0.0
    %5605 = vmatprep.subr.mxu0 0.0
    %5606 = vmatpush1.xpose.msra.mxu0 0.0
    %5607 = vmatprep.mubr.f32.mxu0 %v5536
    %5608 = vmatmul.mubr.f32.gmra.mrb[0].mxu0 %v5535
    %v5609 = vpop.f32.mrb[0].mxu0
    %v5610 = vadd.f32 0.0, %v5609
    %v5611 = vpop.f32.mrb[0].mxu0
    %5612 = vmatprep.mubr.f32.mxu0 %v5538
    %5613 = vmatmul.mubr.f32.gmra.mrb[0].mxu0 %v5537
    %v5614 = vpop.f32.mrb[0].mxu0
    %v5615 = vadd.f32 0.0, %v5614
    %v5616 = vpop.f32.mrb[0].mxu0
    %5617 = vdwg.mxu0
    %5618 = vmatprep.subr.mxu0 %v29
    %5619 = vmatpush1.xpose.msra.mxu0 %v28
    %5620 = vmatprep.subr.mxu0 0.0
    %5621 = vmatpush1.xpose.msra.mxu0 0.0
    %5622 = vmatprep.subr.mxu0 0.0
    %5623 = vmatpush1.xpose.msra.mxu0 0.0
    %5624 = vmatprep.subr.mxu0 0.0
    %5625 = vmatpush1.xpose.msra.mxu0 0.0
    %5626 = vmatprep.subr.mxu0 0.0
    %5627 = vmatpush1.xpose.msra.mxu0 0.0
    %5628 = vmatprep.subr.mxu0 0.0
    %5629 = vmatpush1.xpose.msra.mxu0 0.0
    %5630 = vmatprep.subr.mxu0 0.0
    %5631 = vmatpush1.xpose.msra.mxu0 0.0
    %5632 = vmatprep.subr.mxu0 0.0
    %5633 = vmatpush1.xpose.msra.mxu0 0.0
    %5634 = vmatprep.subr.mxu0 0.0
    %5635 = vmatpush1.xpose.msra.mxu0 0.0
    %5636 = vmatprep.subr.mxu0 0.0
    %5637 = vmatpush1.xpose.msra.mxu0 0.0
    %5638 = vmatprep.subr.mxu0 0.0
    %5639 = vmatpush1.xpose.msra.mxu0 0.0
    %5640 = vmatprep.subr.mxu0 0.0
    %5641 = vmatpush1.xpose.msra.mxu0 0.0
    %5642 = vmatprep.subr.mxu0 0.0
    %5643 = vmatpush1.xpose.msra.mxu0 0.0
    %5644 = vmatprep.subr.mxu0 0.0
    %5645 = vmatpush1.xpose.msra.mxu0 0.0
    %5646 = vmatprep.subr.mxu0 0.0
    %5647 = vmatpush1.xpose.msra.mxu0 0.0
    %5648 = vmatprep.subr.mxu0 0.0
    %5649 = vmatpush1.xpose.msra.mxu0 0.0
    %5650 = vmatprep.subr.mxu0 0.0
    %5651 = vmatpush1.xpose.msra.mxu0 0.0
    %5652 = vmatprep.subr.mxu0 0.0
    %5653 = vmatpush1.xpose.msra.mxu0 0.0
    %5654 = vmatprep.subr.mxu0 0.0
    %5655 = vmatpush1.xpose.msra.mxu0 0.0
    %5656 = vmatprep.subr.mxu0 0.0
    %5657 = vmatpush1.xpose.msra.mxu0 0.0
    %5658 = vmatprep.subr.mxu0 0.0
    %5659 = vmatpush1.xpose.msra.mxu0 0.0
    %5660 = vmatprep.subr.mxu0 0.0
    %5661 = vmatpush1.xpose.msra.mxu0 0.0
    %5662 = vmatprep.subr.mxu0 0.0
    %5663 = vmatpush1.xpose.msra.mxu0 0.0
    %5664 = vmatprep.subr.mxu0 0.0
    %5665 = vmatpush1.xpose.msra.mxu0 0.0
    %5666 = vmatprep.subr.mxu0 0.0
    %5667 = vmatpush1.xpose.msra.mxu0 0.0
    %5668 = vmatprep.subr.mxu0 0.0
    %5669 = vmatpush1.xpose.msra.mxu0 0.0
    %5670 = vmatprep.subr.mxu0 0.0
    %5671 = vmatpush1.xpose.msra.mxu0 0.0
    %5672 = vmatprep.subr.mxu0 0.0
    %5673 = vmatpush1.xpose.msra.mxu0 0.0
    %5674 = vmatprep.subr.mxu0 0.0
    %5675 = vmatpush1.xpose.msra.mxu0 0.0
    %5676 = vmatprep.subr.mxu0 0.0
    %5677 = vmatpush1.xpose.msra.mxu0 0.0
    %5678 = vmatprep.subr.mxu0 0.0
    %5679 = vmatpush1.xpose.msra.mxu0 0.0
    %5680 = vmatprep.subr.mxu0 0.0
    %5681 = vmatpush1.xpose.msra.mxu0 0.0
    %5682 = vmatprep.mubr.f32.mxu0 %v5540
    %5683 = vmatmul.mubr.f32.gmra.mrb[0].mxu0 %v5539
    %v5684 = vpop.f32.mrb[0].mxu0
    %v5685 = vadd.f32 0.0, %v5684
    %v5686 = vpop.f32.mrb[0].mxu0
    %5687 = vmatprep.mubr.f32.mxu0 %v5542
    %5688 = vmatmul.mubr.f32.gmra.mrb[0].mxu0 %v5541
    %v5689 = vpop.f32.mrb[0].mxu0
    %v5690 = vadd.f32 0.0, %v5689
    %v5691 = vpop.f32.mrb[0].mxu0
    %5692 = vdwg.mxu0
    %v5693 = vmax.f32 %v5610, 1e-30
    %v5694 = vmax.f32 %v5615, 1e-30
    %v5695 = vmax.f32 %v5685, 1e-30
    %v5696 = vmax.f32 %v5690, 1e-30
    %5698 = vset.pattern.permute.xlu0 4
    %5699 = vperm.xlu0 %5698, %v5693
    %v5700 = vpop.permute.xlu0 %5699
    %5703 = vset.pattern.permute.xlu0 4
    %5704 = vperm.xlu0 %5703, %v5694
    %v5705 = vpop.permute.xlu0 %5704
    %5708 = vset.pattern.permute.xlu0 4
    %5709 = vperm.xlu0 %5708, %v5695
    %v5710 = vpop.permute.xlu0 %5709
    %5713 = vset.pattern.permute.xlu0 4
    %5714 = vperm.xlu0 %5713, %v5696
    %v5715 = vpop.permute.xlu0 %5714
    %v5717 = vrcp.pop %v5700
    %v5718 = vmul.f32 %v5610, %v5717
    %v5719 = vrcp.pop %v5705
    %v5720 = vmul.f32 %v5615, %v5719
    %v5721 = vrcp.pop %v5710
    %v5722 = vmul.f32 %v5685, %v5721
    %v5723 = vrcp.pop %v5715
    %v5724 = vmul.f32 %v5690, %v5723
    %5726 = vset.pattern.permute.xlu0 0
    %5727 = vperm.xlu0 %5726, %v5718
    %v5728 = vpop.permute.xlu0 %5727
    %5731 = vset.pattern.permute.xlu0 0
    %5732 = vperm.xlu0 %5731, %v5720
    %v5733 = vpop.permute.xlu0 %5732
    %5736 = vset.pattern.permute.xlu0 0
    %5737 = vperm.xlu0 %5736, %v5722
    %v5738 = vpop.permute.xlu0 %5737
    %5741 = vset.pattern.permute.xlu0 0
    %5742 = vperm.xlu0 %5741, %v5724
    %v5743 = vpop.permute.xlu0 %5742
    %v5745 = vsub.f32 %v3634, %v5728
    %v5746 = vsub.f32 %v3638, %v5728
    %v5747 = vsub.f32 %v3634, %v5733
    %v5748 = vsub.f32 %v3638, %v5733
    %v5749 = vsub.f32 %v3642, %v5738
    %v5750 = vsub.f32 %v3646, %v5738
    %v5751 = vsub.f32 %v3642, %v5743
    %v5752 = vsub.f32 %v3646, %v5743
    %v5753 = vmul.f32 %v5745, %v5745
    %v5754 = vmul.f32 %v5746, %v5746
    %v5755 = vmul.f32 %v5747, %v5747
    %v5756 = vmul.f32 %v5748, %v5748
    %v5757 = vmul.f32 %v5749, %v5749
    %v5758 = vmul.f32 %v5750, %v5750
    %v5759 = vmul.f32 %v5751, %v5751
    %v5760 = vmul.f32 %v5752, %v5752
    %v5761 = vadd.f32 %v5753, 1e-12
    %v5762 = vadd.f32 %v5754, 1e-12
    %v5763 = vadd.f32 %v5755, 1e-12
    %v5764 = vadd.f32 %v5756, 1e-12
    %v5765 = vadd.f32 %v5757, 1e-12
    %v5766 = vadd.f32 %v5758, 1e-12
    %v5767 = vadd.f32 %v5759, 1e-12
    %v5768 = vadd.f32 %v5760, 1e-12
    %5769 = vset.pattern.permute.xlu0 1
    %5770 = vperm.xlu0 %5769, %v5718
    %v5771 = vpop.permute.xlu0 %5770
    %5773 = vset.pattern.permute.xlu0 1
    %5774 = vperm.xlu0 %5773, %v5720
    %v5775 = vpop.permute.xlu0 %5774
    %5777 = vset.pattern.permute.xlu0 1
    %5778 = vperm.xlu0 %5777, %v5722
    %v5779 = vpop.permute.xlu0 %5778
    %5781 = vset.pattern.permute.xlu0 1
    %5782 = vperm.xlu0 %5781, %v5724
    %v5783 = vpop.permute.xlu0 %5782
    %v5785 = vsub.f32 %v3694, %v5771
    %v5786 = vsub.f32 %v3698, %v5771
    %v5787 = vsub.f32 %v3694, %v5775
    %v5788 = vsub.f32 %v3698, %v5775
    %v5789 = vsub.f32 %v3702, %v5779
    %v5790 = vsub.f32 %v3706, %v5779
    %v5791 = vsub.f32 %v3702, %v5783
    %v5792 = vsub.f32 %v3706, %v5783
    %v5793 = vmul.f32 %v5785, %v5785
    %v5794 = vmul.f32 %v5786, %v5786
    %v5795 = vmul.f32 %v5787, %v5787
    %v5796 = vmul.f32 %v5788, %v5788
    %v5797 = vmul.f32 %v5789, %v5789
    %v5798 = vmul.f32 %v5790, %v5790
    %v5799 = vmul.f32 %v5791, %v5791
    %v5800 = vmul.f32 %v5792, %v5792
    %v5801 = vadd.f32 %v5761, %v5793
    %v5802 = vadd.f32 %v5762, %v5794
    %v5803 = vadd.f32 %v5763, %v5795
    %v5804 = vadd.f32 %v5764, %v5796
    %v5805 = vadd.f32 %v5765, %v5797
    %v5806 = vadd.f32 %v5766, %v5798
    %v5807 = vadd.f32 %v5767, %v5799
    %v5808 = vadd.f32 %v5768, %v5800
    %5809 = vset.pattern.permute.xlu0 2
    %5810 = vperm.xlu0 %5809, %v5718
    %v5811 = vpop.permute.xlu0 %5810
    %5813 = vset.pattern.permute.xlu0 2
    %5814 = vperm.xlu0 %5813, %v5720
    %v5815 = vpop.permute.xlu0 %5814
    %5817 = vset.pattern.permute.xlu0 2
    %5818 = vperm.xlu0 %5817, %v5722
    %v5819 = vpop.permute.xlu0 %5818
    %5821 = vset.pattern.permute.xlu0 2
    %5822 = vperm.xlu0 %5821, %v5724
    %v5823 = vpop.permute.xlu0 %5822
    %v5825 = vsub.f32 %v3750, %v5811
    %v5826 = vsub.f32 %v3754, %v5811
    %v5827 = vsub.f32 %v3750, %v5815
    %v5828 = vsub.f32 %v3754, %v5815
    %v5829 = vsub.f32 %v3758, %v5819
    %v5830 = vsub.f32 %v3762, %v5819
    %v5831 = vsub.f32 %v3758, %v5823
    %v5832 = vsub.f32 %v3762, %v5823
    %v5833 = vmul.f32 %v5825, %v5825
    %v5834 = vmul.f32 %v5826, %v5826
    %v5835 = vmul.f32 %v5827, %v5827
    %v5836 = vmul.f32 %v5828, %v5828
    %v5837 = vmul.f32 %v5829, %v5829
    %v5838 = vmul.f32 %v5830, %v5830
    %v5839 = vmul.f32 %v5831, %v5831
    %v5840 = vmul.f32 %v5832, %v5832
    %v5841 = vadd.f32 %v5801, %v5833
    %v5842 = vadd.f32 %v5802, %v5834
    %v5843 = vadd.f32 %v5803, %v5835
    %v5844 = vadd.f32 %v5804, %v5836
    %v5845 = vadd.f32 %v5805, %v5837
    %v5846 = vadd.f32 %v5806, %v5838
    %v5847 = vadd.f32 %v5807, %v5839
    %v5848 = vadd.f32 %v5808, %v5840
    %5849 = vset.pattern.permute.xlu0 3
    %5850 = vperm.xlu0 %5849, %v5718
    %v5851 = vpop.permute.xlu0 %5850
    %5853 = vset.pattern.permute.xlu0 3
    %5854 = vperm.xlu0 %5853, %v5720
    %v5855 = vpop.permute.xlu0 %5854
    %5857 = vset.pattern.permute.xlu0 3
    %5858 = vperm.xlu0 %5857, %v5722
    %v5859 = vpop.permute.xlu0 %5858
    %5861 = vset.pattern.permute.xlu0 3
    %5862 = vperm.xlu0 %5861, %v5724
    %v5863 = vpop.permute.xlu0 %5862
    %v5865 = vsub.f32 %v3806, %v5851
    %v5866 = vsub.f32 %v3810, %v5851
    %v5867 = vsub.f32 %v3806, %v5855
    %v5868 = vsub.f32 %v3810, %v5855
    %v5869 = vsub.f32 %v3814, %v5859
    %v5870 = vsub.f32 %v3818, %v5859
    %v5871 = vsub.f32 %v3814, %v5863
    %v5872 = vsub.f32 %v3818, %v5863
    %v5873 = vmul.f32 %v5865, %v5865
    %v5874 = vmul.f32 %v5866, %v5866
    %v5875 = vmul.f32 %v5867, %v5867
    %v5876 = vmul.f32 %v5868, %v5868
    %v5877 = vmul.f32 %v5869, %v5869
    %v5878 = vmul.f32 %v5870, %v5870
    %v5879 = vmul.f32 %v5871, %v5871
    %v5880 = vmul.f32 %v5872, %v5872
    %v5881 = vadd.f32 %v5841, %v5873
    %v5882 = vadd.f32 %v5842, %v5874
    %v5883 = vadd.f32 %v5843, %v5875
    %v5884 = vadd.f32 %v5844, %v5876
    %v5885 = vadd.f32 %v5845, %v5877
    %v5886 = vadd.f32 %v5846, %v5878
    %v5887 = vadd.f32 %v5847, %v5879
    %v5888 = vadd.f32 %v5848, %v5880
    %v5889 = vrcp.pop %v5881
    %v5890 = vrcp.pop %v5882
    %v5891 = vrcp.pop %v5883
    %v5892 = vrcp.pop %v5884
    %v5893 = vrcp.pop %v5885
    %v5894 = vrcp.pop %v5886
    %v5895 = vrcp.pop %v5887
    %v5896 = vrcp.pop %v5888
    %v5897 = vsel %vm501, %v5891, 0.0
    %v5898 = vadd.f32 %v5889, %v5897
    %v5899 = vrot.slane %v5898, 4
    %v5900 = vadd.f32 %v5898, %v5899
    %v5901 = vrot.slane %v5900, 2
    %v5902 = vadd.f32 %v5900, %v5901
    %v5903 = vrot.slane %v5902, 1
    %v5904 = vadd.f32 %v5902, %v5903
    %v5905 = vsel %vm501, %v5892, 0.0
    %v5906 = vadd.f32 %v5890, %v5905
    %v5907 = vrot.slane %v5906, 4
    %v5908 = vadd.f32 %v5906, %v5907
    %v5909 = vrot.slane %v5908, 2
    %v5910 = vadd.f32 %v5908, %v5909
    %v5911 = vrot.slane %v5910, 1
    %v5912 = vadd.f32 %v5910, %v5911
    %v5913 = vsel %vm501, %v5895, 0.0
    %v5914 = vadd.f32 %v5893, %v5913
    %v5915 = vrot.slane %v5914, 4
    %v5916 = vadd.f32 %v5914, %v5915
    %v5917 = vrot.slane %v5916, 2
    %v5918 = vadd.f32 %v5916, %v5917
    %v5919 = vrot.slane %v5918, 1
    %v5920 = vadd.f32 %v5918, %v5919
    %v5921 = vsel %vm501, %v5896, 0.0
    %v5922 = vadd.f32 %v5894, %v5921
    %v5923 = vrot.slane %v5922, 4
    %v5924 = vadd.f32 %v5922, %v5923
    %v5925 = vrot.slane %v5924, 2
    %v5926 = vadd.f32 %v5924, %v5925
    %v5927 = vrot.slane %v5926, 1
    %v5928 = vadd.f32 %v5926, %v5927
    %v5929 = vrcp.pop %v5904
    %v5930 = vrcp.pop %v5912
    %v5931 = vrcp.pop %v5920
    %v5932 = vrcp.pop %v5928
    %v5933 = vmul.f32 %v5889, %v5929
    %v5934 = vmul.f32 %v5890, %v5930
    %v5935 = vmul.f32 %v5891, %v5929
    %v5936 = vmul.f32 %v5892, %v5930
    %v5937 = vmul.f32 %v5893, %v5931
    %v5938 = vmul.f32 %v5894, %v5932
    %v5939 = vmul.f32 %v5895, %v5931
    %v5940 = vmul.f32 %v5896, %v5932
    %v5941 = vmul.f32 %v5933, %v5933
    %v5942 = vmul.f32 %v5934, %v5934
    %v5943 = vmul.f32 %v5935, %v5935
    %v5944 = vmul.f32 %v5936, %v5936
    %v5945 = vmul.f32 %v5937, %v5937
    %v5946 = vmul.f32 %v5938, %v5938
    %v5947 = vmul.f32 %v5939, %v5939
    %v5948 = vmul.f32 %v5940, %v5940
    %5949 = vmatprep.subr.mxu0 %v27
    %5950 = vmatpush1.xpose.msra.mxu0 %v26
    %5951 = vmatprep.subr.mxu0 0.0
    %5952 = vmatpush1.xpose.msra.mxu0 0.0
    %5953 = vmatprep.subr.mxu0 0.0
    %5954 = vmatpush1.xpose.msra.mxu0 0.0
    %5955 = vmatprep.subr.mxu0 0.0
    %5956 = vmatpush1.xpose.msra.mxu0 0.0
    %5957 = vmatprep.subr.mxu0 0.0
    %5958 = vmatpush1.xpose.msra.mxu0 0.0
    %5959 = vmatprep.subr.mxu0 0.0
    %5960 = vmatpush1.xpose.msra.mxu0 0.0
    %5961 = vmatprep.subr.mxu0 0.0
    %5962 = vmatpush1.xpose.msra.mxu0 0.0
    %5963 = vmatprep.subr.mxu0 0.0
    %5964 = vmatpush1.xpose.msra.mxu0 0.0
    %5965 = vmatprep.subr.mxu0 0.0
    %5966 = vmatpush1.xpose.msra.mxu0 0.0
    %5967 = vmatprep.subr.mxu0 0.0
    %5968 = vmatpush1.xpose.msra.mxu0 0.0
    %5969 = vmatprep.subr.mxu0 0.0
    %5970 = vmatpush1.xpose.msra.mxu0 0.0
    %5971 = vmatprep.subr.mxu0 0.0
    %5972 = vmatpush1.xpose.msra.mxu0 0.0
    %5973 = vmatprep.subr.mxu0 0.0
    %5974 = vmatpush1.xpose.msra.mxu0 0.0
    %5975 = vmatprep.subr.mxu0 0.0
    %5976 = vmatpush1.xpose.msra.mxu0 0.0
    %5977 = vmatprep.subr.mxu0 0.0
    %5978 = vmatpush1.xpose.msra.mxu0 0.0
    %5979 = vmatprep.subr.mxu0 0.0
    %5980 = vmatpush1.xpose.msra.mxu0 0.0
    %5981 = vmatprep.subr.mxu0 0.0
    %5982 = vmatpush1.xpose.msra.mxu0 0.0
    %5983 = vmatprep.subr.mxu0 0.0
    %5984 = vmatpush1.xpose.msra.mxu0 0.0
    %5985 = vmatprep.subr.mxu0 0.0
    %5986 = vmatpush1.xpose.msra.mxu0 0.0
    %5987 = vmatprep.subr.mxu0 0.0
    %5988 = vmatpush1.xpose.msra.mxu0 0.0
    %5989 = vmatprep.subr.mxu0 0.0
    %5990 = vmatpush1.xpose.msra.mxu0 0.0
    %5991 = vmatprep.subr.mxu0 0.0
    %5992 = vmatpush1.xpose.msra.mxu0 0.0
    %5993 = vmatprep.subr.mxu0 0.0
    %5994 = vmatpush1.xpose.msra.mxu0 0.0
    %5995 = vmatprep.subr.mxu0 0.0
    %5996 = vmatpush1.xpose.msra.mxu0 0.0
    %5997 = vmatprep.subr.mxu0 0.0
    %5998 = vmatpush1.xpose.msra.mxu0 0.0
    %5999 = vmatprep.subr.mxu0 0.0
    %6000 = vmatpush1.xpose.msra.mxu0 0.0
    %6001 = vmatprep.subr.mxu0 0.0
    %6002 = vmatpush1.xpose.msra.mxu0 0.0
    %6003 = vmatprep.subr.mxu0 0.0
    %6004 = vmatpush1.xpose.msra.mxu0 0.0
    %6005 = vmatprep.subr.mxu0 0.0
    %6006 = vmatpush1.xpose.msra.mxu0 0.0
    %6007 = vmatprep.subr.mxu0 0.0
    %6008 = vmatpush1.xpose.msra.mxu0 0.0
    %6009 = vmatprep.subr.mxu0 0.0
    %6010 = vmatpush1.xpose.msra.mxu0 0.0
    %6011 = vmatprep.subr.mxu0 0.0
    %6012 = vmatpush1.xpose.msra.mxu0 0.0
    %6013 = vmatprep.mubr.f32.mxu0 %v5942
    %6014 = vmatmul.mubr.f32.gmra.mrb[0].mxu0 %v5941
    %v6015 = vpop.f32.mrb[0].mxu0
    %v6016 = vadd.f32 0.0, %v6015
    %v6017 = vpop.f32.mrb[0].mxu0
    %6018 = vmatprep.mubr.f32.mxu0 %v5944
    %6019 = vmatmul.mubr.f32.gmra.mrb[0].mxu0 %v5943
    %v6020 = vpop.f32.mrb[0].mxu0
    %v6021 = vadd.f32 0.0, %v6020
    %v6022 = vpop.f32.mrb[0].mxu0
    %6023 = vdwg.mxu0
    %6024 = vmatprep.subr.mxu0 %v29
    %6025 = vmatpush1.xpose.msra.mxu0 %v28
    %6026 = vmatprep.subr.mxu0 0.0
    %6027 = vmatpush1.xpose.msra.mxu0 0.0
    %6028 = vmatprep.subr.mxu0 0.0
    %6029 = vmatpush1.xpose.msra.mxu0 0.0
    %6030 = vmatprep.subr.mxu0 0.0
    %6031 = vmatpush1.xpose.msra.mxu0 0.0
    %6032 = vmatprep.subr.mxu0 0.0
    %6033 = vmatpush1.xpose.msra.mxu0 0.0
    %6034 = vmatprep.subr.mxu0 0.0
    %6035 = vmatpush1.xpose.msra.mxu0 0.0
    %6036 = vmatprep.subr.mxu0 0.0
    %6037 = vmatpush1.xpose.msra.mxu0 0.0
    %6038 = vmatprep.subr.mxu0 0.0
    %6039 = vmatpush1.xpose.msra.mxu0 0.0
    %6040 = vmatprep.subr.mxu0 0.0
    %6041 = vmatpush1.xpose.msra.mxu0 0.0
    %6042 = vmatprep.subr.mxu0 0.0
    %6043 = vmatpush1.xpose.msra.mxu0 0.0
    %6044 = vmatprep.subr.mxu0 0.0
    %6045 = vmatpush1.xpose.msra.mxu0 0.0
    %6046 = vmatprep.subr.mxu0 0.0
    %6047 = vmatpush1.xpose.msra.mxu0 0.0
    %6048 = vmatprep.subr.mxu0 0.0
    %6049 = vmatpush1.xpose.msra.mxu0 0.0
    %6050 = vmatprep.subr.mxu0 0.0
    %6051 = vmatpush1.xpose.msra.mxu0 0.0
    %6052 = vmatprep.subr.mxu0 0.0
    %6053 = vmatpush1.xpose.msra.mxu0 0.0
    %6054 = vmatprep.subr.mxu0 0.0
    %6055 = vmatpush1.xpose.msra.mxu0 0.0
    %6056 = vmatprep.subr.mxu0 0.0
    %6057 = vmatpush1.xpose.msra.mxu0 0.0
    %6058 = vmatprep.subr.mxu0 0.0
    %6059 = vmatpush1.xpose.msra.mxu0 0.0
    %6060 = vmatprep.subr.mxu0 0.0
    %6061 = vmatpush1.xpose.msra.mxu0 0.0
    %6062 = vmatprep.subr.mxu0 0.0
    %6063 = vmatpush1.xpose.msra.mxu0 0.0
    %6064 = vmatprep.subr.mxu0 0.0
    %6065 = vmatpush1.xpose.msra.mxu0 0.0
    %6066 = vmatprep.subr.mxu0 0.0
    %6067 = vmatpush1.xpose.msra.mxu0 0.0
    %6068 = vmatprep.subr.mxu0 0.0
    %6069 = vmatpush1.xpose.msra.mxu0 0.0
    %6070 = vmatprep.subr.mxu0 0.0
    %6071 = vmatpush1.xpose.msra.mxu0 0.0
    %6072 = vmatprep.subr.mxu0 0.0
    %6073 = vmatpush1.xpose.msra.mxu0 0.0
    %6074 = vmatprep.subr.mxu0 0.0
    %6075 = vmatpush1.xpose.msra.mxu0 0.0
    %6076 = vmatprep.subr.mxu0 0.0
    %6077 = vmatpush1.xpose.msra.mxu0 0.0
    %6078 = vmatprep.subr.mxu0 0.0
    %6079 = vmatpush1.xpose.msra.mxu0 0.0
    %6080 = vmatprep.subr.mxu0 0.0
    %6081 = vmatpush1.xpose.msra.mxu0 0.0
    %6082 = vmatprep.subr.mxu0 0.0
    %6083 = vmatpush1.xpose.msra.mxu0 0.0
    %6084 = vmatprep.subr.mxu0 0.0
    %6085 = vmatpush1.xpose.msra.mxu0 0.0
    %6086 = vmatprep.subr.mxu0 0.0
    %6087 = vmatpush1.xpose.msra.mxu0 0.0
    %6088 = vmatprep.mubr.f32.mxu0 %v5946
    %6089 = vmatmul.mubr.f32.gmra.mrb[0].mxu0 %v5945
    %v6090 = vpop.f32.mrb[0].mxu0
    %v6091 = vadd.f32 0.0, %v6090
    %v6092 = vpop.f32.mrb[0].mxu0
    %6093 = vmatprep.mubr.f32.mxu0 %v5948
    %6094 = vmatmul.mubr.f32.gmra.mrb[0].mxu0 %v5947
    %v6095 = vpop.f32.mrb[0].mxu0
    %v6096 = vadd.f32 0.0, %v6095
    %v6097 = vpop.f32.mrb[0].mxu0
    %6098 = vdwg.mxu0
    %v6099 = vmax.f32 %v6016, 1e-30
    %v6100 = vmax.f32 %v6021, 1e-30
    %v6101 = vmax.f32 %v6091, 1e-30
    %v6102 = vmax.f32 %v6096, 1e-30
    %6104 = vset.pattern.permute.xlu0 4
    %6105 = vperm.xlu0 %6104, %v6099
    %v6106 = vpop.permute.xlu0 %6105
    %6109 = vset.pattern.permute.xlu0 4
    %6110 = vperm.xlu0 %6109, %v6100
    %v6111 = vpop.permute.xlu0 %6110
    %6114 = vset.pattern.permute.xlu0 4
    %6115 = vperm.xlu0 %6114, %v6101
    %v6116 = vpop.permute.xlu0 %6115
    %6119 = vset.pattern.permute.xlu0 4
    %6120 = vperm.xlu0 %6119, %v6102
    %v6121 = vpop.permute.xlu0 %6120
    %v6123 = vrcp.pop %v6106
    %v6124 = vmul.f32 %v6016, %v6123
    %v6125 = vrcp.pop %v6111
    %v6126 = vmul.f32 %v6021, %v6125
    %v6127 = vrcp.pop %v6116
    %v6128 = vmul.f32 %v6091, %v6127
    %v6129 = vrcp.pop %v6121
    %v6130 = vmul.f32 %v6096, %v6129
    %6132 = vset.pattern.permute.xlu0 0
    %6133 = vperm.xlu0 %6132, %v6124
    %v6134 = vpop.permute.xlu0 %6133
    %6137 = vset.pattern.permute.xlu0 0
    %6138 = vperm.xlu0 %6137, %v6126
    %v6139 = vpop.permute.xlu0 %6138
    %6142 = vset.pattern.permute.xlu0 0
    %6143 = vperm.xlu0 %6142, %v6128
    %v6144 = vpop.permute.xlu0 %6143
    %6147 = vset.pattern.permute.xlu0 0
    %6148 = vperm.xlu0 %6147, %v6130
    %v6149 = vpop.permute.xlu0 %6148
    %v6151 = vsub.f32 %v3634, %v6134
    %v6152 = vsub.f32 %v3638, %v6134
    %v6153 = vsub.f32 %v3634, %v6139
    %v6154 = vsub.f32 %v3638, %v6139
    %v6155 = vsub.f32 %v3642, %v6144
    %v6156 = vsub.f32 %v3646, %v6144
    %v6157 = vsub.f32 %v3642, %v6149
    %v6158 = vsub.f32 %v3646, %v6149
    %v6159 = vmul.f32 %v6151, %v6151
    %v6160 = vmul.f32 %v6152, %v6152
    %v6161 = vmul.f32 %v6153, %v6153
    %v6162 = vmul.f32 %v6154, %v6154
    %v6163 = vmul.f32 %v6155, %v6155
    %v6164 = vmul.f32 %v6156, %v6156
    %v6165 = vmul.f32 %v6157, %v6157
    %v6166 = vmul.f32 %v6158, %v6158
    %v6167 = vadd.f32 %v6159, 1e-12
    %v6168 = vadd.f32 %v6160, 1e-12
    %v6169 = vadd.f32 %v6161, 1e-12
    %v6170 = vadd.f32 %v6162, 1e-12
    %v6171 = vadd.f32 %v6163, 1e-12
    %v6172 = vadd.f32 %v6164, 1e-12
    %v6173 = vadd.f32 %v6165, 1e-12
    %v6174 = vadd.f32 %v6166, 1e-12
    %6175 = vset.pattern.permute.xlu0 1
    %6176 = vperm.xlu0 %6175, %v6124
    %v6177 = vpop.permute.xlu0 %6176
    %6179 = vset.pattern.permute.xlu0 1
    %6180 = vperm.xlu0 %6179, %v6126
    %v6181 = vpop.permute.xlu0 %6180
    %6183 = vset.pattern.permute.xlu0 1
    %6184 = vperm.xlu0 %6183, %v6128
    %v6185 = vpop.permute.xlu0 %6184
    %6187 = vset.pattern.permute.xlu0 1
    %6188 = vperm.xlu0 %6187, %v6130
    %v6189 = vpop.permute.xlu0 %6188
    %v6191 = vsub.f32 %v3694, %v6177
    %v6192 = vsub.f32 %v3698, %v6177
    %v6193 = vsub.f32 %v3694, %v6181
    %v6194 = vsub.f32 %v3698, %v6181
    %v6195 = vsub.f32 %v3702, %v6185
    %v6196 = vsub.f32 %v3706, %v6185
    %v6197 = vsub.f32 %v3702, %v6189
    %v6198 = vsub.f32 %v3706, %v6189
    %v6199 = vmul.f32 %v6191, %v6191
    %v6200 = vmul.f32 %v6192, %v6192
    %v6201 = vmul.f32 %v6193, %v6193
    %v6202 = vmul.f32 %v6194, %v6194
    %v6203 = vmul.f32 %v6195, %v6195
    %v6204 = vmul.f32 %v6196, %v6196
    %v6205 = vmul.f32 %v6197, %v6197
    %v6206 = vmul.f32 %v6198, %v6198
    %v6207 = vadd.f32 %v6167, %v6199
    %v6208 = vadd.f32 %v6168, %v6200
    %v6209 = vadd.f32 %v6169, %v6201
    %v6210 = vadd.f32 %v6170, %v6202
    %v6211 = vadd.f32 %v6171, %v6203
    %v6212 = vadd.f32 %v6172, %v6204
    %v6213 = vadd.f32 %v6173, %v6205
    %v6214 = vadd.f32 %v6174, %v6206
    %6215 = vset.pattern.permute.xlu0 2
    %6216 = vperm.xlu0 %6215, %v6124
    %v6217 = vpop.permute.xlu0 %6216
    %6219 = vset.pattern.permute.xlu0 2
    %6220 = vperm.xlu0 %6219, %v6126
    %v6221 = vpop.permute.xlu0 %6220
    %6223 = vset.pattern.permute.xlu0 2
    %6224 = vperm.xlu0 %6223, %v6128
    %v6225 = vpop.permute.xlu0 %6224
    %6227 = vset.pattern.permute.xlu0 2
    %6228 = vperm.xlu0 %6227, %v6130
    %v6229 = vpop.permute.xlu0 %6228
    %v6231 = vsub.f32 %v3750, %v6217
    %v6232 = vsub.f32 %v3754, %v6217
    %v6233 = vsub.f32 %v3750, %v6221
    %v6234 = vsub.f32 %v3754, %v6221
    %v6235 = vsub.f32 %v3758, %v6225
    %v6236 = vsub.f32 %v3762, %v6225
    %v6237 = vsub.f32 %v3758, %v6229
    %v6238 = vsub.f32 %v3762, %v6229
    %v6239 = vmul.f32 %v6231, %v6231
    %v6240 = vmul.f32 %v6232, %v6232
    %v6241 = vmul.f32 %v6233, %v6233
    %v6242 = vmul.f32 %v6234, %v6234
    %v6243 = vmul.f32 %v6235, %v6235
    %v6244 = vmul.f32 %v6236, %v6236
    %v6245 = vmul.f32 %v6237, %v6237
    %v6246 = vmul.f32 %v6238, %v6238
    %v6247 = vadd.f32 %v6207, %v6239
    %v6248 = vadd.f32 %v6208, %v6240
    %v6249 = vadd.f32 %v6209, %v6241
    %v6250 = vadd.f32 %v6210, %v6242
    %v6251 = vadd.f32 %v6211, %v6243
    %v6252 = vadd.f32 %v6212, %v6244
    %v6253 = vadd.f32 %v6213, %v6245
    %v6254 = vadd.f32 %v6214, %v6246
    %6255 = vset.pattern.permute.xlu0 3
    %6256 = vperm.xlu0 %6255, %v6124
    %v6257 = vpop.permute.xlu0 %6256
    %6259 = vset.pattern.permute.xlu0 3
    %6260 = vperm.xlu0 %6259, %v6126
    %v6261 = vpop.permute.xlu0 %6260
    %6263 = vset.pattern.permute.xlu0 3
    %6264 = vperm.xlu0 %6263, %v6128
    %v6265 = vpop.permute.xlu0 %6264
    %6267 = vset.pattern.permute.xlu0 3
    %6268 = vperm.xlu0 %6267, %v6130
    %v6269 = vpop.permute.xlu0 %6268
    %v6271 = vsub.f32 %v3806, %v6257
    %v6272 = vsub.f32 %v3810, %v6257
    %v6273 = vsub.f32 %v3806, %v6261
    %v6274 = vsub.f32 %v3810, %v6261
    %v6275 = vsub.f32 %v3814, %v6265
    %v6276 = vsub.f32 %v3818, %v6265
    %v6277 = vsub.f32 %v3814, %v6269
    %v6278 = vsub.f32 %v3818, %v6269
    %v6279 = vmul.f32 %v6271, %v6271
    %v6280 = vmul.f32 %v6272, %v6272
    %v6281 = vmul.f32 %v6273, %v6273
    %v6282 = vmul.f32 %v6274, %v6274
    %v6283 = vmul.f32 %v6275, %v6275
    %v6284 = vmul.f32 %v6276, %v6276
    %v6285 = vmul.f32 %v6277, %v6277
    %v6286 = vmul.f32 %v6278, %v6278
    %v6287 = vadd.f32 %v6247, %v6279
    %v6288 = vadd.f32 %v6248, %v6280
    %v6289 = vadd.f32 %v6249, %v6281
    %v6290 = vadd.f32 %v6250, %v6282
    %v6291 = vadd.f32 %v6251, %v6283
    %v6292 = vadd.f32 %v6252, %v6284
    %v6293 = vadd.f32 %v6253, %v6285
    %v6294 = vadd.f32 %v6254, %v6286
    %v6295 = vrcp.pop %v6287
    %v6296 = vrcp.pop %v6288
    %v6297 = vrcp.pop %v6289
    %v6298 = vrcp.pop %v6290
    %v6299 = vrcp.pop %v6291
    %v6300 = vrcp.pop %v6292
    %v6301 = vrcp.pop %v6293
    %v6302 = vrcp.pop %v6294
    %v6303 = vsel %vm501, %v6297, 0.0
    %v6304 = vadd.f32 %v6295, %v6303
    %v6305 = vrot.slane %v6304, 4
    %v6306 = vadd.f32 %v6304, %v6305
    %v6307 = vrot.slane %v6306, 2
    %v6308 = vadd.f32 %v6306, %v6307
    %v6309 = vrot.slane %v6308, 1
    %v6310 = vadd.f32 %v6308, %v6309
    %v6311 = vsel %vm501, %v6298, 0.0
    %v6312 = vadd.f32 %v6296, %v6311
    %v6313 = vrot.slane %v6312, 4
    %v6314 = vadd.f32 %v6312, %v6313
    %v6315 = vrot.slane %v6314, 2
    %v6316 = vadd.f32 %v6314, %v6315
    %v6317 = vrot.slane %v6316, 1
    %v6318 = vadd.f32 %v6316, %v6317
    %v6319 = vsel %vm501, %v6301, 0.0
    %v6320 = vadd.f32 %v6299, %v6319
    %v6321 = vrot.slane %v6320, 4
    %v6322 = vadd.f32 %v6320, %v6321
    %v6323 = vrot.slane %v6322, 2
    %v6324 = vadd.f32 %v6322, %v6323
    %v6325 = vrot.slane %v6324, 1
    %v6326 = vadd.f32 %v6324, %v6325
    %v6327 = vsel %vm501, %v6302, 0.0
    %v6328 = vadd.f32 %v6300, %v6327
    %v6329 = vrot.slane %v6328, 4
    %v6330 = vadd.f32 %v6328, %v6329
    %v6331 = vrot.slane %v6330, 2
    %v6332 = vadd.f32 %v6330, %v6331
    %v6333 = vrot.slane %v6332, 1
    %v6334 = vadd.f32 %v6332, %v6333
    %v6335 = vrcp.pop %v6310
    %v6336 = vrcp.pop %v6318
    %v6337 = vrcp.pop %v6326
    %v6338 = vrcp.pop %v6334
    %v6339 = vmul.f32 %v6295, %v6335
    %v6340 = vmul.f32 %v6296, %v6336
    %v6341 = vmul.f32 %v6297, %v6335
    %v6342 = vmul.f32 %v6298, %v6336
    %v6343 = vmul.f32 %v6299, %v6337
    %v6344 = vmul.f32 %v6300, %v6338
    %v6345 = vmul.f32 %v6301, %v6337
    %v6346 = vmul.f32 %v6302, %v6338
    %v6347 = vmul.f32 %v6339, %v6339
    %v6348 = vmul.f32 %v6340, %v6340
    %v6349 = vmul.f32 %v6341, %v6341
    %v6350 = vmul.f32 %v6342, %v6342
    %v6351 = vmul.f32 %v6343, %v6343
    %v6352 = vmul.f32 %v6344, %v6344
    %v6353 = vmul.f32 %v6345, %v6345
    %v6354 = vmul.f32 %v6346, %v6346
    %6355 = vmatprep.subr.mxu0 %v27
    %6356 = vmatpush1.xpose.msra.mxu0 %v26
    %6357 = vmatprep.subr.mxu0 0.0
    %6358 = vmatpush1.xpose.msra.mxu0 0.0
    %6359 = vmatprep.subr.mxu0 0.0
    %6360 = vmatpush1.xpose.msra.mxu0 0.0
    %6361 = vmatprep.subr.mxu0 0.0
    %6362 = vmatpush1.xpose.msra.mxu0 0.0
    %6363 = vmatprep.subr.mxu0 0.0
    %6364 = vmatpush1.xpose.msra.mxu0 0.0
    %6365 = vmatprep.subr.mxu0 0.0
    %6366 = vmatpush1.xpose.msra.mxu0 0.0
    %6367 = vmatprep.subr.mxu0 0.0
    %6368 = vmatpush1.xpose.msra.mxu0 0.0
    %6369 = vmatprep.subr.mxu0 0.0
    %6370 = vmatpush1.xpose.msra.mxu0 0.0
    %6371 = vmatprep.subr.mxu0 0.0
    %6372 = vmatpush1.xpose.msra.mxu0 0.0
    %6373 = vmatprep.subr.mxu0 0.0
    %6374 = vmatpush1.xpose.msra.mxu0 0.0
    %6375 = vmatprep.subr.mxu0 0.0
    %6376 = vmatpush1.xpose.msra.mxu0 0.0
    %6377 = vmatprep.subr.mxu0 0.0
    %6378 = vmatpush1.xpose.msra.mxu0 0.0
    %6379 = vmatprep.subr.mxu0 0.0
    %6380 = vmatpush1.xpose.msra.mxu0 0.0
    %6381 = vmatprep.subr.mxu0 0.0
    %6382 = vmatpush1.xpose.msra.mxu0 0.0
    %6383 = vmatprep.subr.mxu0 0.0
    %6384 = vmatpush1.xpose.msra.mxu0 0.0
    %6385 = vmatprep.subr.mxu0 0.0
    %6386 = vmatpush1.xpose.msra.mxu0 0.0
    %6387 = vmatprep.subr.mxu0 0.0
    %6388 = vmatpush1.xpose.msra.mxu0 0.0
    %6389 = vmatprep.subr.mxu0 0.0
    %6390 = vmatpush1.xpose.msra.mxu0 0.0
    %6391 = vmatprep.subr.mxu0 0.0
    %6392 = vmatpush1.xpose.msra.mxu0 0.0
    %6393 = vmatprep.subr.mxu0 0.0
    %6394 = vmatpush1.xpose.msra.mxu0 0.0
    %6395 = vmatprep.subr.mxu0 0.0
    %6396 = vmatpush1.xpose.msra.mxu0 0.0
    %6397 = vmatprep.subr.mxu0 0.0
    %6398 = vmatpush1.xpose.msra.mxu0 0.0
    %6399 = vmatprep.subr.mxu0 0.0
    %6400 = vmatpush1.xpose.msra.mxu0 0.0
    %6401 = vmatprep.subr.mxu0 0.0
    %6402 = vmatpush1.xpose.msra.mxu0 0.0
    %6403 = vmatprep.subr.mxu0 0.0
    %6404 = vmatpush1.xpose.msra.mxu0 0.0
    %6405 = vmatprep.subr.mxu0 0.0
    %6406 = vmatpush1.xpose.msra.mxu0 0.0
    %6407 = vmatprep.subr.mxu0 0.0
    %6408 = vmatpush1.xpose.msra.mxu0 0.0
    %6409 = vmatprep.subr.mxu0 0.0
    %6410 = vmatpush1.xpose.msra.mxu0 0.0
    %6411 = vmatprep.subr.mxu0 0.0
    %6412 = vmatpush1.xpose.msra.mxu0 0.0
    %6413 = vmatprep.subr.mxu0 0.0
    %6414 = vmatpush1.xpose.msra.mxu0 0.0
    %6415 = vmatprep.subr.mxu0 0.0
    %6416 = vmatpush1.xpose.msra.mxu0 0.0
    %6417 = vmatprep.subr.mxu0 0.0
    %6418 = vmatpush1.xpose.msra.mxu0 0.0
    %6419 = vmatprep.mubr.f32.mxu0 %v6348
    %6420 = vmatmul.mubr.f32.gmra.mrb[0].mxu0 %v6347
    %v6421 = vpop.f32.mrb[0].mxu0
    %v6422 = vadd.f32 0.0, %v6421
    %v6423 = vpop.f32.mrb[0].mxu0
    %6424 = vmatprep.mubr.f32.mxu0 %v6350
    %6425 = vmatmul.mubr.f32.gmra.mrb[0].mxu0 %v6349
    %v6426 = vpop.f32.mrb[0].mxu0
    %v6427 = vadd.f32 0.0, %v6426
    %v6428 = vpop.f32.mrb[0].mxu0
    %6429 = vdwg.mxu0
    %6430 = vmatprep.subr.mxu0 %v29
    %6431 = vmatpush1.xpose.msra.mxu0 %v28
    %6432 = vmatprep.subr.mxu0 0.0
    %6433 = vmatpush1.xpose.msra.mxu0 0.0
    %6434 = vmatprep.subr.mxu0 0.0
    %6435 = vmatpush1.xpose.msra.mxu0 0.0
    %6436 = vmatprep.subr.mxu0 0.0
    %6437 = vmatpush1.xpose.msra.mxu0 0.0
    %6438 = vmatprep.subr.mxu0 0.0
    %6439 = vmatpush1.xpose.msra.mxu0 0.0
    %6440 = vmatprep.subr.mxu0 0.0
    %6441 = vmatpush1.xpose.msra.mxu0 0.0
    %6442 = vmatprep.subr.mxu0 0.0
    %6443 = vmatpush1.xpose.msra.mxu0 0.0
    %6444 = vmatprep.subr.mxu0 0.0
    %6445 = vmatpush1.xpose.msra.mxu0 0.0
    %6446 = vmatprep.subr.mxu0 0.0
    %6447 = vmatpush1.xpose.msra.mxu0 0.0
    %6448 = vmatprep.subr.mxu0 0.0
    %6449 = vmatpush1.xpose.msra.mxu0 0.0
    %6450 = vmatprep.subr.mxu0 0.0
    %6451 = vmatpush1.xpose.msra.mxu0 0.0
    %6452 = vmatprep.subr.mxu0 0.0
    %6453 = vmatpush1.xpose.msra.mxu0 0.0
    %6454 = vmatprep.subr.mxu0 0.0
    %6455 = vmatpush1.xpose.msra.mxu0 0.0
    %6456 = vmatprep.subr.mxu0 0.0
    %6457 = vmatpush1.xpose.msra.mxu0 0.0
    %6458 = vmatprep.subr.mxu0 0.0
    %6459 = vmatpush1.xpose.msra.mxu0 0.0
    %6460 = vmatprep.subr.mxu0 0.0
    %6461 = vmatpush1.xpose.msra.mxu0 0.0
    %6462 = vmatprep.subr.mxu0 0.0
    %6463 = vmatpush1.xpose.msra.mxu0 0.0
    %6464 = vmatprep.subr.mxu0 0.0
    %6465 = vmatpush1.xpose.msra.mxu0 0.0
    %6466 = vmatprep.subr.mxu0 0.0
    %6467 = vmatpush1.xpose.msra.mxu0 0.0
    %6468 = vmatprep.subr.mxu0 0.0
    %6469 = vmatpush1.xpose.msra.mxu0 0.0
    %6470 = vmatprep.subr.mxu0 0.0
    %6471 = vmatpush1.xpose.msra.mxu0 0.0
    %6472 = vmatprep.subr.mxu0 0.0
    %6473 = vmatpush1.xpose.msra.mxu0 0.0
    %6474 = vmatprep.subr.mxu0 0.0
    %6475 = vmatpush1.xpose.msra.mxu0 0.0
    %6476 = vmatprep.subr.mxu0 0.0
    %6477 = vmatpush1.xpose.msra.mxu0 0.0
    %6478 = vmatprep.subr.mxu0 0.0
    %6479 = vmatpush1.xpose.msra.mxu0 0.0
    %6480 = vmatprep.subr.mxu0 0.0
    %6481 = vmatpush1.xpose.msra.mxu0 0.0
    %6482 = vmatprep.subr.mxu0 0.0
    %6483 = vmatpush1.xpose.msra.mxu0 0.0
    %6484 = vmatprep.subr.mxu0 0.0
    %6485 = vmatpush1.xpose.msra.mxu0 0.0
    %6486 = vmatprep.subr.mxu0 0.0
    %6487 = vmatpush1.xpose.msra.mxu0 0.0
    %6488 = vmatprep.subr.mxu0 0.0
    %6489 = vmatpush1.xpose.msra.mxu0 0.0
    %6490 = vmatprep.subr.mxu0 0.0
    %6491 = vmatpush1.xpose.msra.mxu0 0.0
    %6492 = vmatprep.subr.mxu0 0.0
    %6493 = vmatpush1.xpose.msra.mxu0 0.0
    %6494 = vmatprep.mubr.f32.mxu0 %v6352
    %6495 = vmatmul.mubr.f32.gmra.mrb[0].mxu0 %v6351
    %v6496 = vpop.f32.mrb[0].mxu0
    %v6497 = vadd.f32 0.0, %v6496
    %v6498 = vpop.f32.mrb[0].mxu0
    %6499 = vmatprep.mubr.f32.mxu0 %v6354
    %6500 = vmatmul.mubr.f32.gmra.mrb[0].mxu0 %v6353
    %v6501 = vpop.f32.mrb[0].mxu0
    %v6502 = vadd.f32 0.0, %v6501
    %v6503 = vpop.f32.mrb[0].mxu0
    %6504 = vdwg.mxu0
    %v6505 = vmax.f32 %v6422, 1e-30
    %v6506 = vmax.f32 %v6427, 1e-30
    %v6507 = vmax.f32 %v6497, 1e-30
    %v6508 = vmax.f32 %v6502, 1e-30
    %6510 = vset.pattern.permute.xlu0 4
    %6511 = vperm.xlu0 %6510, %v6505
    %v6512 = vpop.permute.xlu0 %6511
    %6515 = vset.pattern.permute.xlu0 4
    %6516 = vperm.xlu0 %6515, %v6506
    %v6517 = vpop.permute.xlu0 %6516
    %6520 = vset.pattern.permute.xlu0 4
    %6521 = vperm.xlu0 %6520, %v6507
    %v6522 = vpop.permute.xlu0 %6521
    %6525 = vset.pattern.permute.xlu0 4
    %6526 = vperm.xlu0 %6525, %v6508
    %v6527 = vpop.permute.xlu0 %6526
    %v6529 = vrcp.pop %v6512
    %v6530 = vmul.f32 %v6422, %v6529
    %v6531 = vrcp.pop %v6517
    %v6532 = vmul.f32 %v6427, %v6531
    %v6533 = vrcp.pop %v6522
    %v6534 = vmul.f32 %v6497, %v6533
    %v6535 = vrcp.pop %v6527
    %v6536 = vmul.f32 %v6502, %v6535
    %6538 = vset.pattern.permute.xlu0 0
    %6539 = vperm.xlu0 %6538, %v6530
    %v6540 = vpop.permute.xlu0 %6539
    %6543 = vset.pattern.permute.xlu0 0
    %6544 = vperm.xlu0 %6543, %v6532
    %v6545 = vpop.permute.xlu0 %6544
    %6548 = vset.pattern.permute.xlu0 0
    %6549 = vperm.xlu0 %6548, %v6534
    %v6550 = vpop.permute.xlu0 %6549
    %6553 = vset.pattern.permute.xlu0 0
    %6554 = vperm.xlu0 %6553, %v6536
    %v6555 = vpop.permute.xlu0 %6554
    %v6557 = vsub.f32 %v3634, %v6540
    %v6558 = vsub.f32 %v3638, %v6540
    %v6559 = vsub.f32 %v3634, %v6545
    %v6560 = vsub.f32 %v3638, %v6545
    %v6561 = vsub.f32 %v3642, %v6550
    %v6562 = vsub.f32 %v3646, %v6550
    %v6563 = vsub.f32 %v3642, %v6555
    %v6564 = vsub.f32 %v3646, %v6555
    %v6565 = vmul.f32 %v6557, %v6557
    %v6566 = vmul.f32 %v6558, %v6558
    %v6567 = vmul.f32 %v6559, %v6559
    %v6568 = vmul.f32 %v6560, %v6560
    %v6569 = vmul.f32 %v6561, %v6561
    %v6570 = vmul.f32 %v6562, %v6562
    %v6571 = vmul.f32 %v6563, %v6563
    %v6572 = vmul.f32 %v6564, %v6564
    %v6573 = vadd.f32 %v6565, 1e-12
    %v6574 = vadd.f32 %v6566, 1e-12
    %v6575 = vadd.f32 %v6567, 1e-12
    %v6576 = vadd.f32 %v6568, 1e-12
    %v6577 = vadd.f32 %v6569, 1e-12
    %v6578 = vadd.f32 %v6570, 1e-12
    %v6579 = vadd.f32 %v6571, 1e-12
    %v6580 = vadd.f32 %v6572, 1e-12
    %6581 = vset.pattern.permute.xlu0 1
    %6582 = vperm.xlu0 %6581, %v6530
    %v6583 = vpop.permute.xlu0 %6582
    %6585 = vset.pattern.permute.xlu0 1
    %6586 = vperm.xlu0 %6585, %v6532
    %v6587 = vpop.permute.xlu0 %6586
    %6589 = vset.pattern.permute.xlu0 1
    %6590 = vperm.xlu0 %6589, %v6534
    %v6591 = vpop.permute.xlu0 %6590
    %6593 = vset.pattern.permute.xlu0 1
    %6594 = vperm.xlu0 %6593, %v6536
    %v6595 = vpop.permute.xlu0 %6594
    %v6597 = vsub.f32 %v3694, %v6583
    %v6598 = vsub.f32 %v3698, %v6583
    %v6599 = vsub.f32 %v3694, %v6587
    %v6600 = vsub.f32 %v3698, %v6587
    %v6601 = vsub.f32 %v3702, %v6591
    %v6602 = vsub.f32 %v3706, %v6591
    %v6603 = vsub.f32 %v3702, %v6595
    %v6604 = vsub.f32 %v3706, %v6595
    %v6605 = vmul.f32 %v6597, %v6597
    %v6606 = vmul.f32 %v6598, %v6598
    %v6607 = vmul.f32 %v6599, %v6599
    %v6608 = vmul.f32 %v6600, %v6600
    %v6609 = vmul.f32 %v6601, %v6601
    %v6610 = vmul.f32 %v6602, %v6602
    %v6611 = vmul.f32 %v6603, %v6603
    %v6612 = vmul.f32 %v6604, %v6604
    %v6613 = vadd.f32 %v6573, %v6605
    %v6614 = vadd.f32 %v6574, %v6606
    %v6615 = vadd.f32 %v6575, %v6607
    %v6616 = vadd.f32 %v6576, %v6608
    %v6617 = vadd.f32 %v6577, %v6609
    %v6618 = vadd.f32 %v6578, %v6610
    %v6619 = vadd.f32 %v6579, %v6611
    %v6620 = vadd.f32 %v6580, %v6612
    %6621 = vset.pattern.permute.xlu0 2
    %6622 = vperm.xlu0 %6621, %v6530
    %v6623 = vpop.permute.xlu0 %6622
    %6625 = vset.pattern.permute.xlu0 2
    %6626 = vperm.xlu0 %6625, %v6532
    %v6627 = vpop.permute.xlu0 %6626
    %6629 = vset.pattern.permute.xlu0 2
    %6630 = vperm.xlu0 %6629, %v6534
    %v6631 = vpop.permute.xlu0 %6630
    %6633 = vset.pattern.permute.xlu0 2
    %6634 = vperm.xlu0 %6633, %v6536
    %v6635 = vpop.permute.xlu0 %6634
    %v6637 = vsub.f32 %v3750, %v6623
    %v6638 = vsub.f32 %v3754, %v6623
    %v6639 = vsub.f32 %v3750, %v6627
    %v6640 = vsub.f32 %v3754, %v6627
    %v6641 = vsub.f32 %v3758, %v6631
    %v6642 = vsub.f32 %v3762, %v6631
    %v6643 = vsub.f32 %v3758, %v6635
    %v6644 = vsub.f32 %v3762, %v6635
    %v6645 = vmul.f32 %v6637, %v6637
    %v6646 = vmul.f32 %v6638, %v6638
    %v6647 = vmul.f32 %v6639, %v6639
    %v6648 = vmul.f32 %v6640, %v6640
    %v6649 = vmul.f32 %v6641, %v6641
    %v6650 = vmul.f32 %v6642, %v6642
    %v6651 = vmul.f32 %v6643, %v6643
    %v6652 = vmul.f32 %v6644, %v6644
    %v6653 = vadd.f32 %v6613, %v6645
    %v6654 = vadd.f32 %v6614, %v6646
    %v6655 = vadd.f32 %v6615, %v6647
    %v6656 = vadd.f32 %v6616, %v6648
    %v6657 = vadd.f32 %v6617, %v6649
    %v6658 = vadd.f32 %v6618, %v6650
    %v6659 = vadd.f32 %v6619, %v6651
    %v6660 = vadd.f32 %v6620, %v6652
    %6661 = vset.pattern.permute.xlu0 3
    %6662 = vperm.xlu0 %6661, %v6530
    %v6663 = vpop.permute.xlu0 %6662
    %6665 = vset.pattern.permute.xlu0 3
    %6666 = vperm.xlu0 %6665, %v6532
    %v6667 = vpop.permute.xlu0 %6666
    %6669 = vset.pattern.permute.xlu0 3
    %6670 = vperm.xlu0 %6669, %v6534
    %v6671 = vpop.permute.xlu0 %6670
    %6673 = vset.pattern.permute.xlu0 3
    %6674 = vperm.xlu0 %6673, %v6536
    %v6675 = vpop.permute.xlu0 %6674
    %v6677 = vsub.f32 %v3806, %v6663
    %v6678 = vsub.f32 %v3810, %v6663
    %v6679 = vsub.f32 %v3806, %v6667
    %v6680 = vsub.f32 %v3810, %v6667
    %v6681 = vsub.f32 %v3814, %v6671
    %v6682 = vsub.f32 %v3818, %v6671
    %v6683 = vsub.f32 %v3814, %v6675
    %v6684 = vsub.f32 %v3818, %v6675
    %v6685 = vmul.f32 %v6677, %v6677
    %v6686 = vmul.f32 %v6678, %v6678
    %v6687 = vmul.f32 %v6679, %v6679
    %v6688 = vmul.f32 %v6680, %v6680
    %v6689 = vmul.f32 %v6681, %v6681
    %v6690 = vmul.f32 %v6682, %v6682
    %v6691 = vmul.f32 %v6683, %v6683
    %v6692 = vmul.f32 %v6684, %v6684
    %v6693 = vadd.f32 %v6653, %v6685
    %v6694 = vadd.f32 %v6654, %v6686
    %v6695 = vadd.f32 %v6655, %v6687
    %v6696 = vadd.f32 %v6656, %v6688
    %v6697 = vadd.f32 %v6657, %v6689
    %v6698 = vadd.f32 %v6658, %v6690
    %v6699 = vadd.f32 %v6659, %v6691
    %v6700 = vadd.f32 %v6660, %v6692
    %v6701 = vrcp.pop %v6693
    %v6702 = vrcp.pop %v6694
    %v6703 = vrcp.pop %v6695
    %v6704 = vrcp.pop %v6696
    %v6705 = vrcp.pop %v6697
    %v6706 = vrcp.pop %v6698
    %v6707 = vrcp.pop %v6699
    %v6708 = vrcp.pop %v6700
    %v6709 = vsel %vm501, %v6703, 0.0
    %v6710 = vadd.f32 %v6701, %v6709
    %v6711 = vrot.slane %v6710, 4
    %v6712 = vadd.f32 %v6710, %v6711
    %v6713 = vrot.slane %v6712, 2
    %v6714 = vadd.f32 %v6712, %v6713
    %v6715 = vrot.slane %v6714, 1
    %v6716 = vadd.f32 %v6714, %v6715
    %v6717 = vsel %vm501, %v6704, 0.0
    %v6718 = vadd.f32 %v6702, %v6717
    %v6719 = vrot.slane %v6718, 4
    %v6720 = vadd.f32 %v6718, %v6719
    %v6721 = vrot.slane %v6720, 2
    %v6722 = vadd.f32 %v6720, %v6721
    %v6723 = vrot.slane %v6722, 1
    %v6724 = vadd.f32 %v6722, %v6723
    %v6725 = vsel %vm501, %v6707, 0.0
    %v6726 = vadd.f32 %v6705, %v6725
    %v6727 = vrot.slane %v6726, 4
    %v6728 = vadd.f32 %v6726, %v6727
    %v6729 = vrot.slane %v6728, 2
    %v6730 = vadd.f32 %v6728, %v6729
    %v6731 = vrot.slane %v6730, 1
    %v6732 = vadd.f32 %v6730, %v6731
    %v6733 = vsel %vm501, %v6708, 0.0
    %v6734 = vadd.f32 %v6706, %v6733
    %v6735 = vrot.slane %v6734, 4
    %v6736 = vadd.f32 %v6734, %v6735
    %v6737 = vrot.slane %v6736, 2
    %v6738 = vadd.f32 %v6736, %v6737
    %v6739 = vrot.slane %v6738, 1
    %v6740 = vadd.f32 %v6738, %v6739
    %v6741 = vrcp.pop %v6716
    %v6742 = vrcp.pop %v6724
    %v6743 = vrcp.pop %v6732
    %v6744 = vrcp.pop %v6740
    %v6745 = vmul.f32 %v6701, %v6741
    %v6746 = vmul.f32 %v6702, %v6742
    %v6747 = vmul.f32 %v6703, %v6741
    %v6748 = vmul.f32 %v6704, %v6742
    %v6749 = vmul.f32 %v6705, %v6743
    %v6750 = vmul.f32 %v6706, %v6744
    %v6751 = vmul.f32 %v6707, %v6743
    %v6752 = vmul.f32 %v6708, %v6744
    %v6753 = vsub.f32 %v5933, %v6339
    %v6754 = vsub.f32 %v5934, %v6340
    %v6755 = vsub.f32 %v5935, %v6341
    %v6756 = vsub.f32 %v5936, %v6342
    %v6757 = vsub.f32 %v5937, %v6343
    %v6758 = vsub.f32 %v5938, %v6344
    %v6759 = vsub.f32 %v5939, %v6345
    %v6760 = vsub.f32 %v5940, %v6346
    %v6761 = vmul.f32 %v6753, %v6753
    %v6762 = vmul.f32 %v6754, %v6754
    %v6763 = vmul.f32 %v6755, %v6755
    %v6764 = vmul.f32 %v6756, %v6756
    %v6765 = vmul.f32 %v6757, %v6757
    %v6766 = vmul.f32 %v6758, %v6758
    %v6767 = vmul.f32 %v6759, %v6759
    %v6768 = vmul.f32 %v6760, %v6760
    %v6769 = vadd.f32 %v6761, %v6762
    %v6770 = vsel %vm501, %v6763, 0.0
    %v6771 = vadd.f32 %v6769, %v6770
    %v6772 = vsel %vm501, %v6764, 0.0
    %v6773 = vadd.f32 %v6771, %v6772
    %v6774 = vadd.f32 %v6773, %v6765
    %v6775 = vadd.f32 %v6774, %v6766
    %v6776 = vsel %vm501, %v6767, 0.0
    %v6777 = vadd.f32 %v6775, %v6776
    %v6778 = vsel %vm501, %v6768, 0.0
    %v6779 = vadd.f32 %v6777, %v6778
    %6780 = vadd.xlane.f32.xlu0 %v6779
    %v6781 = vpop.xlane.xlu0 %6780
    %v6782 = vrot.slane %v6781, 4
    %v6783 = vadd.f32 %v6781, %v6782
    %v6784 = vrot.slane %v6783, 2
    %v6785 = vadd.f32 %v6783, %v6784
    %v6786 = vrot.slane %v6785, 1
    %v6787 = vadd.f32 %v6785, %v6786
    %s6788 = vtos %v6787
    %p6789 = scmp.lt.f32.partialorder %s6788, 1e-12
    %s6790 = scalar_select %p66, 1, 0
    %v6791 = vstv %s6790
    %vm6792 = vcmp.eq.s32.totalorder %v6791, 1
    %v6793 = vsel %vm6792, %v49, %v6745
    %v6794 = vsel %vm6792, %v50, %v6746
    %v6795 = vsel %vm6792, %v51, %v6747
    %v6796 = vsel %vm6792, %v52, %v6748
    %v6797 = vsel %vm6792, %v53, %v6749
    %v6798 = vsel %vm6792, %v54, %v6750
    %v6799 = vsel %vm6792, %v55, %v6751
    %v6800 = vsel %vm6792, %v56, %v6752
    %v6801 = vsel %vm6792, %v61, %v6530
    %v6802 = vsel %vm6792, %v62, %v6532
    %v6803 = vsel %vm6792, %v63, %v6534
    %v6804 = vsel %vm6792, %v64, %v6536
    %p6805 = por %p66, %p6789
    %s6806 = sadd.s32 %s40, 8
  $region14: #{tpu_custom_call.1} parent=0 // loop_footer
    _
  $region15: #{tpu_custom_call.1} parent=0 // loop_footer_branch
    %39 = sbr.rel target = $region11
  $region16: #{tpu_custom_call.1} parent=0 // loop_exit
    _
  %6807 = vst [vmem:[%s2] sm:$0xff] %v41
  %6808 = vst [vmem:[%s2 + $0x8] sm:$0xff] %v42
  %6809 = vst [vmem:[%s2 + $0x10] sm:$0x3] %v43
  %6810 = vst [vmem:[%s2 + $0x18] sm:$0x3] %v44
  %6811 = vst [vmem:[%s2 + $0x20] sm:$0xff] %v45
  %6812 = vst [vmem:[%s2 + $0x28] sm:$0xff] %v46
  %6813 = vst [vmem:[%s2 + $0x30] sm:$0x3] %v47
  %6814 = vst [vmem:[%s2 + $0x38] sm:$0x3] %v48
  %vm6815 = vcmask 31744
  %6816 = vst.msk [vmem:[%s3] sm:$0xff] %vm6815, %v57
  %vm6817 = vcmask 25600
  %6818 = vst.msk [vmem:[%s3 + $0x8] sm:$0x3] %vm6817, %v58
  %6819 = vst.msk [vmem:[%s3 + $0x10] sm:$0xff] %vm6815, %v59
  %6820 = vst.msk [vmem:[%s3 + $0x18] sm:$0x3] %vm6817, %v60
  %s6821 = scalar_lea.vmem %s2, 64
  %6822 = vst [vmem:[%s6821] sm:$0xff] %v49
  %6823 = vst [vmem:[%s6821 + $0x8] sm:$0xff] %v50
  %6824 = vst [vmem:[%s6821 + $0x10] sm:$0x3] %v51
  %6825 = vst [vmem:[%s6821 + $0x18] sm:$0x3] %v52
  %6826 = vst [vmem:[%s6821 + $0x20] sm:$0xff] %v53
  %6827 = vst [vmem:[%s6821 + $0x28] sm:$0xff] %v54
  %6828 = vst [vmem:[%s6821 + $0x30] sm:$0x3] %v55
  %6829 = vst [vmem:[%s6821 + $0x38] sm:$0x3] %v56
  %s6830 = scalar_lea.vmem %s3, 32
  %6831 = vst.msk [vmem:[%s6830] sm:$0xff] %vm6815, %v61
  %6832 = vst.msk [vmem:[%s6830 + $0x8] sm:$0x3] %vm6817, %v62
  %6833 = vst.msk [vmem:[%s6830 + $0x10] sm:$0xff] %vm6815, %v63
  %6834 = vst.msk [vmem:[%s6830 + $0x18] sm:$0x3] %vm6817, %v64
  // Predicated region
  $region17: #{tpu_custom_call.1} parent=0 // pred_check
    _
  $region18: #{tpu_custom_call.1} parent=0 // pred_check_branch
    %6836 = sbr.rel (0) target = $region20
  $region19: #{tpu_custom_call.1} parent=0 // pred_region
    _
  $region20: #{tpu_custom_call.1} parent=0 // pred_fallthru
    _
  // Predicated region
  $region21: #{tpu_custom_call.1} parent=0 // pred_check
    _
  $region22: #{tpu_custom_call.1} parent=0 // pred_check_branch
    %6838 = sbr.rel (0) target = $region24
  $region23: #{tpu_custom_call.1} parent=0 // pred_region
    _
  $region24: #{tpu_custom_call.1} parent=0 // pred_fallthru
    _
  // Predicated region
  $region25: #{tpu_custom_call.1} parent=0 // pred_check
    _
  $region26: #{tpu_custom_call.1} parent=0 // pred_check_branch
    %6840 = sbr.rel (0) target = $region28
  $region27: #{tpu_custom_call.1} parent=0 // pred_region
    _
  $region28: #{tpu_custom_call.1} parent=0 // pred_fallthru
    _
  // Predicated region
  $region29: #{tpu_custom_call.1} parent=0 // pred_check
    _
  $region30: #{tpu_custom_call.1} parent=0 // pred_check_branch
    %6842 = sbr.rel (0) target = $region32
  $region31: #{tpu_custom_call.1} parent=0 // pred_region
    _
  $region32: #{tpu_custom_call.1} parent=0 // pred_fallthru
    _

</llo_original>
